<compile_context>
chip_gen: v6e
topology: v6e:2x2x1
jax: 0.10.0
libtpu: 0.0.40
codegen_flags: <defaults>
</compile_context>

<pallas_src>
import jax
import jax.numpy as jnp
from jax import lax
from jax.experimental import pallas as pl
from jax.experimental.pallas import tpu as pltpu

# ---- Model geometry implied by the PyTorch module (fc1 expects 5120 = 20*16*16) -------
IN_C = 10                       # input channels
MID_C = 20                      # conv output channels
KSIZE = 3
GRID_HW = 24                    # input spatial size (carried through every layer)
OUT_HW = GRID_HW - 4 * (KSIZE - 1)       # 16 after four VALID 3x3 convs
FC_IN = MID_C * OUT_HW * OUT_HW          # 5120
FC_OUT = 10

GROUP = 20                      # lanes per pixel (max channel count)
ROW_LANES = GRID_HW * GROUP     # 480 = 24 pixels * 20 channel slots
LANES = 512                     # lane-padded row width (480 -> 512)


# ---------------------------------------------------------------------------------------
# Kernel: one batch sample per grid step.  Activations are (24, 512) values:
# row = image row y, lanes = 20*x + c.  Each conv = 3 banded matmuls (one per ky);
# fc1 = 10 zero-masked elementwise reductions against the f32 conv4 accumulator.
# ---------------------------------------------------------------------------------------
def _forward_kernel(x_ref, wc_ref, bc_ref, wimg_ref, bfc_ref, o_ref):

    def conv(a, layer, relu):
        # 8 zero rows appended so the ky=1,2 row shifts are plain in-register slices;
        # the bottom output rows become garbage-carrying and are provably never read.
        a_pad = jnp.concatenate([a, jnp.zeros((8, LANES), a.dtype)], axis=0)  # (32, 512)
        # Bias folded into the accumulator init (review item).
        acc = jnp.broadcast_to(bc_ref[layer], (GRID_HW, LANES))               # (24,512) f32
        for ky in range(KSIZE):
            lhs = a_pad[ky:ky + GRID_HW]                                      # (24, 512)
            acc = acc + jnp.dot(lhs, wc_ref[layer, ky],
                                preferred_element_type=jnp.float32)
        if relu:
            acc = jnp.maximum(acc, 0.0)
        return acc                                                            # f32

    a = x_ref[0]                                             # (24, 512) bf16
    a = conv(a, 0, True).astype(jnp.bfloat16)                # conv1 + relu1
    a = conv(a, 1, True).astype(jnp.bfloat16)                # conv2 + relu2
    a = conv(a, 2, False).astype(jnp.bfloat16)               # conv3
    a4 = conv(a, 3, False)                                   # conv4, kept in f32

    # fc1 fused in: logit_o = sum(a4 * weight_image_o) + b_o.  Weight images are zero
    # outside the valid 16x16x20 region, so the (finite) garbage rows/lanes carried by
    # the convs contribute exactly zero.
    lane = lax.broadcasted_iota(jnp.int32, (1, 128), 1)
    out_row = bfc_ref[...]                                   # (1, 128) f32
    for o in range(FC_OUT):
        s = jnp.sum(a4 * wimg_ref[o], keepdims=True)         # (1, 1) f32
        out_row = out_row + jnp.where(lane == o, s, 0.0)
    o_ref[0] = jnp.broadcast_to(out_row, (8, 128))           # lane-dense store


def _fused_forward(x_rows, kp):
    n = x_rows.shape[0]
    return pl.pallas_call(
        _forward_kernel,
        out_shape=jax.ShapeDtypeStruct((n, 8, 128), jnp.float32),
        grid=(n,),
        in_specs=[
            pl.BlockSpec((1, GRID_HW, LANES), lambda i: (i, 0, 0)),          # x (per sample)
            pl.BlockSpec((4, KSIZE, LANES, LANES), lambda i: (0, 0, 0, 0)),  # banded conv weights
            pl.BlockSpec((4, 1, LANES), lambda i: (0, 0, 0)),                # conv biases
            pl.BlockSpec((FC_OUT, GRID_HW, LANES), lambda i: (0, 0, 0)),     # fc1 weight images
            pl.BlockSpec((1, 128), lambda i: (0, 0)),                        # fc1 bias
        ],
        out_specs=pl.BlockSpec((1, 8, 128), lambda i: (i, 0, 0)),
        compiler_params=pltpu.CompilerParams(
            dimension_semantics=("parallel",),          # v7x: shard samples across cores
            vmem_limit_bytes=32 * 1024 * 1024),
    )(x_rows, kp["wconv"], kp["bconv"], kp["wimg"], kp["bfc"])


# ---------------------------------------------------------------------------------------
# Parameters (PyTorch layout) and one-time packing into kernel-ready operands.
# ---------------------------------------------------------------------------------------
def init_params(key):
    """Parameters in PyTorch layout: conv (Cout, Cin, kh, kw), linear (out, in)."""
    ks = jax.random.split(key, 12)
    p = {}
    p["conv1_w"] = 0.05 * jax.random.normal(ks[0], (MID_C, IN_C, KSIZE, KSIZE), jnp.float32)
    p["conv1_b"] = 0.05 * jax.random.normal(ks[1], (MID_C,), jnp.float32)
    p["conv2_w"] = 0.05 * jax.random.normal(ks[2], (MID_C, MID_C, KSIZE, KSIZE), jnp.float32)
    p["conv2_b"] = 0.05 * jax.random.normal(ks[3], (MID_C,), jnp.float32)
    p["conv3_w"] = 0.05 * jax.random.normal(ks[4], (MID_C, MID_C, KSIZE, KSIZE), jnp.float32)
    p["conv3_b"] = 0.05 * jax.random.normal(ks[5], (MID_C,), jnp.float32)
    p["conv4_w"] = 0.05 * jax.random.normal(ks[6], (MID_C, MID_C, KSIZE, KSIZE), jnp.float32)
    p["conv4_b"] = 0.05 * jax.random.normal(ks[7], (MID_C,), jnp.float32)
    # conv5 exists in the PyTorch __init__ but is never used in forward(); kept for parity.
    p["conv5_w"] = 0.05 * jax.random.normal(ks[8], (MID_C, MID_C, KSIZE, KSIZE), jnp.float32)
    p["conv5_b"] = 0.05 * jax.random.normal(ks[9], (MID_C,), jnp.float32)
    p["fc1_w"] = 0.01 * jax.random.normal(ks[10], (FC_OUT, FC_IN), jnp.float32)
    p["fc1_b"] = 0.01 * jax.random.normal(ks[11], (FC_OUT,), jnp.float32)
    return p


def prepare_kernel_params(p):
    """One-time packing into the x-packed row layout:
       * conv weights -> banded (3, 512, 512) matrices per layer: the kx taps and all
         24 x positions are folded into the contraction (K-packing of taps, per review).
       * conv biases  -> (1, 512) rows tiled per pixel group.
       * fc1 weight   -> 10 zero-masked (24, 512) f32 'weight images' over the valid
         16x16x20 region, in exactly PyTorch's view(N,-1)-on-NCHW feature order."""

    def conv_banded(w_oihw):
        cout, cin, kh, kw = w_oihw.shape
        per_ky = []
        for ky in range(kh):
            acc = jnp.zeros((ROW_LANES, ROW_LANES), jnp.float32)
            for kx in range(kw):
                # shift[xi, xo] = 1  iff  xi == xo + kx   (no wrap past x = 23)
                shift = jnp.eye(GRID_HW, k=-kx, dtype=jnp.float32)
                blk = jnp.zeros((GROUP, GROUP), jnp.float32)
                blk = blk.at[:cin, :cout].set(w_oihw[:, :, ky, kx].T)   # (cin, cout)
                acc = acc + jnp.kron(shift, blk)
            acc = jnp.pad(acc, ((0, LANES - ROW_LANES), (0, LANES - ROW_LANES)))
            per_ky.append(acc)
        return jnp.stack(per_ky)                                        # (3, 512, 512) f32

    def bias_row(b):
        bpad = jnp.pad(b, (0, GROUP - b.shape[0]))
        row = jnp.tile(bpad, GRID_HW)                                   # (480,)
        row = jnp.pad(row, (0, LANES - ROW_LANES))
        return row.reshape(1, LANES)                                    # (1, 512) f32

    wconv = jnp.stack([conv_banded(p["conv1_w"]), conv_banded(p["conv2_w"]),
                       conv_banded(p["conv3_w"]), conv_banded(p["conv4_w"])])
    wconv = wconv.astype(jnp.bfloat16)                                  # (4, 3, 512, 512)
    bconv = jnp.stack([bias_row(p["conv1_b"]), bias_row(p["conv2_b"]),
                       bias_row(p["conv3_b"]), bias_row(p["conv4_b"])]) # (4, 1, 512) f32

    # PyTorch fc1 consumes view(N,-1) of NCHW: feature index = c*256 + y*16 + x.
    wfc = p["fc1_w"].reshape(FC_OUT, MID_C, OUT_HW, OUT_HW)             # (o, c, y, x)
    wfc = jnp.transpose(wfc, (0, 2, 3, 1))                              # (o, y, x, c)
    wfc = jnp.pad(wfc, ((0, 0), (0, GRID_HW - OUT_HW), (0, GRID_HW - OUT_HW), (0, 0)))
    wimg = wfc.reshape(FC_OUT, GRID_HW, ROW_LANES)
    wimg = jnp.pad(wimg, ((0, 0), (0, 0), (0, LANES - ROW_LANES)))      # (10, 24, 512) f32

    bfc = jnp.zeros((1, 128), jnp.float32).at[0, :FC_OUT].set(p["fc1_b"])
    return {"wconv": wconv, "bconv": bconv, "wimg": wimg, "bfc": bfc}


# ---------------------------------------------------------------------------------------
# Forward pass.
# ---------------------------------------------------------------------------------------
@jax.jit
def my_model_forward(x_nchw, kp):
    n = x_nchw.shape[0]
    # TODO(synk): this one-time NCHW -> x-packed (row=y, lane=20*x+c) input relayout is
    # kept as tiny host-side XLA glue; an in-kernel gather would cost more than it saves.
    x = jnp.transpose(x_nchw, (0, 2, 3, 1))                             # NHWC
    x = jnp.pad(x, ((0, 0), (0, 0), (0, 0), (0, GROUP - IN_C)))         # (n, 24, 24, 20)
    x = x.reshape(n, GRID_HW, ROW_LANES)
    x = jnp.pad(x, ((0, 0), (0, 0), (0, LANES - ROW_LANES)))            # (n, 24, 512)
    x = x.astype(jnp.bfloat16)
    out = _fused_forward(x, kp)                                         # (n, 8, 128) f32
    return out[:, 0, :FC_OUT]


# ---------------------------------------------------------------------------------------
# Pure-JAX f32 reference (PyTorch semantics) for a correctness spot-check.
# ---------------------------------------------------------------------------------------
def _ref_forward(x_nchw, p):
    x = jnp.transpose(x_nchw, (0, 2, 3, 1))

    def conv(x, w_oihw, b):
        w = jnp.transpose(w_oihw, (2, 3, 1, 0))                         # OIHW -> HWIO
        y = lax.conv_general_dilated(x, w, (1, 1), "VALID",
                                     dimension_numbers=("NHWC", "HWIO", "NHWC"))
        return y + b

    x = jax.nn.relu(conv(x, p["conv1_w"], p["conv1_b"]))
    x = jax.nn.relu(conv(x, p["conv2_w"], p["conv2_b"]))
    x = conv(x, p["conv3_w"], p["conv3_b"])
    x = conv(x, p["conv4_w"], p["conv4_b"])
    x = jnp.transpose(x, (0, 3, 1, 2)).reshape(x.shape[0], -1)          # view(N,-1) on NCHW
    return x @ p["fc1_w"].T + p["fc1_b"]


if __name__ == "__main__":
    key = jax.random.PRNGKey(0)
    k_in, k_par = jax.random.split(key)
    # fc1 expects 5120 = 20*16*16 features => input is (N, 10, 24, 24) NCHW like PyTorch.
    x = jax.random.normal(k_in, (2, IN_C, GRID_HW, GRID_HW), jnp.float32)
    params = init_params(k_par)
    kparams = prepare_kernel_params(params)

    out = jax.block_until_ready(my_model_forward(x, kparams))
    assert out.shape == (2, FC_OUT), out.shape

    ref = jax.block_until_ready(_ref_forward(x, params))
    err = float(jnp.max(jnp.abs(out - ref)))
    # bf16 MXU operands with f32 accumulation => loosened tolerance vs the pure-f32 reference.
    assert jnp.allclose(out, ref, atol=1e-2, rtol=1e-2), err

    print("KERNEL_OK")
</pallas_src>

<mosaic_0001>
module attributes {stable_mosaic.version = 11 : i64} {
  func.func @_forward_kernel(%arg0: i32, %arg1: memref<1x24x512xbf16, #tpu.memory_space<vmem>>, %arg2: memref<4x3x512x512xbf16, #tpu.memory_space<vmem>>, %arg3: memref<4x1x512xf32, #tpu.memory_space<vmem>>, %arg4: memref<10x24x512xf32, #tpu.memory_space<vmem>>, %arg5: memref<1x128xf32, #tpu.memory_space<vmem>>, %arg6: memref<1x8x128xf32, #tpu.memory_space<vmem>>) attributes {dimension_semantics = [#tpu.dimension_semantics<parallel>], iteration_bounds = array<i64: 2>, scalar_prefetch = 0 : i64, scratch_operands = 0 : i64, tpu.core_type = #tpu.core_type<tc>, window_params = [{transform_indices = @transform_0, window_bounds = array<i64: 1, 24, 512>}, {pipeline_mode = #tpu.pipeline_mode<synchronous>, transform_indices = @transform_1, window_bounds = array<i64: 4, 3, 512, 512>}, {pipeline_mode = #tpu.pipeline_mode<synchronous>, transform_indices = @transform_2, window_bounds = array<i64: 4, 1, 512>}, {pipeline_mode = #tpu.pipeline_mode<synchronous>, transform_indices = @transform_3, window_bounds = array<i64: 10, 24, 512>}, {pipeline_mode = #tpu.pipeline_mode<synchronous>, transform_indices = @transform_4, window_bounds = array<i64: 1, 128>}, {transform_indices = @transform_5, window_bounds = array<i64: 1, 8, 128>}]} {
    %c0 = arith.constant 0 : index
    %c0_0 = arith.constant 0 : index
    %c0_1 = arith.constant 0 : index
    %0 = vector.load %arg1[%c0, %c0_0, %c0_1] : memref<1x24x512xbf16, #tpu.memory_space<vmem>>, vector<1x24x512xbf16>
    %1 = vector.shape_cast %0 : vector<1x24x512xbf16> to vector<24x512xbf16>
    %cst = arith.constant 0.000000e+00 : bf16
    %2 = vector.broadcast %cst : bf16 to vector<8x512xbf16>
    %3 = tpu.concatenate %1, %2 in 0 : vector<24x512xbf16>, vector<8x512xbf16> -> vector<32x512xbf16>
    %c0_2 = arith.constant 0 : index
    %c0_3 = arith.constant 0 : index
    %c0_4 = arith.constant 0 : index
    %4 = vector.load %arg3[%c0_2, %c0_3, %c0_4] : memref<4x1x512xf32, #tpu.memory_space<vmem>>, vector<1x1x512xf32>
    %5 = vector.shape_cast %4 : vector<1x1x512xf32> to vector<1x512xf32>
    %6 = vector.shape_cast %5 : vector<1x512xf32> to vector<1x512xf32>
    %7 = vector.broadcast %6 : vector<1x512xf32> to vector<24x512xf32>
    %8 = vector.extract_strided_slice %3 {offsets = [0, 0], sizes = [24, 512], strides = [1, 1]} : vector<32x512xbf16> to vector<24x512xbf16>
    %c0_5 = arith.constant 0 : index
    %c0_6 = arith.constant 0 : index
    %c0_7 = arith.constant 0 : index
    %c0_8 = arith.constant 0 : index
    %9 = vector.load %arg2[%c0_5, %c0_6, %c0_7, %c0_8] : memref<4x3x512x512xbf16, #tpu.memory_space<vmem>>, vector<1x1x512x512xbf16>
    %10 = vector.shape_cast %9 : vector<1x1x512x512xbf16> to vector<512x512xbf16>
    %cst_9 = arith.constant dense<0.000000e+00> : vector<24x512xf32>
    %11 = tpu.matmul %8, %10, %cst_9 {dimension_numbers = #tpu.dot_dimension_numbers<[1], [0], [0], [1], [0, 0, 1, 1], [], []>} : vector<24x512xbf16>, vector<512x512xbf16>, vector<24x512xf32> -> vector<24x512xf32>
    %12 = arith.addf %7, %11 : vector<24x512xf32>
    %13 = vector.extract_strided_slice %3 {offsets = [1, 0], sizes = [24, 512], strides = [1, 1]} : vector<32x512xbf16> to vector<24x512xbf16>
    %c0_10 = arith.constant 0 : index
    %c1 = arith.constant 1 : index
    %c0_11 = arith.constant 0 : index
    %c0_12 = arith.constant 0 : index
    %14 = vector.load %arg2[%c0_10, %c1, %c0_11, %c0_12] : memref<4x3x512x512xbf16, #tpu.memory_space<vmem>>, vector<1x1x512x512xbf16>
    %15 = vector.shape_cast %14 : vector<1x1x512x512xbf16> to vector<512x512xbf16>
    %cst_13 = arith.constant dense<0.000000e+00> : vector<24x512xf32>
    %16 = tpu.matmul %13, %15, %cst_13 {dimension_numbers = #tpu.dot_dimension_numbers<[1], [0], [0], [1], [0, 0, 1, 1], [], []>} : vector<24x512xbf16>, vector<512x512xbf16>, vector<24x512xf32> -> vector<24x512xf32>
    %17 = arith.addf %12, %16 : vector<24x512xf32>
    %18 = vector.extract_strided_slice %3 {offsets = [2, 0], sizes = [24, 512], strides = [1, 1]} : vector<32x512xbf16> to vector<24x512xbf16>
    %c0_14 = arith.constant 0 : index
    %c2 = arith.constant 2 : index
    %c0_15 = arith.constant 0 : index
    %c0_16 = arith.constant 0 : index
    %19 = vector.load %arg2[%c0_14, %c2, %c0_15, %c0_16] : memref<4x3x512x512xbf16, #tpu.memory_space<vmem>>, vector<1x1x512x512xbf16>
    %20 = vector.shape_cast %19 : vector<1x1x512x512xbf16> to vector<512x512xbf16>
    %cst_17 = arith.constant dense<0.000000e+00> : vector<24x512xf32>
    %21 = tpu.matmul %18, %20, %cst_17 {dimension_numbers = #tpu.dot_dimension_numbers<[1], [0], [0], [1], [0, 0, 1, 1], [], []>} : vector<24x512xbf16>, vector<512x512xbf16>, vector<24x512xf32> -> vector<24x512xf32>
    %22 = arith.addf %17, %21 : vector<24x512xf32>
    %cst_18 = arith.constant 0.000000e+00 : f32
    %23 = vector.broadcast %cst_18 : f32 to vector<24x512xf32>
    %24 = arith.maximumf %22, %23 : vector<24x512xf32>
    %25 = arith.truncf %24 : vector<24x512xf32> to vector<24x512xbf16>
    %cst_19 = arith.constant 0.000000e+00 : bf16
    %26 = vector.broadcast %cst_19 : bf16 to vector<8x512xbf16>
    %27 = tpu.concatenate %25, %26 in 0 : vector<24x512xbf16>, vector<8x512xbf16> -> vector<32x512xbf16>
    %c1_20 = arith.constant 1 : index
    %c0_21 = arith.constant 0 : index
    %c0_22 = arith.constant 0 : index
    %28 = vector.load %arg3[%c1_20, %c0_21, %c0_22] : memref<4x1x512xf32, #tpu.memory_space<vmem>>, vector<1x1x512xf32>
    %29 = vector.shape_cast %28 : vector<1x1x512xf32> to vector<1x512xf32>
    %30 = vector.shape_cast %29 : vector<1x512xf32> to vector<1x512xf32>
    %31 = vector.broadcast %30 : vector<1x512xf32> to vector<24x512xf32>
    %32 = vector.extract_strided_slice %27 {offsets = [0, 0], sizes = [24, 512], strides = [1, 1]} : vector<32x512xbf16> to vector<24x512xbf16>
    %c1_23 = arith.constant 1 : index
    %c0_24 = arith.constant 0 : index
    %c0_25 = arith.constant 0 : index
    %c0_26 = arith.constant 0 : index
    %33 = vector.load %arg2[%c1_23, %c0_24, %c0_25, %c0_26] : memref<4x3x512x512xbf16, #tpu.memory_space<vmem>>, vector<1x1x512x512xbf16>
    %34 = vector.shape_cast %33 : vector<1x1x512x512xbf16> to vector<512x512xbf16>
    %cst_27 = arith.constant dense<0.000000e+00> : vector<24x512xf32>
    %35 = tpu.matmul %32, %34, %cst_27 {dimension_numbers = #tpu.dot_dimension_numbers<[1], [0], [0], [1], [0, 0, 1, 1], [], []>} : vector<24x512xbf16>, vector<512x512xbf16>, vector<24x512xf32> -> vector<24x512xf32>
    %36 = arith.addf %31, %35 : vector<24x512xf32>
    %37 = vector.extract_strided_slice %27 {offsets = [1, 0], sizes = [24, 512], strides = [1, 1]} : vector<32x512xbf16> to vector<24x512xbf16>
    %c1_28 = arith.constant 1 : index
    %c1_29 = arith.constant 1 : index
    %c0_30 = arith.constant 0 : index
    %c0_31 = arith.constant 0 : index
    %38 = vector.load %arg2[%c1_28, %c1_29, %c0_30, %c0_31] : memref<4x3x512x512xbf16, #tpu.memory_space<vmem>>, vector<1x1x512x512xbf16>
    %39 = vector.shape_cast %38 : vector<1x1x512x512xbf16> to vector<512x512xbf16>
    %cst_32 = arith.constant dense<0.000000e+00> : vector<24x512xf32>
    %40 = tpu.matmul %37, %39, %cst_32 {dimension_numbers = #tpu.dot_dimension_numbers<[1], [0], [0], [1], [0, 0, 1, 1], [], []>} : vector<24x512xbf16>, vector<512x512xbf16>, vector<24x512xf32> -> vector<24x512xf32>
    %41 = arith.addf %36, %40 : vector<24x512xf32>
    %42 = vector.extract_strided_slice %27 {offsets = [2, 0], sizes = [24, 512], strides = [1, 1]} : vector<32x512xbf16> to vector<24x512xbf16>
    %c1_33 = arith.constant 1 : index
    %c2_34 = arith.constant 2 : index
    %c0_35 = arith.constant 0 : index
    %c0_36 = arith.constant 0 : index
    %43 = vector.load %arg2[%c1_33, %c2_34, %c0_35, %c0_36] : memref<4x3x512x512xbf16, #tpu.memory_space<vmem>>, vector<1x1x512x512xbf16>
    %44 = vector.shape_cast %43 : vector<1x1x512x512xbf16> to vector<512x512xbf16>
    %cst_37 = arith.constant dense<0.000000e+00> : vector<24x512xf32>
    %45 = tpu.matmul %42, %44, %cst_37 {dimension_numbers = #tpu.dot_dimension_numbers<[1], [0], [0], [1], [0, 0, 1, 1], [], []>} : vector<24x512xbf16>, vector<512x512xbf16>, vector<24x512xf32> -> vector<24x512xf32>
    %46 = arith.addf %41, %45 : vector<24x512xf32>
    %cst_38 = arith.constant 0.000000e+00 : f32
    %47 = vector.broadcast %cst_38 : f32 to vector<24x512xf32>
    %48 = arith.maximumf %46, %47 : vector<24x512xf32>
    %49 = arith.truncf %48 : vector<24x512xf32> to vector<24x512xbf16>
    %cst_39 = arith.constant 0.000000e+00 : bf16
    %50 = vector.broadcast %cst_39 : bf16 to vector<8x512xbf16>
    %51 = tpu.concatenate %49, %50 in 0 : vector<24x512xbf16>, vector<8x512xbf16> -> vector<32x512xbf16>
    %c2_40 = arith.constant 2 : index
    %c0_41 = arith.constant 0 : index
    %c0_42 = arith.constant 0 : index
    %52 = vector.load %arg3[%c2_40, %c0_41, %c0_42] : memref<4x1x512xf32, #tpu.memory_space<vmem>>, vector<1x1x512xf32>
    %53 = vector.shape_cast %52 : vector<1x1x512xf32> to vector<1x512xf32>
    %54 = vector.shape_cast %53 : vector<1x512xf32> to vector<1x512xf32>
    %55 = vector.broadcast %54 : vector<1x512xf32> to vector<24x512xf32>
    %56 = vector.extract_strided_slice %51 {offsets = [0, 0], sizes = [24, 512], strides = [1, 1]} : vector<32x512xbf16> to vector<24x512xbf16>
    %c2_43 = arith.constant 2 : index
    %c0_44 = arith.constant 0 : index
    %c0_45 = arith.constant 0 : index
    %c0_46 = arith.constant 0 : index
    %57 = vector.load %arg2[%c2_43, %c0_44, %c0_45, %c0_46] : memref<4x3x512x512xbf16, #tpu.memory_space<vmem>>, vector<1x1x512x512xbf16>
    %58 = vector.shape_cast %57 : vector<1x1x512x512xbf16> to vector<512x512xbf16>
    %cst_47 = arith.constant dense<0.000000e+00> : vector<24x512xf32>
    %59 = tpu.matmul %56, %58, %cst_47 {dimension_numbers = #tpu.dot_dimension_numbers<[1], [0], [0], [1], [0, 0, 1, 1], [], []>} : vector<24x512xbf16>, vector<512x512xbf16>, vector<24x512xf32> -> vector<24x512xf32>
    %60 = arith.addf %55, %59 : vector<24x512xf32>
    %61 = vector.extract_strided_slice %51 {offsets = [1, 0], sizes = [24, 512], strides = [1, 1]} : vector<32x512xbf16> to vector<24x512xbf16>
    %c2_48 = arith.constant 2 : index
    %c1_49 = arith.constant 1 : index
    %c0_50 = arith.constant 0 : index
    %c0_51 = arith.constant 0 : index
    %62 = vector.load %arg2[%c2_48, %c1_49, %c0_50, %c0_51] : memref<4x3x512x512xbf16, #tpu.memory_space<vmem>>, vector<1x1x512x512xbf16>
    %63 = vector.shape_cast %62 : vector<1x1x512x512xbf16> to vector<512x512xbf16>
    %cst_52 = arith.constant dense<0.000000e+00> : vector<24x512xf32>
    %64 = tpu.matmul %61, %63, %cst_52 {dimension_numbers = #tpu.dot_dimension_numbers<[1], [0], [0], [1], [0, 0, 1, 1], [], []>} : vector<24x512xbf16>, vector<512x512xbf16>, vector<24x512xf32> -> vector<24x512xf32>
    %65 = arith.addf %60, %64 : vector<24x512xf32>
    %66 = vector.extract_strided_slice %51 {offsets = [2, 0], sizes = [24, 512], strides = [1, 1]} : vector<32x512xbf16> to vector<24x512xbf16>
    %c2_53 = arith.constant 2 : index
    %c2_54 = arith.constant 2 : index
    %c0_55 = arith.constant 0 : index
    %c0_56 = arith.constant 0 : index
    %67 = vector.load %arg2[%c2_53, %c2_54, %c0_55, %c0_56] : memref<4x3x512x512xbf16, #tpu.memory_space<vmem>>, vector<1x1x512x512xbf16>
    %68 = vector.shape_cast %67 : vector<1x1x512x512xbf16> to vector<512x512xbf16>
    %cst_57 = arith.constant dense<0.000000e+00> : vector<24x512xf32>
    %69 = tpu.matmul %66, %68, %cst_57 {dimension_numbers = #tpu.dot_dimension_numbers<[1], [0], [0], [1], [0, 0, 1, 1], [], []>} : vector<24x512xbf16>, vector<512x512xbf16>, vector<24x512xf32> -> vector<24x512xf32>
    %70 = arith.addf %65, %69 : vector<24x512xf32>
    %71 = arith.truncf %70 : vector<24x512xf32> to vector<24x512xbf16>
    %cst_58 = arith.constant 0.000000e+00 : bf16
    %72 = vector.broadcast %cst_58 : bf16 to vector<8x512xbf16>
    %73 = tpu.concatenate %71, %72 in 0 : vector<24x512xbf16>, vector<8x512xbf16> -> vector<32x512xbf16>
    %c3 = arith.constant 3 : index
    %c0_59 = arith.constant 0 : index
    %c0_60 = arith.constant 0 : index
    %74 = vector.load %arg3[%c3, %c0_59, %c0_60] : memref<4x1x512xf32, #tpu.memory_space<vmem>>, vector<1x1x512xf32>
    %75 = vector.shape_cast %74 : vector<1x1x512xf32> to vector<1x512xf32>
    %76 = vector.shape_cast %75 : vector<1x512xf32> to vector<1x512xf32>
    %77 = vector.broadcast %76 : vector<1x512xf32> to vector<24x512xf32>
    %78 = vector.extract_strided_slice %73 {offsets = [0, 0], sizes = [24, 512], strides = [1, 1]} : vector<32x512xbf16> to vector<24x512xbf16>
    %c3_61 = arith.constant 3 : index
    %c0_62 = arith.constant 0 : index
    %c0_63 = arith.constant 0 : index
    %c0_64 = arith.constant 0 : index
    %79 = vector.load %arg2[%c3_61, %c0_62, %c0_63, %c0_64] : memref<4x3x512x512xbf16, #tpu.memory_space<vmem>>, vector<1x1x512x512xbf16>
    %80 = vector.shape_cast %79 : vector<1x1x512x512xbf16> to vector<512x512xbf16>
    %cst_65 = arith.constant dense<0.000000e+00> : vector<24x512xf32>
    %81 = tpu.matmul %78, %80, %cst_65 {dimension_numbers = #tpu.dot_dimension_numbers<[1], [0], [0], [1], [0, 0, 1, 1], [], []>} : vector<24x512xbf16>, vector<512x512xbf16>, vector<24x512xf32> -> vector<24x512xf32>
    %82 = arith.addf %77, %81 : vector<24x512xf32>
    %83 = vector.extract_strided_slice %73 {offsets = [1, 0], sizes = [24, 512], strides = [1, 1]} : vector<32x512xbf16> to vector<24x512xbf16>
    %c3_66 = arith.constant 3 : index
    %c1_67 = arith.constant 1 : index
    %c0_68 = arith.constant 0 : index
    %c0_69 = arith.constant 0 : index
    %84 = vector.load %arg2[%c3_66, %c1_67, %c0_68, %c0_69] : memref<4x3x512x512xbf16, #tpu.memory_space<vmem>>, vector<1x1x512x512xbf16>
    %85 = vector.shape_cast %84 : vector<1x1x512x512xbf16> to vector<512x512xbf16>
    %cst_70 = arith.constant dense<0.000000e+00> : vector<24x512xf32>
    %86 = tpu.matmul %83, %85, %cst_70 {dimension_numbers = #tpu.dot_dimension_numbers<[1], [0], [0], [1], [0, 0, 1, 1], [], []>} : vector<24x512xbf16>, vector<512x512xbf16>, vector<24x512xf32> -> vector<24x512xf32>
    %87 = arith.addf %82, %86 : vector<24x512xf32>
    %88 = vector.extract_strided_slice %73 {offsets = [2, 0], sizes = [24, 512], strides = [1, 1]} : vector<32x512xbf16> to vector<24x512xbf16>
    %c3_71 = arith.constant 3 : index
    %c2_72 = arith.constant 2 : index
    %c0_73 = arith.constant 0 : index
    %c0_74 = arith.constant 0 : index
    %89 = vector.load %arg2[%c3_71, %c2_72, %c0_73, %c0_74] : memref<4x3x512x512xbf16, #tpu.memory_space<vmem>>, vector<1x1x512x512xbf16>
    %90 = vector.shape_cast %89 : vector<1x1x512x512xbf16> to vector<512x512xbf16>
    %cst_75 = arith.constant dense<0.000000e+00> : vector<24x512xf32>
    %91 = tpu.matmul %88, %90, %cst_75 {dimension_numbers = #tpu.dot_dimension_numbers<[1], [0], [0], [1], [0, 0, 1, 1], [], []>} : vector<24x512xbf16>, vector<512x512xbf16>, vector<24x512xf32> -> vector<24x512xf32>
    %92 = arith.addf %87, %91 : vector<24x512xf32>
    %93 = tpu.iota {dimensions = array<i32: 1>} : vector<1x128xi32>
    %c0_76 = arith.constant 0 : index
    %c0_77 = arith.constant 0 : index
    %94 = vector.load %arg5[%c0_76, %c0_77] : memref<1x128xf32, #tpu.memory_space<vmem>>, vector<1x128xf32>
    %c0_78 = arith.constant 0 : index
    %c0_79 = arith.constant 0 : index
    %c0_80 = arith.constant 0 : index
    %95 = vector.load %arg4[%c0_78, %c0_79, %c0_80] : memref<10x24x512xf32, #tpu.memory_space<vmem>>, vector<1x24x512xf32>
    %96 = vector.shape_cast %95 : vector<1x24x512xf32> to vector<24x512xf32>
    %97 = arith.mulf %92, %96 : vector<24x512xf32>
    %98 = vector.shape_cast %97 : vector<24x512xf32> to vector<1x24x512xf32>
    %cst_81 = arith.constant dense<0.000000e+00> : vector<1xf32>
    %99 = vector.multi_reduction <add>, %98, %cst_81 [1, 2] : vector<1x24x512xf32> to vector<1xf32>
    %100 = vector.shape_cast %99 : vector<1xf32> to vector<1x1x1xf32>
    %101 = vector.extract %100[0, 0, 0] : f32 from vector<1x1x1xf32>
    %102 = vector.broadcast %101 : f32 to vector<1x1xf32>
    %c0_i32 = arith.constant 0 : i32
    %103 = vector.broadcast %c0_i32 : i32 to vector<1x128xi32>
    %104 = arith.cmpi eq, %93, %103 : vector<1x128xi32>
    %cst_82 = arith.constant 0.000000e+00 : f32
    %105 = vector.shape_cast %102 : vector<1x1xf32> to vector<1x1xf32>
    %106 = vector.broadcast %105 : vector<1x1xf32> to vector<1x128xf32>
    %107 = vector.broadcast %cst_82 : f32 to vector<1x128xf32>
    %108 = arith.select %104, %106, %107 : vector<1x128xi1>, vector<1x128xf32>
    %109 = arith.addf %94, %108 : vector<1x128xf32>
    %c1_83 = arith.constant 1 : index
    %c0_84 = arith.constant 0 : index
    %c0_85 = arith.constant 0 : index
    %110 = vector.load %arg4[%c1_83, %c0_84, %c0_85] : memref<10x24x512xf32, #tpu.memory_space<vmem>>, vector<1x24x512xf32>
    %111 = vector.shape_cast %110 : vector<1x24x512xf32> to vector<24x512xf32>
    %112 = arith.mulf %92, %111 : vector<24x512xf32>
    %113 = vector.shape_cast %112 : vector<24x512xf32> to vector<1x24x512xf32>
    %cst_86 = arith.constant dense<0.000000e+00> : vector<1xf32>
    %114 = vector.multi_reduction <add>, %113, %cst_86 [1, 2] : vector<1x24x512xf32> to vector<1xf32>
    %115 = vector.shape_cast %114 : vector<1xf32> to vector<1x1x1xf32>
    %116 = vector.extract %115[0, 0, 0] : f32 from vector<1x1x1xf32>
    %117 = vector.broadcast %116 : f32 to vector<1x1xf32>
    %c1_i32 = arith.constant 1 : i32
    %118 = vector.broadcast %c1_i32 : i32 to vector<1x128xi32>
    %119 = arith.cmpi eq, %93, %118 : vector<1x128xi32>
    %cst_87 = arith.constant 0.000000e+00 : f32
    %120 = vector.shape_cast %117 : vector<1x1xf32> to vector<1x1xf32>
    %121 = vector.broadcast %120 : vector<1x1xf32> to vector<1x128xf32>
    %122 = vector.broadcast %cst_87 : f32 to vector<1x128xf32>
    %123 = arith.select %119, %121, %122 : vector<1x128xi1>, vector<1x128xf32>
    %124 = arith.addf %109, %123 : vector<1x128xf32>
    %c2_88 = arith.constant 2 : index
    %c0_89 = arith.constant 0 : index
    %c0_90 = arith.constant 0 : index
    %125 = vector.load %arg4[%c2_88, %c0_89, %c0_90] : memref<10x24x512xf32, #tpu.memory_space<vmem>>, vector<1x24x512xf32>
    %126 = vector.shape_cast %125 : vector<1x24x512xf32> to vector<24x512xf32>
    %127 = arith.mulf %92, %126 : vector<24x512xf32>
    %128 = vector.shape_cast %127 : vector<24x512xf32> to vector<1x24x512xf32>
    %cst_91 = arith.constant dense<0.000000e+00> : vector<1xf32>
    %129 = vector.multi_reduction <add>, %128, %cst_91 [1, 2] : vector<1x24x512xf32> to vector<1xf32>
    %130 = vector.shape_cast %129 : vector<1xf32> to vector<1x1x1xf32>
    %131 = vector.extract %130[0, 0, 0] : f32 from vector<1x1x1xf32>
    %132 = vector.broadcast %131 : f32 to vector<1x1xf32>
    %c2_i32 = arith.constant 2 : i32
    %133 = vector.broadcast %c2_i32 : i32 to vector<1x128xi32>
    %134 = arith.cmpi eq, %93, %133 : vector<1x128xi32>
    %cst_92 = arith.constant 0.000000e+00 : f32
    %135 = vector.shape_cast %132 : vector<1x1xf32> to vector<1x1xf32>
    %136 = vector.broadcast %135 : vector<1x1xf32> to vector<1x128xf32>
    %137 = vector.broadcast %cst_92 : f32 to vector<1x128xf32>
    %138 = arith.select %134, %136, %137 : vector<1x128xi1>, vector<1x128xf32>
    %139 = arith.addf %124, %138 : vector<1x128xf32>
    %c3_93 = arith.constant 3 : index
    %c0_94 = arith.constant 0 : index
    %c0_95 = arith.constant 0 : index
    %140 = vector.load %arg4[%c3_93, %c0_94, %c0_95] : memref<10x24x512xf32, #tpu.memory_space<vmem>>, vector<1x24x512xf32>
    %141 = vector.shape_cast %140 : vector<1x24x512xf32> to vector<24x512xf32>
    %142 = arith.mulf %92, %141 : vector<24x512xf32>
    %143 = vector.shape_cast %142 : vector<24x512xf32> to vector<1x24x512xf32>
    %cst_96 = arith.constant dense<0.000000e+00> : vector<1xf32>
    %144 = vector.multi_reduction <add>, %143, %cst_96 [1, 2] : vector<1x24x512xf32> to vector<1xf32>
    %145 = vector.shape_cast %144 : vector<1xf32> to vector<1x1x1xf32>
    %146 = vector.extract %145[0, 0, 0] : f32 from vector<1x1x1xf32>
    %147 = vector.broadcast %146 : f32 to vector<1x1xf32>
    %c3_i32 = arith.constant 3 : i32
    %148 = vector.broadcast %c3_i32 : i32 to vector<1x128xi32>
    %149 = arith.cmpi eq, %93, %148 : vector<1x128xi32>
    %cst_97 = arith.constant 0.000000e+00 : f32
    %150 = vector.shape_cast %147 : vector<1x1xf32> to vector<1x1xf32>
    %151 = vector.broadcast %150 : vector<1x1xf32> to vector<1x128xf32>
    %152 = vector.broadcast %cst_97 : f32 to vector<1x128xf32>
    %153 = arith.select %149, %151, %152 : vector<1x128xi1>, vector<1x128xf32>
    %154 = arith.addf %139, %153 : vector<1x128xf32>
    %c4 = arith.constant 4 : index
    %c0_98 = arith.constant 0 : index
    %c0_99 = arith.constant 0 : index
    %155 = vector.load %arg4[%c4, %c0_98, %c0_99] : memref<10x24x512xf32, #tpu.memory_space<vmem>>, vector<1x24x512xf32>
    %156 = vector.shape_cast %155 : vector<1x24x512xf32> to vector<24x512xf32>
    %157 = arith.mulf %92, %156 : vector<24x512xf32>
    %158 = vector.shape_cast %157 : vector<24x512xf32> to vector<1x24x512xf32>
    %cst_100 = arith.constant dense<0.000000e+00> : vector<1xf32>
    %159 = vector.multi_reduction <add>, %158, %cst_100 [1, 2] : vector<1x24x512xf32> to vector<1xf32>
    %160 = vector.shape_cast %159 : vector<1xf32> to vector<1x1x1xf32>
    %161 = vector.extract %160[0, 0, 0] : f32 from vector<1x1x1xf32>
    %162 = vector.broadcast %161 : f32 to vector<1x1xf32>
    %c4_i32 = arith.constant 4 : i32
    %163 = vector.broadcast %c4_i32 : i32 to vector<1x128xi32>
    %164 = arith.cmpi eq, %93, %163 : vector<1x128xi32>
    %cst_101 = arith.constant 0.000000e+00 : f32
    %165 = vector.shape_cast %162 : vector<1x1xf32> to vector<1x1xf32>
    %166 = vector.broadcast %165 : vector<1x1xf32> to vector<1x128xf32>
    %167 = vector.broadcast %cst_101 : f32 to vector<1x128xf32>
    %168 = arith.select %164, %166, %167 : vector<1x128xi1>, vector<1x128xf32>
    %169 = arith.addf %154, %168 : vector<1x128xf32>
    %c5 = arith.constant 5 : index
    %c0_102 = arith.constant 0 : index
    %c0_103 = arith.constant 0 : index
    %170 = vector.load %arg4[%c5, %c0_102, %c0_103] : memref<10x24x512xf32, #tpu.memory_space<vmem>>, vector<1x24x512xf32>
    %171 = vector.shape_cast %170 : vector<1x24x512xf32> to vector<24x512xf32>
    %172 = arith.mulf %92, %171 : vector<24x512xf32>
    %173 = vector.shape_cast %172 : vector<24x512xf32> to vector<1x24x512xf32>
    %cst_104 = arith.constant dense<0.000000e+00> : vector<1xf32>
    %174 = vector.multi_reduction <add>, %173, %cst_104 [1, 2] : vector<1x24x512xf32> to vector<1xf32>
    %175 = vector.shape_cast %174 : vector<1xf32> to vector<1x1x1xf32>
    %176 = vector.extract %175[0, 0, 0] : f32 from vector<1x1x1xf32>
    %177 = vector.broadcast %176 : f32 to vector<1x1xf32>
    %c5_i32 = arith.constant 5 : i32
    %178 = vector.broadcast %c5_i32 : i32 to vector<1x128xi32>
    %179 = arith.cmpi eq, %93, %178 : vector<1x128xi32>
    %cst_105 = arith.constant 0.000000e+00 : f32
    %180 = vector.shape_cast %177 : vector<1x1xf32> to vector<1x1xf32>
    %181 = vector.broadcast %180 : vector<1x1xf32> to vector<1x128xf32>
    %182 = vector.broadcast %cst_105 : f32 to vector<1x128xf32>
    %183 = arith.select %179, %181, %182 : vector<1x128xi1>, vector<1x128xf32>
    %184 = arith.addf %169, %183 : vector<1x128xf32>
    %c6 = arith.constant 6 : index
    %c0_106 = arith.constant 0 : index
    %c0_107 = arith.constant 0 : index
    %185 = vector.load %arg4[%c6, %c0_106, %c0_107] : memref<10x24x512xf32, #tpu.memory_space<vmem>>, vector<1x24x512xf32>
    %186 = vector.shape_cast %185 : vector<1x24x512xf32> to vector<24x512xf32>
    %187 = arith.mulf %92, %186 : vector<24x512xf32>
    %188 = vector.shape_cast %187 : vector<24x512xf32> to vector<1x24x512xf32>
    %cst_108 = arith.constant dense<0.000000e+00> : vector<1xf32>
    %189 = vector.multi_reduction <add>, %188, %cst_108 [1, 2] : vector<1x24x512xf32> to vector<1xf32>
    %190 = vector.shape_cast %189 : vector<1xf32> to vector<1x1x1xf32>
    %191 = vector.extract %190[0, 0, 0] : f32 from vector<1x1x1xf32>
    %192 = vector.broadcast %191 : f32 to vector<1x1xf32>
    %c6_i32 = arith.constant 6 : i32
    %193 = vector.broadcast %c6_i32 : i32 to vector<1x128xi32>
    %194 = arith.cmpi eq, %93, %193 : vector<1x128xi32>
    %cst_109 = arith.constant 0.000000e+00 : f32
    %195 = vector.shape_cast %192 : vector<1x1xf32> to vector<1x1xf32>
    %196 = vector.broadcast %195 : vector<1x1xf32> to vector<1x128xf32>
    %197 = vector.broadcast %cst_109 : f32 to vector<1x128xf32>
    %198 = arith.select %194, %196, %197 : vector<1x128xi1>, vector<1x128xf32>
    %199 = arith.addf %184, %198 : vector<1x128xf32>
    %c7 = arith.constant 7 : index
    %c0_110 = arith.constant 0 : index
    %c0_111 = arith.constant 0 : index
    %200 = vector.load %arg4[%c7, %c0_110, %c0_111] : memref<10x24x512xf32, #tpu.memory_space<vmem>>, vector<1x24x512xf32>
    %201 = vector.shape_cast %200 : vector<1x24x512xf32> to vector<24x512xf32>
    %202 = arith.mulf %92, %201 : vector<24x512xf32>
    %203 = vector.shape_cast %202 : vector<24x512xf32> to vector<1x24x512xf32>
    %cst_112 = arith.constant dense<0.000000e+00> : vector<1xf32>
    %204 = vector.multi_reduction <add>, %203, %cst_112 [1, 2] : vector<1x24x512xf32> to vector<1xf32>
    %205 = vector.shape_cast %204 : vector<1xf32> to vector<1x1x1xf32>
    %206 = vector.extract %205[0, 0, 0] : f32 from vector<1x1x1xf32>
    %207 = vector.broadcast %206 : f32 to vector<1x1xf32>
    %c7_i32 = arith.constant 7 : i32
    %208 = vector.broadcast %c7_i32 : i32 to vector<1x128xi32>
    %209 = arith.cmpi eq, %93, %208 : vector<1x128xi32>
    %cst_113 = arith.constant 0.000000e+00 : f32
    %210 = vector.shape_cast %207 : vector<1x1xf32> to vector<1x1xf32>
    %211 = vector.broadcast %210 : vector<1x1xf32> to vector<1x128xf32>
    %212 = vector.broadcast %cst_113 : f32 to vector<1x128xf32>
    %213 = arith.select %209, %211, %212 : vector<1x128xi1>, vector<1x128xf32>
    %214 = arith.addf %199, %213 : vector<1x128xf32>
    %c8 = arith.constant 8 : index
    %c0_114 = arith.constant 0 : index
    %c0_115 = arith.constant 0 : index
    %215 = vector.load %arg4[%c8, %c0_114, %c0_115] : memref<10x24x512xf32, #tpu.memory_space<vmem>>, vector<1x24x512xf32>
    %216 = vector.shape_cast %215 : vector<1x24x512xf32> to vector<24x512xf32>
    %217 = arith.mulf %92, %216 : vector<24x512xf32>
    %218 = vector.shape_cast %217 : vector<24x512xf32> to vector<1x24x512xf32>
    %cst_116 = arith.constant dense<0.000000e+00> : vector<1xf32>
    %219 = vector.multi_reduction <add>, %218, %cst_116 [1, 2] : vector<1x24x512xf32> to vector<1xf32>
    %220 = vector.shape_cast %219 : vector<1xf32> to vector<1x1x1xf32>
    %221 = vector.extract %220[0, 0, 0] : f32 from vector<1x1x1xf32>
    %222 = vector.broadcast %221 : f32 to vector<1x1xf32>
    %c8_i32 = arith.constant 8 : i32
    %223 = vector.broadcast %c8_i32 : i32 to vector<1x128xi32>
    %224 = arith.cmpi eq, %93, %223 : vector<1x128xi32>
    %cst_117 = arith.constant 0.000000e+00 : f32
    %225 = vector.shape_cast %222 : vector<1x1xf32> to vector<1x1xf32>
    %226 = vector.broadcast %225 : vector<1x1xf32> to vector<1x128xf32>
    %227 = vector.broadcast %cst_117 : f32 to vector<1x128xf32>
    %228 = arith.select %224, %226, %227 : vector<1x128xi1>, vector<1x128xf32>
    %229 = arith.addf %214, %228 : vector<1x128xf32>
    %c9 = arith.constant 9 : index
    %c0_118 = arith.constant 0 : index
    %c0_119 = arith.constant 0 : index
    %230 = vector.load %arg4[%c9, %c0_118, %c0_119] : memref<10x24x512xf32, #tpu.memory_space<vmem>>, vector<1x24x512xf32>
    %231 = vector.shape_cast %230 : vector<1x24x512xf32> to vector<24x512xf32>
    %232 = arith.mulf %92, %231 : vector<24x512xf32>
    %233 = vector.shape_cast %232 : vector<24x512xf32> to vector<1x24x512xf32>
    %cst_120 = arith.constant dense<0.000000e+00> : vector<1xf32>
    %234 = vector.multi_reduction <add>, %233, %cst_120 [1, 2] : vector<1x24x512xf32> to vector<1xf32>
    %235 = vector.shape_cast %234 : vector<1xf32> to vector<1x1x1xf32>
    %236 = vector.extract %235[0, 0, 0] : f32 from vector<1x1x1xf32>
    %237 = vector.broadcast %236 : f32 to vector<1x1xf32>
    %c9_i32 = arith.constant 9 : i32
    %238 = vector.broadcast %c9_i32 : i32 to vector<1x128xi32>
    %239 = arith.cmpi eq, %93, %238 : vector<1x128xi32>
    %cst_121 = arith.constant 0.000000e+00 : f32
    %240 = vector.shape_cast %237 : vector<1x1xf32> to vector<1x1xf32>
    %241 = vector.broadcast %240 : vector<1x1xf32> to vector<1x128xf32>
    %242 = vector.broadcast %cst_121 : f32 to vector<1x128xf32>
    %243 = arith.select %239, %241, %242 : vector<1x128xi1>, vector<1x128xf32>
    %244 = arith.addf %229, %243 : vector<1x128xf32>
    %245 = vector.shape_cast %244 : vector<1x128xf32> to vector<1x128xf32>
    %246 = vector.broadcast %245 : vector<1x128xf32> to vector<8x128xf32>
    %c0_122 = arith.constant 0 : index
    %c0_123 = arith.constant 0 : index
    %c0_124 = arith.constant 0 : index
    %247 = vector.load %arg6[%c0_122, %c0_123, %c0_124] : memref<1x8x128xf32, #tpu.memory_space<vmem>>, vector<1x8x128xf32>
    %248 = vector.shape_cast %247 : vector<1x8x128xf32> to vector<8x128xf32>
    %249 = vector.shape_cast %246 : vector<8x128xf32> to vector<1x8x128xf32>
    tpu.vector_store %arg6[%c0_122, %c0_123, %c0_124], %249 {strides = array<i32>} : memref<1x8x128xf32, #tpu.memory_space<vmem>>, vector<1x8x128xf32>,
    return
  }
  func.func @transform_0(%arg0: i32) -> (i32, i32, i32) {
    %c0_i32 = arith.constant 0 : i32
    %c0_i32_0 = arith.constant 0 : i32
    %c0_i32_1 = arith.constant 0 : i32
    return %arg0, %c0_i32, %c0_i32_0 : i32, i32, i32
  }
  func.func @transform_1(%arg0: i32) -> (i32, i32, i32, i32) {
    %c0_i32 = arith.constant 0 : i32
    %c0_i32_0 = arith.constant 0 : i32
    %c0_i32_1 = arith.constant 0 : i32
    %c0_i32_2 = arith.constant 0 : i32
    %c0_i32_3 = arith.constant 0 : i32
    return %c0_i32, %c0_i32_0, %c0_i32_1, %c0_i32_2 : i32, i32, i32, i32
  }
  func.func @transform_2(%arg0: i32) -> (i32, i32, i32) {
    %c0_i32 = arith.constant 0 : i32
    %c0_i32_0 = arith.constant 0 : i32
    %c0_i32_1 = arith.constant 0 : i32
    %c0_i32_2 = arith.constant 0 : i32
    return %c0_i32, %c0_i32_0, %c0_i32_1 : i32, i32, i32
  }
  func.func @transform_3(%arg0: i32) -> (i32, i32, i32) {
    %c0_i32 = arith.constant 0 : i32
    %c0_i32_0 = arith.constant 0 : i32
    %c0_i32_1 = arith.constant 0 : i32
    %c0_i32_2 = arith.constant 0 : i32
    return %c0_i32, %c0_i32_0, %c0_i32_1 : i32, i32, i32
  }
  func.func @transform_4(%arg0: i32) -> (i32, i32) {
    %c0_i32 = arith.constant 0 : i32
    %c0_i32_0 = arith.constant 0 : i32
    %c0_i32_1 = arith.constant 0 : i32
    return %c0_i32, %c0_i32_0 : i32, i32
  }
  func.func @transform_5(%arg0: i32) -> (i32, i32, i32) {
    %c0_i32 = arith.constant 0 : i32
    %c0_i32_0 = arith.constant 0 : i32
    %c0_i32_1 = arith.constant 0 : i32
    return %arg0, %c0_i32, %c0_i32_0 : i32, i32, i32
  }
}

</mosaic_0001>

<llo_original>
// kernel: my_model_forward.1
$region0: #{my_model_forward.1}
  #allocation0 [shape = 'u32[]', space=smem, size = 0x4, offset = 0x4, fixed_abs, tag = 'smem constant byte address 0x4 - core index']
  #allocation1 [shape = 'u32[144,128]{1,0:T(1,128)}', space=vmem, size = 0x12000, scoped, tag = 'internal scratch']
  %s0 = inlined_call_operand.vmem [shape: bf16[2,24,512], index: 0, kind: input, shape index: {}]
  %s1 = inlined_call_operand.hbm [shape: bf16[4,3,512,512], index: 1, kind: input, shape index: {}]
  %s2 = inlined_call_operand.hbm [shape: f32[4,1,512], index: 2, kind: input, shape index: {}]
  %s3 = inlined_call_operand.hbm [shape: f32[10,24,512], index: 3, kind: input, shape index: {}]
  %s4 = inlined_call_operand.hbm [shape: f32[1,128], index: 4, kind: input, shape index: {}]
  %s5 = inlined_call_operand.vmem [shape: f32[2,8,128], index: 5, kind: output, shape index: {}]
  %s6 = sld [smem:[#allocation0]]
  $region69: #{my_model_forward.1} parent=0
    _
  %s8 = ssub.s32 1, %s6
  %s9 = scalar_select 0, %s8, %s6
  $region1: #{my_model_forward.1} parent=0
    #allocation2 [shape = 'u8[6291456]{0}', space=vmem, size = 0x600000, scoped, tag = 'input window, operand 1, single buffered']
    #allocation3 [shape = 's32[2]{0}', space=sflag, size = 0x8, scoped, tag = 'scoped memory for my_model_forward.1']
    #allocation4 [shape = 'u8[8192]{0}', space=vmem, size = 0x2000, scoped, tag = 'input window, operand 2, single buffered']
    #allocation5 [shape = 's32[1]{0}', space=sflag, size = 0x4, scoped, tag = 'scoped memory for my_model_forward.1']
    #allocation6 [shape = 'u8[491520]{0}', space=vmem, size = 0x78000, scoped, tag = 'input window, operand 3, single buffered']
    #allocation7 [shape = 'u8[512]{0}', space=vmem, size = 0x400, scoped, tag = 'input window, operand 4, single buffered']
    #allocation8 [shape = 's32[1]{0}', space=sflag, size = 0x4, scoped, tag = 'scoped memory for my_model_forward.1']
    %10 = vsyncpa [#allocation3], 0
    %11 = vsyncpa [#allocation5], 0
    %12 = vsyncpa [#allocation8], 0
    loop: start=0, step=1, limit=4
    $region2: #{my_model_forward.1} parent=1 // loop_pre_header
      _
    $region3: #{my_model_forward.1} parent=1 // loop_header
      %s14 = sphi 0, %s18
      %p15 = scmp.ge.s32.totalorder %s14, 4
      %s24 = sphi 0, %s26
      %s27 = sphi 0, %s24
      %s28 = sphi 0, %s27
      %s44 = sphi 0, %s28
      %s48 = sphi 0, %s48
      %s50 = sphi 0, %s48
      %s51 = sphi 0, %s50
      %s65 = sphi 0, %s51
      %s69 = sphi 0, %s69
      %s71 = sphi 0, %s69
      %s72 = sphi 0, %s71
      %s86 = sphi 0, %s72
      %s90 = sphi 0, %s90
      %s92 = sphi 0, %s90
      %s93 = sphi 0, %s92
      %s107 = sphi 0, %s93
      %s111 = sphi 0, %s111
      %s113 = sphi 0, %s111
      %s114 = sphi 0, %s113
      %s128 = sphi 0, %s114
      %s134 = sphi 0, %s136
      %s137 = sphi 0, %s134
      %s138 = sphi 0, %s137
      %s154 = sphi 0, %s138
    $region4: #{my_model_forward.1} parent=1 // loop_header_branch
      %17 = sbr.rel (%p15) target = $region8
    $region5: #{my_model_forward.1} parent=1 // loop_body
      %s19 = ssub.s32 %s14, 1
      %s20 = ssub.s32 %s14, 2
      %s21 = sadd.s32 %s14, 1
      %s22 = ssub.s32 %s14, %s21
      %p23 = scmp.eq.s32.totalorder %s22, 0
      %s25 = sadd.s32 %s24, 1
      %s26 = scalar_select %p23, %s24, %s25
      %p29 = pneg %p23
      %p30 = scmp.eq.s32.totalorder %s14, 1
      %p31 = por %p29, %p30
      %p32 = scmp.ne.s32.totalorder %s24, %s27
      %p33 = scmp.eq.s32.totalorder %s14, 0
      %p34 = por %p32, %p33
      %p35 = scmp.ne.s32.totalorder %s24, %s27
      %p36 = scmp.eq.s32.totalorder %s19, 1
      %p37 = por %p35, %p36
      %p38 = scmp.ne.s32.totalorder %s27, %s28
      %p39 = scmp.eq.s32.totalorder %s19, 0
      %p40 = por %p38, %p39
      %p41 = scmp.ne.s32.totalorder %s27, %s28
      %p42 = scmp.eq.s32.totalorder %s20, 1
      %p43 = por %p41, %p42
      %p45 = scmp.ne.s32.totalorder %s28, %s44
      %p46 = scmp.eq.s32.totalorder %s20, 0
      %p47 = por %p45, %p46
      %s49 = sadd.s32 %s48, 1
      %p52 = scmp.eq.s32.totalorder %s14, 1
      %p53 = scmp.ne.s32.totalorder %s48, %s50
      %p54 = scmp.eq.s32.totalorder %s14, 0
      %p55 = por %p53, %p54
      %p56 = scmp.ne.s32.totalorder %s48, %s50
      %p57 = scmp.eq.s32.totalorder %s19, 1
      %p58 = por %p56, %p57
      %p59 = scmp.ne.s32.totalorder %s50, %s51
      %p60 = scmp.eq.s32.totalorder %s19, 0
      %p61 = por %p59, %p60
      %p62 = scmp.ne.s32.totalorder %s50, %s51
      %p63 = scmp.eq.s32.totalorder %s20, 1
      %p64 = por %p62, %p63
      %p66 = scmp.ne.s32.totalorder %s51, %s65
      %p67 = scmp.eq.s32.totalorder %s20, 0
      %p68 = por %p66, %p67
      %s70 = sadd.s32 %s69, 1
      %p73 = scmp.eq.s32.totalorder %s14, 1
      %p74 = scmp.ne.s32.totalorder %s69, %s71
      %p75 = scmp.eq.s32.totalorder %s14, 0
      %p76 = por %p74, %p75
      %p77 = scmp.ne.s32.totalorder %s69, %s71
      %p78 = scmp.eq.s32.totalorder %s19, 1
      %p79 = por %p77, %p78
      %p80 = scmp.ne.s32.totalorder %s71, %s72
      %p81 = scmp.eq.s32.totalorder %s19, 0
      %p82 = por %p80, %p81
      %p83 = scmp.ne.s32.totalorder %s71, %s72
      %p84 = scmp.eq.s32.totalorder %s20, 1
      %p85 = por %p83, %p84
      %p87 = scmp.ne.s32.totalorder %s72, %s86
      %p88 = scmp.eq.s32.totalorder %s20, 0
      %p89 = por %p87, %p88
      %s91 = sadd.s32 %s90, 1
      %p94 = scmp.eq.s32.totalorder %s14, 1
      %p95 = scmp.ne.s32.totalorder %s90, %s92
      %p96 = scmp.eq.s32.totalorder %s14, 0
      %p97 = por %p95, %p96
      %p98 = scmp.ne.s32.totalorder %s90, %s92
      %p99 = scmp.eq.s32.totalorder %s19, 1
      %p100 = por %p98, %p99
      %p101 = scmp.ne.s32.totalorder %s92, %s93
      %p102 = scmp.eq.s32.totalorder %s19, 0
      %p103 = por %p101, %p102
      %p104 = scmp.ne.s32.totalorder %s92, %s93
      %p105 = scmp.eq.s32.totalorder %s20, 1
      %p106 = por %p104, %p105
      %p108 = scmp.ne.s32.totalorder %s93, %s107
      %p109 = scmp.eq.s32.totalorder %s20, 0
      %p110 = por %p108, %p109
      %s112 = sadd.s32 %s111, 1
      %p115 = scmp.eq.s32.totalorder %s14, 1
      %p116 = scmp.ne.s32.totalorder %s111, %s113
      %p117 = scmp.eq.s32.totalorder %s14, 0
      %p118 = por %p116, %p117
      %p119 = scmp.ne.s32.totalorder %s111, %s113
      %p120 = scmp.eq.s32.totalorder %s19, 1
      %p121 = por %p119, %p120
      %p122 = scmp.ne.s32.totalorder %s113, %s114
      %p123 = scmp.eq.s32.totalorder %s19, 0
      %p124 = por %p122, %p123
      %p125 = scmp.ne.s32.totalorder %s113, %s114
      %p126 = scmp.eq.s32.totalorder %s20, 1
      %p127 = por %p125, %p126
      %p129 = scmp.ne.s32.totalorder %s114, %s128
      %p130 = scmp.eq.s32.totalorder %s20, 0
      %p131 = por %p129, %p130
      %s132 = ssub.s32 %s14, %s21
      %p133 = scmp.eq.s32.totalorder %s132, 0
      %s135 = sadd.s32 %s134, 1
      %s136 = scalar_select %p133, %s134, %s135
      %p139 = pneg %p133
      %p140 = scmp.eq.s32.totalorder %s14, 1
      %p141 = por %p139, %p140
      %p142 = scmp.ne.s32.totalorder %s134, %s137
      %p143 = scmp.eq.s32.totalorder %s14, 0
      %p144 = por %p142, %p143
      %p145 = scmp.ne.s32.totalorder %s134, %s137
      %p146 = scmp.eq.s32.totalorder %s19, 1
      %p147 = por %p145, %p146
      %p148 = scmp.ne.s32.totalorder %s137, %s138
      %p149 = scmp.eq.s32.totalorder %s19, 0
      %p150 = por %p148, %p149
      %p151 = scmp.ne.s32.totalorder %s137, %s138
      %p152 = scmp.eq.s32.totalorder %s20, 1
      %p153 = por %p151, %p152
      %p155 = scmp.ne.s32.totalorder %s138, %s154
      %p156 = scmp.eq.s32.totalorder %s20, 0
      %p157 = por %p155, %p156
      %p158 = scmp.le.s32.totalorder 1, %s14
      %p159 = scmp.lt.s32.totalorder %s14, 3
      %p160 = pnand %p158, %p159
      %p161 = pneg %p160
      // Predicated region
      $region9: #{my_model_forward.1} parent=5 // pred_check
        _
      $region10: #{my_model_forward.1} parent=5 // pred_check_branch
        %163 = sbr.rel (%p160) target = $region12
      $region11: #{my_model_forward.1} parent=5 // pred_region
        %s164 = ssub.s32 %s14, 1
        // Predicated region
        $region13: #{my_model_forward.1} parent=11 // pred_check
          %p165 = pneg %p61
        $region14: #{my_model_forward.1} parent=11 // pred_check_branch
          %167 = sbr.rel (%p165) target = $region16
        $region15: #{my_model_forward.1} parent=11 // pred_region
          %s169 = ssub.s32 196608, 196608
          %170 = vsyncadd [#allocation3], %s169
          %s171 = sshll.u32 [#allocation2], 4
          %s172 = int_to_ptr.vmem [resolvable:$true] %s171
          %177 = dma.hbm_to_vmem [thread:$0]  %s1, 196608, %s172, [#allocation3], 256, 256, 16
        $region16: #{my_model_forward.1} parent=11 // pred_fallthru
          _
        // Predicated region
        $region17: #{my_model_forward.1} parent=11 // pred_check
          %p178 = pneg %p82
        $region18: #{my_model_forward.1} parent=11 // pred_check_branch
          %180 = sbr.rel (%p178) target = $region20
        $region19: #{my_model_forward.1} parent=11 // pred_region
          %s182 = ssub.s32 256, 256
          %183 = vsyncadd [#allocation5], %s182
          %s184 = sshll.u32 [#allocation4], 4
          %s185 = int_to_ptr.vmem [resolvable:$true] %s184
          %190 = dma.hbm_to_vmem [thread:$0]  %s2, 256, %s185, [#allocation5], 64, 64, 4
        $region20: #{my_model_forward.1} parent=11 // pred_fallthru
          _
        // Predicated region
        $region21: #{my_model_forward.1} parent=11 // pred_check
          %p191 = pneg %p103
        $region22: #{my_model_forward.1} parent=11 // pred_check_branch
          %193 = sbr.rel (%p191) target = $region24
        $region23: #{my_model_forward.1} parent=11 // pred_region
          %s195 = ssub.s32 15360, 15360
          %196 = vsyncadd [#allocation5], %s195
          %s197 = sshll.u32 [#allocation6], 4
          %s198 = int_to_ptr.vmem [resolvable:$true] %s197
          %203 = dma.hbm_to_vmem [thread:$0]  %s3, 15360, %s198, [#allocation5], 512, 512, 32
        $region24: #{my_model_forward.1} parent=11 // pred_fallthru
          _
        // Predicated region
        $region25: #{my_model_forward.1} parent=11 // pred_check
          %p204 = pneg %p124
        $region26: #{my_model_forward.1} parent=11 // pred_check_branch
          %206 = sbr.rel (%p204) target = $region28
        $region27: #{my_model_forward.1} parent=11 // pred_region
          %s208 = ssub.s32 16, 16
          %209 = vsyncadd [#allocation8], %s208
          %s211 = sshll.u32 [#allocation7], 4
          %s212 = int_to_ptr.vmem [resolvable:$true] %s211
          %214 = dma.hbm_to_vmem [thread:$0]  %s4, 16, %s212, [#allocation8]
        $region28: #{my_model_forward.1} parent=11 // pred_fallthru
          _
      $region12: #{my_model_forward.1} parent=5 // pred_fallthru
        _
      %p215 = scmp.lt.s32.totalorder %s14, 2
      // Predicated region
      $region29: #{my_model_forward.1} parent=5 // pred_check
        %p216 = pneg %p215
      $region30: #{my_model_forward.1} parent=5 // pred_check_branch
        %218 = sbr.rel (%p216) target = $region32
      $region31: #{my_model_forward.1} parent=5 // pred_region
        // Predicated region
        $region33: #{my_model_forward.1} parent=31 // pred_check
          %p219 = pneg %p34
        $region34: #{my_model_forward.1} parent=31 // pred_check_branch
          %221 = sbr.rel (%p219) target = $region36
        $region35: #{my_model_forward.1} parent=31 // pred_region
          %p222 = scmp.lt.s32.totalorder %s14, 1
          %s223 = scalar_select %p222, %s14, 1
          %s224 = smul.addr %s223, 12
          %s225 = smul.addr %s224, 4
          %s226 = scalar_lea.vmem %s0, %s225
        $region36: #{my_model_forward.1} parent=31 // pred_fallthru
          _
      $region32: #{my_model_forward.1} parent=5 // pred_fallthru
        _
      %p227 = scmp.le.s32.totalorder 1, %s14
      %p228 = scmp.lt.s32.totalorder %s14, 3
      %p229 = pnand %p227, %p228
      %p230 = pneg %p229
      // Predicated region
      $region37: #{my_model_forward.1} parent=5 // pred_check
        _
      $region38: #{my_model_forward.1} parent=5 // pred_check_branch
        %232 = sbr.rel (%p229) target = $region40
      $region39: #{my_model_forward.1} parent=5 // pred_region
        %s233 = ssub.s32 %s14, 1
        // Predicated region
        $region41: #{my_model_forward.1} parent=39 // pred_check
          %p234 = pneg %p61
        $region42: #{my_model_forward.1} parent=39 // pred_check_branch
          %236 = sbr.rel (%p234) target = $region44
        $region43: #{my_model_forward.1} parent=39 // pred_region
          %237 = dma.done [#allocation3], 196608
        $region44: #{my_model_forward.1} parent=39 // pred_fallthru
          _
        // Predicated region
        $region45: #{my_model_forward.1} parent=39 // pred_check
          %p238 = pneg %p82
        $region46: #{my_model_forward.1} parent=39 // pred_check_branch
          %240 = sbr.rel (%p238) target = $region48
        $region47: #{my_model_forward.1} parent=39 // pred_region
          %241 = dma.done [#allocation5], 256
        $region48: #{my_model_forward.1} parent=39 // pred_fallthru
          _
        // Predicated region
        $region49: #{my_model_forward.1} parent=39 // pred_check
          %p242 = pneg %p103
        $region50: #{my_model_forward.1} parent=39 // pred_check_branch
          %244 = sbr.rel (%p242) target = $region52
        $region51: #{my_model_forward.1} parent=39 // pred_region
          %245 = dma.done [#allocation5], 15360
        $region52: #{my_model_forward.1} parent=39 // pred_fallthru
          _
        // Predicated region
        $region53: #{my_model_forward.1} parent=39 // pred_check
          %p246 = pneg %p124
        $region54: #{my_model_forward.1} parent=39 // pred_check_branch
          %248 = sbr.rel (%p246) target = $region56
        $region55: #{my_model_forward.1} parent=39 // pred_region
          %249 = dma.done [#allocation8], 16
        $region56: #{my_model_forward.1} parent=39 // pred_fallthru
          _
        %p250 = scmp.lt.s32.totalorder %s19, 1
        %s251 = scalar_select %p250, %s19, 1
        %s252 = smul.addr %s251, 12
        %s253 = smul.addr %s252, 4
        %s254 = scalar_lea.vmem %s0, %s253
        %p255 = pneg %p40
        %p256 = pneg %p37
        %p257 = pneg %p61
        %p258 = pneg %p58
        %p259 = pneg %p82
        %p260 = pneg %p79
        %p261 = pneg %p103
        %p262 = pneg %p100
        %p263 = pneg %p124
        %p264 = pneg %p121
        %p265 = pneg %p150
        %p266 = pneg %p147
        %p267 = scmp.lt.s32.totalorder %s19, 1
        %s268 = scalar_select %p267, %s19, 1
        %s269 = smul.addr %s268, 8
        %s270 = scalar_lea.vmem %s5, %s269
        %p271 = scmp.lt.s32.totalorder %s19, 1
        %s272 = scalar_select %p271, %s19, 1
        %s273 = smul.addr %s272, 12
        %s274 = smul.addr %s273, 4
        %s275 = scalar_lea.vmem %s0, %s274
        %p276 = scmp.lt.s32.totalorder %s19, 1
        %s277 = scalar_select %p276, %s19, 1
        %s278 = smul.addr %s277, 8
        %s279 = scalar_lea.vmem %s5, %s278
        %v281 = vld [vmem:[%s275] sm:$0xff]
        %v282 = vld [vmem:[%s275 + $0x8] sm:$0xff]
        %v283 = vld [vmem:[%s275 + $0x10] sm:$0xff]
        %v284 = vld [vmem:[%s275 + $0x18] sm:$0xff]
        %v285 = vld [vmem:[%s275 + $0x20] sm:$0xff]
        %v286 = vld [vmem:[%s275 + $0x28] sm:$0xff]
        %v293 = vunpack.c.l.b16 %v281
        %v294 = vunpack.c.h.b16 %v281
        %v295 = vunpack.c.l.b16 %v282
        %v296 = vunpack.c.h.b16 %v282
        %v297 = vunpack.c.l.b16 %v283
        %v298 = vunpack.c.h.b16 %v283
        %v299 = vunpack.c.l.b16 %v284
        %v300 = vunpack.c.h.b16 %v284
        %v301 = vunpack.c.l.b16 %v285
        %v302 = vunpack.c.h.b16 %v285
        %v303 = vunpack.c.l.b16 %v286
        %v304 = vunpack.c.h.b16 %v286
        %v305 = vpack.c.b16 %v297, %v293
        %v306 = vpack.c.b16 %v298, %v294
        %v307 = vpack.c.b16 %v299, %v295
        %v308 = vpack.c.b16 %v300, %v296
        %v309 = vpack.c.b16 %v301, %v301
        %v310 = vpack.c.b16 %v302, %v302
        %v311 = vpack.c.b16 %v303, %v303
        %v312 = vpack.c.b16 %v304, %v304
        %vm317 = vcmask 1043456
        %v320 = vsel %vm317, %v309, 0
        %v323 = vsel %vm317, %v310, 0
        %v326 = vsel %vm317, %v311, 0
        %v329 = vsel %vm317, %v312, 0
        %v331 = vld [vmem:[#allocation4] sm:$0xf]
        %v333 = vlaneseq
        %v334 = vshrl.u32 %v333, 7
        %v335 = vsub.s32 0, %v334
        %v336 = vrot.slane %v331, %v335
        %v337 = vlaneseq
        %v338 = vshrl.u32 %v337, 7
        %v339 = vsub.s32 1, %v338
        %v340 = vrot.slane %v331, %v339
        %v341 = vlaneseq
        %v342 = vshrl.u32 %v341, 7
        %v343 = vsub.s32 2, %v342
        %v344 = vrot.slane %v331, %v343
        %v345 = vlaneseq
        %v346 = vshrl.u32 %v345, 7
        %v347 = vsub.s32 3, %v346
        %v348 = vrot.slane %v331, %v347
        %v353 = vld [vmem:[#allocation2] sm:$0xff]
        %v354 = vld [vmem:[#allocation2 + $0x8] sm:$0xff]
        %v355 = vld [vmem:[#allocation2 + $0x10] sm:$0xff]
        %v356 = vld [vmem:[#allocation2 + $0x18] sm:$0xff]
        %v357 = vld [vmem:[#allocation2 + $0x20] sm:$0xff]
        %v358 = vld [vmem:[#allocation2 + $0x28] sm:$0xff]
        %v359 = vld [vmem:[#allocation2 + $0x30] sm:$0xff]
        %v360 = vld [vmem:[#allocation2 + $0x38] sm:$0xff]
        %v361 = vld [vmem:[#allocation2 + $0x40] sm:$0xff]
        %v362 = vld [vmem:[#allocation2 + $0x48] sm:$0xff]
        %v363 = vld [vmem:[#allocation2 + $0x50] sm:$0xff]
        %v364 = vld [vmem:[#allocation2 + $0x58] sm:$0xff]
        %v365 = vld [vmem:[#allocation2 + $0x60] sm:$0xff]
        %v366 = vld [vmem:[#allocation2 + $0x68] sm:$0xff]
        %v367 = vld [vmem:[#allocation2 + $0x70] sm:$0xff]
        %v368 = vld [vmem:[#allocation2 + $0x78] sm:$0xff]
        %v369 = vld [vmem:[#allocation2 + $0x80] sm:$0xff]
        %v370 = vld [vmem:[#allocation2 + $0x88] sm:$0xff]
        %v371 = vld [vmem:[#allocation2 + $0x90] sm:$0xff]
        %v372 = vld [vmem:[#allocation2 + $0x98] sm:$0xff]
        %v373 = vld [vmem:[#allocation2 + $0xa0] sm:$0xff]
        %v374 = vld [vmem:[#allocation2 + $0xa8] sm:$0xff]
        %v375 = vld [vmem:[#allocation2 + $0xb0] sm:$0xff]
        %v376 = vld [vmem:[#allocation2 + $0xb8] sm:$0xff]
        %v377 = vld [vmem:[#allocation2 + $0xc0] sm:$0xff]
        %v378 = vld [vmem:[#allocation2 + $0xc8] sm:$0xff]
        %v379 = vld [vmem:[#allocation2 + $0xd0] sm:$0xff]
        %v380 = vld [vmem:[#allocation2 + $0xd8] sm:$0xff]
        %v381 = vld [vmem:[#allocation2 + $0xe0] sm:$0xff]
        %v382 = vld [vmem:[#allocation2 + $0xe8] sm:$0xff]
        %v383 = vld [vmem:[#allocation2 + $0xf0] sm:$0xff]
        %v384 = vld [vmem:[#allocation2 + $0xf8] sm:$0xff]
        %v385 = vld [vmem:[#allocation2 + $0x100] sm:$0xff]
        %v386 = vld [vmem:[#allocation2 + $0x108] sm:$0xff]
        %v387 = vld [vmem:[#allocation2 + $0x110] sm:$0xff]
        %v388 = vld [vmem:[#allocation2 + $0x118] sm:$0xff]
        %v389 = vld [vmem:[#allocation2 + $0x120] sm:$0xff]
        %v390 = vld [vmem:[#allocation2 + $0x128] sm:$0xff]
        %v391 = vld [vmem:[#allocation2 + $0x130] sm:$0xff]
        %v392 = vld [vmem:[#allocation2 + $0x138] sm:$0xff]
        %v393 = vld [vmem:[#allocation2 + $0x140] sm:$0xff]
        %v394 = vld [vmem:[#allocation2 + $0x148] sm:$0xff]
        %v395 = vld [vmem:[#allocation2 + $0x150] sm:$0xff]
        %v396 = vld [vmem:[#allocation2 + $0x158] sm:$0xff]
        %v397 = vld [vmem:[#allocation2 + $0x160] sm:$0xff]
        %v398 = vld [vmem:[#allocation2 + $0x168] sm:$0xff]
        %v399 = vld [vmem:[#allocation2 + $0x170] sm:$0xff]
        %v400 = vld [vmem:[#allocation2 + $0x178] sm:$0xff]
        %v401 = vld [vmem:[#allocation2 + $0x180] sm:$0xff]
        %v402 = vld [vmem:[#allocation2 + $0x188] sm:$0xff]
        %v403 = vld [vmem:[#allocation2 + $0x190] sm:$0xff]
        %v404 = vld [vmem:[#allocation2 + $0x198] sm:$0xff]
        %v405 = vld [vmem:[#allocation2 + $0x1a0] sm:$0xff]
        %v406 = vld [vmem:[#allocation2 + $0x1a8] sm:$0xff]
        %v407 = vld [vmem:[#allocation2 + $0x1b0] sm:$0xff]
        %v408 = vld [vmem:[#allocation2 + $0x1b8] sm:$0xff]
        %v409 = vld [vmem:[#allocation2 + $0x1c0] sm:$0xff]
        %v410 = vld [vmem:[#allocation2 + $0x1c8] sm:$0xff]
        %v411 = vld [vmem:[#allocation2 + $0x1d0] sm:$0xff]
        %v412 = vld [vmem:[#allocation2 + $0x1d8] sm:$0xff]
        %v413 = vld [vmem:[#allocation2 + $0x1e0] sm:$0xff]
        %v414 = vld [vmem:[#allocation2 + $0x1e8] sm:$0xff]
        %v415 = vld [vmem:[#allocation2 + $0x1f0] sm:$0xff]
        %v416 = vld [vmem:[#allocation2 + $0x1f8] sm:$0xff]
        %v417 = vld [vmem:[#allocation2 + $0x200] sm:$0xff]
        %v418 = vld [vmem:[#allocation2 + $0x208] sm:$0xff]
        %v419 = vld [vmem:[#allocation2 + $0x210] sm:$0xff]
        %v420 = vld [vmem:[#allocation2 + $0x218] sm:$0xff]
        %v421 = vld [vmem:[#allocation2 + $0x220] sm:$0xff]
        %v422 = vld [vmem:[#allocation2 + $0x228] sm:$0xff]
        %v423 = vld [vmem:[#allocation2 + $0x230] sm:$0xff]
        %v424 = vld [vmem:[#allocation2 + $0x238] sm:$0xff]
        %v425 = vld [vmem:[#allocation2 + $0x240] sm:$0xff]
        %v426 = vld [vmem:[#allocation2 + $0x248] sm:$0xff]
        %v427 = vld [vmem:[#allocation2 + $0x250] sm:$0xff]
        %v428 = vld [vmem:[#allocation2 + $0x258] sm:$0xff]
        %v429 = vld [vmem:[#allocation2 + $0x260] sm:$0xff]
        %v430 = vld [vmem:[#allocation2 + $0x268] sm:$0xff]
        %v431 = vld [vmem:[#allocation2 + $0x270] sm:$0xff]
        %v432 = vld [vmem:[#allocation2 + $0x278] sm:$0xff]
        %v433 = vld [vmem:[#allocation2 + $0x280] sm:$0xff]
        %v434 = vld [vmem:[#allocation2 + $0x288] sm:$0xff]
        %v435 = vld [vmem:[#allocation2 + $0x290] sm:$0xff]
        %v436 = vld [vmem:[#allocation2 + $0x298] sm:$0xff]
        %v437 = vld [vmem:[#allocation2 + $0x2a0] sm:$0xff]
        %v438 = vld [vmem:[#allocation2 + $0x2a8] sm:$0xff]
        %v439 = vld [vmem:[#allocation2 + $0x2b0] sm:$0xff]
        %v440 = vld [vmem:[#allocation2 + $0x2b8] sm:$0xff]
        %v441 = vld [vmem:[#allocation2 + $0x2c0] sm:$0xff]
        %v442 = vld [vmem:[#allocation2 + $0x2c8] sm:$0xff]
        %v443 = vld [vmem:[#allocation2 + $0x2d0] sm:$0xff]
        %v444 = vld [vmem:[#allocation2 + $0x2d8] sm:$0xff]
        %v445 = vld [vmem:[#allocation2 + $0x2e0] sm:$0xff]
        %v446 = vld [vmem:[#allocation2 + $0x2e8] sm:$0xff]
        %v447 = vld [vmem:[#allocation2 + $0x2f0] sm:$0xff]
        %v448 = vld [vmem:[#allocation2 + $0x2f8] sm:$0xff]
        %v449 = vld [vmem:[#allocation2 + $0x300] sm:$0xff]
        %v450 = vld [vmem:[#allocation2 + $0x308] sm:$0xff]
        %v451 = vld [vmem:[#allocation2 + $0x310] sm:$0xff]
        %v452 = vld [vmem:[#allocation2 + $0x318] sm:$0xff]
        %v453 = vld [vmem:[#allocation2 + $0x320] sm:$0xff]
        %v454 = vld [vmem:[#allocation2 + $0x328] sm:$0xff]
        %v455 = vld [vmem:[#allocation2 + $0x330] sm:$0xff]
        %v456 = vld [vmem:[#allocation2 + $0x338] sm:$0xff]
        %v457 = vld [vmem:[#allocation2 + $0x340] sm:$0xff]
        %v458 = vld [vmem:[#allocation2 + $0x348] sm:$0xff]
        %v459 = vld [vmem:[#allocation2 + $0x350] sm:$0xff]
        %v460 = vld [vmem:[#allocation2 + $0x358] sm:$0xff]
        %v461 = vld [vmem:[#allocation2 + $0x360] sm:$0xff]
        %v462 = vld [vmem:[#allocation2 + $0x368] sm:$0xff]
        %v463 = vld [vmem:[#allocation2 + $0x370] sm:$0xff]
        %v464 = vld [vmem:[#allocation2 + $0x378] sm:$0xff]
        %v465 = vld [vmem:[#allocation2 + $0x380] sm:$0xff]
        %v466 = vld [vmem:[#allocation2 + $0x388] sm:$0xff]
        %v467 = vld [vmem:[#allocation2 + $0x390] sm:$0xff]
        %v468 = vld [vmem:[#allocation2 + $0x398] sm:$0xff]
        %v469 = vld [vmem:[#allocation2 + $0x3a0] sm:$0xff]
        %v470 = vld [vmem:[#allocation2 + $0x3a8] sm:$0xff]
        %v471 = vld [vmem:[#allocation2 + $0x3b0] sm:$0xff]
        %v472 = vld [vmem:[#allocation2 + $0x3b8] sm:$0xff]
        %v473 = vld [vmem:[#allocation2 + $0x3c0] sm:$0xff]
        %v474 = vld [vmem:[#allocation2 + $0x3c8] sm:$0xff]
        %v475 = vld [vmem:[#allocation2 + $0x3d0] sm:$0xff]
        %v476 = vld [vmem:[#allocation2 + $0x3d8] sm:$0xff]
        %v477 = vld [vmem:[#allocation2 + $0x3e0] sm:$0xff]
        %v478 = vld [vmem:[#allocation2 + $0x3e8] sm:$0xff]
        %v479 = vld [vmem:[#allocation2 + $0x3f0] sm:$0xff]
        %v480 = vld [vmem:[#allocation2 + $0x3f8] sm:$0xff]
        %v609 = vunpack.c.l.b16 %v353
        %v610 = vunpack.c.h.b16 %v353
        %v611 = vunpack.c.l.b16 %v354
        %v612 = vunpack.c.h.b16 %v354
        %v613 = vunpack.c.l.b16 %v355
        %v614 = vunpack.c.h.b16 %v355
        %v615 = vunpack.c.l.b16 %v356
        %v616 = vunpack.c.h.b16 %v356
        %v617 = vunpack.c.l.b16 %v357
        %v618 = vunpack.c.h.b16 %v357
        %v619 = vunpack.c.l.b16 %v358
        %v620 = vunpack.c.h.b16 %v358
        %v621 = vunpack.c.l.b16 %v359
        %v622 = vunpack.c.h.b16 %v359
        %v623 = vunpack.c.l.b16 %v360
        %v624 = vunpack.c.h.b16 %v360
        %v625 = vunpack.c.l.b16 %v361
        %v626 = vunpack.c.h.b16 %v361
        %v627 = vunpack.c.l.b16 %v362
        %v628 = vunpack.c.h.b16 %v362
        %v629 = vunpack.c.l.b16 %v363
        %v630 = vunpack.c.h.b16 %v363
        %v631 = vunpack.c.l.b16 %v364
        %v632 = vunpack.c.h.b16 %v364
        %v633 = vunpack.c.l.b16 %v365
        %v634 = vunpack.c.h.b16 %v365
        %v635 = vunpack.c.l.b16 %v366
        %v636 = vunpack.c.h.b16 %v366
        %v637 = vunpack.c.l.b16 %v367
        %v638 = vunpack.c.h.b16 %v367
        %v639 = vunpack.c.l.b16 %v368
        %v640 = vunpack.c.h.b16 %v368
        %v641 = vunpack.c.l.b16 %v369
        %v642 = vunpack.c.h.b16 %v369
        %v643 = vunpack.c.l.b16 %v370
        %v644 = vunpack.c.h.b16 %v370
        %v645 = vunpack.c.l.b16 %v371
        %v646 = vunpack.c.h.b16 %v371
        %v647 = vunpack.c.l.b16 %v372
        %v648 = vunpack.c.h.b16 %v372
        %v649 = vunpack.c.l.b16 %v373
        %v650 = vunpack.c.h.b16 %v373
        %v651 = vunpack.c.l.b16 %v374
        %v652 = vunpack.c.h.b16 %v374
        %v653 = vunpack.c.l.b16 %v375
        %v654 = vunpack.c.h.b16 %v375
        %v655 = vunpack.c.l.b16 %v376
        %v656 = vunpack.c.h.b16 %v376
        %v657 = vunpack.c.l.b16 %v377
        %v658 = vunpack.c.h.b16 %v377
        %v659 = vunpack.c.l.b16 %v378
        %v660 = vunpack.c.h.b16 %v378
        %v661 = vunpack.c.l.b16 %v379
        %v662 = vunpack.c.h.b16 %v379
        %v663 = vunpack.c.l.b16 %v380
        %v664 = vunpack.c.h.b16 %v380
        %v665 = vunpack.c.l.b16 %v381
        %v666 = vunpack.c.h.b16 %v381
        %v667 = vunpack.c.l.b16 %v382
        %v668 = vunpack.c.h.b16 %v382
        %v669 = vunpack.c.l.b16 %v383
        %v670 = vunpack.c.h.b16 %v383
        %v671 = vunpack.c.l.b16 %v384
        %v672 = vunpack.c.h.b16 %v384
        %v673 = vunpack.c.l.b16 %v385
        %v674 = vunpack.c.h.b16 %v385
        %v675 = vunpack.c.l.b16 %v386
        %v676 = vunpack.c.h.b16 %v386
        %v677 = vunpack.c.l.b16 %v387
        %v678 = vunpack.c.h.b16 %v387
        %v679 = vunpack.c.l.b16 %v388
        %v680 = vunpack.c.h.b16 %v388
        %v681 = vunpack.c.l.b16 %v389
        %v682 = vunpack.c.h.b16 %v389
        %v683 = vunpack.c.l.b16 %v390
        %v684 = vunpack.c.h.b16 %v390
        %v685 = vunpack.c.l.b16 %v391
        %v686 = vunpack.c.h.b16 %v391
        %v687 = vunpack.c.l.b16 %v392
        %v688 = vunpack.c.h.b16 %v392
        %v689 = vunpack.c.l.b16 %v393
        %v690 = vunpack.c.h.b16 %v393
        %v691 = vunpack.c.l.b16 %v394
        %v692 = vunpack.c.h.b16 %v394
        %v693 = vunpack.c.l.b16 %v395
        %v694 = vunpack.c.h.b16 %v395
        %v695 = vunpack.c.l.b16 %v396
        %v696 = vunpack.c.h.b16 %v396
        %v697 = vunpack.c.l.b16 %v397
        %v698 = vunpack.c.h.b16 %v397
        %v699 = vunpack.c.l.b16 %v398
        %v700 = vunpack.c.h.b16 %v398
        %v701 = vunpack.c.l.b16 %v399
        %v702 = vunpack.c.h.b16 %v399
        %v703 = vunpack.c.l.b16 %v400
        %v704 = vunpack.c.h.b16 %v400
        %v705 = vunpack.c.l.b16 %v401
        %v706 = vunpack.c.h.b16 %v401
        %v707 = vunpack.c.l.b16 %v402
        %v708 = vunpack.c.h.b16 %v402
        %v709 = vunpack.c.l.b16 %v403
        %v710 = vunpack.c.h.b16 %v403
        %v711 = vunpack.c.l.b16 %v404
        %v712 = vunpack.c.h.b16 %v404
        %v713 = vunpack.c.l.b16 %v405
        %v714 = vunpack.c.h.b16 %v405
        %v715 = vunpack.c.l.b16 %v406
        %v716 = vunpack.c.h.b16 %v406
        %v717 = vunpack.c.l.b16 %v407
        %v718 = vunpack.c.h.b16 %v407
        %v719 = vunpack.c.l.b16 %v408
        %v720 = vunpack.c.h.b16 %v408
        %v721 = vunpack.c.l.b16 %v409
        %v722 = vunpack.c.h.b16 %v409
        %v723 = vunpack.c.l.b16 %v410
        %v724 = vunpack.c.h.b16 %v410
        %v725 = vunpack.c.l.b16 %v411
        %v726 = vunpack.c.h.b16 %v411
        %v727 = vunpack.c.l.b16 %v412
        %v728 = vunpack.c.h.b16 %v412
        %v729 = vunpack.c.l.b16 %v413
        %v730 = vunpack.c.h.b16 %v413
        %v731 = vunpack.c.l.b16 %v414
        %v732 = vunpack.c.h.b16 %v414
        %v733 = vunpack.c.l.b16 %v415
        %v734 = vunpack.c.h.b16 %v415
        %v735 = vunpack.c.l.b16 %v416
        %v736 = vunpack.c.h.b16 %v416
        %v737 = vunpack.c.l.b16 %v417
        %v738 = vunpack.c.h.b16 %v417
        %v739 = vunpack.c.l.b16 %v418
        %v740 = vunpack.c.h.b16 %v418
        %v741 = vunpack.c.l.b16 %v419
        %v742 = vunpack.c.h.b16 %v419
        %v743 = vunpack.c.l.b16 %v420
        %v744 = vunpack.c.h.b16 %v420
        %v745 = vunpack.c.l.b16 %v421
        %v746 = vunpack.c.h.b16 %v421
        %v747 = vunpack.c.l.b16 %v422
        %v748 = vunpack.c.h.b16 %v422
        %v749 = vunpack.c.l.b16 %v423
        %v750 = vunpack.c.h.b16 %v423
        %v751 = vunpack.c.l.b16 %v424
        %v752 = vunpack.c.h.b16 %v424
        %v753 = vunpack.c.l.b16 %v425
        %v754 = vunpack.c.h.b16 %v425
        %v755 = vunpack.c.l.b16 %v426
        %v756 = vunpack.c.h.b16 %v426
        %v757 = vunpack.c.l.b16 %v427
        %v758 = vunpack.c.h.b16 %v427
        %v759 = vunpack.c.l.b16 %v428
        %v760 = vunpack.c.h.b16 %v428
        %v761 = vunpack.c.l.b16 %v429
        %v762 = vunpack.c.h.b16 %v429
        %v763 = vunpack.c.l.b16 %v430
        %v764 = vunpack.c.h.b16 %v430
        %v765 = vunpack.c.l.b16 %v431
        %v766 = vunpack.c.h.b16 %v431
        %v767 = vunpack.c.l.b16 %v432
        %v768 = vunpack.c.h.b16 %v432
        %v769 = vunpack.c.l.b16 %v433
        %v770 = vunpack.c.h.b16 %v433
        %v771 = vunpack.c.l.b16 %v434
        %v772 = vunpack.c.h.b16 %v434
        %v773 = vunpack.c.l.b16 %v435
        %v774 = vunpack.c.h.b16 %v435
        %v775 = vunpack.c.l.b16 %v436
        %v776 = vunpack.c.h.b16 %v436
        %v777 = vunpack.c.l.b16 %v437
        %v778 = vunpack.c.h.b16 %v437
        %v779 = vunpack.c.l.b16 %v438
        %v780 = vunpack.c.h.b16 %v438
        %v781 = vunpack.c.l.b16 %v439
        %v782 = vunpack.c.h.b16 %v439
        %v783 = vunpack.c.l.b16 %v440
        %v784 = vunpack.c.h.b16 %v440
        %v785 = vunpack.c.l.b16 %v441
        %v786 = vunpack.c.h.b16 %v441
        %v787 = vunpack.c.l.b16 %v442
        %v788 = vunpack.c.h.b16 %v442
        %v789 = vunpack.c.l.b16 %v443
        %v790 = vunpack.c.h.b16 %v443
        %v791 = vunpack.c.l.b16 %v444
        %v792 = vunpack.c.h.b16 %v444
        %v793 = vunpack.c.l.b16 %v445
        %v794 = vunpack.c.h.b16 %v445
        %v795 = vunpack.c.l.b16 %v446
        %v796 = vunpack.c.h.b16 %v446
        %v797 = vunpack.c.l.b16 %v447
        %v798 = vunpack.c.h.b16 %v447
        %v799 = vunpack.c.l.b16 %v448
        %v800 = vunpack.c.h.b16 %v448
        %v801 = vunpack.c.l.b16 %v449
        %v802 = vunpack.c.h.b16 %v449
        %v803 = vunpack.c.l.b16 %v450
        %v804 = vunpack.c.h.b16 %v450
        %v805 = vunpack.c.l.b16 %v451
        %v806 = vunpack.c.h.b16 %v451
        %v807 = vunpack.c.l.b16 %v452
        %v808 = vunpack.c.h.b16 %v452
        %v809 = vunpack.c.l.b16 %v453
        %v810 = vunpack.c.h.b16 %v453
        %v811 = vunpack.c.l.b16 %v454
        %v812 = vunpack.c.h.b16 %v454
        %v813 = vunpack.c.l.b16 %v455
        %v814 = vunpack.c.h.b16 %v455
        %v815 = vunpack.c.l.b16 %v456
        %v816 = vunpack.c.h.b16 %v456
        %v817 = vunpack.c.l.b16 %v457
        %v818 = vunpack.c.h.b16 %v457
        %v819 = vunpack.c.l.b16 %v458
        %v820 = vunpack.c.h.b16 %v458
        %v821 = vunpack.c.l.b16 %v459
        %v822 = vunpack.c.h.b16 %v459
        %v823 = vunpack.c.l.b16 %v460
        %v824 = vunpack.c.h.b16 %v460
        %v825 = vunpack.c.l.b16 %v461
        %v826 = vunpack.c.h.b16 %v461
        %v827 = vunpack.c.l.b16 %v462
        %v828 = vunpack.c.h.b16 %v462
        %v829 = vunpack.c.l.b16 %v463
        %v830 = vunpack.c.h.b16 %v463
        %v831 = vunpack.c.l.b16 %v464
        %v832 = vunpack.c.h.b16 %v464
        %v833 = vunpack.c.l.b16 %v465
        %v834 = vunpack.c.h.b16 %v465
        %v835 = vunpack.c.l.b16 %v466
        %v836 = vunpack.c.h.b16 %v466
        %v837 = vunpack.c.l.b16 %v467
        %v838 = vunpack.c.h.b16 %v467
        %v839 = vunpack.c.l.b16 %v468
        %v840 = vunpack.c.h.b16 %v468
        %v841 = vunpack.c.l.b16 %v469
        %v842 = vunpack.c.h.b16 %v469
        %v843 = vunpack.c.l.b16 %v470
        %v844 = vunpack.c.h.b16 %v470
        %v845 = vunpack.c.l.b16 %v471
        %v846 = vunpack.c.h.b16 %v471
        %v847 = vunpack.c.l.b16 %v472
        %v848 = vunpack.c.h.b16 %v472
        %v849 = vunpack.c.l.b16 %v473
        %v850 = vunpack.c.h.b16 %v473
        %v851 = vunpack.c.l.b16 %v474
        %v852 = vunpack.c.h.b16 %v474
        %v853 = vunpack.c.l.b16 %v475
        %v854 = vunpack.c.h.b16 %v475
        %v855 = vunpack.c.l.b16 %v476
        %v856 = vunpack.c.h.b16 %v476
        %v857 = vunpack.c.l.b16 %v477
        %v858 = vunpack.c.h.b16 %v477
        %v859 = vunpack.c.l.b16 %v478
        %v860 = vunpack.c.h.b16 %v478
        %v861 = vunpack.c.l.b16 %v479
        %v862 = vunpack.c.h.b16 %v479
        %v863 = vunpack.c.l.b16 %v480
        %v864 = vunpack.c.h.b16 %v480
        %v865 = vpack.c.b16 %v613, %v609
        %v866 = vpack.c.b16 %v614, %v610
        %v867 = vpack.c.b16 %v615, %v611
        %v868 = vpack.c.b16 %v616, %v612
        %v869 = vpack.c.b16 %v621, %v617
        %v870 = vpack.c.b16 %v622, %v618
        %v871 = vpack.c.b16 %v623, %v619
        %v872 = vpack.c.b16 %v624, %v620
        %v873 = vpack.c.b16 %v629, %v625
        %v874 = vpack.c.b16 %v630, %v626
        %v875 = vpack.c.b16 %v631, %v627
        %v876 = vpack.c.b16 %v632, %v628
        %v877 = vpack.c.b16 %v637, %v633
        %v878 = vpack.c.b16 %v638, %v634
        %v879 = vpack.c.b16 %v639, %v635
        %v880 = vpack.c.b16 %v640, %v636
        %v881 = vpack.c.b16 %v645, %v641
        %v882 = vpack.c.b16 %v646, %v642
        %v883 = vpack.c.b16 %v647, %v643
        %v884 = vpack.c.b16 %v648, %v644
        %v885 = vpack.c.b16 %v653, %v649
        %v886 = vpack.c.b16 %v654, %v650
        %v887 = vpack.c.b16 %v655, %v651
        %v888 = vpack.c.b16 %v656, %v652
        %v889 = vpack.c.b16 %v661, %v657
        %v890 = vpack.c.b16 %v662, %v658
        %v891 = vpack.c.b16 %v663, %v659
        %v892 = vpack.c.b16 %v664, %v660
        %v893 = vpack.c.b16 %v669, %v665
        %v894 = vpack.c.b16 %v670, %v666
        %v895 = vpack.c.b16 %v671, %v667
        %v896 = vpack.c.b16 %v672, %v668
        %v897 = vpack.c.b16 %v677, %v673
        %v898 = vpack.c.b16 %v678, %v674
        %v899 = vpack.c.b16 %v679, %v675
        %v900 = vpack.c.b16 %v680, %v676
        %v901 = vpack.c.b16 %v685, %v681
        %v902 = vpack.c.b16 %v686, %v682
        %v903 = vpack.c.b16 %v687, %v683
        %v904 = vpack.c.b16 %v688, %v684
        %v905 = vpack.c.b16 %v693, %v689
        %v906 = vpack.c.b16 %v694, %v690
        %v907 = vpack.c.b16 %v695, %v691
        %v908 = vpack.c.b16 %v696, %v692
        %v909 = vpack.c.b16 %v701, %v697
        %v910 = vpack.c.b16 %v702, %v698
        %v911 = vpack.c.b16 %v703, %v699
        %v912 = vpack.c.b16 %v704, %v700
        %v913 = vpack.c.b16 %v709, %v705
        %v914 = vpack.c.b16 %v710, %v706
        %v915 = vpack.c.b16 %v711, %v707
        %v916 = vpack.c.b16 %v712, %v708
        %v917 = vpack.c.b16 %v717, %v713
        %v918 = vpack.c.b16 %v718, %v714
        %v919 = vpack.c.b16 %v719, %v715
        %v920 = vpack.c.b16 %v720, %v716
        %v921 = vpack.c.b16 %v725, %v721
        %v922 = vpack.c.b16 %v726, %v722
        %v923 = vpack.c.b16 %v727, %v723
        %v924 = vpack.c.b16 %v728, %v724
        %v925 = vpack.c.b16 %v733, %v729
        %v926 = vpack.c.b16 %v734, %v730
        %v927 = vpack.c.b16 %v735, %v731
        %v928 = vpack.c.b16 %v736, %v732
        %v929 = vpack.c.b16 %v741, %v737
        %v930 = vpack.c.b16 %v742, %v738
        %v931 = vpack.c.b16 %v743, %v739
        %v932 = vpack.c.b16 %v744, %v740
        %v933 = vpack.c.b16 %v749, %v745
        %v934 = vpack.c.b16 %v750, %v746
        %v935 = vpack.c.b16 %v751, %v747
        %v936 = vpack.c.b16 %v752, %v748
        %v937 = vpack.c.b16 %v757, %v753
        %v938 = vpack.c.b16 %v758, %v754
        %v939 = vpack.c.b16 %v759, %v755
        %v940 = vpack.c.b16 %v760, %v756
        %v941 = vpack.c.b16 %v765, %v761
        %v942 = vpack.c.b16 %v766, %v762
        %v943 = vpack.c.b16 %v767, %v763
        %v944 = vpack.c.b16 %v768, %v764
        %v945 = vpack.c.b16 %v773, %v769
        %v946 = vpack.c.b16 %v774, %v770
        %v947 = vpack.c.b16 %v775, %v771
        %v948 = vpack.c.b16 %v776, %v772
        %v949 = vpack.c.b16 %v781, %v777
        %v950 = vpack.c.b16 %v782, %v778
        %v951 = vpack.c.b16 %v783, %v779
        %v952 = vpack.c.b16 %v784, %v780
        %v953 = vpack.c.b16 %v789, %v785
        %v954 = vpack.c.b16 %v790, %v786
        %v955 = vpack.c.b16 %v791, %v787
        %v956 = vpack.c.b16 %v792, %v788
        %v957 = vpack.c.b16 %v797, %v793
        %v958 = vpack.c.b16 %v798, %v794
        %v959 = vpack.c.b16 %v799, %v795
        %v960 = vpack.c.b16 %v800, %v796
        %v961 = vpack.c.b16 %v805, %v801
        %v962 = vpack.c.b16 %v806, %v802
        %v963 = vpack.c.b16 %v807, %v803
        %v964 = vpack.c.b16 %v808, %v804
        %v965 = vpack.c.b16 %v813, %v809
        %v966 = vpack.c.b16 %v814, %v810
        %v967 = vpack.c.b16 %v815, %v811
        %v968 = vpack.c.b16 %v816, %v812
        %v969 = vpack.c.b16 %v821, %v817
        %v970 = vpack.c.b16 %v822, %v818
        %v971 = vpack.c.b16 %v823, %v819
        %v972 = vpack.c.b16 %v824, %v820
        %v973 = vpack.c.b16 %v829, %v825
        %v974 = vpack.c.b16 %v830, %v826
        %v975 = vpack.c.b16 %v831, %v827
        %v976 = vpack.c.b16 %v832, %v828
        %v977 = vpack.c.b16 %v837, %v833
        %v978 = vpack.c.b16 %v838, %v834
        %v979 = vpack.c.b16 %v839, %v835
        %v980 = vpack.c.b16 %v840, %v836
        %v981 = vpack.c.b16 %v845, %v841
        %v982 = vpack.c.b16 %v846, %v842
        %v983 = vpack.c.b16 %v847, %v843
        %v984 = vpack.c.b16 %v848, %v844
        %v985 = vpack.c.b16 %v853, %v849
        %v986 = vpack.c.b16 %v854, %v850
        %v987 = vpack.c.b16 %v855, %v851
        %v988 = vpack.c.b16 %v856, %v852
        %v989 = vpack.c.b16 %v861, %v857
        %v990 = vpack.c.b16 %v862, %v858
        %v991 = vpack.c.b16 %v863, %v859
        %v992 = vpack.c.b16 %v864, %v860
        %1121 = vmatprep.subr.bf16.mxu0 %v894
        %1122 = vmatpush1.bf16.msra.mxu0 %v893
        %1123 = vmatprep.subr.bf16.mxu0 %v890
        %1124 = vmatpush1.bf16.msra.mxu0 %v889
        %1125 = vmatprep.subr.bf16.mxu0 %v886
        %1126 = vmatpush1.bf16.msra.mxu0 %v885
        %1127 = vmatprep.subr.bf16.mxu0 %v882
        %1128 = vmatpush1.bf16.msra.mxu0 %v881
        %1129 = vmatprep.subr.bf16.mxu0 %v878
        %1130 = vmatpush1.bf16.msra.mxu0 %v877
        %1131 = vmatprep.subr.bf16.mxu0 %v874
        %1132 = vmatpush1.bf16.msra.mxu0 %v873
        %1133 = vmatprep.subr.bf16.mxu0 %v870
        %1134 = vmatpush1.bf16.msra.mxu0 %v869
        %1135 = vmatprep.subr.bf16.mxu0 %v866
        %1136 = vmatpush1.bf16.msra.mxu0 %v865
        %1137 = vmatprep.subr.bf16.mxu0 %v926
        %1138 = vmatpush2.bf16.msra.mxu0 %v925
        %1139 = vmatprep.subr.bf16.mxu0 %v922
        %1140 = vmatpush2.bf16.msra.mxu0 %v921
        %1141 = vmatprep.subr.bf16.mxu0 %v918
        %1142 = vmatpush2.bf16.msra.mxu0 %v917
        %1143 = vmatprep.subr.bf16.mxu0 %v914
        %1144 = vmatpush2.bf16.msra.mxu0 %v913
        %1145 = vmatprep.subr.bf16.mxu0 %v910
        %1146 = vmatpush2.bf16.msra.mxu0 %v909
        %1147 = vmatprep.subr.bf16.mxu0 %v906
        %1148 = vmatpush2.bf16.msra.mxu0 %v905
        %1149 = vmatprep.subr.bf16.mxu0 %v902
        %1150 = vmatpush2.bf16.msra.mxu0 %v901
        %1151 = vmatprep.subr.bf16.mxu0 %v898
        %1152 = vmatpush2.bf16.msra.mxu0 %v897
        %1153 = vmatprep.mubr.bf16.mxu0 %v306
        %1154 = vmatmul.mubr.bf16.gmra.mxu0 %v305
        %v1155 = vpop.f32.mrf.mxu0
        %v1156 = vadd.f32 0.0, %v1155
        %v1157 = vpop.f32.mrf.mxu0
        %v1158 = vadd.f32 0.0, %v1157
        %v1159 = vpop.f32.mrf.mxu0
        %v1160 = vadd.f32 0.0, %v1159
        %v1161 = vpop.f32.mrf.mxu0
        %v1162 = vadd.f32 0.0, %v1161
        %1163 = vmatprep.mubr.bf16.mxu0 %v323
        %1164 = vmatmul.mubr.bf16.gmra.mxu0 %v320
        %v1165 = vpop.f32.mrf.mxu0
        %v1166 = vadd.f32 0.0, %v1165
        %v1167 = vpop.f32.mrf.mxu0
        %v1168 = vadd.f32 0.0, %v1167
        %v1169 = vpop.f32.mrf.mxu0
        %v1170 = vpop.f32.mrf.mxu0
        %1171 = vdwg.mxu0
        %1172 = vmatprep.subr.bf16.mxu0 %v958
        %1173 = vmatpush1.bf16.msra.mxu0 %v957
        %1174 = vmatprep.subr.bf16.mxu0 %v954
        %1175 = vmatpush1.bf16.msra.mxu0 %v953
        %1176 = vmatprep.subr.bf16.mxu0 %v950
        %1177 = vmatpush1.bf16.msra.mxu0 %v949
        %1178 = vmatprep.subr.bf16.mxu0 %v946
        %1179 = vmatpush1.bf16.msra.mxu0 %v945
        %1180 = vmatprep.subr.bf16.mxu0 %v942
        %1181 = vmatpush1.bf16.msra.mxu0 %v941
        %1182 = vmatprep.subr.bf16.mxu0 %v938
        %1183 = vmatpush1.bf16.msra.mxu0 %v937
        %1184 = vmatprep.subr.bf16.mxu0 %v934
        %1185 = vmatpush1.bf16.msra.mxu0 %v933
        %1186 = vmatprep.subr.bf16.mxu0 %v930
        %1187 = vmatpush1.bf16.msra.mxu0 %v929
        %1188 = vmatprep.subr.bf16.mxu0 %v990
        %1189 = vmatpush2.bf16.msra.mxu0 %v989
        %1190 = vmatprep.subr.bf16.mxu0 %v986
        %1191 = vmatpush2.bf16.msra.mxu0 %v985
        %1192 = vmatprep.subr.bf16.mxu0 %v982
        %1193 = vmatpush2.bf16.msra.mxu0 %v981
        %1194 = vmatprep.subr.bf16.mxu0 %v978
        %1195 = vmatpush2.bf16.msra.mxu0 %v977
        %1196 = vmatprep.subr.bf16.mxu0 %v974
        %1197 = vmatpush2.bf16.msra.mxu0 %v973
        %1198 = vmatprep.subr.bf16.mxu0 %v970
        %1199 = vmatpush2.bf16.msra.mxu0 %v969
        %1200 = vmatprep.subr.bf16.mxu0 %v966
        %1201 = vmatpush2.bf16.msra.mxu0 %v965
        %1202 = vmatprep.subr.bf16.mxu0 %v962
        %1203 = vmatpush2.bf16.msra.mxu0 %v961
        %1204 = vmatprep.mubr.bf16.mxu0 %v308
        %1205 = vmatmul.mubr.bf16.gmra.mxu0 %v307
        %v1206 = vpop.f32.mrf.mxu0
        %v1207 = vadd.f32 %v1156, %v1206
        %v1208 = vpop.f32.mrf.mxu0
        %v1209 = vadd.f32 %v1158, %v1208
        %v1210 = vpop.f32.mrf.mxu0
        %v1211 = vadd.f32 %v1160, %v1210
        %v1212 = vpop.f32.mrf.mxu0
        %v1213 = vadd.f32 %v1162, %v1212
        %1214 = vmatprep.mubr.bf16.mxu0 %v329
        %1215 = vmatmul.mubr.bf16.gmra.mxu0 %v326
        %v1216 = vpop.f32.mrf.mxu0
        %v1217 = vadd.f32 %v1166, %v1216
        %v1218 = vpop.f32.mrf.mxu0
        %v1219 = vadd.f32 %v1168, %v1218
        %v1220 = vpop.f32.mrf.mxu0
        %v1221 = vpop.f32.mrf.mxu0
        %1222 = vdwg.mxu0
        %1223 = vmatprep.subr.bf16.mxu0 %v896
        %1224 = vmatpush1.bf16.msra.mxu0 %v895
        %1225 = vmatprep.subr.bf16.mxu0 %v892
        %1226 = vmatpush1.bf16.msra.mxu0 %v891
        %1227 = vmatprep.subr.bf16.mxu0 %v888
        %1228 = vmatpush1.bf16.msra.mxu0 %v887
        %1229 = vmatprep.subr.bf16.mxu0 %v884
        %1230 = vmatpush1.bf16.msra.mxu0 %v883
        %1231 = vmatprep.subr.bf16.mxu0 %v880
        %1232 = vmatpush1.bf16.msra.mxu0 %v879
        %1233 = vmatprep.subr.bf16.mxu0 %v876
        %1234 = vmatpush1.bf16.msra.mxu0 %v875
        %1235 = vmatprep.subr.bf16.mxu0 %v872
        %1236 = vmatpush1.bf16.msra.mxu0 %v871
        %1237 = vmatprep.subr.bf16.mxu0 %v868
        %1238 = vmatpush1.bf16.msra.mxu0 %v867
        %1239 = vmatprep.subr.bf16.mxu0 %v928
        %1240 = vmatpush2.bf16.msra.mxu0 %v927
        %1241 = vmatprep.subr.bf16.mxu0 %v924
        %1242 = vmatpush2.bf16.msra.mxu0 %v923
        %1243 = vmatprep.subr.bf16.mxu0 %v920
        %1244 = vmatpush2.bf16.msra.mxu0 %v919
        %1245 = vmatprep.subr.bf16.mxu0 %v916
        %1246 = vmatpush2.bf16.msra.mxu0 %v915
        %1247 = vmatprep.subr.bf16.mxu0 %v912
        %1248 = vmatpush2.bf16.msra.mxu0 %v911
        %1249 = vmatprep.subr.bf16.mxu0 %v908
        %1250 = vmatpush2.bf16.msra.mxu0 %v907
        %1251 = vmatprep.subr.bf16.mxu0 %v904
        %1252 = vmatpush2.bf16.msra.mxu0 %v903
        %1253 = vmatprep.subr.bf16.mxu0 %v900
        %1254 = vmatpush2.bf16.msra.mxu0 %v899
        %1255 = vmatprep.mubr.bf16.mxu0 %v306
        %1256 = vmatmul.mubr.bf16.gmra.mxu0 %v305
        %v1257 = vpop.f32.mrf.mxu0
        %v1258 = vadd.f32 0.0, %v1257
        %v1259 = vpop.f32.mrf.mxu0
        %v1260 = vadd.f32 0.0, %v1259
        %v1261 = vpop.f32.mrf.mxu0
        %v1262 = vadd.f32 0.0, %v1261
        %v1263 = vpop.f32.mrf.mxu0
        %v1264 = vadd.f32 0.0, %v1263
        %1265 = vmatprep.mubr.bf16.mxu0 %v323
        %1266 = vmatmul.mubr.bf16.gmra.mxu0 %v320
        %v1267 = vpop.f32.mrf.mxu0
        %v1268 = vadd.f32 0.0, %v1267
        %v1269 = vpop.f32.mrf.mxu0
        %v1270 = vadd.f32 0.0, %v1269
        %v1271 = vpop.f32.mrf.mxu0
        %v1272 = vpop.f32.mrf.mxu0
        %1273 = vdwg.mxu0
        %1274 = vmatprep.subr.bf16.mxu0 %v960
        %1275 = vmatpush1.bf16.msra.mxu0 %v959
        %1276 = vmatprep.subr.bf16.mxu0 %v956
        %1277 = vmatpush1.bf16.msra.mxu0 %v955
        %1278 = vmatprep.subr.bf16.mxu0 %v952
        %1279 = vmatpush1.bf16.msra.mxu0 %v951
        %1280 = vmatprep.subr.bf16.mxu0 %v948
        %1281 = vmatpush1.bf16.msra.mxu0 %v947
        %1282 = vmatprep.subr.bf16.mxu0 %v944
        %1283 = vmatpush1.bf16.msra.mxu0 %v943
        %1284 = vmatprep.subr.bf16.mxu0 %v940
        %1285 = vmatpush1.bf16.msra.mxu0 %v939
        %1286 = vmatprep.subr.bf16.mxu0 %v936
        %1287 = vmatpush1.bf16.msra.mxu0 %v935
        %1288 = vmatprep.subr.bf16.mxu0 %v932
        %1289 = vmatpush1.bf16.msra.mxu0 %v931
        %1290 = vmatprep.subr.bf16.mxu0 %v992
        %1291 = vmatpush2.bf16.msra.mxu0 %v991
        %1292 = vmatprep.subr.bf16.mxu0 %v988
        %1293 = vmatpush2.bf16.msra.mxu0 %v987
        %1294 = vmatprep.subr.bf16.mxu0 %v984
        %1295 = vmatpush2.bf16.msra.mxu0 %v983
        %1296 = vmatprep.subr.bf16.mxu0 %v980
        %1297 = vmatpush2.bf16.msra.mxu0 %v979
        %1298 = vmatprep.subr.bf16.mxu0 %v976
        %1299 = vmatpush2.bf16.msra.mxu0 %v975
        %1300 = vmatprep.subr.bf16.mxu0 %v972
        %1301 = vmatpush2.bf16.msra.mxu0 %v971
        %1302 = vmatprep.subr.bf16.mxu0 %v968
        %1303 = vmatpush2.bf16.msra.mxu0 %v967
        %1304 = vmatprep.subr.bf16.mxu0 %v964
        %1305 = vmatpush2.bf16.msra.mxu0 %v963
        %1306 = vmatprep.mubr.bf16.mxu0 %v308
        %1307 = vmatmul.mubr.bf16.gmra.mxu0 %v307
        %v1308 = vpop.f32.mrf.mxu0
        %v1309 = vadd.f32 %v1258, %v1308
        %v1310 = vpop.f32.mrf.mxu0
        %v1311 = vadd.f32 %v1260, %v1310
        %v1312 = vpop.f32.mrf.mxu0
        %v1313 = vadd.f32 %v1262, %v1312
        %v1314 = vpop.f32.mrf.mxu0
        %v1315 = vadd.f32 %v1264, %v1314
        %1316 = vmatprep.mubr.bf16.mxu0 %v329
        %1317 = vmatmul.mubr.bf16.gmra.mxu0 %v326
        %v1318 = vpop.f32.mrf.mxu0
        %v1319 = vadd.f32 %v1268, %v1318
        %v1320 = vpop.f32.mrf.mxu0
        %v1321 = vadd.f32 %v1270, %v1320
        %v1322 = vpop.f32.mrf.mxu0
        %v1323 = vpop.f32.mrf.mxu0
        %1324 = vdwg.mxu0
        %v1325 = vadd.f32 %v336, %v1207
        %v1326 = vadd.f32 %v340, %v1209
        %v1327 = vadd.f32 %v344, %v1309
        %v1328 = vadd.f32 %v348, %v1311
        %v1329 = vadd.f32 %v336, %v1211
        %v1330 = vadd.f32 %v340, %v1213
        %v1331 = vadd.f32 %v344, %v1313
        %v1332 = vadd.f32 %v348, %v1315
        %v1333 = vadd.f32 %v336, %v1217
        %v1334 = vadd.f32 %v340, %v1219
        %v1335 = vadd.f32 %v344, %v1319
        %v1336 = vadd.f32 %v348, %v1321
        %s1337 = scalar_lea.vmem [#allocation2], 1024
        %v1338 = vld [vmem:[%s1337] sm:$0xff]
        %v1339 = vld [vmem:[%s1337 + $0x8] sm:$0xff]
        %v1340 = vld [vmem:[%s1337 + $0x10] sm:$0xff]
        %v1341 = vld [vmem:[%s1337 + $0x18] sm:$0xff]
        %v1342 = vld [vmem:[%s1337 + $0x20] sm:$0xff]
        %v1343 = vld [vmem:[%s1337 + $0x28] sm:$0xff]
        %v1344 = vld [vmem:[%s1337 + $0x30] sm:$0xff]
        %v1345 = vld [vmem:[%s1337 + $0x38] sm:$0xff]
        %v1346 = vld [vmem:[%s1337 + $0x40] sm:$0xff]
        %v1347 = vld [vmem:[%s1337 + $0x48] sm:$0xff]
        %v1348 = vld [vmem:[%s1337 + $0x50] sm:$0xff]
        %v1349 = vld [vmem:[%s1337 + $0x58] sm:$0xff]
        %v1350 = vld [vmem:[%s1337 + $0x60] sm:$0xff]
        %v1351 = vld [vmem:[%s1337 + $0x68] sm:$0xff]
        %v1352 = vld [vmem:[%s1337 + $0x70] sm:$0xff]
        %v1353 = vld [vmem:[%s1337 + $0x78] sm:$0xff]
        %v1354 = vld [vmem:[%s1337 + $0x80] sm:$0xff]
        %v1355 = vld [vmem:[%s1337 + $0x88] sm:$0xff]
        %v1356 = vld [vmem:[%s1337 + $0x90] sm:$0xff]
        %v1357 = vld [vmem:[%s1337 + $0x98] sm:$0xff]
        %v1358 = vld [vmem:[%s1337 + $0xa0] sm:$0xff]
        %v1359 = vld [vmem:[%s1337 + $0xa8] sm:$0xff]
        %v1360 = vld [vmem:[%s1337 + $0xb0] sm:$0xff]
        %v1361 = vld [vmem:[%s1337 + $0xb8] sm:$0xff]
        %v1362 = vld [vmem:[%s1337 + $0xc0] sm:$0xff]
        %v1363 = vld [vmem:[%s1337 + $0xc8] sm:$0xff]
        %v1364 = vld [vmem:[%s1337 + $0xd0] sm:$0xff]
        %v1365 = vld [vmem:[%s1337 + $0xd8] sm:$0xff]
        %v1366 = vld [vmem:[%s1337 + $0xe0] sm:$0xff]
        %v1367 = vld [vmem:[%s1337 + $0xe8] sm:$0xff]
        %v1368 = vld [vmem:[%s1337 + $0xf0] sm:$0xff]
        %v1369 = vld [vmem:[%s1337 + $0xf8] sm:$0xff]
        %v1370 = vld [vmem:[%s1337 + $0x100] sm:$0xff]
        %v1371 = vld [vmem:[%s1337 + $0x108] sm:$0xff]
        %v1372 = vld [vmem:[%s1337 + $0x110] sm:$0xff]
        %v1373 = vld [vmem:[%s1337 + $0x118] sm:$0xff]
        %v1374 = vld [vmem:[%s1337 + $0x120] sm:$0xff]
        %v1375 = vld [vmem:[%s1337 + $0x128] sm:$0xff]
        %v1376 = vld [vmem:[%s1337 + $0x130] sm:$0xff]
        %v1377 = vld [vmem:[%s1337 + $0x138] sm:$0xff]
        %v1378 = vld [vmem:[%s1337 + $0x140] sm:$0xff]
        %v1379 = vld [vmem:[%s1337 + $0x148] sm:$0xff]
        %v1380 = vld [vmem:[%s1337 + $0x150] sm:$0xff]
        %v1381 = vld [vmem:[%s1337 + $0x158] sm:$0xff]
        %v1382 = vld [vmem:[%s1337 + $0x160] sm:$0xff]
        %v1383 = vld [vmem:[%s1337 + $0x168] sm:$0xff]
        %v1384 = vld [vmem:[%s1337 + $0x170] sm:$0xff]
        %v1385 = vld [vmem:[%s1337 + $0x178] sm:$0xff]
        %v1386 = vld [vmem:[%s1337 + $0x180] sm:$0xff]
        %v1387 = vld [vmem:[%s1337 + $0x188] sm:$0xff]
        %v1388 = vld [vmem:[%s1337 + $0x190] sm:$0xff]
        %v1389 = vld [vmem:[%s1337 + $0x198] sm:$0xff]
        %v1390 = vld [vmem:[%s1337 + $0x1a0] sm:$0xff]
        %v1391 = vld [vmem:[%s1337 + $0x1a8] sm:$0xff]
        %v1392 = vld [vmem:[%s1337 + $0x1b0] sm:$0xff]
        %v1393 = vld [vmem:[%s1337 + $0x1b8] sm:$0xff]
        %v1394 = vld [vmem:[%s1337 + $0x1c0] sm:$0xff]
        %v1395 = vld [vmem:[%s1337 + $0x1c8] sm:$0xff]
        %v1396 = vld [vmem:[%s1337 + $0x1d0] sm:$0xff]
        %v1397 = vld [vmem:[%s1337 + $0x1d8] sm:$0xff]
        %v1398 = vld [vmem:[%s1337 + $0x1e0] sm:$0xff]
        %v1399 = vld [vmem:[%s1337 + $0x1e8] sm:$0xff]
        %v1400 = vld [vmem:[%s1337 + $0x1f0] sm:$0xff]
        %v1401 = vld [vmem:[%s1337 + $0x1f8] sm:$0xff]
        %v1402 = vld [vmem:[%s1337 + $0x200] sm:$0xff]
        %v1403 = vld [vmem:[%s1337 + $0x208] sm:$0xff]
        %v1404 = vld [vmem:[%s1337 + $0x210] sm:$0xff]
        %v1405 = vld [vmem:[%s1337 + $0x218] sm:$0xff]
        %v1406 = vld [vmem:[%s1337 + $0x220] sm:$0xff]
        %v1407 = vld [vmem:[%s1337 + $0x228] sm:$0xff]
        %v1408 = vld [vmem:[%s1337 + $0x230] sm:$0xff]
        %v1409 = vld [vmem:[%s1337 + $0x238] sm:$0xff]
        %v1410 = vld [vmem:[%s1337 + $0x240] sm:$0xff]
        %v1411 = vld [vmem:[%s1337 + $0x248] sm:$0xff]
        %v1412 = vld [vmem:[%s1337 + $0x250] sm:$0xff]
        %v1413 = vld [vmem:[%s1337 + $0x258] sm:$0xff]
        %v1414 = vld [vmem:[%s1337 + $0x260] sm:$0xff]
        %v1415 = vld [vmem:[%s1337 + $0x268] sm:$0xff]
        %v1416 = vld [vmem:[%s1337 + $0x270] sm:$0xff]
        %v1417 = vld [vmem:[%s1337 + $0x278] sm:$0xff]
        %v1418 = vld [vmem:[%s1337 + $0x280] sm:$0xff]
        %v1419 = vld [vmem:[%s1337 + $0x288] sm:$0xff]
        %v1420 = vld [vmem:[%s1337 + $0x290] sm:$0xff]
        %v1421 = vld [vmem:[%s1337 + $0x298] sm:$0xff]
        %v1422 = vld [vmem:[%s1337 + $0x2a0] sm:$0xff]
        %v1423 = vld [vmem:[%s1337 + $0x2a8] sm:$0xff]
        %v1424 = vld [vmem:[%s1337 + $0x2b0] sm:$0xff]
        %v1425 = vld [vmem:[%s1337 + $0x2b8] sm:$0xff]
        %v1426 = vld [vmem:[%s1337 + $0x2c0] sm:$0xff]
        %v1427 = vld [vmem:[%s1337 + $0x2c8] sm:$0xff]
        %v1428 = vld [vmem:[%s1337 + $0x2d0] sm:$0xff]
        %v1429 = vld [vmem:[%s1337 + $0x2d8] sm:$0xff]
        %v1430 = vld [vmem:[%s1337 + $0x2e0] sm:$0xff]
        %v1431 = vld [vmem:[%s1337 + $0x2e8] sm:$0xff]
        %v1432 = vld [vmem:[%s1337 + $0x2f0] sm:$0xff]
        %v1433 = vld [vmem:[%s1337 + $0x2f8] sm:$0xff]
        %v1434 = vld [vmem:[%s1337 + $0x300] sm:$0xff]
        %v1435 = vld [vmem:[%s1337 + $0x308] sm:$0xff]
        %v1436 = vld [vmem:[%s1337 + $0x310] sm:$0xff]
        %v1437 = vld [vmem:[%s1337 + $0x318] sm:$0xff]
        %v1438 = vld [vmem:[%s1337 + $0x320] sm:$0xff]
        %v1439 = vld [vmem:[%s1337 + $0x328] sm:$0xff]
        %v1440 = vld [vmem:[%s1337 + $0x330] sm:$0xff]
        %v1441 = vld [vmem:[%s1337 + $0x338] sm:$0xff]
        %v1442 = vld [vmem:[%s1337 + $0x340] sm:$0xff]
        %v1443 = vld [vmem:[%s1337 + $0x348] sm:$0xff]
        %v1444 = vld [vmem:[%s1337 + $0x350] sm:$0xff]
        %v1445 = vld [vmem:[%s1337 + $0x358] sm:$0xff]
        %v1446 = vld [vmem:[%s1337 + $0x360] sm:$0xff]
        %v1447 = vld [vmem:[%s1337 + $0x368] sm:$0xff]
        %v1448 = vld [vmem:[%s1337 + $0x370] sm:$0xff]
        %v1449 = vld [vmem:[%s1337 + $0x378] sm:$0xff]
        %v1450 = vld [vmem:[%s1337 + $0x380] sm:$0xff]
        %v1451 = vld [vmem:[%s1337 + $0x388] sm:$0xff]
        %v1452 = vld [vmem:[%s1337 + $0x390] sm:$0xff]
        %v1453 = vld [vmem:[%s1337 + $0x398] sm:$0xff]
        %v1454 = vld [vmem:[%s1337 + $0x3a0] sm:$0xff]
        %v1455 = vld [vmem:[%s1337 + $0x3a8] sm:$0xff]
        %v1456 = vld [vmem:[%s1337 + $0x3b0] sm:$0xff]
        %v1457 = vld [vmem:[%s1337 + $0x3b8] sm:$0xff]
        %v1458 = vld [vmem:[%s1337 + $0x3c0] sm:$0xff]
        %v1459 = vld [vmem:[%s1337 + $0x3c8] sm:$0xff]
        %v1460 = vld [vmem:[%s1337 + $0x3d0] sm:$0xff]
        %v1461 = vld [vmem:[%s1337 + $0x3d8] sm:$0xff]
        %v1462 = vld [vmem:[%s1337 + $0x3e0] sm:$0xff]
        %v1463 = vld [vmem:[%s1337 + $0x3e8] sm:$0xff]
        %v1464 = vld [vmem:[%s1337 + $0x3f0] sm:$0xff]
        %v1465 = vld [vmem:[%s1337 + $0x3f8] sm:$0xff]
        %vm1466 = vsmask.f32 7424
        %v1468 = vshrl.u32 %v305, 16
        %v1470 = vshll.u32 %v305, 16
        %v1472 = vrot.slane %v1470, 1
        %v1473 = vor.u32 %v1468, %v1472
        %v1474 = vshll.u32 %v320, 16
        %v1476 = vrot.slane %v1474, 1
        %v1477 = vsel %vm1466, %v1473, %v1476
        %v1479 = vshrl.u32 %v306, 16
        %v1481 = vshll.u32 %v306, 16
        %v1483 = vrot.slane %v1481, 1
        %v1484 = vor.u32 %v1479, %v1483
        %v1485 = vshll.u32 %v323, 16
        %v1487 = vrot.slane %v1485, 1
        %v1488 = vsel %vm1466, %v1484, %v1487
        %v1490 = vshrl.u32 %v307, 16
        %v1492 = vshll.u32 %v307, 16
        %v1494 = vrot.slane %v1492, 1
        %v1495 = vor.u32 %v1490, %v1494
        %v1496 = vshll.u32 %v326, 16
        %v1498 = vrot.slane %v1496, 1
        %v1499 = vsel %vm1466, %v1495, %v1498
        %v1501 = vshrl.u32 %v308, 16
        %v1503 = vshll.u32 %v308, 16
        %v1505 = vrot.slane %v1503, 1
        %v1506 = vor.u32 %v1501, %v1505
        %v1507 = vshll.u32 %v329, 16
        %v1509 = vrot.slane %v1507, 1
        %v1510 = vsel %vm1466, %v1506, %v1509
        %v1511 = vshrl.u32 %v320, 16
        %v1513 = vor.u32 %v1511, %v1476
        %v1514 = vshrl.u32 %v323, 16
        %v1516 = vor.u32 %v1514, %v1487
        %v1517 = vshrl.u32 %v326, 16
        %v1519 = vor.u32 %v1517, %v1498
        %v1520 = vshrl.u32 %v329, 16
        %v1522 = vor.u32 %v1520, %v1509
        %v1659 = vunpack.c.l.b16 %v1338
        %v1660 = vunpack.c.h.b16 %v1338
        %v1661 = vunpack.c.l.b16 %v1339
        %v1662 = vunpack.c.h.b16 %v1339
        %v1663 = vunpack.c.l.b16 %v1340
        %v1664 = vunpack.c.h.b16 %v1340
        %v1665 = vunpack.c.l.b16 %v1341
        %v1666 = vunpack.c.h.b16 %v1341
        %v1667 = vunpack.c.l.b16 %v1342
        %v1668 = vunpack.c.h.b16 %v1342
        %v1669 = vunpack.c.l.b16 %v1343
        %v1670 = vunpack.c.h.b16 %v1343
        %v1671 = vunpack.c.l.b16 %v1344
        %v1672 = vunpack.c.h.b16 %v1344
        %v1673 = vunpack.c.l.b16 %v1345
        %v1674 = vunpack.c.h.b16 %v1345
        %v1675 = vunpack.c.l.b16 %v1346
        %v1676 = vunpack.c.h.b16 %v1346
        %v1677 = vunpack.c.l.b16 %v1347
        %v1678 = vunpack.c.h.b16 %v1347
        %v1679 = vunpack.c.l.b16 %v1348
        %v1680 = vunpack.c.h.b16 %v1348
        %v1681 = vunpack.c.l.b16 %v1349
        %v1682 = vunpack.c.h.b16 %v1349
        %v1683 = vunpack.c.l.b16 %v1350
        %v1684 = vunpack.c.h.b16 %v1350
        %v1685 = vunpack.c.l.b16 %v1351
        %v1686 = vunpack.c.h.b16 %v1351
        %v1687 = vunpack.c.l.b16 %v1352
        %v1688 = vunpack.c.h.b16 %v1352
        %v1689 = vunpack.c.l.b16 %v1353
        %v1690 = vunpack.c.h.b16 %v1353
        %v1691 = vunpack.c.l.b16 %v1354
        %v1692 = vunpack.c.h.b16 %v1354
        %v1693 = vunpack.c.l.b16 %v1355
        %v1694 = vunpack.c.h.b16 %v1355
        %v1695 = vunpack.c.l.b16 %v1356
        %v1696 = vunpack.c.h.b16 %v1356
        %v1697 = vunpack.c.l.b16 %v1357
        %v1698 = vunpack.c.h.b16 %v1357
        %v1699 = vunpack.c.l.b16 %v1358
        %v1700 = vunpack.c.h.b16 %v1358
        %v1701 = vunpack.c.l.b16 %v1359
        %v1702 = vunpack.c.h.b16 %v1359
        %v1703 = vunpack.c.l.b16 %v1360
        %v1704 = vunpack.c.h.b16 %v1360
        %v1705 = vunpack.c.l.b16 %v1361
        %v1706 = vunpack.c.h.b16 %v1361
        %v1707 = vunpack.c.l.b16 %v1362
        %v1708 = vunpack.c.h.b16 %v1362
        %v1709 = vunpack.c.l.b16 %v1363
        %v1710 = vunpack.c.h.b16 %v1363
        %v1711 = vunpack.c.l.b16 %v1364
        %v1712 = vunpack.c.h.b16 %v1364
        %v1713 = vunpack.c.l.b16 %v1365
        %v1714 = vunpack.c.h.b16 %v1365
        %v1715 = vunpack.c.l.b16 %v1366
        %v1716 = vunpack.c.h.b16 %v1366
        %v1717 = vunpack.c.l.b16 %v1367
        %v1718 = vunpack.c.h.b16 %v1367
        %v1719 = vunpack.c.l.b16 %v1368
        %v1720 = vunpack.c.h.b16 %v1368
        %v1721 = vunpack.c.l.b16 %v1369
        %v1722 = vunpack.c.h.b16 %v1369
        %v1723 = vunpack.c.l.b16 %v1370
        %v1724 = vunpack.c.h.b16 %v1370
        %v1725 = vunpack.c.l.b16 %v1371
        %v1726 = vunpack.c.h.b16 %v1371
        %v1727 = vunpack.c.l.b16 %v1372
        %v1728 = vunpack.c.h.b16 %v1372
        %v1729 = vunpack.c.l.b16 %v1373
        %v1730 = vunpack.c.h.b16 %v1373
        %v1731 = vunpack.c.l.b16 %v1374
        %v1732 = vunpack.c.h.b16 %v1374
        %v1733 = vunpack.c.l.b16 %v1375
        %v1734 = vunpack.c.h.b16 %v1375
        %v1735 = vunpack.c.l.b16 %v1376
        %v1736 = vunpack.c.h.b16 %v1376
        %v1737 = vunpack.c.l.b16 %v1377
        %v1738 = vunpack.c.h.b16 %v1377
        %v1739 = vunpack.c.l.b16 %v1378
        %v1740 = vunpack.c.h.b16 %v1378
        %v1741 = vunpack.c.l.b16 %v1379
        %v1742 = vunpack.c.h.b16 %v1379
        %v1743 = vunpack.c.l.b16 %v1380
        %v1744 = vunpack.c.h.b16 %v1380
        %v1745 = vunpack.c.l.b16 %v1381
        %v1746 = vunpack.c.h.b16 %v1381
        %v1747 = vunpack.c.l.b16 %v1382
        %v1748 = vunpack.c.h.b16 %v1382
        %v1749 = vunpack.c.l.b16 %v1383
        %v1750 = vunpack.c.h.b16 %v1383
        %v1751 = vunpack.c.l.b16 %v1384
        %v1752 = vunpack.c.h.b16 %v1384
        %v1753 = vunpack.c.l.b16 %v1385
        %v1754 = vunpack.c.h.b16 %v1385
        %v1755 = vunpack.c.l.b16 %v1386
        %v1756 = vunpack.c.h.b16 %v1386
        %v1757 = vunpack.c.l.b16 %v1387
        %v1758 = vunpack.c.h.b16 %v1387
        %v1759 = vunpack.c.l.b16 %v1388
        %v1760 = vunpack.c.h.b16 %v1388
        %v1761 = vunpack.c.l.b16 %v1389
        %v1762 = vunpack.c.h.b16 %v1389
        %v1763 = vunpack.c.l.b16 %v1390
        %v1764 = vunpack.c.h.b16 %v1390
        %v1765 = vunpack.c.l.b16 %v1391
        %v1766 = vunpack.c.h.b16 %v1391
        %v1767 = vunpack.c.l.b16 %v1392
        %v1768 = vunpack.c.h.b16 %v1392
        %v1769 = vunpack.c.l.b16 %v1393
        %v1770 = vunpack.c.h.b16 %v1393
        %v1771 = vunpack.c.l.b16 %v1394
        %v1772 = vunpack.c.h.b16 %v1394
        %v1773 = vunpack.c.l.b16 %v1395
        %v1774 = vunpack.c.h.b16 %v1395
        %v1775 = vunpack.c.l.b16 %v1396
        %v1776 = vunpack.c.h.b16 %v1396
        %v1777 = vunpack.c.l.b16 %v1397
        %v1778 = vunpack.c.h.b16 %v1397
        %v1779 = vunpack.c.l.b16 %v1398
        %v1780 = vunpack.c.h.b16 %v1398
        %v1781 = vunpack.c.l.b16 %v1399
        %v1782 = vunpack.c.h.b16 %v1399
        %v1783 = vunpack.c.l.b16 %v1400
        %v1784 = vunpack.c.h.b16 %v1400
        %v1785 = vunpack.c.l.b16 %v1401
        %v1786 = vunpack.c.h.b16 %v1401
        %v1787 = vunpack.c.l.b16 %v1402
        %v1788 = vunpack.c.h.b16 %v1402
        %v1789 = vunpack.c.l.b16 %v1403
        %v1790 = vunpack.c.h.b16 %v1403
        %v1791 = vunpack.c.l.b16 %v1404
        %v1792 = vunpack.c.h.b16 %v1404
        %v1793 = vunpack.c.l.b16 %v1405
        %v1794 = vunpack.c.h.b16 %v1405
        %v1795 = vunpack.c.l.b16 %v1406
        %v1796 = vunpack.c.h.b16 %v1406
        %v1797 = vunpack.c.l.b16 %v1407
        %v1798 = vunpack.c.h.b16 %v1407
        %v1799 = vunpack.c.l.b16 %v1408
        %v1800 = vunpack.c.h.b16 %v1408
        %v1801 = vunpack.c.l.b16 %v1409
        %v1802 = vunpack.c.h.b16 %v1409
        %v1803 = vunpack.c.l.b16 %v1410
        %v1804 = vunpack.c.h.b16 %v1410
        %v1805 = vunpack.c.l.b16 %v1411
        %v1806 = vunpack.c.h.b16 %v1411
        %v1807 = vunpack.c.l.b16 %v1412
        %v1808 = vunpack.c.h.b16 %v1412
        %v1809 = vunpack.c.l.b16 %v1413
        %v1810 = vunpack.c.h.b16 %v1413
        %v1811 = vunpack.c.l.b16 %v1414
        %v1812 = vunpack.c.h.b16 %v1414
        %v1813 = vunpack.c.l.b16 %v1415
        %v1814 = vunpack.c.h.b16 %v1415
        %v1815 = vunpack.c.l.b16 %v1416
        %v1816 = vunpack.c.h.b16 %v1416
        %v1817 = vunpack.c.l.b16 %v1417
        %v1818 = vunpack.c.h.b16 %v1417
        %v1819 = vunpack.c.l.b16 %v1418
        %v1820 = vunpack.c.h.b16 %v1418
        %v1821 = vunpack.c.l.b16 %v1419
        %v1822 = vunpack.c.h.b16 %v1419
        %v1823 = vunpack.c.l.b16 %v1420
        %v1824 = vunpack.c.h.b16 %v1420
        %v1825 = vunpack.c.l.b16 %v1421
        %v1826 = vunpack.c.h.b16 %v1421
        %v1827 = vunpack.c.l.b16 %v1422
        %v1828 = vunpack.c.h.b16 %v1422
        %v1829 = vunpack.c.l.b16 %v1423
        %v1830 = vunpack.c.h.b16 %v1423
        %v1831 = vunpack.c.l.b16 %v1424
        %v1832 = vunpack.c.h.b16 %v1424
        %v1833 = vunpack.c.l.b16 %v1425
        %v1834 = vunpack.c.h.b16 %v1425
        %v1835 = vunpack.c.l.b16 %v1426
        %v1836 = vunpack.c.h.b16 %v1426
        %v1837 = vunpack.c.l.b16 %v1427
        %v1838 = vunpack.c.h.b16 %v1427
        %v1839 = vunpack.c.l.b16 %v1428
        %v1840 = vunpack.c.h.b16 %v1428
        %v1841 = vunpack.c.l.b16 %v1429
        %v1842 = vunpack.c.h.b16 %v1429
        %v1843 = vunpack.c.l.b16 %v1430
        %v1844 = vunpack.c.h.b16 %v1430
        %v1845 = vunpack.c.l.b16 %v1431
        %v1846 = vunpack.c.h.b16 %v1431
        %v1847 = vunpack.c.l.b16 %v1432
        %v1848 = vunpack.c.h.b16 %v1432
        %v1849 = vunpack.c.l.b16 %v1433
        %v1850 = vunpack.c.h.b16 %v1433
        %v1851 = vunpack.c.l.b16 %v1434
        %v1852 = vunpack.c.h.b16 %v1434
        %v1853 = vunpack.c.l.b16 %v1435
        %v1854 = vunpack.c.h.b16 %v1435
        %v1855 = vunpack.c.l.b16 %v1436
        %v1856 = vunpack.c.h.b16 %v1436
        %v1857 = vunpack.c.l.b16 %v1437
        %v1858 = vunpack.c.h.b16 %v1437
        %v1859 = vunpack.c.l.b16 %v1438
        %v1860 = vunpack.c.h.b16 %v1438
        %v1861 = vunpack.c.l.b16 %v1439
        %v1862 = vunpack.c.h.b16 %v1439
        %v1863 = vunpack.c.l.b16 %v1440
        %v1864 = vunpack.c.h.b16 %v1440
        %v1865 = vunpack.c.l.b16 %v1441
        %v1866 = vunpack.c.h.b16 %v1441
        %v1867 = vunpack.c.l.b16 %v1442
        %v1868 = vunpack.c.h.b16 %v1442
        %v1869 = vunpack.c.l.b16 %v1443
        %v1870 = vunpack.c.h.b16 %v1443
        %v1871 = vunpack.c.l.b16 %v1444
        %v1872 = vunpack.c.h.b16 %v1444
        %v1873 = vunpack.c.l.b16 %v1445
        %v1874 = vunpack.c.h.b16 %v1445
        %v1875 = vunpack.c.l.b16 %v1446
        %v1876 = vunpack.c.h.b16 %v1446
        %v1877 = vunpack.c.l.b16 %v1447
        %v1878 = vunpack.c.h.b16 %v1447
        %v1879 = vunpack.c.l.b16 %v1448
        %v1880 = vunpack.c.h.b16 %v1448
        %v1881 = vunpack.c.l.b16 %v1449
        %v1882 = vunpack.c.h.b16 %v1449
        %v1883 = vunpack.c.l.b16 %v1450
        %v1884 = vunpack.c.h.b16 %v1450
        %v1885 = vunpack.c.l.b16 %v1451
        %v1886 = vunpack.c.h.b16 %v1451
        %v1887 = vunpack.c.l.b16 %v1452
        %v1888 = vunpack.c.h.b16 %v1452
        %v1889 = vunpack.c.l.b16 %v1453
        %v1890 = vunpack.c.h.b16 %v1453
        %v1891 = vunpack.c.l.b16 %v1454
        %v1892 = vunpack.c.h.b16 %v1454
        %v1893 = vunpack.c.l.b16 %v1455
        %v1894 = vunpack.c.h.b16 %v1455
        %v1895 = vunpack.c.l.b16 %v1456
        %v1896 = vunpack.c.h.b16 %v1456
        %v1897 = vunpack.c.l.b16 %v1457
        %v1898 = vunpack.c.h.b16 %v1457
        %v1899 = vunpack.c.l.b16 %v1458
        %v1900 = vunpack.c.h.b16 %v1458
        %v1901 = vunpack.c.l.b16 %v1459
        %v1902 = vunpack.c.h.b16 %v1459
        %v1903 = vunpack.c.l.b16 %v1460
        %v1904 = vunpack.c.h.b16 %v1460
        %v1905 = vunpack.c.l.b16 %v1461
        %v1906 = vunpack.c.h.b16 %v1461
        %v1907 = vunpack.c.l.b16 %v1462
        %v1908 = vunpack.c.h.b16 %v1462
        %v1909 = vunpack.c.l.b16 %v1463
        %v1910 = vunpack.c.h.b16 %v1463
        %v1911 = vunpack.c.l.b16 %v1464
        %v1912 = vunpack.c.h.b16 %v1464
        %v1913 = vunpack.c.l.b16 %v1465
        %v1914 = vunpack.c.h.b16 %v1465
        %v1915 = vpack.c.b16 %v1663, %v1659
        %v1916 = vpack.c.b16 %v1664, %v1660
        %v1917 = vpack.c.b16 %v1665, %v1661
        %v1918 = vpack.c.b16 %v1666, %v1662
        %v1919 = vpack.c.b16 %v1671, %v1667
        %v1920 = vpack.c.b16 %v1672, %v1668
        %v1921 = vpack.c.b16 %v1673, %v1669
        %v1922 = vpack.c.b16 %v1674, %v1670
        %v1923 = vpack.c.b16 %v1679, %v1675
        %v1924 = vpack.c.b16 %v1680, %v1676
        %v1925 = vpack.c.b16 %v1681, %v1677
        %v1926 = vpack.c.b16 %v1682, %v1678
        %v1927 = vpack.c.b16 %v1687, %v1683
        %v1928 = vpack.c.b16 %v1688, %v1684
        %v1929 = vpack.c.b16 %v1689, %v1685
        %v1930 = vpack.c.b16 %v1690, %v1686
        %v1931 = vpack.c.b16 %v1695, %v1691
        %v1932 = vpack.c.b16 %v1696, %v1692
        %v1933 = vpack.c.b16 %v1697, %v1693
        %v1934 = vpack.c.b16 %v1698, %v1694
        %v1935 = vpack.c.b16 %v1703, %v1699
        %v1936 = vpack.c.b16 %v1704, %v1700
        %v1937 = vpack.c.b16 %v1705, %v1701
        %v1938 = vpack.c.b16 %v1706, %v1702
        %v1939 = vpack.c.b16 %v1711, %v1707
        %v1940 = vpack.c.b16 %v1712, %v1708
        %v1941 = vpack.c.b16 %v1713, %v1709
        %v1942 = vpack.c.b16 %v1714, %v1710
        %v1943 = vpack.c.b16 %v1719, %v1715
        %v1944 = vpack.c.b16 %v1720, %v1716
        %v1945 = vpack.c.b16 %v1721, %v1717
        %v1946 = vpack.c.b16 %v1722, %v1718
        %v1947 = vpack.c.b16 %v1727, %v1723
        %v1948 = vpack.c.b16 %v1728, %v1724
        %v1949 = vpack.c.b16 %v1729, %v1725
        %v1950 = vpack.c.b16 %v1730, %v1726
        %v1951 = vpack.c.b16 %v1735, %v1731
        %v1952 = vpack.c.b16 %v1736, %v1732
        %v1953 = vpack.c.b16 %v1737, %v1733
        %v1954 = vpack.c.b16 %v1738, %v1734
        %v1955 = vpack.c.b16 %v1743, %v1739
        %v1956 = vpack.c.b16 %v1744, %v1740
        %v1957 = vpack.c.b16 %v1745, %v1741
        %v1958 = vpack.c.b16 %v1746, %v1742
        %v1959 = vpack.c.b16 %v1751, %v1747
        %v1960 = vpack.c.b16 %v1752, %v1748
        %v1961 = vpack.c.b16 %v1753, %v1749
        %v1962 = vpack.c.b16 %v1754, %v1750
        %v1963 = vpack.c.b16 %v1759, %v1755
        %v1964 = vpack.c.b16 %v1760, %v1756
        %v1965 = vpack.c.b16 %v1761, %v1757
        %v1966 = vpack.c.b16 %v1762, %v1758
        %v1967 = vpack.c.b16 %v1767, %v1763
        %v1968 = vpack.c.b16 %v1768, %v1764
        %v1969 = vpack.c.b16 %v1769, %v1765
        %v1970 = vpack.c.b16 %v1770, %v1766
        %v1971 = vpack.c.b16 %v1775, %v1771
        %v1972 = vpack.c.b16 %v1776, %v1772
        %v1973 = vpack.c.b16 %v1777, %v1773
        %v1974 = vpack.c.b16 %v1778, %v1774
        %v1975 = vpack.c.b16 %v1783, %v1779
        %v1976 = vpack.c.b16 %v1784, %v1780
        %v1977 = vpack.c.b16 %v1785, %v1781
        %v1978 = vpack.c.b16 %v1786, %v1782
        %v1979 = vpack.c.b16 %v1791, %v1787
        %v1980 = vpack.c.b16 %v1792, %v1788
        %v1981 = vpack.c.b16 %v1793, %v1789
        %v1982 = vpack.c.b16 %v1794, %v1790
        %v1983 = vpack.c.b16 %v1799, %v1795
        %v1984 = vpack.c.b16 %v1800, %v1796
        %v1985 = vpack.c.b16 %v1801, %v1797
        %v1986 = vpack.c.b16 %v1802, %v1798
        %v1987 = vpack.c.b16 %v1807, %v1803
        %v1988 = vpack.c.b16 %v1808, %v1804
        %v1989 = vpack.c.b16 %v1809, %v1805
        %v1990 = vpack.c.b16 %v1810, %v1806
        %v1991 = vpack.c.b16 %v1815, %v1811
        %v1992 = vpack.c.b16 %v1816, %v1812
        %v1993 = vpack.c.b16 %v1817, %v1813
        %v1994 = vpack.c.b16 %v1818, %v1814
        %v1995 = vpack.c.b16 %v1823, %v1819
        %v1996 = vpack.c.b16 %v1824, %v1820
        %v1997 = vpack.c.b16 %v1825, %v1821
        %v1998 = vpack.c.b16 %v1826, %v1822
        %v1999 = vpack.c.b16 %v1831, %v1827
        %v2000 = vpack.c.b16 %v1832, %v1828
        %v2001 = vpack.c.b16 %v1833, %v1829
        %v2002 = vpack.c.b16 %v1834, %v1830
        %v2003 = vpack.c.b16 %v1839, %v1835
        %v2004 = vpack.c.b16 %v1840, %v1836
        %v2005 = vpack.c.b16 %v1841, %v1837
        %v2006 = vpack.c.b16 %v1842, %v1838
        %v2007 = vpack.c.b16 %v1847, %v1843
        %v2008 = vpack.c.b16 %v1848, %v1844
        %v2009 = vpack.c.b16 %v1849, %v1845
        %v2010 = vpack.c.b16 %v1850, %v1846
        %v2011 = vpack.c.b16 %v1855, %v1851
        %v2012 = vpack.c.b16 %v1856, %v1852
        %v2013 = vpack.c.b16 %v1857, %v1853
        %v2014 = vpack.c.b16 %v1858, %v1854
        %v2015 = vpack.c.b16 %v1863, %v1859
        %v2016 = vpack.c.b16 %v1864, %v1860
        %v2017 = vpack.c.b16 %v1865, %v1861
        %v2018 = vpack.c.b16 %v1866, %v1862
        %v2019 = vpack.c.b16 %v1871, %v1867
        %v2020 = vpack.c.b16 %v1872, %v1868
        %v2021 = vpack.c.b16 %v1873, %v1869
        %v2022 = vpack.c.b16 %v1874, %v1870
        %v2023 = vpack.c.b16 %v1879, %v1875
        %v2024 = vpack.c.b16 %v1880, %v1876
        %v2025 = vpack.c.b16 %v1881, %v1877
        %v2026 = vpack.c.b16 %v1882, %v1878
        %v2027 = vpack.c.b16 %v1887, %v1883
        %v2028 = vpack.c.b16 %v1888, %v1884
        %v2029 = vpack.c.b16 %v1889, %v1885
        %v2030 = vpack.c.b16 %v1890, %v1886
        %v2031 = vpack.c.b16 %v1895, %v1891
        %v2032 = vpack.c.b16 %v1896, %v1892
        %v2033 = vpack.c.b16 %v1897, %v1893
        %v2034 = vpack.c.b16 %v1898, %v1894
        %v2035 = vpack.c.b16 %v1903, %v1899
        %v2036 = vpack.c.b16 %v1904, %v1900
        %v2037 = vpack.c.b16 %v1905, %v1901
        %v2038 = vpack.c.b16 %v1906, %v1902
        %v2039 = vpack.c.b16 %v1911, %v1907
        %v2040 = vpack.c.b16 %v1912, %v1908
        %v2041 = vpack.c.b16 %v1913, %v1909
        %v2042 = vpack.c.b16 %v1914, %v1910
        %2171 = vmatprep.subr.bf16.mxu0 %v1944
        %2172 = vmatpush1.bf16.msra.mxu0 %v1943
        %2173 = vmatprep.subr.bf16.mxu0 %v1940
        %2174 = vmatpush1.bf16.msra.mxu0 %v1939
        %2175 = vmatprep.subr.bf16.mxu0 %v1936
        %2176 = vmatpush1.bf16.msra.mxu0 %v1935
        %2177 = vmatprep.subr.bf16.mxu0 %v1932
        %2178 = vmatpush1.bf16.msra.mxu0 %v1931
        %2179 = vmatprep.subr.bf16.mxu0 %v1928
        %2180 = vmatpush1.bf16.msra.mxu0 %v1927
        %2181 = vmatprep.subr.bf16.mxu0 %v1924
        %2182 = vmatpush1.bf16.msra.mxu0 %v1923
        %2183 = vmatprep.subr.bf16.mxu0 %v1920
        %2184 = vmatpush1.bf16.msra.mxu0 %v1919
        %2185 = vmatprep.subr.bf16.mxu0 %v1916
        %2186 = vmatpush1.bf16.msra.mxu0 %v1915
        %2187 = vmatprep.subr.bf16.mxu0 %v1976
        %2188 = vmatpush2.bf16.msra.mxu0 %v1975
        %2189 = vmatprep.subr.bf16.mxu0 %v1972
        %2190 = vmatpush2.bf16.msra.mxu0 %v1971
        %2191 = vmatprep.subr.bf16.mxu0 %v1968
        %2192 = vmatpush2.bf16.msra.mxu0 %v1967
        %2193 = vmatprep.subr.bf16.mxu0 %v1964
        %2194 = vmatpush2.bf16.msra.mxu0 %v1963
        %2195 = vmatprep.subr.bf16.mxu0 %v1960
        %2196 = vmatpush2.bf16.msra.mxu0 %v1959
        %2197 = vmatprep.subr.bf16.mxu0 %v1956
        %2198 = vmatpush2.bf16.msra.mxu0 %v1955
        %2199 = vmatprep.subr.bf16.mxu0 %v1952
        %2200 = vmatpush2.bf16.msra.mxu0 %v1951
        %2201 = vmatprep.subr.bf16.mxu0 %v1948
        %2202 = vmatpush2.bf16.msra.mxu0 %v1947
        %2203 = vmatprep.mubr.bf16.mxu0 %v1488
        %2204 = vmatmul.mubr.bf16.gmra.mxu0 %v1477
        %v2205 = vpop.f32.mrf.mxu0
        %v2206 = vadd.f32 0.0, %v2205
        %v2207 = vpop.f32.mrf.mxu0
        %v2208 = vadd.f32 0.0, %v2207
        %v2209 = vpop.f32.mrf.mxu0
        %v2210 = vadd.f32 0.0, %v2209
        %v2211 = vpop.f32.mrf.mxu0
        %v2212 = vadd.f32 0.0, %v2211
        %2213 = vmatprep.mubr.bf16.mxu0 %v1516
        %2214 = vmatmul.mubr.bf16.gmra.mxu0 %v1513
        %v2215 = vpop.f32.mrf.mxu0
        %v2216 = vadd.f32 0.0, %v2215
        %v2217 = vpop.f32.mrf.mxu0
        %v2218 = vadd.f32 0.0, %v2217
        %v2219 = vpop.f32.mrf.mxu0
        %v2220 = vpop.f32.mrf.mxu0
        %2221 = vdwg.mxu0
        %2222 = vmatprep.subr.bf16.mxu0 %v2008
        %2223 = vmatpush1.bf16.msra.mxu0 %v2007
        %2224 = vmatprep.subr.bf16.mxu0 %v2004
        %2225 = vmatpush1.bf16.msra.mxu0 %v2003
        %2226 = vmatprep.subr.bf16.mxu0 %v2000
        %2227 = vmatpush1.bf16.msra.mxu0 %v1999
        %2228 = vmatprep.subr.bf16.mxu0 %v1996
        %2229 = vmatpush1.bf16.msra.mxu0 %v1995
        %2230 = vmatprep.subr.bf16.mxu0 %v1992
        %2231 = vmatpush1.bf16.msra.mxu0 %v1991
        %2232 = vmatprep.subr.bf16.mxu0 %v1988
        %2233 = vmatpush1.bf16.msra.mxu0 %v1987
        %2234 = vmatprep.subr.bf16.mxu0 %v1984
        %2235 = vmatpush1.bf16.msra.mxu0 %v1983
        %2236 = vmatprep.subr.bf16.mxu0 %v1980
        %2237 = vmatpush1.bf16.msra.mxu0 %v1979
        %2238 = vmatprep.subr.bf16.mxu0 %v2040
        %2239 = vmatpush2.bf16.msra.mxu0 %v2039
        %2240 = vmatprep.subr.bf16.mxu0 %v2036
        %2241 = vmatpush2.bf16.msra.mxu0 %v2035
        %2242 = vmatprep.subr.bf16.mxu0 %v2032
        %2243 = vmatpush2.bf16.msra.mxu0 %v2031
        %2244 = vmatprep.subr.bf16.mxu0 %v2028
        %2245 = vmatpush2.bf16.msra.mxu0 %v2027
        %2246 = vmatprep.subr.bf16.mxu0 %v2024
        %2247 = vmatpush2.bf16.msra.mxu0 %v2023
        %2248 = vmatprep.subr.bf16.mxu0 %v2020
        %2249 = vmatpush2.bf16.msra.mxu0 %v2019
        %2250 = vmatprep.subr.bf16.mxu0 %v2016
        %2251 = vmatpush2.bf16.msra.mxu0 %v2015
        %2252 = vmatprep.subr.bf16.mxu0 %v2012
        %2253 = vmatpush2.bf16.msra.mxu0 %v2011
        %2254 = vmatprep.mubr.bf16.mxu0 %v1510
        %2255 = vmatmul.mubr.bf16.gmra.mxu0 %v1499
        %v2256 = vpop.f32.mrf.mxu0
        %v2257 = vadd.f32 %v2206, %v2256
        %v2258 = vpop.f32.mrf.mxu0
        %v2259 = vadd.f32 %v2208, %v2258
        %v2260 = vpop.f32.mrf.mxu0
        %v2261 = vadd.f32 %v2210, %v2260
        %v2262 = vpop.f32.mrf.mxu0
        %v2263 = vadd.f32 %v2212, %v2262
        %2264 = vmatprep.mubr.bf16.mxu0 %v1522
        %2265 = vmatmul.mubr.bf16.gmra.mxu0 %v1519
        %v2266 = vpop.f32.mrf.mxu0
        %v2267 = vadd.f32 %v2216, %v2266
        %v2268 = vpop.f32.mrf.mxu0
        %v2269 = vadd.f32 %v2218, %v2268
        %v2270 = vpop.f32.mrf.mxu0
        %v2271 = vpop.f32.mrf.mxu0
        %2272 = vdwg.mxu0
        %2273 = vmatprep.subr.bf16.mxu0 %v1946
        %2274 = vmatpush1.bf16.msra.mxu0 %v1945
        %2275 = vmatprep.subr.bf16.mxu0 %v1942
        %2276 = vmatpush1.bf16.msra.mxu0 %v1941
        %2277 = vmatprep.subr.bf16.mxu0 %v1938
        %2278 = vmatpush1.bf16.msra.mxu0 %v1937
        %2279 = vmatprep.subr.bf16.mxu0 %v1934
        %2280 = vmatpush1.bf16.msra.mxu0 %v1933
        %2281 = vmatprep.subr.bf16.mxu0 %v1930
        %2282 = vmatpush1.bf16.msra.mxu0 %v1929
        %2283 = vmatprep.subr.bf16.mxu0 %v1926
        %2284 = vmatpush1.bf16.msra.mxu0 %v1925
        %2285 = vmatprep.subr.bf16.mxu0 %v1922
        %2286 = vmatpush1.bf16.msra.mxu0 %v1921
        %2287 = vmatprep.subr.bf16.mxu0 %v1918
        %2288 = vmatpush1.bf16.msra.mxu0 %v1917
        %2289 = vmatprep.subr.bf16.mxu0 %v1978
        %2290 = vmatpush2.bf16.msra.mxu0 %v1977
        %2291 = vmatprep.subr.bf16.mxu0 %v1974
        %2292 = vmatpush2.bf16.msra.mxu0 %v1973
        %2293 = vmatprep.subr.bf16.mxu0 %v1970
        %2294 = vmatpush2.bf16.msra.mxu0 %v1969
        %2295 = vmatprep.subr.bf16.mxu0 %v1966
        %2296 = vmatpush2.bf16.msra.mxu0 %v1965
        %2297 = vmatprep.subr.bf16.mxu0 %v1962
        %2298 = vmatpush2.bf16.msra.mxu0 %v1961
        %2299 = vmatprep.subr.bf16.mxu0 %v1958
        %2300 = vmatpush2.bf16.msra.mxu0 %v1957
        %2301 = vmatprep.subr.bf16.mxu0 %v1954
        %2302 = vmatpush2.bf16.msra.mxu0 %v1953
        %2303 = vmatprep.subr.bf16.mxu0 %v1950
        %2304 = vmatpush2.bf16.msra.mxu0 %v1949
        %2305 = vmatprep.mubr.bf16.mxu0 %v1488
        %2306 = vmatmul.mubr.bf16.gmra.mxu0 %v1477
        %v2307 = vpop.f32.mrf.mxu0
        %v2308 = vadd.f32 0.0, %v2307
        %v2309 = vpop.f32.mrf.mxu0
        %v2310 = vadd.f32 0.0, %v2309
        %v2311 = vpop.f32.mrf.mxu0
        %v2312 = vadd.f32 0.0, %v2311
        %v2313 = vpop.f32.mrf.mxu0
        %v2314 = vadd.f32 0.0, %v2313
        %2315 = vmatprep.mubr.bf16.mxu0 %v1516
        %2316 = vmatmul.mubr.bf16.gmra.mxu0 %v1513
        %v2317 = vpop.f32.mrf.mxu0
        %v2318 = vadd.f32 0.0, %v2317
        %v2319 = vpop.f32.mrf.mxu0
        %v2320 = vadd.f32 0.0, %v2319
        %v2321 = vpop.f32.mrf.mxu0
        %v2322 = vpop.f32.mrf.mxu0
        %2323 = vdwg.mxu0
        %2324 = vmatprep.subr.bf16.mxu0 %v2010
        %2325 = vmatpush1.bf16.msra.mxu0 %v2009
        %2326 = vmatprep.subr.bf16.mxu0 %v2006
        %2327 = vmatpush1.bf16.msra.mxu0 %v2005
        %2328 = vmatprep.subr.bf16.mxu0 %v2002
        %2329 = vmatpush1.bf16.msra.mxu0 %v2001
        %2330 = vmatprep.subr.bf16.mxu0 %v1998
        %2331 = vmatpush1.bf16.msra.mxu0 %v1997
        %2332 = vmatprep.subr.bf16.mxu0 %v1994
        %2333 = vmatpush1.bf16.msra.mxu0 %v1993
        %2334 = vmatprep.subr.bf16.mxu0 %v1990
        %2335 = vmatpush1.bf16.msra.mxu0 %v1989
        %2336 = vmatprep.subr.bf16.mxu0 %v1986
        %2337 = vmatpush1.bf16.msra.mxu0 %v1985
        %2338 = vmatprep.subr.bf16.mxu0 %v1982
        %2339 = vmatpush1.bf16.msra.mxu0 %v1981
        %2340 = vmatprep.subr.bf16.mxu0 %v2042
        %2341 = vmatpush2.bf16.msra.mxu0 %v2041
        %2342 = vmatprep.subr.bf16.mxu0 %v2038
        %2343 = vmatpush2.bf16.msra.mxu0 %v2037
        %2344 = vmatprep.subr.bf16.mxu0 %v2034
        %2345 = vmatpush2.bf16.msra.mxu0 %v2033
        %2346 = vmatprep.subr.bf16.mxu0 %v2030
        %2347 = vmatpush2.bf16.msra.mxu0 %v2029
        %2348 = vmatprep.subr.bf16.mxu0 %v2026
        %2349 = vmatpush2.bf16.msra.mxu0 %v2025
        %2350 = vmatprep.subr.bf16.mxu0 %v2022
        %2351 = vmatpush2.bf16.msra.mxu0 %v2021
        %2352 = vmatprep.subr.bf16.mxu0 %v2018
        %2353 = vmatpush2.bf16.msra.mxu0 %v2017
        %2354 = vmatprep.subr.bf16.mxu0 %v2014
        %2355 = vmatpush2.bf16.msra.mxu0 %v2013
        %2356 = vmatprep.mubr.bf16.mxu0 %v1510
        %2357 = vmatmul.mubr.bf16.gmra.mxu0 %v1499
        %v2358 = vpop.f32.mrf.mxu0
        %v2359 = vadd.f32 %v2308, %v2358
        %v2360 = vpop.f32.mrf.mxu0
        %v2361 = vadd.f32 %v2310, %v2360
        %v2362 = vpop.f32.mrf.mxu0
        %v2363 = vadd.f32 %v2312, %v2362
        %v2364 = vpop.f32.mrf.mxu0
        %v2365 = vadd.f32 %v2314, %v2364
        %2366 = vmatprep.mubr.bf16.mxu0 %v1522
        %2367 = vmatmul.mubr.bf16.gmra.mxu0 %v1519
        %v2368 = vpop.f32.mrf.mxu0
        %v2369 = vadd.f32 %v2318, %v2368
        %v2370 = vpop.f32.mrf.mxu0
        %v2371 = vadd.f32 %v2320, %v2370
        %v2372 = vpop.f32.mrf.mxu0
        %v2373 = vpop.f32.mrf.mxu0
        %2374 = vdwg.mxu0
        %v2375 = vadd.f32 %v1325, %v2257
        %v2376 = vadd.f32 %v1326, %v2259
        %v2377 = vadd.f32 %v1327, %v2359
        %v2378 = vadd.f32 %v1328, %v2361
        %v2379 = vadd.f32 %v1329, %v2261
        %v2380 = vadd.f32 %v1330, %v2263
        %v2381 = vadd.f32 %v1331, %v2363
        %v2382 = vadd.f32 %v1332, %v2365
        %v2383 = vadd.f32 %v1333, %v2267
        %v2384 = vadd.f32 %v1334, %v2269
        %v2385 = vadd.f32 %v1335, %v2369
        %v2386 = vadd.f32 %v1336, %v2371
        %s2387 = scalar_lea.vmem [#allocation2], 2048
        %v2388 = vld [vmem:[%s2387] sm:$0xff]
        %v2389 = vld [vmem:[%s2387 + $0x8] sm:$0xff]
        %v2390 = vld [vmem:[%s2387 + $0x10] sm:$0xff]
        %v2391 = vld [vmem:[%s2387 + $0x18] sm:$0xff]
        %v2392 = vld [vmem:[%s2387 + $0x20] sm:$0xff]
        %v2393 = vld [vmem:[%s2387 + $0x28] sm:$0xff]
        %v2394 = vld [vmem:[%s2387 + $0x30] sm:$0xff]
        %v2395 = vld [vmem:[%s2387 + $0x38] sm:$0xff]
        %v2396 = vld [vmem:[%s2387 + $0x40] sm:$0xff]
        %v2397 = vld [vmem:[%s2387 + $0x48] sm:$0xff]
        %v2398 = vld [vmem:[%s2387 + $0x50] sm:$0xff]
        %v2399 = vld [vmem:[%s2387 + $0x58] sm:$0xff]
        %v2400 = vld [vmem:[%s2387 + $0x60] sm:$0xff]
        %v2401 = vld [vmem:[%s2387 + $0x68] sm:$0xff]
        %v2402 = vld [vmem:[%s2387 + $0x70] sm:$0xff]
        %v2403 = vld [vmem:[%s2387 + $0x78] sm:$0xff]
        %v2404 = vld [vmem:[%s2387 + $0x80] sm:$0xff]
        %v2405 = vld [vmem:[%s2387 + $0x88] sm:$0xff]
        %v2406 = vld [vmem:[%s2387 + $0x90] sm:$0xff]
        %v2407 = vld [vmem:[%s2387 + $0x98] sm:$0xff]
        %v2408 = vld [vmem:[%s2387 + $0xa0] sm:$0xff]
        %v2409 = vld [vmem:[%s2387 + $0xa8] sm:$0xff]
        %v2410 = vld [vmem:[%s2387 + $0xb0] sm:$0xff]
        %v2411 = vld [vmem:[%s2387 + $0xb8] sm:$0xff]
        %v2412 = vld [vmem:[%s2387 + $0xc0] sm:$0xff]
        %v2413 = vld [vmem:[%s2387 + $0xc8] sm:$0xff]
        %v2414 = vld [vmem:[%s2387 + $0xd0] sm:$0xff]
        %v2415 = vld [vmem:[%s2387 + $0xd8] sm:$0xff]
        %v2416 = vld [vmem:[%s2387 + $0xe0] sm:$0xff]
        %v2417 = vld [vmem:[%s2387 + $0xe8] sm:$0xff]
        %v2418 = vld [vmem:[%s2387 + $0xf0] sm:$0xff]
        %v2419 = vld [vmem:[%s2387 + $0xf8] sm:$0xff]
        %v2420 = vld [vmem:[%s2387 + $0x100] sm:$0xff]
        %v2421 = vld [vmem:[%s2387 + $0x108] sm:$0xff]
        %v2422 = vld [vmem:[%s2387 + $0x110] sm:$0xff]
        %v2423 = vld [vmem:[%s2387 + $0x118] sm:$0xff]
        %v2424 = vld [vmem:[%s2387 + $0x120] sm:$0xff]
        %v2425 = vld [vmem:[%s2387 + $0x128] sm:$0xff]
        %v2426 = vld [vmem:[%s2387 + $0x130] sm:$0xff]
        %v2427 = vld [vmem:[%s2387 + $0x138] sm:$0xff]
        %v2428 = vld [vmem:[%s2387 + $0x140] sm:$0xff]
        %v2429 = vld [vmem:[%s2387 + $0x148] sm:$0xff]
        %v2430 = vld [vmem:[%s2387 + $0x150] sm:$0xff]
        %v2431 = vld [vmem:[%s2387 + $0x158] sm:$0xff]
        %v2432 = vld [vmem:[%s2387 + $0x160] sm:$0xff]
        %v2433 = vld [vmem:[%s2387 + $0x168] sm:$0xff]
        %v2434 = vld [vmem:[%s2387 + $0x170] sm:$0xff]
        %v2435 = vld [vmem:[%s2387 + $0x178] sm:$0xff]
        %v2436 = vld [vmem:[%s2387 + $0x180] sm:$0xff]
        %v2437 = vld [vmem:[%s2387 + $0x188] sm:$0xff]
        %v2438 = vld [vmem:[%s2387 + $0x190] sm:$0xff]
        %v2439 = vld [vmem:[%s2387 + $0x198] sm:$0xff]
        %v2440 = vld [vmem:[%s2387 + $0x1a0] sm:$0xff]
        %v2441 = vld [vmem:[%s2387 + $0x1a8] sm:$0xff]
        %v2442 = vld [vmem:[%s2387 + $0x1b0] sm:$0xff]
        %v2443 = vld [vmem:[%s2387 + $0x1b8] sm:$0xff]
        %v2444 = vld [vmem:[%s2387 + $0x1c0] sm:$0xff]
        %v2445 = vld [vmem:[%s2387 + $0x1c8] sm:$0xff]
        %v2446 = vld [vmem:[%s2387 + $0x1d0] sm:$0xff]
        %v2447 = vld [vmem:[%s2387 + $0x1d8] sm:$0xff]
        %v2448 = vld [vmem:[%s2387 + $0x1e0] sm:$0xff]
        %v2449 = vld [vmem:[%s2387 + $0x1e8] sm:$0xff]
        %v2450 = vld [vmem:[%s2387 + $0x1f0] sm:$0xff]
        %v2451 = vld [vmem:[%s2387 + $0x1f8] sm:$0xff]
        %v2452 = vld [vmem:[%s2387 + $0x200] sm:$0xff]
        %v2453 = vld [vmem:[%s2387 + $0x208] sm:$0xff]
        %v2454 = vld [vmem:[%s2387 + $0x210] sm:$0xff]
        %v2455 = vld [vmem:[%s2387 + $0x218] sm:$0xff]
        %v2456 = vld [vmem:[%s2387 + $0x220] sm:$0xff]
        %v2457 = vld [vmem:[%s2387 + $0x228] sm:$0xff]
        %v2458 = vld [vmem:[%s2387 + $0x230] sm:$0xff]
        %v2459 = vld [vmem:[%s2387 + $0x238] sm:$0xff]
        %v2460 = vld [vmem:[%s2387 + $0x240] sm:$0xff]
        %v2461 = vld [vmem:[%s2387 + $0x248] sm:$0xff]
        %v2462 = vld [vmem:[%s2387 + $0x250] sm:$0xff]
        %v2463 = vld [vmem:[%s2387 + $0x258] sm:$0xff]
        %v2464 = vld [vmem:[%s2387 + $0x260] sm:$0xff]
        %v2465 = vld [vmem:[%s2387 + $0x268] sm:$0xff]
        %v2466 = vld [vmem:[%s2387 + $0x270] sm:$0xff]
        %v2467 = vld [vmem:[%s2387 + $0x278] sm:$0xff]
        %v2468 = vld [vmem:[%s2387 + $0x280] sm:$0xff]
        %v2469 = vld [vmem:[%s2387 + $0x288] sm:$0xff]
        %v2470 = vld [vmem:[%s2387 + $0x290] sm:$0xff]
        %v2471 = vld [vmem:[%s2387 + $0x298] sm:$0xff]
        %v2472 = vld [vmem:[%s2387 + $0x2a0] sm:$0xff]
        %v2473 = vld [vmem:[%s2387 + $0x2a8] sm:$0xff]
        %v2474 = vld [vmem:[%s2387 + $0x2b0] sm:$0xff]
        %v2475 = vld [vmem:[%s2387 + $0x2b8] sm:$0xff]
        %v2476 = vld [vmem:[%s2387 + $0x2c0] sm:$0xff]
        %v2477 = vld [vmem:[%s2387 + $0x2c8] sm:$0xff]
        %v2478 = vld [vmem:[%s2387 + $0x2d0] sm:$0xff]
        %v2479 = vld [vmem:[%s2387 + $0x2d8] sm:$0xff]
        %v2480 = vld [vmem:[%s2387 + $0x2e0] sm:$0xff]
        %v2481 = vld [vmem:[%s2387 + $0x2e8] sm:$0xff]
        %v2482 = vld [vmem:[%s2387 + $0x2f0] sm:$0xff]
        %v2483 = vld [vmem:[%s2387 + $0x2f8] sm:$0xff]
        %v2484 = vld [vmem:[%s2387 + $0x300] sm:$0xff]
        %v2485 = vld [vmem:[%s2387 + $0x308] sm:$0xff]
        %v2486 = vld [vmem:[%s2387 + $0x310] sm:$0xff]
        %v2487 = vld [vmem:[%s2387 + $0x318] sm:$0xff]
        %v2488 = vld [vmem:[%s2387 + $0x320] sm:$0xff]
        %v2489 = vld [vmem:[%s2387 + $0x328] sm:$0xff]
        %v2490 = vld [vmem:[%s2387 + $0x330] sm:$0xff]
        %v2491 = vld [vmem:[%s2387 + $0x338] sm:$0xff]
        %v2492 = vld [vmem:[%s2387 + $0x340] sm:$0xff]
        %v2493 = vld [vmem:[%s2387 + $0x348] sm:$0xff]
        %v2494 = vld [vmem:[%s2387 + $0x350] sm:$0xff]
        %v2495 = vld [vmem:[%s2387 + $0x358] sm:$0xff]
        %v2496 = vld [vmem:[%s2387 + $0x360] sm:$0xff]
        %v2497 = vld [vmem:[%s2387 + $0x368] sm:$0xff]
        %v2498 = vld [vmem:[%s2387 + $0x370] sm:$0xff]
        %v2499 = vld [vmem:[%s2387 + $0x378] sm:$0xff]
        %v2500 = vld [vmem:[%s2387 + $0x380] sm:$0xff]
        %v2501 = vld [vmem:[%s2387 + $0x388] sm:$0xff]
        %v2502 = vld [vmem:[%s2387 + $0x390] sm:$0xff]
        %v2503 = vld [vmem:[%s2387 + $0x398] sm:$0xff]
        %v2504 = vld [vmem:[%s2387 + $0x3a0] sm:$0xff]
        %v2505 = vld [vmem:[%s2387 + $0x3a8] sm:$0xff]
        %v2506 = vld [vmem:[%s2387 + $0x3b0] sm:$0xff]
        %v2507 = vld [vmem:[%s2387 + $0x3b8] sm:$0xff]
        %v2508 = vld [vmem:[%s2387 + $0x3c0] sm:$0xff]
        %v2509 = vld [vmem:[%s2387 + $0x3c8] sm:$0xff]
        %v2510 = vld [vmem:[%s2387 + $0x3d0] sm:$0xff]
        %v2511 = vld [vmem:[%s2387 + $0x3d8] sm:$0xff]
        %v2512 = vld [vmem:[%s2387 + $0x3e0] sm:$0xff]
        %v2513 = vld [vmem:[%s2387 + $0x3e8] sm:$0xff]
        %v2514 = vld [vmem:[%s2387 + $0x3f0] sm:$0xff]
        %v2515 = vld [vmem:[%s2387 + $0x3f8] sm:$0xff]
        %vm2520 = vcmask 1046528
        %v2521 = vrot.slane %v305, 1
        %v2522 = vrot.slane %v320, 1
        %v2523 = vsel %vm2520, %v2521, %v2522
        %v2524 = vrot.slane %v306, 1
        %v2525 = vrot.slane %v323, 1
        %v2526 = vsel %vm2520, %v2524, %v2525
        %v2527 = vrot.slane %v307, 1
        %v2528 = vrot.slane %v326, 1
        %v2529 = vsel %vm2520, %v2527, %v2528
        %v2530 = vrot.slane %v308, 1
        %v2531 = vrot.slane %v329, 1
        %v2532 = vsel %vm2520, %v2530, %v2531
        %v2669 = vunpack.c.l.b16 %v2388
        %v2670 = vunpack.c.h.b16 %v2388
        %v2671 = vunpack.c.l.b16 %v2389
        %v2672 = vunpack.c.h.b16 %v2389
        %v2673 = vunpack.c.l.b16 %v2390
        %v2674 = vunpack.c.h.b16 %v2390
        %v2675 = vunpack.c.l.b16 %v2391
        %v2676 = vunpack.c.h.b16 %v2391
        %v2677 = vunpack.c.l.b16 %v2392
        %v2678 = vunpack.c.h.b16 %v2392
        %v2679 = vunpack.c.l.b16 %v2393
        %v2680 = vunpack.c.h.b16 %v2393
        %v2681 = vunpack.c.l.b16 %v2394
        %v2682 = vunpack.c.h.b16 %v2394
        %v2683 = vunpack.c.l.b16 %v2395
        %v2684 = vunpack.c.h.b16 %v2395
        %v2685 = vunpack.c.l.b16 %v2396
        %v2686 = vunpack.c.h.b16 %v2396
        %v2687 = vunpack.c.l.b16 %v2397
        %v2688 = vunpack.c.h.b16 %v2397
        %v2689 = vunpack.c.l.b16 %v2398
        %v2690 = vunpack.c.h.b16 %v2398
        %v2691 = vunpack.c.l.b16 %v2399
        %v2692 = vunpack.c.h.b16 %v2399
        %v2693 = vunpack.c.l.b16 %v2400
        %v2694 = vunpack.c.h.b16 %v2400
        %v2695 = vunpack.c.l.b16 %v2401
        %v2696 = vunpack.c.h.b16 %v2401
        %v2697 = vunpack.c.l.b16 %v2402
        %v2698 = vunpack.c.h.b16 %v2402
        %v2699 = vunpack.c.l.b16 %v2403
        %v2700 = vunpack.c.h.b16 %v2403
        %v2701 = vunpack.c.l.b16 %v2404
        %v2702 = vunpack.c.h.b16 %v2404
        %v2703 = vunpack.c.l.b16 %v2405
        %v2704 = vunpack.c.h.b16 %v2405
        %v2705 = vunpack.c.l.b16 %v2406
        %v2706 = vunpack.c.h.b16 %v2406
        %v2707 = vunpack.c.l.b16 %v2407
        %v2708 = vunpack.c.h.b16 %v2407
        %v2709 = vunpack.c.l.b16 %v2408
        %v2710 = vunpack.c.h.b16 %v2408
        %v2711 = vunpack.c.l.b16 %v2409
        %v2712 = vunpack.c.h.b16 %v2409
        %v2713 = vunpack.c.l.b16 %v2410
        %v2714 = vunpack.c.h.b16 %v2410
        %v2715 = vunpack.c.l.b16 %v2411
        %v2716 = vunpack.c.h.b16 %v2411
        %v2717 = vunpack.c.l.b16 %v2412
        %v2718 = vunpack.c.h.b16 %v2412
        %v2719 = vunpack.c.l.b16 %v2413
        %v2720 = vunpack.c.h.b16 %v2413
        %v2721 = vunpack.c.l.b16 %v2414
        %v2722 = vunpack.c.h.b16 %v2414
        %v2723 = vunpack.c.l.b16 %v2415
        %v2724 = vunpack.c.h.b16 %v2415
        %v2725 = vunpack.c.l.b16 %v2416
        %v2726 = vunpack.c.h.b16 %v2416
        %v2727 = vunpack.c.l.b16 %v2417
        %v2728 = vunpack.c.h.b16 %v2417
        %v2729 = vunpack.c.l.b16 %v2418
        %v2730 = vunpack.c.h.b16 %v2418
        %v2731 = vunpack.c.l.b16 %v2419
        %v2732 = vunpack.c.h.b16 %v2419
        %v2733 = vunpack.c.l.b16 %v2420
        %v2734 = vunpack.c.h.b16 %v2420
        %v2735 = vunpack.c.l.b16 %v2421
        %v2736 = vunpack.c.h.b16 %v2421
        %v2737 = vunpack.c.l.b16 %v2422
        %v2738 = vunpack.c.h.b16 %v2422
        %v2739 = vunpack.c.l.b16 %v2423
        %v2740 = vunpack.c.h.b16 %v2423
        %v2741 = vunpack.c.l.b16 %v2424
        %v2742 = vunpack.c.h.b16 %v2424
        %v2743 = vunpack.c.l.b16 %v2425
        %v2744 = vunpack.c.h.b16 %v2425
        %v2745 = vunpack.c.l.b16 %v2426
        %v2746 = vunpack.c.h.b16 %v2426
        %v2747 = vunpack.c.l.b16 %v2427
        %v2748 = vunpack.c.h.b16 %v2427
        %v2749 = vunpack.c.l.b16 %v2428
        %v2750 = vunpack.c.h.b16 %v2428
        %v2751 = vunpack.c.l.b16 %v2429
        %v2752 = vunpack.c.h.b16 %v2429
        %v2753 = vunpack.c.l.b16 %v2430
        %v2754 = vunpack.c.h.b16 %v2430
        %v2755 = vunpack.c.l.b16 %v2431
        %v2756 = vunpack.c.h.b16 %v2431
        %v2757 = vunpack.c.l.b16 %v2432
        %v2758 = vunpack.c.h.b16 %v2432
        %v2759 = vunpack.c.l.b16 %v2433
        %v2760 = vunpack.c.h.b16 %v2433
        %v2761 = vunpack.c.l.b16 %v2434
        %v2762 = vunpack.c.h.b16 %v2434
        %v2763 = vunpack.c.l.b16 %v2435
        %v2764 = vunpack.c.h.b16 %v2435
        %v2765 = vunpack.c.l.b16 %v2436
        %v2766 = vunpack.c.h.b16 %v2436
        %v2767 = vunpack.c.l.b16 %v2437
        %v2768 = vunpack.c.h.b16 %v2437
        %v2769 = vunpack.c.l.b16 %v2438
        %v2770 = vunpack.c.h.b16 %v2438
        %v2771 = vunpack.c.l.b16 %v2439
        %v2772 = vunpack.c.h.b16 %v2439
        %v2773 = vunpack.c.l.b16 %v2440
        %v2774 = vunpack.c.h.b16 %v2440
        %v2775 = vunpack.c.l.b16 %v2441
        %v2776 = vunpack.c.h.b16 %v2441
        %v2777 = vunpack.c.l.b16 %v2442
        %v2778 = vunpack.c.h.b16 %v2442
        %v2779 = vunpack.c.l.b16 %v2443
        %v2780 = vunpack.c.h.b16 %v2443
        %v2781 = vunpack.c.l.b16 %v2444
        %v2782 = vunpack.c.h.b16 %v2444
        %v2783 = vunpack.c.l.b16 %v2445
        %v2784 = vunpack.c.h.b16 %v2445
        %v2785 = vunpack.c.l.b16 %v2446
        %v2786 = vunpack.c.h.b16 %v2446
        %v2787 = vunpack.c.l.b16 %v2447
        %v2788 = vunpack.c.h.b16 %v2447
        %v2789 = vunpack.c.l.b16 %v2448
        %v2790 = vunpack.c.h.b16 %v2448
        %v2791 = vunpack.c.l.b16 %v2449
        %v2792 = vunpack.c.h.b16 %v2449
        %v2793 = vunpack.c.l.b16 %v2450
        %v2794 = vunpack.c.h.b16 %v2450
        %v2795 = vunpack.c.l.b16 %v2451
        %v2796 = vunpack.c.h.b16 %v2451
        %v2797 = vunpack.c.l.b16 %v2452
        %v2798 = vunpack.c.h.b16 %v2452
        %v2799 = vunpack.c.l.b16 %v2453
        %v2800 = vunpack.c.h.b16 %v2453
        %v2801 = vunpack.c.l.b16 %v2454
        %v2802 = vunpack.c.h.b16 %v2454
        %v2803 = vunpack.c.l.b16 %v2455
        %v2804 = vunpack.c.h.b16 %v2455
        %v2805 = vunpack.c.l.b16 %v2456
        %v2806 = vunpack.c.h.b16 %v2456
        %v2807 = vunpack.c.l.b16 %v2457
        %v2808 = vunpack.c.h.b16 %v2457
        %v2809 = vunpack.c.l.b16 %v2458
        %v2810 = vunpack.c.h.b16 %v2458
        %v2811 = vunpack.c.l.b16 %v2459
        %v2812 = vunpack.c.h.b16 %v2459
        %v2813 = vunpack.c.l.b16 %v2460
        %v2814 = vunpack.c.h.b16 %v2460
        %v2815 = vunpack.c.l.b16 %v2461
        %v2816 = vunpack.c.h.b16 %v2461
        %v2817 = vunpack.c.l.b16 %v2462
        %v2818 = vunpack.c.h.b16 %v2462
        %v2819 = vunpack.c.l.b16 %v2463
        %v2820 = vunpack.c.h.b16 %v2463
        %v2821 = vunpack.c.l.b16 %v2464
        %v2822 = vunpack.c.h.b16 %v2464
        %v2823 = vunpack.c.l.b16 %v2465
        %v2824 = vunpack.c.h.b16 %v2465
        %v2825 = vunpack.c.l.b16 %v2466
        %v2826 = vunpack.c.h.b16 %v2466
        %v2827 = vunpack.c.l.b16 %v2467
        %v2828 = vunpack.c.h.b16 %v2467
        %v2829 = vunpack.c.l.b16 %v2468
        %v2830 = vunpack.c.h.b16 %v2468
        %v2831 = vunpack.c.l.b16 %v2469
        %v2832 = vunpack.c.h.b16 %v2469
        %v2833 = vunpack.c.l.b16 %v2470
        %v2834 = vunpack.c.h.b16 %v2470
        %v2835 = vunpack.c.l.b16 %v2471
        %v2836 = vunpack.c.h.b16 %v2471
        %v2837 = vunpack.c.l.b16 %v2472
        %v2838 = vunpack.c.h.b16 %v2472
        %v2839 = vunpack.c.l.b16 %v2473
        %v2840 = vunpack.c.h.b16 %v2473
        %v2841 = vunpack.c.l.b16 %v2474
        %v2842 = vunpack.c.h.b16 %v2474
        %v2843 = vunpack.c.l.b16 %v2475
        %v2844 = vunpack.c.h.b16 %v2475
        %v2845 = vunpack.c.l.b16 %v2476
        %v2846 = vunpack.c.h.b16 %v2476
        %v2847 = vunpack.c.l.b16 %v2477
        %v2848 = vunpack.c.h.b16 %v2477
        %v2849 = vunpack.c.l.b16 %v2478
        %v2850 = vunpack.c.h.b16 %v2478
        %v2851 = vunpack.c.l.b16 %v2479
        %v2852 = vunpack.c.h.b16 %v2479
        %v2853 = vunpack.c.l.b16 %v2480
        %v2854 = vunpack.c.h.b16 %v2480
        %v2855 = vunpack.c.l.b16 %v2481
        %v2856 = vunpack.c.h.b16 %v2481
        %v2857 = vunpack.c.l.b16 %v2482
        %v2858 = vunpack.c.h.b16 %v2482
        %v2859 = vunpack.c.l.b16 %v2483
        %v2860 = vunpack.c.h.b16 %v2483
        %v2861 = vunpack.c.l.b16 %v2484
        %v2862 = vunpack.c.h.b16 %v2484
        %v2863 = vunpack.c.l.b16 %v2485
        %v2864 = vunpack.c.h.b16 %v2485
        %v2865 = vunpack.c.l.b16 %v2486
        %v2866 = vunpack.c.h.b16 %v2486
        %v2867 = vunpack.c.l.b16 %v2487
        %v2868 = vunpack.c.h.b16 %v2487
        %v2869 = vunpack.c.l.b16 %v2488
        %v2870 = vunpack.c.h.b16 %v2488
        %v2871 = vunpack.c.l.b16 %v2489
        %v2872 = vunpack.c.h.b16 %v2489
        %v2873 = vunpack.c.l.b16 %v2490
        %v2874 = vunpack.c.h.b16 %v2490
        %v2875 = vunpack.c.l.b16 %v2491
        %v2876 = vunpack.c.h.b16 %v2491
        %v2877 = vunpack.c.l.b16 %v2492
        %v2878 = vunpack.c.h.b16 %v2492
        %v2879 = vunpack.c.l.b16 %v2493
        %v2880 = vunpack.c.h.b16 %v2493
        %v2881 = vunpack.c.l.b16 %v2494
        %v2882 = vunpack.c.h.b16 %v2494
        %v2883 = vunpack.c.l.b16 %v2495
        %v2884 = vunpack.c.h.b16 %v2495
        %v2885 = vunpack.c.l.b16 %v2496
        %v2886 = vunpack.c.h.b16 %v2496
        %v2887 = vunpack.c.l.b16 %v2497
        %v2888 = vunpack.c.h.b16 %v2497
        %v2889 = vunpack.c.l.b16 %v2498
        %v2890 = vunpack.c.h.b16 %v2498
        %v2891 = vunpack.c.l.b16 %v2499
        %v2892 = vunpack.c.h.b16 %v2499
        %v2893 = vunpack.c.l.b16 %v2500
        %v2894 = vunpack.c.h.b16 %v2500
        %v2895 = vunpack.c.l.b16 %v2501
        %v2896 = vunpack.c.h.b16 %v2501
        %v2897 = vunpack.c.l.b16 %v2502
        %v2898 = vunpack.c.h.b16 %v2502
        %v2899 = vunpack.c.l.b16 %v2503
        %v2900 = vunpack.c.h.b16 %v2503
        %v2901 = vunpack.c.l.b16 %v2504
        %v2902 = vunpack.c.h.b16 %v2504
        %v2903 = vunpack.c.l.b16 %v2505
        %v2904 = vunpack.c.h.b16 %v2505
        %v2905 = vunpack.c.l.b16 %v2506
        %v2906 = vunpack.c.h.b16 %v2506
        %v2907 = vunpack.c.l.b16 %v2507
        %v2908 = vunpack.c.h.b16 %v2507
        %v2909 = vunpack.c.l.b16 %v2508
        %v2910 = vunpack.c.h.b16 %v2508
        %v2911 = vunpack.c.l.b16 %v2509
        %v2912 = vunpack.c.h.b16 %v2509
        %v2913 = vunpack.c.l.b16 %v2510
        %v2914 = vunpack.c.h.b16 %v2510
        %v2915 = vunpack.c.l.b16 %v2511
        %v2916 = vunpack.c.h.b16 %v2511
        %v2917 = vunpack.c.l.b16 %v2512
        %v2918 = vunpack.c.h.b16 %v2512
        %v2919 = vunpack.c.l.b16 %v2513
        %v2920 = vunpack.c.h.b16 %v2513
        %v2921 = vunpack.c.l.b16 %v2514
        %v2922 = vunpack.c.h.b16 %v2514
        %v2923 = vunpack.c.l.b16 %v2515
        %v2924 = vunpack.c.h.b16 %v2515
        %v2925 = vpack.c.b16 %v2673, %v2669
        %v2926 = vpack.c.b16 %v2674, %v2670
        %v2927 = vpack.c.b16 %v2675, %v2671
        %v2928 = vpack.c.b16 %v2676, %v2672
        %v2929 = vpack.c.b16 %v2681, %v2677
        %v2930 = vpack.c.b16 %v2682, %v2678
        %v2931 = vpack.c.b16 %v2683, %v2679
        %v2932 = vpack.c.b16 %v2684, %v2680
        %v2933 = vpack.c.b16 %v2689, %v2685
        %v2934 = vpack.c.b16 %v2690, %v2686
        %v2935 = vpack.c.b16 %v2691, %v2687
        %v2936 = vpack.c.b16 %v2692, %v2688
        %v2937 = vpack.c.b16 %v2697, %v2693
        %v2938 = vpack.c.b16 %v2698, %v2694
        %v2939 = vpack.c.b16 %v2699, %v2695
        %v2940 = vpack.c.b16 %v2700, %v2696
        %v2941 = vpack.c.b16 %v2705, %v2701
        %v2942 = vpack.c.b16 %v2706, %v2702
        %v2943 = vpack.c.b16 %v2707, %v2703
        %v2944 = vpack.c.b16 %v2708, %v2704
        %v2945 = vpack.c.b16 %v2713, %v2709
        %v2946 = vpack.c.b16 %v2714, %v2710
        %v2947 = vpack.c.b16 %v2715, %v2711
        %v2948 = vpack.c.b16 %v2716, %v2712
        %v2949 = vpack.c.b16 %v2721, %v2717
        %v2950 = vpack.c.b16 %v2722, %v2718
        %v2951 = vpack.c.b16 %v2723, %v2719
        %v2952 = vpack.c.b16 %v2724, %v2720
        %v2953 = vpack.c.b16 %v2729, %v2725
        %v2954 = vpack.c.b16 %v2730, %v2726
        %v2955 = vpack.c.b16 %v2731, %v2727
        %v2956 = vpack.c.b16 %v2732, %v2728
        %v2957 = vpack.c.b16 %v2737, %v2733
        %v2958 = vpack.c.b16 %v2738, %v2734
        %v2959 = vpack.c.b16 %v2739, %v2735
        %v2960 = vpack.c.b16 %v2740, %v2736
        %v2961 = vpack.c.b16 %v2745, %v2741
        %v2962 = vpack.c.b16 %v2746, %v2742
        %v2963 = vpack.c.b16 %v2747, %v2743
        %v2964 = vpack.c.b16 %v2748, %v2744
        %v2965 = vpack.c.b16 %v2753, %v2749
        %v2966 = vpack.c.b16 %v2754, %v2750
        %v2967 = vpack.c.b16 %v2755, %v2751
        %v2968 = vpack.c.b16 %v2756, %v2752
        %v2969 = vpack.c.b16 %v2761, %v2757
        %v2970 = vpack.c.b16 %v2762, %v2758
        %v2971 = vpack.c.b16 %v2763, %v2759
        %v2972 = vpack.c.b16 %v2764, %v2760
        %v2973 = vpack.c.b16 %v2769, %v2765
        %v2974 = vpack.c.b16 %v2770, %v2766
        %v2975 = vpack.c.b16 %v2771, %v2767
        %v2976 = vpack.c.b16 %v2772, %v2768
        %v2977 = vpack.c.b16 %v2777, %v2773
        %v2978 = vpack.c.b16 %v2778, %v2774
        %v2979 = vpack.c.b16 %v2779, %v2775
        %v2980 = vpack.c.b16 %v2780, %v2776
        %v2981 = vpack.c.b16 %v2785, %v2781
        %v2982 = vpack.c.b16 %v2786, %v2782
        %v2983 = vpack.c.b16 %v2787, %v2783
        %v2984 = vpack.c.b16 %v2788, %v2784
        %v2985 = vpack.c.b16 %v2793, %v2789
        %v2986 = vpack.c.b16 %v2794, %v2790
        %v2987 = vpack.c.b16 %v2795, %v2791
        %v2988 = vpack.c.b16 %v2796, %v2792
        %v2989 = vpack.c.b16 %v2801, %v2797
        %v2990 = vpack.c.b16 %v2802, %v2798
        %v2991 = vpack.c.b16 %v2803, %v2799
        %v2992 = vpack.c.b16 %v2804, %v2800
        %v2993 = vpack.c.b16 %v2809, %v2805
        %v2994 = vpack.c.b16 %v2810, %v2806
        %v2995 = vpack.c.b16 %v2811, %v2807
        %v2996 = vpack.c.b16 %v2812, %v2808
        %v2997 = vpack.c.b16 %v2817, %v2813
        %v2998 = vpack.c.b16 %v2818, %v2814
        %v2999 = vpack.c.b16 %v2819, %v2815
        %v3000 = vpack.c.b16 %v2820, %v2816
        %v3001 = vpack.c.b16 %v2825, %v2821
        %v3002 = vpack.c.b16 %v2826, %v2822
        %v3003 = vpack.c.b16 %v2827, %v2823
        %v3004 = vpack.c.b16 %v2828, %v2824
        %v3005 = vpack.c.b16 %v2833, %v2829
        %v3006 = vpack.c.b16 %v2834, %v2830
        %v3007 = vpack.c.b16 %v2835, %v2831
        %v3008 = vpack.c.b16 %v2836, %v2832
        %v3009 = vpack.c.b16 %v2841, %v2837
        %v3010 = vpack.c.b16 %v2842, %v2838
        %v3011 = vpack.c.b16 %v2843, %v2839
        %v3012 = vpack.c.b16 %v2844, %v2840
        %v3013 = vpack.c.b16 %v2849, %v2845
        %v3014 = vpack.c.b16 %v2850, %v2846
        %v3015 = vpack.c.b16 %v2851, %v2847
        %v3016 = vpack.c.b16 %v2852, %v2848
        %v3017 = vpack.c.b16 %v2857, %v2853
        %v3018 = vpack.c.b16 %v2858, %v2854
        %v3019 = vpack.c.b16 %v2859, %v2855
        %v3020 = vpack.c.b16 %v2860, %v2856
        %v3021 = vpack.c.b16 %v2865, %v2861
        %v3022 = vpack.c.b16 %v2866, %v2862
        %v3023 = vpack.c.b16 %v2867, %v2863
        %v3024 = vpack.c.b16 %v2868, %v2864
        %v3025 = vpack.c.b16 %v2873, %v2869
        %v3026 = vpack.c.b16 %v2874, %v2870
        %v3027 = vpack.c.b16 %v2875, %v2871
        %v3028 = vpack.c.b16 %v2876, %v2872
        %v3029 = vpack.c.b16 %v2881, %v2877
        %v3030 = vpack.c.b16 %v2882, %v2878
        %v3031 = vpack.c.b16 %v2883, %v2879
        %v3032 = vpack.c.b16 %v2884, %v2880
        %v3033 = vpack.c.b16 %v2889, %v2885
        %v3034 = vpack.c.b16 %v2890, %v2886
        %v3035 = vpack.c.b16 %v2891, %v2887
        %v3036 = vpack.c.b16 %v2892, %v2888
        %v3037 = vpack.c.b16 %v2897, %v2893
        %v3038 = vpack.c.b16 %v2898, %v2894
        %v3039 = vpack.c.b16 %v2899, %v2895
        %v3040 = vpack.c.b16 %v2900, %v2896
        %v3041 = vpack.c.b16 %v2905, %v2901
        %v3042 = vpack.c.b16 %v2906, %v2902
        %v3043 = vpack.c.b16 %v2907, %v2903
        %v3044 = vpack.c.b16 %v2908, %v2904
        %v3045 = vpack.c.b16 %v2913, %v2909
        %v3046 = vpack.c.b16 %v2914, %v2910
        %v3047 = vpack.c.b16 %v2915, %v2911
        %v3048 = vpack.c.b16 %v2916, %v2912
        %v3049 = vpack.c.b16 %v2921, %v2917
        %v3050 = vpack.c.b16 %v2922, %v2918
        %v3051 = vpack.c.b16 %v2923, %v2919
        %v3052 = vpack.c.b16 %v2924, %v2920
        %3181 = vmatprep.subr.bf16.mxu0 %v2954
        %3182 = vmatpush1.bf16.msra.mxu0 %v2953
        %3183 = vmatprep.subr.bf16.mxu0 %v2950
        %3184 = vmatpush1.bf16.msra.mxu0 %v2949
        %3185 = vmatprep.subr.bf16.mxu0 %v2946
        %3186 = vmatpush1.bf16.msra.mxu0 %v2945
        %3187 = vmatprep.subr.bf16.mxu0 %v2942
        %3188 = vmatpush1.bf16.msra.mxu0 %v2941
        %3189 = vmatprep.subr.bf16.mxu0 %v2938
        %3190 = vmatpush1.bf16.msra.mxu0 %v2937
        %3191 = vmatprep.subr.bf16.mxu0 %v2934
        %3192 = vmatpush1.bf16.msra.mxu0 %v2933
        %3193 = vmatprep.subr.bf16.mxu0 %v2930
        %3194 = vmatpush1.bf16.msra.mxu0 %v2929
        %3195 = vmatprep.subr.bf16.mxu0 %v2926
        %3196 = vmatpush1.bf16.msra.mxu0 %v2925
        %3197 = vmatprep.subr.bf16.mxu0 %v2986
        %3198 = vmatpush2.bf16.msra.mxu0 %v2985
        %3199 = vmatprep.subr.bf16.mxu0 %v2982
        %3200 = vmatpush2.bf16.msra.mxu0 %v2981
        %3201 = vmatprep.subr.bf16.mxu0 %v2978
        %3202 = vmatpush2.bf16.msra.mxu0 %v2977
        %3203 = vmatprep.subr.bf16.mxu0 %v2974
        %3204 = vmatpush2.bf16.msra.mxu0 %v2973
        %3205 = vmatprep.subr.bf16.mxu0 %v2970
        %3206 = vmatpush2.bf16.msra.mxu0 %v2969
        %3207 = vmatprep.subr.bf16.mxu0 %v2966
        %3208 = vmatpush2.bf16.msra.mxu0 %v2965
        %3209 = vmatprep.subr.bf16.mxu0 %v2962
        %3210 = vmatpush2.bf16.msra.mxu0 %v2961
        %3211 = vmatprep.subr.bf16.mxu0 %v2958
        %3212 = vmatpush2.bf16.msra.mxu0 %v2957
        %3213 = vmatprep.mubr.bf16.mxu0 %v2526
        %3214 = vmatmul.mubr.bf16.gmra.mxu0 %v2523
        %v3215 = vpop.f32.mrf.mxu0
        %v3216 = vadd.f32 0.0, %v3215
        %v3217 = vpop.f32.mrf.mxu0
        %v3218 = vadd.f32 0.0, %v3217
        %v3219 = vpop.f32.mrf.mxu0
        %v3220 = vadd.f32 0.0, %v3219
        %v3221 = vpop.f32.mrf.mxu0
        %v3222 = vadd.f32 0.0, %v3221
        %3223 = vmatprep.mubr.bf16.mxu0 %v2525
        %3224 = vmatmul.mubr.bf16.gmra.mxu0 %v2522
        %v3225 = vpop.f32.mrf.mxu0
        %v3226 = vadd.f32 0.0, %v3225
        %v3227 = vpop.f32.mrf.mxu0
        %v3228 = vadd.f32 0.0, %v3227
        %v3229 = vpop.f32.mrf.mxu0
        %v3230 = vpop.f32.mrf.mxu0
        %3231 = vdwg.mxu0
        %3232 = vmatprep.subr.bf16.mxu0 %v3018
        %3233 = vmatpush1.bf16.msra.mxu0 %v3017
        %3234 = vmatprep.subr.bf16.mxu0 %v3014
        %3235 = vmatpush1.bf16.msra.mxu0 %v3013
        %3236 = vmatprep.subr.bf16.mxu0 %v3010
        %3237 = vmatpush1.bf16.msra.mxu0 %v3009
        %3238 = vmatprep.subr.bf16.mxu0 %v3006
        %3239 = vmatpush1.bf16.msra.mxu0 %v3005
        %3240 = vmatprep.subr.bf16.mxu0 %v3002
        %3241 = vmatpush1.bf16.msra.mxu0 %v3001
        %3242 = vmatprep.subr.bf16.mxu0 %v2998
        %3243 = vmatpush1.bf16.msra.mxu0 %v2997
        %3244 = vmatprep.subr.bf16.mxu0 %v2994
        %3245 = vmatpush1.bf16.msra.mxu0 %v2993
        %3246 = vmatprep.subr.bf16.mxu0 %v2990
        %3247 = vmatpush1.bf16.msra.mxu0 %v2989
        %3248 = vmatprep.subr.bf16.mxu0 %v3050
        %3249 = vmatpush2.bf16.msra.mxu0 %v3049
        %3250 = vmatprep.subr.bf16.mxu0 %v3046
        %3251 = vmatpush2.bf16.msra.mxu0 %v3045
        %3252 = vmatprep.subr.bf16.mxu0 %v3042
        %3253 = vmatpush2.bf16.msra.mxu0 %v3041
        %3254 = vmatprep.subr.bf16.mxu0 %v3038
        %3255 = vmatpush2.bf16.msra.mxu0 %v3037
        %3256 = vmatprep.subr.bf16.mxu0 %v3034
        %3257 = vmatpush2.bf16.msra.mxu0 %v3033
        %3258 = vmatprep.subr.bf16.mxu0 %v3030
        %3259 = vmatpush2.bf16.msra.mxu0 %v3029
        %3260 = vmatprep.subr.bf16.mxu0 %v3026
        %3261 = vmatpush2.bf16.msra.mxu0 %v3025
        %3262 = vmatprep.subr.bf16.mxu0 %v3022
        %3263 = vmatpush2.bf16.msra.mxu0 %v3021
        %3264 = vmatprep.mubr.bf16.mxu0 %v2532
        %3265 = vmatmul.mubr.bf16.gmra.mxu0 %v2529
        %v3266 = vpop.f32.mrf.mxu0
        %v3267 = vadd.f32 %v3216, %v3266
        %v3268 = vpop.f32.mrf.mxu0
        %v3269 = vadd.f32 %v3218, %v3268
        %v3270 = vpop.f32.mrf.mxu0
        %v3271 = vadd.f32 %v3220, %v3270
        %v3272 = vpop.f32.mrf.mxu0
        %v3273 = vadd.f32 %v3222, %v3272
        %3274 = vmatprep.mubr.bf16.mxu0 %v2531
        %3275 = vmatmul.mubr.bf16.gmra.mxu0 %v2528
        %v3276 = vpop.f32.mrf.mxu0
        %v3277 = vadd.f32 %v3226, %v3276
        %v3278 = vpop.f32.mrf.mxu0
        %v3279 = vadd.f32 %v3228, %v3278
        %v3280 = vpop.f32.mrf.mxu0
        %v3281 = vpop.f32.mrf.mxu0
        %3282 = vdwg.mxu0
        %3283 = vmatprep.subr.bf16.mxu0 %v2956
        %3284 = vmatpush1.bf16.msra.mxu0 %v2955
        %3285 = vmatprep.subr.bf16.mxu0 %v2952
        %3286 = vmatpush1.bf16.msra.mxu0 %v2951
        %3287 = vmatprep.subr.bf16.mxu0 %v2948
        %3288 = vmatpush1.bf16.msra.mxu0 %v2947
        %3289 = vmatprep.subr.bf16.mxu0 %v2944
        %3290 = vmatpush1.bf16.msra.mxu0 %v2943
        %3291 = vmatprep.subr.bf16.mxu0 %v2940
        %3292 = vmatpush1.bf16.msra.mxu0 %v2939
        %3293 = vmatprep.subr.bf16.mxu0 %v2936
        %3294 = vmatpush1.bf16.msra.mxu0 %v2935
        %3295 = vmatprep.subr.bf16.mxu0 %v2932
        %3296 = vmatpush1.bf16.msra.mxu0 %v2931
        %3297 = vmatprep.subr.bf16.mxu0 %v2928
        %3298 = vmatpush1.bf16.msra.mxu0 %v2927
        %3299 = vmatprep.subr.bf16.mxu0 %v2988
        %3300 = vmatpush2.bf16.msra.mxu0 %v2987
        %3301 = vmatprep.subr.bf16.mxu0 %v2984
        %3302 = vmatpush2.bf16.msra.mxu0 %v2983
        %3303 = vmatprep.subr.bf16.mxu0 %v2980
        %3304 = vmatpush2.bf16.msra.mxu0 %v2979
        %3305 = vmatprep.subr.bf16.mxu0 %v2976
        %3306 = vmatpush2.bf16.msra.mxu0 %v2975
        %3307 = vmatprep.subr.bf16.mxu0 %v2972
        %3308 = vmatpush2.bf16.msra.mxu0 %v2971
        %3309 = vmatprep.subr.bf16.mxu0 %v2968
        %3310 = vmatpush2.bf16.msra.mxu0 %v2967
        %3311 = vmatprep.subr.bf16.mxu0 %v2964
        %3312 = vmatpush2.bf16.msra.mxu0 %v2963
        %3313 = vmatprep.subr.bf16.mxu0 %v2960
        %3314 = vmatpush2.bf16.msra.mxu0 %v2959
        %3315 = vmatprep.mubr.bf16.mxu0 %v2526
        %3316 = vmatmul.mubr.bf16.gmra.mxu0 %v2523
        %v3317 = vpop.f32.mrf.mxu0
        %v3318 = vadd.f32 0.0, %v3317
        %v3319 = vpop.f32.mrf.mxu0
        %v3320 = vadd.f32 0.0, %v3319
        %v3321 = vpop.f32.mrf.mxu0
        %v3322 = vadd.f32 0.0, %v3321
        %v3323 = vpop.f32.mrf.mxu0
        %v3324 = vadd.f32 0.0, %v3323
        %3325 = vmatprep.mubr.bf16.mxu0 %v2525
        %3326 = vmatmul.mubr.bf16.gmra.mxu0 %v2522
        %v3327 = vpop.f32.mrf.mxu0
        %v3328 = vadd.f32 0.0, %v3327
        %v3329 = vpop.f32.mrf.mxu0
        %v3330 = vadd.f32 0.0, %v3329
        %v3331 = vpop.f32.mrf.mxu0
        %v3332 = vpop.f32.mrf.mxu0
        %3333 = vdwg.mxu0
        %3334 = vmatprep.subr.bf16.mxu0 %v3020
        %3335 = vmatpush1.bf16.msra.mxu0 %v3019
        %3336 = vmatprep.subr.bf16.mxu0 %v3016
        %3337 = vmatpush1.bf16.msra.mxu0 %v3015
        %3338 = vmatprep.subr.bf16.mxu0 %v3012
        %3339 = vmatpush1.bf16.msra.mxu0 %v3011
        %3340 = vmatprep.subr.bf16.mxu0 %v3008
        %3341 = vmatpush1.bf16.msra.mxu0 %v3007
        %3342 = vmatprep.subr.bf16.mxu0 %v3004
        %3343 = vmatpush1.bf16.msra.mxu0 %v3003
        %3344 = vmatprep.subr.bf16.mxu0 %v3000
        %3345 = vmatpush1.bf16.msra.mxu0 %v2999
        %3346 = vmatprep.subr.bf16.mxu0 %v2996
        %3347 = vmatpush1.bf16.msra.mxu0 %v2995
        %3348 = vmatprep.subr.bf16.mxu0 %v2992
        %3349 = vmatpush1.bf16.msra.mxu0 %v2991
        %3350 = vmatprep.subr.bf16.mxu0 %v3052
        %3351 = vmatpush2.bf16.msra.mxu0 %v3051
        %3352 = vmatprep.subr.bf16.mxu0 %v3048
        %3353 = vmatpush2.bf16.msra.mxu0 %v3047
        %3354 = vmatprep.subr.bf16.mxu0 %v3044
        %3355 = vmatpush2.bf16.msra.mxu0 %v3043
        %3356 = vmatprep.subr.bf16.mxu0 %v3040
        %3357 = vmatpush2.bf16.msra.mxu0 %v3039
        %3358 = vmatprep.subr.bf16.mxu0 %v3036
        %3359 = vmatpush2.bf16.msra.mxu0 %v3035
        %3360 = vmatprep.subr.bf16.mxu0 %v3032
        %3361 = vmatpush2.bf16.msra.mxu0 %v3031
        %3362 = vmatprep.subr.bf16.mxu0 %v3028
        %3363 = vmatpush2.bf16.msra.mxu0 %v3027
        %3364 = vmatprep.subr.bf16.mxu0 %v3024
        %3365 = vmatpush2.bf16.msra.mxu0 %v3023
        %3366 = vmatprep.mubr.bf16.mxu0 %v2532
        %3367 = vmatmul.mubr.bf16.gmra.mxu0 %v2529
        %v3368 = vpop.f32.mrf.mxu0
        %v3369 = vadd.f32 %v3318, %v3368
        %v3370 = vpop.f32.mrf.mxu0
        %v3371 = vadd.f32 %v3320, %v3370
        %v3372 = vpop.f32.mrf.mxu0
        %v3373 = vadd.f32 %v3322, %v3372
        %v3374 = vpop.f32.mrf.mxu0
        %v3375 = vadd.f32 %v3324, %v3374
        %3376 = vmatprep.mubr.bf16.mxu0 %v2531
        %3377 = vmatmul.mubr.bf16.gmra.mxu0 %v2528
        %v3378 = vpop.f32.mrf.mxu0
        %v3379 = vadd.f32 %v3328, %v3378
        %v3380 = vpop.f32.mrf.mxu0
        %v3381 = vadd.f32 %v3330, %v3380
        %v3382 = vpop.f32.mrf.mxu0
        %v3383 = vpop.f32.mrf.mxu0
        %3384 = vdwg.mxu0
        %v3385 = vadd.f32 %v2375, %v3267
        %v3386 = vadd.f32 %v2376, %v3269
        %v3387 = vadd.f32 %v2377, %v3369
        %v3388 = vadd.f32 %v2378, %v3371
        %v3389 = vadd.f32 %v2379, %v3271
        %v3390 = vadd.f32 %v2380, %v3273
        %v3391 = vadd.f32 %v2381, %v3373
        %v3392 = vadd.f32 %v2382, %v3375
        %v3393 = vadd.f32 %v2383, %v3277
        %v3394 = vadd.f32 %v2384, %v3279
        %v3395 = vadd.f32 %v2385, %v3379
        %v3396 = vadd.f32 %v2386, %v3381
        %v3397 = vmax.f32 %v3385, 0.0
        %v3398 = vmax.f32 %v3386, 0.0
        %v3399 = vmax.f32 %v3387, 0.0
        %v3400 = vmax.f32 %v3388, 0.0
        %v3401 = vmax.f32 %v3389, 0.0
        %v3402 = vmax.f32 %v3390, 0.0
        %v3403 = vmax.f32 %v3391, 0.0
        %v3404 = vmax.f32 %v3392, 0.0
        %v3405 = vmax.f32 %v3393, 0.0
        %v3406 = vmax.f32 %v3394, 0.0
        %v3407 = vmax.f32 %v3395, 0.0
        %v3408 = vmax.f32 %v3396, 0.0
        %v3409 = vpack.c.bf16 %v3401, %v3397
        %v3410 = vpack.c.bf16 %v3402, %v3398
        %v3411 = vpack.c.bf16 %v3403, %v3399
        %v3412 = vpack.c.bf16 %v3404, %v3400
        %v3413 = vpack.c.bf16 %v3405, %v3405
        %v3414 = vpack.c.bf16 %v3406, %v3406
        %v3415 = vpack.c.bf16 %v3407, %v3407
        %v3416 = vpack.c.bf16 %v3408, %v3408
        %v3418 = vsel %vm317, %v3413, 0
        %v3421 = vsel %vm317, %v3414, 0
        %v3424 = vsel %vm317, %v3415, 0
        %v3427 = vsel %vm317, %v3416, 0
        %s3429 = scalar_lea.vmem [#allocation4], 4
        %v3430 = vld [vmem:[%s3429] sm:$0xf]
        %v3432 = vlaneseq
        %v3433 = vshrl.u32 %v3432, 7
        %v3434 = vsub.s32 0, %v3433
        %v3435 = vrot.slane %v3430, %v3434
        %v3436 = vlaneseq
        %v3437 = vshrl.u32 %v3436, 7
        %v3438 = vsub.s32 1, %v3437
        %v3439 = vrot.slane %v3430, %v3438
        %v3440 = vlaneseq
        %v3441 = vshrl.u32 %v3440, 7
        %v3442 = vsub.s32 2, %v3441
        %v3443 = vrot.slane %v3430, %v3442
        %v3444 = vlaneseq
        %v3445 = vshrl.u32 %v3444, 7
        %v3446 = vsub.s32 3, %v3445
        %v3447 = vrot.slane %v3430, %v3446
        %s3452 = scalar_lea.vmem [#allocation2], 3072
        %v3453 = vld [vmem:[%s3452] sm:$0xff]
        %v3454 = vld [vmem:[%s3452 + $0x8] sm:$0xff]
        %v3455 = vld [vmem:[%s3452 + $0x10] sm:$0xff]
        %v3456 = vld [vmem:[%s3452 + $0x18] sm:$0xff]
        %v3457 = vld [vmem:[%s3452 + $0x20] sm:$0xff]
        %v3458 = vld [vmem:[%s3452 + $0x28] sm:$0xff]
        %v3459 = vld [vmem:[%s3452 + $0x30] sm:$0xff]
        %v3460 = vld [vmem:[%s3452 + $0x38] sm:$0xff]
        %v3461 = vld [vmem:[%s3452 + $0x40] sm:$0xff]
        %v3462 = vld [vmem:[%s3452 + $0x48] sm:$0xff]
        %v3463 = vld [vmem:[%s3452 + $0x50] sm:$0xff]
        %v3464 = vld [vmem:[%s3452 + $0x58] sm:$0xff]
        %v3465 = vld [vmem:[%s3452 + $0x60] sm:$0xff]
        %v3466 = vld [vmem:[%s3452 + $0x68] sm:$0xff]
        %v3467 = vld [vmem:[%s3452 + $0x70] sm:$0xff]
        %v3468 = vld [vmem:[%s3452 + $0x78] sm:$0xff]
        %v3469 = vld [vmem:[%s3452 + $0x80] sm:$0xff]
        %v3470 = vld [vmem:[%s3452 + $0x88] sm:$0xff]
        %v3471 = vld [vmem:[%s3452 + $0x90] sm:$0xff]
        %v3472 = vld [vmem:[%s3452 + $0x98] sm:$0xff]
        %v3473 = vld [vmem:[%s3452 + $0xa0] sm:$0xff]
        %v3474 = vld [vmem:[%s3452 + $0xa8] sm:$0xff]
        %v3475 = vld [vmem:[%s3452 + $0xb0] sm:$0xff]
        %v3476 = vld [vmem:[%s3452 + $0xb8] sm:$0xff]
        %v3477 = vld [vmem:[%s3452 + $0xc0] sm:$0xff]
        %v3478 = vld [vmem:[%s3452 + $0xc8] sm:$0xff]
        %v3479 = vld [vmem:[%s3452 + $0xd0] sm:$0xff]
        %v3480 = vld [vmem:[%s3452 + $0xd8] sm:$0xff]
        %v3481 = vld [vmem:[%s3452 + $0xe0] sm:$0xff]
        %v3482 = vld [vmem:[%s3452 + $0xe8] sm:$0xff]
        %v3483 = vld [vmem:[%s3452 + $0xf0] sm:$0xff]
        %v3484 = vld [vmem:[%s3452 + $0xf8] sm:$0xff]
        %v3485 = vld [vmem:[%s3452 + $0x100] sm:$0xff]
        %v3486 = vld [vmem:[%s3452 + $0x108] sm:$0xff]
        %v3487 = vld [vmem:[%s3452 + $0x110] sm:$0xff]
        %v3488 = vld [vmem:[%s3452 + $0x118] sm:$0xff]
        %v3489 = vld [vmem:[%s3452 + $0x120] sm:$0xff]
        %v3490 = vld [vmem:[%s3452 + $0x128] sm:$0xff]
        %v3491 = vld [vmem:[%s3452 + $0x130] sm:$0xff]
        %v3492 = vld [vmem:[%s3452 + $0x138] sm:$0xff]
        %v3493 = vld [vmem:[%s3452 + $0x140] sm:$0xff]
        %v3494 = vld [vmem:[%s3452 + $0x148] sm:$0xff]
        %v3495 = vld [vmem:[%s3452 + $0x150] sm:$0xff]
        %v3496 = vld [vmem:[%s3452 + $0x158] sm:$0xff]
        %v3497 = vld [vmem:[%s3452 + $0x160] sm:$0xff]
        %v3498 = vld [vmem:[%s3452 + $0x168] sm:$0xff]
        %v3499 = vld [vmem:[%s3452 + $0x170] sm:$0xff]
        %v3500 = vld [vmem:[%s3452 + $0x178] sm:$0xff]
        %v3501 = vld [vmem:[%s3452 + $0x180] sm:$0xff]
        %v3502 = vld [vmem:[%s3452 + $0x188] sm:$0xff]
        %v3503 = vld [vmem:[%s3452 + $0x190] sm:$0xff]
        %v3504 = vld [vmem:[%s3452 + $0x198] sm:$0xff]
        %v3505 = vld [vmem:[%s3452 + $0x1a0] sm:$0xff]
        %v3506 = vld [vmem:[%s3452 + $0x1a8] sm:$0xff]
        %v3507 = vld [vmem:[%s3452 + $0x1b0] sm:$0xff]
        %v3508 = vld [vmem:[%s3452 + $0x1b8] sm:$0xff]
        %v3509 = vld [vmem:[%s3452 + $0x1c0] sm:$0xff]
        %v3510 = vld [vmem:[%s3452 + $0x1c8] sm:$0xff]
        %v3511 = vld [vmem:[%s3452 + $0x1d0] sm:$0xff]
        %v3512 = vld [vmem:[%s3452 + $0x1d8] sm:$0xff]
        %v3513 = vld [vmem:[%s3452 + $0x1e0] sm:$0xff]
        %v3514 = vld [vmem:[%s3452 + $0x1e8] sm:$0xff]
        %v3515 = vld [vmem:[%s3452 + $0x1f0] sm:$0xff]
        %v3516 = vld [vmem:[%s3452 + $0x1f8] sm:$0xff]
        %v3517 = vld [vmem:[%s3452 + $0x200] sm:$0xff]
        %v3518 = vld [vmem:[%s3452 + $0x208] sm:$0xff]
        %v3519 = vld [vmem:[%s3452 + $0x210] sm:$0xff]
        %v3520 = vld [vmem:[%s3452 + $0x218] sm:$0xff]
        %v3521 = vld [vmem:[%s3452 + $0x220] sm:$0xff]
        %v3522 = vld [vmem:[%s3452 + $0x228] sm:$0xff]
        %v3523 = vld [vmem:[%s3452 + $0x230] sm:$0xff]
        %v3524 = vld [vmem:[%s3452 + $0x238] sm:$0xff]
        %v3525 = vld [vmem:[%s3452 + $0x240] sm:$0xff]
        %v3526 = vld [vmem:[%s3452 + $0x248] sm:$0xff]
        %v3527 = vld [vmem:[%s3452 + $0x250] sm:$0xff]
        %v3528 = vld [vmem:[%s3452 + $0x258] sm:$0xff]
        %v3529 = vld [vmem:[%s3452 + $0x260] sm:$0xff]
        %v3530 = vld [vmem:[%s3452 + $0x268] sm:$0xff]
        %v3531 = vld [vmem:[%s3452 + $0x270] sm:$0xff]
        %v3532 = vld [vmem:[%s3452 + $0x278] sm:$0xff]
        %v3533 = vld [vmem:[%s3452 + $0x280] sm:$0xff]
        %v3534 = vld [vmem:[%s3452 + $0x288] sm:$0xff]
        %v3535 = vld [vmem:[%s3452 + $0x290] sm:$0xff]
        %v3536 = vld [vmem:[%s3452 + $0x298] sm:$0xff]
        %v3537 = vld [vmem:[%s3452 + $0x2a0] sm:$0xff]
        %v3538 = vld [vmem:[%s3452 + $0x2a8] sm:$0xff]
        %v3539 = vld [vmem:[%s3452 + $0x2b0] sm:$0xff]
        %v3540 = vld [vmem:[%s3452 + $0x2b8] sm:$0xff]
        %v3541 = vld [vmem:[%s3452 + $0x2c0] sm:$0xff]
        %v3542 = vld [vmem:[%s3452 + $0x2c8] sm:$0xff]
        %v3543 = vld [vmem:[%s3452 + $0x2d0] sm:$0xff]
        %v3544 = vld [vmem:[%s3452 + $0x2d8] sm:$0xff]
        %v3545 = vld [vmem:[%s3452 + $0x2e0] sm:$0xff]
        %v3546 = vld [vmem:[%s3452 + $0x2e8] sm:$0xff]
        %v3547 = vld [vmem:[%s3452 + $0x2f0] sm:$0xff]
        %v3548 = vld [vmem:[%s3452 + $0x2f8] sm:$0xff]
        %v3549 = vld [vmem:[%s3452 + $0x300] sm:$0xff]
        %v3550 = vld [vmem:[%s3452 + $0x308] sm:$0xff]
        %v3551 = vld [vmem:[%s3452 + $0x310] sm:$0xff]
        %v3552 = vld [vmem:[%s3452 + $0x318] sm:$0xff]
        %v3553 = vld [vmem:[%s3452 + $0x320] sm:$0xff]
        %v3554 = vld [vmem:[%s3452 + $0x328] sm:$0xff]
        %v3555 = vld [vmem:[%s3452 + $0x330] sm:$0xff]
        %v3556 = vld [vmem:[%s3452 + $0x338] sm:$0xff]
        %v3557 = vld [vmem:[%s3452 + $0x340] sm:$0xff]
        %v3558 = vld [vmem:[%s3452 + $0x348] sm:$0xff]
        %v3559 = vld [vmem:[%s3452 + $0x350] sm:$0xff]
        %v3560 = vld [vmem:[%s3452 + $0x358] sm:$0xff]
        %v3561 = vld [vmem:[%s3452 + $0x360] sm:$0xff]
        %v3562 = vld [vmem:[%s3452 + $0x368] sm:$0xff]
        %v3563 = vld [vmem:[%s3452 + $0x370] sm:$0xff]
        %v3564 = vld [vmem:[%s3452 + $0x378] sm:$0xff]
        %v3565 = vld [vmem:[%s3452 + $0x380] sm:$0xff]
        %v3566 = vld [vmem:[%s3452 + $0x388] sm:$0xff]
        %v3567 = vld [vmem:[%s3452 + $0x390] sm:$0xff]
        %v3568 = vld [vmem:[%s3452 + $0x398] sm:$0xff]
        %v3569 = vld [vmem:[%s3452 + $0x3a0] sm:$0xff]
        %v3570 = vld [vmem:[%s3452 + $0x3a8] sm:$0xff]
        %v3571 = vld [vmem:[%s3452 + $0x3b0] sm:$0xff]
        %v3572 = vld [vmem:[%s3452 + $0x3b8] sm:$0xff]
        %v3573 = vld [vmem:[%s3452 + $0x3c0] sm:$0xff]
        %v3574 = vld [vmem:[%s3452 + $0x3c8] sm:$0xff]
        %v3575 = vld [vmem:[%s3452 + $0x3d0] sm:$0xff]
        %v3576 = vld [vmem:[%s3452 + $0x3d8] sm:$0xff]
        %v3577 = vld [vmem:[%s3452 + $0x3e0] sm:$0xff]
        %v3578 = vld [vmem:[%s3452 + $0x3e8] sm:$0xff]
        %v3579 = vld [vmem:[%s3452 + $0x3f0] sm:$0xff]
        %v3580 = vld [vmem:[%s3452 + $0x3f8] sm:$0xff]
        %v3709 = vunpack.c.l.b16 %v3453
        %v3710 = vunpack.c.h.b16 %v3453
        %v3711 = vunpack.c.l.b16 %v3454
        %v3712 = vunpack.c.h.b16 %v3454
        %v3713 = vunpack.c.l.b16 %v3455
        %v3714 = vunpack.c.h.b16 %v3455
        %v3715 = vunpack.c.l.b16 %v3456
        %v3716 = vunpack.c.h.b16 %v3456
        %v3717 = vunpack.c.l.b16 %v3457
        %v3718 = vunpack.c.h.b16 %v3457
        %v3719 = vunpack.c.l.b16 %v3458
        %v3720 = vunpack.c.h.b16 %v3458
        %v3721 = vunpack.c.l.b16 %v3459
        %v3722 = vunpack.c.h.b16 %v3459
        %v3723 = vunpack.c.l.b16 %v3460
        %v3724 = vunpack.c.h.b16 %v3460
        %v3725 = vunpack.c.l.b16 %v3461
        %v3726 = vunpack.c.h.b16 %v3461
        %v3727 = vunpack.c.l.b16 %v3462
        %v3728 = vunpack.c.h.b16 %v3462
        %v3729 = vunpack.c.l.b16 %v3463
        %v3730 = vunpack.c.h.b16 %v3463
        %v3731 = vunpack.c.l.b16 %v3464
        %v3732 = vunpack.c.h.b16 %v3464
        %v3733 = vunpack.c.l.b16 %v3465
        %v3734 = vunpack.c.h.b16 %v3465
        %v3735 = vunpack.c.l.b16 %v3466
        %v3736 = vunpack.c.h.b16 %v3466
        %v3737 = vunpack.c.l.b16 %v3467
        %v3738 = vunpack.c.h.b16 %v3467
        %v3739 = vunpack.c.l.b16 %v3468
        %v3740 = vunpack.c.h.b16 %v3468
        %v3741 = vunpack.c.l.b16 %v3469
        %v3742 = vunpack.c.h.b16 %v3469
        %v3743 = vunpack.c.l.b16 %v3470
        %v3744 = vunpack.c.h.b16 %v3470
        %v3745 = vunpack.c.l.b16 %v3471
        %v3746 = vunpack.c.h.b16 %v3471
        %v3747 = vunpack.c.l.b16 %v3472
        %v3748 = vunpack.c.h.b16 %v3472
        %v3749 = vunpack.c.l.b16 %v3473
        %v3750 = vunpack.c.h.b16 %v3473
        %v3751 = vunpack.c.l.b16 %v3474
        %v3752 = vunpack.c.h.b16 %v3474
        %v3753 = vunpack.c.l.b16 %v3475
        %v3754 = vunpack.c.h.b16 %v3475
        %v3755 = vunpack.c.l.b16 %v3476
        %v3756 = vunpack.c.h.b16 %v3476
        %v3757 = vunpack.c.l.b16 %v3477
        %v3758 = vunpack.c.h.b16 %v3477
        %v3759 = vunpack.c.l.b16 %v3478
        %v3760 = vunpack.c.h.b16 %v3478
        %v3761 = vunpack.c.l.b16 %v3479
        %v3762 = vunpack.c.h.b16 %v3479
        %v3763 = vunpack.c.l.b16 %v3480
        %v3764 = vunpack.c.h.b16 %v3480
        %v3765 = vunpack.c.l.b16 %v3481
        %v3766 = vunpack.c.h.b16 %v3481
        %v3767 = vunpack.c.l.b16 %v3482
        %v3768 = vunpack.c.h.b16 %v3482
        %v3769 = vunpack.c.l.b16 %v3483
        %v3770 = vunpack.c.h.b16 %v3483
        %v3771 = vunpack.c.l.b16 %v3484
        %v3772 = vunpack.c.h.b16 %v3484
        %v3773 = vunpack.c.l.b16 %v3485
        %v3774 = vunpack.c.h.b16 %v3485
        %v3775 = vunpack.c.l.b16 %v3486
        %v3776 = vunpack.c.h.b16 %v3486
        %v3777 = vunpack.c.l.b16 %v3487
        %v3778 = vunpack.c.h.b16 %v3487
        %v3779 = vunpack.c.l.b16 %v3488
        %v3780 = vunpack.c.h.b16 %v3488
        %v3781 = vunpack.c.l.b16 %v3489
        %v3782 = vunpack.c.h.b16 %v3489
        %v3783 = vunpack.c.l.b16 %v3490
        %v3784 = vunpack.c.h.b16 %v3490
        %v3785 = vunpack.c.l.b16 %v3491
        %v3786 = vunpack.c.h.b16 %v3491
        %v3787 = vunpack.c.l.b16 %v3492
        %v3788 = vunpack.c.h.b16 %v3492
        %v3789 = vunpack.c.l.b16 %v3493
        %v3790 = vunpack.c.h.b16 %v3493
        %v3791 = vunpack.c.l.b16 %v3494
        %v3792 = vunpack.c.h.b16 %v3494
        %v3793 = vunpack.c.l.b16 %v3495
        %v3794 = vunpack.c.h.b16 %v3495
        %v3795 = vunpack.c.l.b16 %v3496
        %v3796 = vunpack.c.h.b16 %v3496
        %v3797 = vunpack.c.l.b16 %v3497
        %v3798 = vunpack.c.h.b16 %v3497
        %v3799 = vunpack.c.l.b16 %v3498
        %v3800 = vunpack.c.h.b16 %v3498
        %v3801 = vunpack.c.l.b16 %v3499
        %v3802 = vunpack.c.h.b16 %v3499
        %v3803 = vunpack.c.l.b16 %v3500
        %v3804 = vunpack.c.h.b16 %v3500
        %v3805 = vunpack.c.l.b16 %v3501
        %v3806 = vunpack.c.h.b16 %v3501
        %v3807 = vunpack.c.l.b16 %v3502
        %v3808 = vunpack.c.h.b16 %v3502
        %v3809 = vunpack.c.l.b16 %v3503
        %v3810 = vunpack.c.h.b16 %v3503
        %v3811 = vunpack.c.l.b16 %v3504
        %v3812 = vunpack.c.h.b16 %v3504
        %v3813 = vunpack.c.l.b16 %v3505
        %v3814 = vunpack.c.h.b16 %v3505
        %v3815 = vunpack.c.l.b16 %v3506
        %v3816 = vunpack.c.h.b16 %v3506
        %v3817 = vunpack.c.l.b16 %v3507
        %v3818 = vunpack.c.h.b16 %v3507
        %v3819 = vunpack.c.l.b16 %v3508
        %v3820 = vunpack.c.h.b16 %v3508
        %v3821 = vunpack.c.l.b16 %v3509
        %v3822 = vunpack.c.h.b16 %v3509
        %v3823 = vunpack.c.l.b16 %v3510
        %v3824 = vunpack.c.h.b16 %v3510
        %v3825 = vunpack.c.l.b16 %v3511
        %v3826 = vunpack.c.h.b16 %v3511
        %v3827 = vunpack.c.l.b16 %v3512
        %v3828 = vunpack.c.h.b16 %v3512
        %v3829 = vunpack.c.l.b16 %v3513
        %v3830 = vunpack.c.h.b16 %v3513
        %v3831 = vunpack.c.l.b16 %v3514
        %v3832 = vunpack.c.h.b16 %v3514
        %v3833 = vunpack.c.l.b16 %v3515
        %v3834 = vunpack.c.h.b16 %v3515
        %v3835 = vunpack.c.l.b16 %v3516
        %v3836 = vunpack.c.h.b16 %v3516
        %v3837 = vunpack.c.l.b16 %v3517
        %v3838 = vunpack.c.h.b16 %v3517
        %v3839 = vunpack.c.l.b16 %v3518
        %v3840 = vunpack.c.h.b16 %v3518
        %v3841 = vunpack.c.l.b16 %v3519
        %v3842 = vunpack.c.h.b16 %v3519
        %v3843 = vunpack.c.l.b16 %v3520
        %v3844 = vunpack.c.h.b16 %v3520
        %v3845 = vunpack.c.l.b16 %v3521
        %v3846 = vunpack.c.h.b16 %v3521
        %v3847 = vunpack.c.l.b16 %v3522
        %v3848 = vunpack.c.h.b16 %v3522
        %v3849 = vunpack.c.l.b16 %v3523
        %v3850 = vunpack.c.h.b16 %v3523
        %v3851 = vunpack.c.l.b16 %v3524
        %v3852 = vunpack.c.h.b16 %v3524
        %v3853 = vunpack.c.l.b16 %v3525
        %v3854 = vunpack.c.h.b16 %v3525
        %v3855 = vunpack.c.l.b16 %v3526
        %v3856 = vunpack.c.h.b16 %v3526
        %v3857 = vunpack.c.l.b16 %v3527
        %v3858 = vunpack.c.h.b16 %v3527
        %v3859 = vunpack.c.l.b16 %v3528
        %v3860 = vunpack.c.h.b16 %v3528
        %v3861 = vunpack.c.l.b16 %v3529
        %v3862 = vunpack.c.h.b16 %v3529
        %v3863 = vunpack.c.l.b16 %v3530
        %v3864 = vunpack.c.h.b16 %v3530
        %v3865 = vunpack.c.l.b16 %v3531
        %v3866 = vunpack.c.h.b16 %v3531
        %v3867 = vunpack.c.l.b16 %v3532
        %v3868 = vunpack.c.h.b16 %v3532
        %v3869 = vunpack.c.l.b16 %v3533
        %v3870 = vunpack.c.h.b16 %v3533
        %v3871 = vunpack.c.l.b16 %v3534
        %v3872 = vunpack.c.h.b16 %v3534
        %v3873 = vunpack.c.l.b16 %v3535
        %v3874 = vunpack.c.h.b16 %v3535
        %v3875 = vunpack.c.l.b16 %v3536
        %v3876 = vunpack.c.h.b16 %v3536
        %v3877 = vunpack.c.l.b16 %v3537
        %v3878 = vunpack.c.h.b16 %v3537
        %v3879 = vunpack.c.l.b16 %v3538
        %v3880 = vunpack.c.h.b16 %v3538
        %v3881 = vunpack.c.l.b16 %v3539
        %v3882 = vunpack.c.h.b16 %v3539
        %v3883 = vunpack.c.l.b16 %v3540
        %v3884 = vunpack.c.h.b16 %v3540
        %v3885 = vunpack.c.l.b16 %v3541
        %v3886 = vunpack.c.h.b16 %v3541
        %v3887 = vunpack.c.l.b16 %v3542
        %v3888 = vunpack.c.h.b16 %v3542
        %v3889 = vunpack.c.l.b16 %v3543
        %v3890 = vunpack.c.h.b16 %v3543
        %v3891 = vunpack.c.l.b16 %v3544
        %v3892 = vunpack.c.h.b16 %v3544
        %v3893 = vunpack.c.l.b16 %v3545
        %v3894 = vunpack.c.h.b16 %v3545
        %v3895 = vunpack.c.l.b16 %v3546
        %v3896 = vunpack.c.h.b16 %v3546
        %v3897 = vunpack.c.l.b16 %v3547
        %v3898 = vunpack.c.h.b16 %v3547
        %v3899 = vunpack.c.l.b16 %v3548
        %v3900 = vunpack.c.h.b16 %v3548
        %v3901 = vunpack.c.l.b16 %v3549
        %v3902 = vunpack.c.h.b16 %v3549
        %v3903 = vunpack.c.l.b16 %v3550
        %v3904 = vunpack.c.h.b16 %v3550
        %v3905 = vunpack.c.l.b16 %v3551
        %v3906 = vunpack.c.h.b16 %v3551
        %v3907 = vunpack.c.l.b16 %v3552
        %v3908 = vunpack.c.h.b16 %v3552
        %v3909 = vunpack.c.l.b16 %v3553
        %v3910 = vunpack.c.h.b16 %v3553
        %v3911 = vunpack.c.l.b16 %v3554
        %v3912 = vunpack.c.h.b16 %v3554
        %v3913 = vunpack.c.l.b16 %v3555
        %v3914 = vunpack.c.h.b16 %v3555
        %v3915 = vunpack.c.l.b16 %v3556
        %v3916 = vunpack.c.h.b16 %v3556
        %v3917 = vunpack.c.l.b16 %v3557
        %v3918 = vunpack.c.h.b16 %v3557
        %v3919 = vunpack.c.l.b16 %v3558
        %v3920 = vunpack.c.h.b16 %v3558
        %v3921 = vunpack.c.l.b16 %v3559
        %v3922 = vunpack.c.h.b16 %v3559
        %v3923 = vunpack.c.l.b16 %v3560
        %v3924 = vunpack.c.h.b16 %v3560
        %v3925 = vunpack.c.l.b16 %v3561
        %v3926 = vunpack.c.h.b16 %v3561
        %v3927 = vunpack.c.l.b16 %v3562
        %v3928 = vunpack.c.h.b16 %v3562
        %v3929 = vunpack.c.l.b16 %v3563
        %v3930 = vunpack.c.h.b16 %v3563
        %v3931 = vunpack.c.l.b16 %v3564
        %v3932 = vunpack.c.h.b16 %v3564
        %v3933 = vunpack.c.l.b16 %v3565
        %v3934 = vunpack.c.h.b16 %v3565
        %v3935 = vunpack.c.l.b16 %v3566
        %v3936 = vunpack.c.h.b16 %v3566
        %v3937 = vunpack.c.l.b16 %v3567
        %v3938 = vunpack.c.h.b16 %v3567
        %v3939 = vunpack.c.l.b16 %v3568
        %v3940 = vunpack.c.h.b16 %v3568
        %v3941 = vunpack.c.l.b16 %v3569
        %v3942 = vunpack.c.h.b16 %v3569
        %v3943 = vunpack.c.l.b16 %v3570
        %v3944 = vunpack.c.h.b16 %v3570
        %v3945 = vunpack.c.l.b16 %v3571
        %v3946 = vunpack.c.h.b16 %v3571
        %v3947 = vunpack.c.l.b16 %v3572
        %v3948 = vunpack.c.h.b16 %v3572
        %v3949 = vunpack.c.l.b16 %v3573
        %v3950 = vunpack.c.h.b16 %v3573
        %v3951 = vunpack.c.l.b16 %v3574
        %v3952 = vunpack.c.h.b16 %v3574
        %v3953 = vunpack.c.l.b16 %v3575
        %v3954 = vunpack.c.h.b16 %v3575
        %v3955 = vunpack.c.l.b16 %v3576
        %v3956 = vunpack.c.h.b16 %v3576
        %v3957 = vunpack.c.l.b16 %v3577
        %v3958 = vunpack.c.h.b16 %v3577
        %v3959 = vunpack.c.l.b16 %v3578
        %v3960 = vunpack.c.h.b16 %v3578
        %v3961 = vunpack.c.l.b16 %v3579
        %v3962 = vunpack.c.h.b16 %v3579
        %v3963 = vunpack.c.l.b16 %v3580
        %v3964 = vunpack.c.h.b16 %v3580
        %v3965 = vpack.c.b16 %v3713, %v3709
        %v3966 = vpack.c.b16 %v3714, %v3710
        %v3967 = vpack.c.b16 %v3715, %v3711
        %v3968 = vpack.c.b16 %v3716, %v3712
        %v3969 = vpack.c.b16 %v3721, %v3717
        %v3970 = vpack.c.b16 %v3722, %v3718
        %v3971 = vpack.c.b16 %v3723, %v3719
        %v3972 = vpack.c.b16 %v3724, %v3720
        %v3973 = vpack.c.b16 %v3729, %v3725
        %v3974 = vpack.c.b16 %v3730, %v3726
        %v3975 = vpack.c.b16 %v3731, %v3727
        %v3976 = vpack.c.b16 %v3732, %v3728
        %v3977 = vpack.c.b16 %v3737, %v3733
        %v3978 = vpack.c.b16 %v3738, %v3734
        %v3979 = vpack.c.b16 %v3739, %v3735
        %v3980 = vpack.c.b16 %v3740, %v3736
        %v3981 = vpack.c.b16 %v3745, %v3741
        %v3982 = vpack.c.b16 %v3746, %v3742
        %v3983 = vpack.c.b16 %v3747, %v3743
        %v3984 = vpack.c.b16 %v3748, %v3744
        %v3985 = vpack.c.b16 %v3753, %v3749
        %v3986 = vpack.c.b16 %v3754, %v3750
        %v3987 = vpack.c.b16 %v3755, %v3751
        %v3988 = vpack.c.b16 %v3756, %v3752
        %v3989 = vpack.c.b16 %v3761, %v3757
        %v3990 = vpack.c.b16 %v3762, %v3758
        %v3991 = vpack.c.b16 %v3763, %v3759
        %v3992 = vpack.c.b16 %v3764, %v3760
        %v3993 = vpack.c.b16 %v3769, %v3765
        %v3994 = vpack.c.b16 %v3770, %v3766
        %v3995 = vpack.c.b16 %v3771, %v3767
        %v3996 = vpack.c.b16 %v3772, %v3768
        %v3997 = vpack.c.b16 %v3777, %v3773
        %v3998 = vpack.c.b16 %v3778, %v3774
        %v3999 = vpack.c.b16 %v3779, %v3775
        %v4000 = vpack.c.b16 %v3780, %v3776
        %v4001 = vpack.c.b16 %v3785, %v3781
        %v4002 = vpack.c.b16 %v3786, %v3782
        %v4003 = vpack.c.b16 %v3787, %v3783
        %v4004 = vpack.c.b16 %v3788, %v3784
        %v4005 = vpack.c.b16 %v3793, %v3789
        %v4006 = vpack.c.b16 %v3794, %v3790
        %v4007 = vpack.c.b16 %v3795, %v3791
        %v4008 = vpack.c.b16 %v3796, %v3792
        %v4009 = vpack.c.b16 %v3801, %v3797
        %v4010 = vpack.c.b16 %v3802, %v3798
        %v4011 = vpack.c.b16 %v3803, %v3799
        %v4012 = vpack.c.b16 %v3804, %v3800
        %v4013 = vpack.c.b16 %v3809, %v3805
        %v4014 = vpack.c.b16 %v3810, %v3806
        %v4015 = vpack.c.b16 %v3811, %v3807
        %v4016 = vpack.c.b16 %v3812, %v3808
        %v4017 = vpack.c.b16 %v3817, %v3813
        %v4018 = vpack.c.b16 %v3818, %v3814
        %v4019 = vpack.c.b16 %v3819, %v3815
        %v4020 = vpack.c.b16 %v3820, %v3816
        %v4021 = vpack.c.b16 %v3825, %v3821
        %v4022 = vpack.c.b16 %v3826, %v3822
        %v4023 = vpack.c.b16 %v3827, %v3823
        %v4024 = vpack.c.b16 %v3828, %v3824
        %v4025 = vpack.c.b16 %v3833, %v3829
        %v4026 = vpack.c.b16 %v3834, %v3830
        %v4027 = vpack.c.b16 %v3835, %v3831
        %v4028 = vpack.c.b16 %v3836, %v3832
        %v4029 = vpack.c.b16 %v3841, %v3837
        %v4030 = vpack.c.b16 %v3842, %v3838
        %v4031 = vpack.c.b16 %v3843, %v3839
        %v4032 = vpack.c.b16 %v3844, %v3840
        %v4033 = vpack.c.b16 %v3849, %v3845
        %v4034 = vpack.c.b16 %v3850, %v3846
        %v4035 = vpack.c.b16 %v3851, %v3847
        %v4036 = vpack.c.b16 %v3852, %v3848
        %v4037 = vpack.c.b16 %v3857, %v3853
        %v4038 = vpack.c.b16 %v3858, %v3854
        %v4039 = vpack.c.b16 %v3859, %v3855
        %v4040 = vpack.c.b16 %v3860, %v3856
        %v4041 = vpack.c.b16 %v3865, %v3861
        %v4042 = vpack.c.b16 %v3866, %v3862
        %v4043 = vpack.c.b16 %v3867, %v3863
        %v4044 = vpack.c.b16 %v3868, %v3864
        %v4045 = vpack.c.b16 %v3873, %v3869
        %v4046 = vpack.c.b16 %v3874, %v3870
        %v4047 = vpack.c.b16 %v3875, %v3871
        %v4048 = vpack.c.b16 %v3876, %v3872
        %v4049 = vpack.c.b16 %v3881, %v3877
        %v4050 = vpack.c.b16 %v3882, %v3878
        %v4051 = vpack.c.b16 %v3883, %v3879
        %v4052 = vpack.c.b16 %v3884, %v3880
        %v4053 = vpack.c.b16 %v3889, %v3885
        %v4054 = vpack.c.b16 %v3890, %v3886
        %v4055 = vpack.c.b16 %v3891, %v3887
        %v4056 = vpack.c.b16 %v3892, %v3888
        %v4057 = vpack.c.b16 %v3897, %v3893
        %v4058 = vpack.c.b16 %v3898, %v3894
        %v4059 = vpack.c.b16 %v3899, %v3895
        %v4060 = vpack.c.b16 %v3900, %v3896
        %v4061 = vpack.c.b16 %v3905, %v3901
        %v4062 = vpack.c.b16 %v3906, %v3902
        %v4063 = vpack.c.b16 %v3907, %v3903
        %v4064 = vpack.c.b16 %v3908, %v3904
        %v4065 = vpack.c.b16 %v3913, %v3909
        %v4066 = vpack.c.b16 %v3914, %v3910
        %v4067 = vpack.c.b16 %v3915, %v3911
        %v4068 = vpack.c.b16 %v3916, %v3912
        %v4069 = vpack.c.b16 %v3921, %v3917
        %v4070 = vpack.c.b16 %v3922, %v3918
        %v4071 = vpack.c.b16 %v3923, %v3919
        %v4072 = vpack.c.b16 %v3924, %v3920
        %v4073 = vpack.c.b16 %v3929, %v3925
        %v4074 = vpack.c.b16 %v3930, %v3926
        %v4075 = vpack.c.b16 %v3931, %v3927
        %v4076 = vpack.c.b16 %v3932, %v3928
        %v4077 = vpack.c.b16 %v3937, %v3933
        %v4078 = vpack.c.b16 %v3938, %v3934
        %v4079 = vpack.c.b16 %v3939, %v3935
        %v4080 = vpack.c.b16 %v3940, %v3936
        %v4081 = vpack.c.b16 %v3945, %v3941
        %v4082 = vpack.c.b16 %v3946, %v3942
        %v4083 = vpack.c.b16 %v3947, %v3943
        %v4084 = vpack.c.b16 %v3948, %v3944
        %v4085 = vpack.c.b16 %v3953, %v3949
        %v4086 = vpack.c.b16 %v3954, %v3950
        %v4087 = vpack.c.b16 %v3955, %v3951
        %v4088 = vpack.c.b16 %v3956, %v3952
        %v4089 = vpack.c.b16 %v3961, %v3957
        %v4090 = vpack.c.b16 %v3962, %v3958
        %v4091 = vpack.c.b16 %v3963, %v3959
        %v4092 = vpack.c.b16 %v3964, %v3960
        %4221 = vmatprep.subr.bf16.mxu0 %v3994
        %4222 = vmatpush1.bf16.msra.mxu0 %v3993
        %4223 = vmatprep.subr.bf16.mxu0 %v3990
        %4224 = vmatpush1.bf16.msra.mxu0 %v3989
        %4225 = vmatprep.subr.bf16.mxu0 %v3986
        %4226 = vmatpush1.bf16.msra.mxu0 %v3985
        %4227 = vmatprep.subr.bf16.mxu0 %v3982
        %4228 = vmatpush1.bf16.msra.mxu0 %v3981
        %4229 = vmatprep.subr.bf16.mxu0 %v3978
        %4230 = vmatpush1.bf16.msra.mxu0 %v3977
        %4231 = vmatprep.subr.bf16.mxu0 %v3974
        %4232 = vmatpush1.bf16.msra.mxu0 %v3973
        %4233 = vmatprep.subr.bf16.mxu0 %v3970
        %4234 = vmatpush1.bf16.msra.mxu0 %v3969
        %4235 = vmatprep.subr.bf16.mxu0 %v3966
        %4236 = vmatpush1.bf16.msra.mxu0 %v3965
        %4237 = vmatprep.subr.bf16.mxu0 %v4026
        %4238 = vmatpush2.bf16.msra.mxu0 %v4025
        %4239 = vmatprep.subr.bf16.mxu0 %v4022
        %4240 = vmatpush2.bf16.msra.mxu0 %v4021
        %4241 = vmatprep.subr.bf16.mxu0 %v4018
        %4242 = vmatpush2.bf16.msra.mxu0 %v4017
        %4243 = vmatprep.subr.bf16.mxu0 %v4014
        %4244 = vmatpush2.bf16.msra.mxu0 %v4013
        %4245 = vmatprep.subr.bf16.mxu0 %v4010
        %4246 = vmatpush2.bf16.msra.mxu0 %v4009
        %4247 = vmatprep.subr.bf16.mxu0 %v4006
        %4248 = vmatpush2.bf16.msra.mxu0 %v4005
        %4249 = vmatprep.subr.bf16.mxu0 %v4002
        %4250 = vmatpush2.bf16.msra.mxu0 %v4001
        %4251 = vmatprep.subr.bf16.mxu0 %v3998
        %4252 = vmatpush2.bf16.msra.mxu0 %v3997
        %4253 = vmatprep.mubr.bf16.mxu0 %v3410
        %4254 = vmatmul.mubr.bf16.gmra.mxu0 %v3409
        %v4255 = vpop.f32.mrf.mxu0
        %v4256 = vadd.f32 0.0, %v4255
        %v4257 = vpop.f32.mrf.mxu0
        %v4258 = vadd.f32 0.0, %v4257
        %v4259 = vpop.f32.mrf.mxu0
        %v4260 = vadd.f32 0.0, %v4259
        %v4261 = vpop.f32.mrf.mxu0
        %v4262 = vadd.f32 0.0, %v4261
        %4263 = vmatprep.mubr.bf16.mxu0 %v3421
        %4264 = vmatmul.mubr.bf16.gmra.mxu0 %v3418
        %v4265 = vpop.f32.mrf.mxu0
        %v4266 = vadd.f32 0.0, %v4265
        %v4267 = vpop.f32.mrf.mxu0
        %v4268 = vadd.f32 0.0, %v4267
        %v4269 = vpop.f32.mrf.mxu0
        %v4270 = vpop.f32.mrf.mxu0
        %4271 = vdwg.mxu0
        %4272 = vmatprep.subr.bf16.mxu0 %v4058
        %4273 = vmatpush1.bf16.msra.mxu0 %v4057
        %4274 = vmatprep.subr.bf16.mxu0 %v4054
        %4275 = vmatpush1.bf16.msra.mxu0 %v4053
        %4276 = vmatprep.subr.bf16.mxu0 %v4050
        %4277 = vmatpush1.bf16.msra.mxu0 %v4049
        %4278 = vmatprep.subr.bf16.mxu0 %v4046
        %4279 = vmatpush1.bf16.msra.mxu0 %v4045
        %4280 = vmatprep.subr.bf16.mxu0 %v4042
        %4281 = vmatpush1.bf16.msra.mxu0 %v4041
        %4282 = vmatprep.subr.bf16.mxu0 %v4038
        %4283 = vmatpush1.bf16.msra.mxu0 %v4037
        %4284 = vmatprep.subr.bf16.mxu0 %v4034
        %4285 = vmatpush1.bf16.msra.mxu0 %v4033
        %4286 = vmatprep.subr.bf16.mxu0 %v4030
        %4287 = vmatpush1.bf16.msra.mxu0 %v4029
        %4288 = vmatprep.subr.bf16.mxu0 %v4090
        %4289 = vmatpush2.bf16.msra.mxu0 %v4089
        %4290 = vmatprep.subr.bf16.mxu0 %v4086
        %4291 = vmatpush2.bf16.msra.mxu0 %v4085
        %4292 = vmatprep.subr.bf16.mxu0 %v4082
        %4293 = vmatpush2.bf16.msra.mxu0 %v4081
        %4294 = vmatprep.subr.bf16.mxu0 %v4078
        %4295 = vmatpush2.bf16.msra.mxu0 %v4077
        %4296 = vmatprep.subr.bf16.mxu0 %v4074
        %4297 = vmatpush2.bf16.msra.mxu0 %v4073
        %4298 = vmatprep.subr.bf16.mxu0 %v4070
        %4299 = vmatpush2.bf16.msra.mxu0 %v4069
        %4300 = vmatprep.subr.bf16.mxu0 %v4066
        %4301 = vmatpush2.bf16.msra.mxu0 %v4065
        %4302 = vmatprep.subr.bf16.mxu0 %v4062
        %4303 = vmatpush2.bf16.msra.mxu0 %v4061
        %4304 = vmatprep.mubr.bf16.mxu0 %v3412
        %4305 = vmatmul.mubr.bf16.gmra.mxu0 %v3411
        %v4306 = vpop.f32.mrf.mxu0
        %v4307 = vadd.f32 %v4256, %v4306
        %v4308 = vpop.f32.mrf.mxu0
        %v4309 = vadd.f32 %v4258, %v4308
        %v4310 = vpop.f32.mrf.mxu0
        %v4311 = vadd.f32 %v4260, %v4310
        %v4312 = vpop.f32.mrf.mxu0
        %v4313 = vadd.f32 %v4262, %v4312
        %4314 = vmatprep.mubr.bf16.mxu0 %v3427
        %4315 = vmatmul.mubr.bf16.gmra.mxu0 %v3424
        %v4316 = vpop.f32.mrf.mxu0
        %v4317 = vadd.f32 %v4266, %v4316
        %v4318 = vpop.f32.mrf.mxu0
        %v4319 = vadd.f32 %v4268, %v4318
        %v4320 = vpop.f32.mrf.mxu0
        %v4321 = vpop.f32.mrf.mxu0
        %4322 = vdwg.mxu0
        %4323 = vmatprep.subr.bf16.mxu0 %v3996
        %4324 = vmatpush1.bf16.msra.mxu0 %v3995
        %4325 = vmatprep.subr.bf16.mxu0 %v3992
        %4326 = vmatpush1.bf16.msra.mxu0 %v3991
        %4327 = vmatprep.subr.bf16.mxu0 %v3988
        %4328 = vmatpush1.bf16.msra.mxu0 %v3987
        %4329 = vmatprep.subr.bf16.mxu0 %v3984
        %4330 = vmatpush1.bf16.msra.mxu0 %v3983
        %4331 = vmatprep.subr.bf16.mxu0 %v3980
        %4332 = vmatpush1.bf16.msra.mxu0 %v3979
        %4333 = vmatprep.subr.bf16.mxu0 %v3976
        %4334 = vmatpush1.bf16.msra.mxu0 %v3975
        %4335 = vmatprep.subr.bf16.mxu0 %v3972
        %4336 = vmatpush1.bf16.msra.mxu0 %v3971
        %4337 = vmatprep.subr.bf16.mxu0 %v3968
        %4338 = vmatpush1.bf16.msra.mxu0 %v3967
        %4339 = vmatprep.subr.bf16.mxu0 %v4028
        %4340 = vmatpush2.bf16.msra.mxu0 %v4027
        %4341 = vmatprep.subr.bf16.mxu0 %v4024
        %4342 = vmatpush2.bf16.msra.mxu0 %v4023
        %4343 = vmatprep.subr.bf16.mxu0 %v4020
        %4344 = vmatpush2.bf16.msra.mxu0 %v4019
        %4345 = vmatprep.subr.bf16.mxu0 %v4016
        %4346 = vmatpush2.bf16.msra.mxu0 %v4015
        %4347 = vmatprep.subr.bf16.mxu0 %v4012
        %4348 = vmatpush2.bf16.msra.mxu0 %v4011
        %4349 = vmatprep.subr.bf16.mxu0 %v4008
        %4350 = vmatpush2.bf16.msra.mxu0 %v4007
        %4351 = vmatprep.subr.bf16.mxu0 %v4004
        %4352 = vmatpush2.bf16.msra.mxu0 %v4003
        %4353 = vmatprep.subr.bf16.mxu0 %v4000
        %4354 = vmatpush2.bf16.msra.mxu0 %v3999
        %4355 = vmatprep.mubr.bf16.mxu0 %v3410
        %4356 = vmatmul.mubr.bf16.gmra.mxu0 %v3409
        %v4357 = vpop.f32.mrf.mxu0
        %v4358 = vadd.f32 0.0, %v4357
        %v4359 = vpop.f32.mrf.mxu0
        %v4360 = vadd.f32 0.0, %v4359
        %v4361 = vpop.f32.mrf.mxu0
        %v4362 = vadd.f32 0.0, %v4361
        %v4363 = vpop.f32.mrf.mxu0
        %v4364 = vadd.f32 0.0, %v4363
        %4365 = vmatprep.mubr.bf16.mxu0 %v3421
        %4366 = vmatmul.mubr.bf16.gmra.mxu0 %v3418
        %v4367 = vpop.f32.mrf.mxu0
        %v4368 = vadd.f32 0.0, %v4367
        %v4369 = vpop.f32.mrf.mxu0
        %v4370 = vadd.f32 0.0, %v4369
        %v4371 = vpop.f32.mrf.mxu0
        %v4372 = vpop.f32.mrf.mxu0
        %4373 = vdwg.mxu0
        %4374 = vmatprep.subr.bf16.mxu0 %v4060
        %4375 = vmatpush1.bf16.msra.mxu0 %v4059
        %4376 = vmatprep.subr.bf16.mxu0 %v4056
        %4377 = vmatpush1.bf16.msra.mxu0 %v4055
        %4378 = vmatprep.subr.bf16.mxu0 %v4052
        %4379 = vmatpush1.bf16.msra.mxu0 %v4051
        %4380 = vmatprep.subr.bf16.mxu0 %v4048
        %4381 = vmatpush1.bf16.msra.mxu0 %v4047
        %4382 = vmatprep.subr.bf16.mxu0 %v4044
        %4383 = vmatpush1.bf16.msra.mxu0 %v4043
        %4384 = vmatprep.subr.bf16.mxu0 %v4040
        %4385 = vmatpush1.bf16.msra.mxu0 %v4039
        %4386 = vmatprep.subr.bf16.mxu0 %v4036
        %4387 = vmatpush1.bf16.msra.mxu0 %v4035
        %4388 = vmatprep.subr.bf16.mxu0 %v4032
        %4389 = vmatpush1.bf16.msra.mxu0 %v4031
        %4390 = vmatprep.subr.bf16.mxu0 %v4092
        %4391 = vmatpush2.bf16.msra.mxu0 %v4091
        %4392 = vmatprep.subr.bf16.mxu0 %v4088
        %4393 = vmatpush2.bf16.msra.mxu0 %v4087
        %4394 = vmatprep.subr.bf16.mxu0 %v4084
        %4395 = vmatpush2.bf16.msra.mxu0 %v4083
        %4396 = vmatprep.subr.bf16.mxu0 %v4080
        %4397 = vmatpush2.bf16.msra.mxu0 %v4079
        %4398 = vmatprep.subr.bf16.mxu0 %v4076
        %4399 = vmatpush2.bf16.msra.mxu0 %v4075
        %4400 = vmatprep.subr.bf16.mxu0 %v4072
        %4401 = vmatpush2.bf16.msra.mxu0 %v4071
        %4402 = vmatprep.subr.bf16.mxu0 %v4068
        %4403 = vmatpush2.bf16.msra.mxu0 %v4067
        %4404 = vmatprep.subr.bf16.mxu0 %v4064
        %4405 = vmatpush2.bf16.msra.mxu0 %v4063
        %4406 = vmatprep.mubr.bf16.mxu0 %v3412
        %4407 = vmatmul.mubr.bf16.gmra.mxu0 %v3411
        %v4408 = vpop.f32.mrf.mxu0
        %v4409 = vadd.f32 %v4358, %v4408
        %v4410 = vpop.f32.mrf.mxu0
        %v4411 = vadd.f32 %v4360, %v4410
        %v4412 = vpop.f32.mrf.mxu0
        %v4413 = vadd.f32 %v4362, %v4412
        %v4414 = vpop.f32.mrf.mxu0
        %v4415 = vadd.f32 %v4364, %v4414
        %4416 = vmatprep.mubr.bf16.mxu0 %v3427
        %4417 = vmatmul.mubr.bf16.gmra.mxu0 %v3424
        %v4418 = vpop.f32.mrf.mxu0
        %v4419 = vadd.f32 %v4368, %v4418
        %v4420 = vpop.f32.mrf.mxu0
        %v4421 = vadd.f32 %v4370, %v4420
        %v4422 = vpop.f32.mrf.mxu0
        %v4423 = vpop.f32.mrf.mxu0
        %4424 = vdwg.mxu0
        %v4425 = vadd.f32 %v3435, %v4307
        %v4426 = vadd.f32 %v3439, %v4309
        %v4427 = vadd.f32 %v3443, %v4409
        %v4428 = vadd.f32 %v3447, %v4411
        %v4429 = vadd.f32 %v3435, %v4311
        %v4430 = vadd.f32 %v3439, %v4313
        %v4431 = vadd.f32 %v3443, %v4413
        %v4432 = vadd.f32 %v3447, %v4415
        %v4433 = vadd.f32 %v3435, %v4317
        %v4434 = vadd.f32 %v3439, %v4319
        %v4435 = vadd.f32 %v3443, %v4419
        %v4436 = vadd.f32 %v3447, %v4421
        %s4437 = scalar_lea.vmem [#allocation2], 4096
        %v4438 = vld [vmem:[%s4437] sm:$0xff]
        %v4439 = vld [vmem:[%s4437 + $0x8] sm:$0xff]
        %v4440 = vld [vmem:[%s4437 + $0x10] sm:$0xff]
        %v4441 = vld [vmem:[%s4437 + $0x18] sm:$0xff]
        %v4442 = vld [vmem:[%s4437 + $0x20] sm:$0xff]
        %v4443 = vld [vmem:[%s4437 + $0x28] sm:$0xff]
        %v4444 = vld [vmem:[%s4437 + $0x30] sm:$0xff]
        %v4445 = vld [vmem:[%s4437 + $0x38] sm:$0xff]
        %v4446 = vld [vmem:[%s4437 + $0x40] sm:$0xff]
        %v4447 = vld [vmem:[%s4437 + $0x48] sm:$0xff]
        %v4448 = vld [vmem:[%s4437 + $0x50] sm:$0xff]
        %v4449 = vld [vmem:[%s4437 + $0x58] sm:$0xff]
        %v4450 = vld [vmem:[%s4437 + $0x60] sm:$0xff]
        %v4451 = vld [vmem:[%s4437 + $0x68] sm:$0xff]
        %v4452 = vld [vmem:[%s4437 + $0x70] sm:$0xff]
        %v4453 = vld [vmem:[%s4437 + $0x78] sm:$0xff]
        %v4454 = vld [vmem:[%s4437 + $0x80] sm:$0xff]
        %v4455 = vld [vmem:[%s4437 + $0x88] sm:$0xff]
        %v4456 = vld [vmem:[%s4437 + $0x90] sm:$0xff]
        %v4457 = vld [vmem:[%s4437 + $0x98] sm:$0xff]
        %v4458 = vld [vmem:[%s4437 + $0xa0] sm:$0xff]
        %v4459 = vld [vmem:[%s4437 + $0xa8] sm:$0xff]
        %v4460 = vld [vmem:[%s4437 + $0xb0] sm:$0xff]
        %v4461 = vld [vmem:[%s4437 + $0xb8] sm:$0xff]
        %v4462 = vld [vmem:[%s4437 + $0xc0] sm:$0xff]
        %v4463 = vld [vmem:[%s4437 + $0xc8] sm:$0xff]
        %v4464 = vld [vmem:[%s4437 + $0xd0] sm:$0xff]
        %v4465 = vld [vmem:[%s4437 + $0xd8] sm:$0xff]
        %v4466 = vld [vmem:[%s4437 + $0xe0] sm:$0xff]
        %v4467 = vld [vmem:[%s4437 + $0xe8] sm:$0xff]
        %v4468 = vld [vmem:[%s4437 + $0xf0] sm:$0xff]
        %v4469 = vld [vmem:[%s4437 + $0xf8] sm:$0xff]
        %v4470 = vld [vmem:[%s4437 + $0x100] sm:$0xff]
        %v4471 = vld [vmem:[%s4437 + $0x108] sm:$0xff]
        %v4472 = vld [vmem:[%s4437 + $0x110] sm:$0xff]
        %v4473 = vld [vmem:[%s4437 + $0x118] sm:$0xff]
        %v4474 = vld [vmem:[%s4437 + $0x120] sm:$0xff]
        %v4475 = vld [vmem:[%s4437 + $0x128] sm:$0xff]
        %v4476 = vld [vmem:[%s4437 + $0x130] sm:$0xff]
        %v4477 = vld [vmem:[%s4437 + $0x138] sm:$0xff]
        %v4478 = vld [vmem:[%s4437 + $0x140] sm:$0xff]
        %v4479 = vld [vmem:[%s4437 + $0x148] sm:$0xff]
        %v4480 = vld [vmem:[%s4437 + $0x150] sm:$0xff]
        %v4481 = vld [vmem:[%s4437 + $0x158] sm:$0xff]
        %v4482 = vld [vmem:[%s4437 + $0x160] sm:$0xff]
        %v4483 = vld [vmem:[%s4437 + $0x168] sm:$0xff]
        %v4484 = vld [vmem:[%s4437 + $0x170] sm:$0xff]
        %v4485 = vld [vmem:[%s4437 + $0x178] sm:$0xff]
        %v4486 = vld [vmem:[%s4437 + $0x180] sm:$0xff]
        %v4487 = vld [vmem:[%s4437 + $0x188] sm:$0xff]
        %v4488 = vld [vmem:[%s4437 + $0x190] sm:$0xff]
        %v4489 = vld [vmem:[%s4437 + $0x198] sm:$0xff]
        %v4490 = vld [vmem:[%s4437 + $0x1a0] sm:$0xff]
        %v4491 = vld [vmem:[%s4437 + $0x1a8] sm:$0xff]
        %v4492 = vld [vmem:[%s4437 + $0x1b0] sm:$0xff]
        %v4493 = vld [vmem:[%s4437 + $0x1b8] sm:$0xff]
        %v4494 = vld [vmem:[%s4437 + $0x1c0] sm:$0xff]
        %v4495 = vld [vmem:[%s4437 + $0x1c8] sm:$0xff]
        %v4496 = vld [vmem:[%s4437 + $0x1d0] sm:$0xff]
        %v4497 = vld [vmem:[%s4437 + $0x1d8] sm:$0xff]
        %v4498 = vld [vmem:[%s4437 + $0x1e0] sm:$0xff]
        %v4499 = vld [vmem:[%s4437 + $0x1e8] sm:$0xff]
        %v4500 = vld [vmem:[%s4437 + $0x1f0] sm:$0xff]
        %v4501 = vld [vmem:[%s4437 + $0x1f8] sm:$0xff]
        %v4502 = vld [vmem:[%s4437 + $0x200] sm:$0xff]
        %v4503 = vld [vmem:[%s4437 + $0x208] sm:$0xff]
        %v4504 = vld [vmem:[%s4437 + $0x210] sm:$0xff]
        %v4505 = vld [vmem:[%s4437 + $0x218] sm:$0xff]
        %v4506 = vld [vmem:[%s4437 + $0x220] sm:$0xff]
        %v4507 = vld [vmem:[%s4437 + $0x228] sm:$0xff]
        %v4508 = vld [vmem:[%s4437 + $0x230] sm:$0xff]
        %v4509 = vld [vmem:[%s4437 + $0x238] sm:$0xff]
        %v4510 = vld [vmem:[%s4437 + $0x240] sm:$0xff]
        %v4511 = vld [vmem:[%s4437 + $0x248] sm:$0xff]
        %v4512 = vld [vmem:[%s4437 + $0x250] sm:$0xff]
        %v4513 = vld [vmem:[%s4437 + $0x258] sm:$0xff]
        %v4514 = vld [vmem:[%s4437 + $0x260] sm:$0xff]
        %v4515 = vld [vmem:[%s4437 + $0x268] sm:$0xff]
        %v4516 = vld [vmem:[%s4437 + $0x270] sm:$0xff]
        %v4517 = vld [vmem:[%s4437 + $0x278] sm:$0xff]
        %v4518 = vld [vmem:[%s4437 + $0x280] sm:$0xff]
        %v4519 = vld [vmem:[%s4437 + $0x288] sm:$0xff]
        %v4520 = vld [vmem:[%s4437 + $0x290] sm:$0xff]
        %v4521 = vld [vmem:[%s4437 + $0x298] sm:$0xff]
        %v4522 = vld [vmem:[%s4437 + $0x2a0] sm:$0xff]
        %v4523 = vld [vmem:[%s4437 + $0x2a8] sm:$0xff]
        %v4524 = vld [vmem:[%s4437 + $0x2b0] sm:$0xff]
        %v4525 = vld [vmem:[%s4437 + $0x2b8] sm:$0xff]
        %v4526 = vld [vmem:[%s4437 + $0x2c0] sm:$0xff]
        %v4527 = vld [vmem:[%s4437 + $0x2c8] sm:$0xff]
        %v4528 = vld [vmem:[%s4437 + $0x2d0] sm:$0xff]
        %v4529 = vld [vmem:[%s4437 + $0x2d8] sm:$0xff]
        %v4530 = vld [vmem:[%s4437 + $0x2e0] sm:$0xff]
        %v4531 = vld [vmem:[%s4437 + $0x2e8] sm:$0xff]
        %v4532 = vld [vmem:[%s4437 + $0x2f0] sm:$0xff]
        %v4533 = vld [vmem:[%s4437 + $0x2f8] sm:$0xff]
        %v4534 = vld [vmem:[%s4437 + $0x300] sm:$0xff]
        %v4535 = vld [vmem:[%s4437 + $0x308] sm:$0xff]
        %v4536 = vld [vmem:[%s4437 + $0x310] sm:$0xff]
        %v4537 = vld [vmem:[%s4437 + $0x318] sm:$0xff]
        %v4538 = vld [vmem:[%s4437 + $0x320] sm:$0xff]
        %v4539 = vld [vmem:[%s4437 + $0x328] sm:$0xff]
        %v4540 = vld [vmem:[%s4437 + $0x330] sm:$0xff]
        %v4541 = vld [vmem:[%s4437 + $0x338] sm:$0xff]
        %v4542 = vld [vmem:[%s4437 + $0x340] sm:$0xff]
        %v4543 = vld [vmem:[%s4437 + $0x348] sm:$0xff]
        %v4544 = vld [vmem:[%s4437 + $0x350] sm:$0xff]
        %v4545 = vld [vmem:[%s4437 + $0x358] sm:$0xff]
        %v4546 = vld [vmem:[%s4437 + $0x360] sm:$0xff]
        %v4547 = vld [vmem:[%s4437 + $0x368] sm:$0xff]
        %v4548 = vld [vmem:[%s4437 + $0x370] sm:$0xff]
        %v4549 = vld [vmem:[%s4437 + $0x378] sm:$0xff]
        %v4550 = vld [vmem:[%s4437 + $0x380] sm:$0xff]
        %v4551 = vld [vmem:[%s4437 + $0x388] sm:$0xff]
        %v4552 = vld [vmem:[%s4437 + $0x390] sm:$0xff]
        %v4553 = vld [vmem:[%s4437 + $0x398] sm:$0xff]
        %v4554 = vld [vmem:[%s4437 + $0x3a0] sm:$0xff]
        %v4555 = vld [vmem:[%s4437 + $0x3a8] sm:$0xff]
        %v4556 = vld [vmem:[%s4437 + $0x3b0] sm:$0xff]
        %v4557 = vld [vmem:[%s4437 + $0x3b8] sm:$0xff]
        %v4558 = vld [vmem:[%s4437 + $0x3c0] sm:$0xff]
        %v4559 = vld [vmem:[%s4437 + $0x3c8] sm:$0xff]
        %v4560 = vld [vmem:[%s4437 + $0x3d0] sm:$0xff]
        %v4561 = vld [vmem:[%s4437 + $0x3d8] sm:$0xff]
        %v4562 = vld [vmem:[%s4437 + $0x3e0] sm:$0xff]
        %v4563 = vld [vmem:[%s4437 + $0x3e8] sm:$0xff]
        %v4564 = vld [vmem:[%s4437 + $0x3f0] sm:$0xff]
        %v4565 = vld [vmem:[%s4437 + $0x3f8] sm:$0xff]
        %v4567 = vshrl.u32 %v3409, 16
        %v4569 = vshll.u32 %v3409, 16
        %v4571 = vrot.slane %v4569, 1
        %v4572 = vor.u32 %v4567, %v4571
        %v4573 = vshll.u32 %v3418, 16
        %v4575 = vrot.slane %v4573, 1
        %v4576 = vsel %vm1466, %v4572, %v4575
        %v4578 = vshrl.u32 %v3410, 16
        %v4580 = vshll.u32 %v3410, 16
        %v4582 = vrot.slane %v4580, 1
        %v4583 = vor.u32 %v4578, %v4582
        %v4584 = vshll.u32 %v3421, 16
        %v4586 = vrot.slane %v4584, 1
        %v4587 = vsel %vm1466, %v4583, %v4586
        %v4589 = vshrl.u32 %v3411, 16
        %v4591 = vshll.u32 %v3411, 16
        %v4593 = vrot.slane %v4591, 1
        %v4594 = vor.u32 %v4589, %v4593
        %v4595 = vshll.u32 %v3424, 16
        %v4597 = vrot.slane %v4595, 1
        %v4598 = vsel %vm1466, %v4594, %v4597
        %v4600 = vshrl.u32 %v3412, 16
        %v4602 = vshll.u32 %v3412, 16
        %v4604 = vrot.slane %v4602, 1
        %v4605 = vor.u32 %v4600, %v4604
        %v4606 = vshll.u32 %v3427, 16
        %v4608 = vrot.slane %v4606, 1
        %v4609 = vsel %vm1466, %v4605, %v4608
        %v4610 = vshrl.u32 %v3418, 16
        %v4612 = vor.u32 %v4610, %v4575
        %v4613 = vshrl.u32 %v3421, 16
        %v4615 = vor.u32 %v4613, %v4586
        %v4616 = vshrl.u32 %v3424, 16
        %v4618 = vor.u32 %v4616, %v4597
        %v4619 = vshrl.u32 %v3427, 16
        %v4621 = vor.u32 %v4619, %v4608
        %v4758 = vunpack.c.l.b16 %v4438
        %v4759 = vunpack.c.h.b16 %v4438
        %v4760 = vunpack.c.l.b16 %v4439
        %v4761 = vunpack.c.h.b16 %v4439
        %v4762 = vunpack.c.l.b16 %v4440
        %v4763 = vunpack.c.h.b16 %v4440
        %v4764 = vunpack.c.l.b16 %v4441
        %v4765 = vunpack.c.h.b16 %v4441
        %v4766 = vunpack.c.l.b16 %v4442
        %v4767 = vunpack.c.h.b16 %v4442
        %v4768 = vunpack.c.l.b16 %v4443
        %v4769 = vunpack.c.h.b16 %v4443
        %v4770 = vunpack.c.l.b16 %v4444
        %v4771 = vunpack.c.h.b16 %v4444
        %v4772 = vunpack.c.l.b16 %v4445
        %v4773 = vunpack.c.h.b16 %v4445
        %v4774 = vunpack.c.l.b16 %v4446
        %v4775 = vunpack.c.h.b16 %v4446
        %v4776 = vunpack.c.l.b16 %v4447
        %v4777 = vunpack.c.h.b16 %v4447
        %v4778 = vunpack.c.l.b16 %v4448
        %v4779 = vunpack.c.h.b16 %v4448
        %v4780 = vunpack.c.l.b16 %v4449
        %v4781 = vunpack.c.h.b16 %v4449
        %v4782 = vunpack.c.l.b16 %v4450
        %v4783 = vunpack.c.h.b16 %v4450
        %v4784 = vunpack.c.l.b16 %v4451
        %v4785 = vunpack.c.h.b16 %v4451
        %v4786 = vunpack.c.l.b16 %v4452
        %v4787 = vunpack.c.h.b16 %v4452
        %v4788 = vunpack.c.l.b16 %v4453
        %v4789 = vunpack.c.h.b16 %v4453
        %v4790 = vunpack.c.l.b16 %v4454
        %v4791 = vunpack.c.h.b16 %v4454
        %v4792 = vunpack.c.l.b16 %v4455
        %v4793 = vunpack.c.h.b16 %v4455
        %v4794 = vunpack.c.l.b16 %v4456
        %v4795 = vunpack.c.h.b16 %v4456
        %v4796 = vunpack.c.l.b16 %v4457
        %v4797 = vunpack.c.h.b16 %v4457
        %v4798 = vunpack.c.l.b16 %v4458
        %v4799 = vunpack.c.h.b16 %v4458
        %v4800 = vunpack.c.l.b16 %v4459
        %v4801 = vunpack.c.h.b16 %v4459
        %v4802 = vunpack.c.l.b16 %v4460
        %v4803 = vunpack.c.h.b16 %v4460
        %v4804 = vunpack.c.l.b16 %v4461
        %v4805 = vunpack.c.h.b16 %v4461
        %v4806 = vunpack.c.l.b16 %v4462
        %v4807 = vunpack.c.h.b16 %v4462
        %v4808 = vunpack.c.l.b16 %v4463
        %v4809 = vunpack.c.h.b16 %v4463
        %v4810 = vunpack.c.l.b16 %v4464
        %v4811 = vunpack.c.h.b16 %v4464
        %v4812 = vunpack.c.l.b16 %v4465
        %v4813 = vunpack.c.h.b16 %v4465
        %v4814 = vunpack.c.l.b16 %v4466
        %v4815 = vunpack.c.h.b16 %v4466
        %v4816 = vunpack.c.l.b16 %v4467
        %v4817 = vunpack.c.h.b16 %v4467
        %v4818 = vunpack.c.l.b16 %v4468
        %v4819 = vunpack.c.h.b16 %v4468
        %v4820 = vunpack.c.l.b16 %v4469
        %v4821 = vunpack.c.h.b16 %v4469
        %v4822 = vunpack.c.l.b16 %v4470
        %v4823 = vunpack.c.h.b16 %v4470
        %v4824 = vunpack.c.l.b16 %v4471
        %v4825 = vunpack.c.h.b16 %v4471
        %v4826 = vunpack.c.l.b16 %v4472
        %v4827 = vunpack.c.h.b16 %v4472
        %v4828 = vunpack.c.l.b16 %v4473
        %v4829 = vunpack.c.h.b16 %v4473
        %v4830 = vunpack.c.l.b16 %v4474
        %v4831 = vunpack.c.h.b16 %v4474
        %v4832 = vunpack.c.l.b16 %v4475
        %v4833 = vunpack.c.h.b16 %v4475
        %v4834 = vunpack.c.l.b16 %v4476
        %v4835 = vunpack.c.h.b16 %v4476
        %v4836 = vunpack.c.l.b16 %v4477
        %v4837 = vunpack.c.h.b16 %v4477
        %v4838 = vunpack.c.l.b16 %v4478
        %v4839 = vunpack.c.h.b16 %v4478
        %v4840 = vunpack.c.l.b16 %v4479
        %v4841 = vunpack.c.h.b16 %v4479
        %v4842 = vunpack.c.l.b16 %v4480
        %v4843 = vunpack.c.h.b16 %v4480
        %v4844 = vunpack.c.l.b16 %v4481
        %v4845 = vunpack.c.h.b16 %v4481
        %v4846 = vunpack.c.l.b16 %v4482
        %v4847 = vunpack.c.h.b16 %v4482
        %v4848 = vunpack.c.l.b16 %v4483
        %v4849 = vunpack.c.h.b16 %v4483
        %v4850 = vunpack.c.l.b16 %v4484
        %v4851 = vunpack.c.h.b16 %v4484
        %v4852 = vunpack.c.l.b16 %v4485
        %v4853 = vunpack.c.h.b16 %v4485
        %v4854 = vunpack.c.l.b16 %v4486
        %v4855 = vunpack.c.h.b16 %v4486
        %v4856 = vunpack.c.l.b16 %v4487
        %v4857 = vunpack.c.h.b16 %v4487
        %v4858 = vunpack.c.l.b16 %v4488
        %v4859 = vunpack.c.h.b16 %v4488
        %v4860 = vunpack.c.l.b16 %v4489
        %v4861 = vunpack.c.h.b16 %v4489
        %v4862 = vunpack.c.l.b16 %v4490
        %v4863 = vunpack.c.h.b16 %v4490
        %v4864 = vunpack.c.l.b16 %v4491
        %v4865 = vunpack.c.h.b16 %v4491
        %v4866 = vunpack.c.l.b16 %v4492
        %v4867 = vunpack.c.h.b16 %v4492
        %v4868 = vunpack.c.l.b16 %v4493
        %v4869 = vunpack.c.h.b16 %v4493
        %v4870 = vunpack.c.l.b16 %v4494
        %v4871 = vunpack.c.h.b16 %v4494
        %v4872 = vunpack.c.l.b16 %v4495
        %v4873 = vunpack.c.h.b16 %v4495
        %v4874 = vunpack.c.l.b16 %v4496
        %v4875 = vunpack.c.h.b16 %v4496
        %v4876 = vunpack.c.l.b16 %v4497
        %v4877 = vunpack.c.h.b16 %v4497
        %v4878 = vunpack.c.l.b16 %v4498
        %v4879 = vunpack.c.h.b16 %v4498
        %v4880 = vunpack.c.l.b16 %v4499
        %v4881 = vunpack.c.h.b16 %v4499
        %v4882 = vunpack.c.l.b16 %v4500
        %v4883 = vunpack.c.h.b16 %v4500
        %v4884 = vunpack.c.l.b16 %v4501
        %v4885 = vunpack.c.h.b16 %v4501
        %v4886 = vunpack.c.l.b16 %v4502
        %v4887 = vunpack.c.h.b16 %v4502
        %v4888 = vunpack.c.l.b16 %v4503
        %v4889 = vunpack.c.h.b16 %v4503
        %v4890 = vunpack.c.l.b16 %v4504
        %v4891 = vunpack.c.h.b16 %v4504
        %v4892 = vunpack.c.l.b16 %v4505
        %v4893 = vunpack.c.h.b16 %v4505
        %v4894 = vunpack.c.l.b16 %v4506
        %v4895 = vunpack.c.h.b16 %v4506
        %v4896 = vunpack.c.l.b16 %v4507
        %v4897 = vunpack.c.h.b16 %v4507
        %v4898 = vunpack.c.l.b16 %v4508
        %v4899 = vunpack.c.h.b16 %v4508
        %v4900 = vunpack.c.l.b16 %v4509
        %v4901 = vunpack.c.h.b16 %v4509
        %v4902 = vunpack.c.l.b16 %v4510
        %v4903 = vunpack.c.h.b16 %v4510
        %v4904 = vunpack.c.l.b16 %v4511
        %v4905 = vunpack.c.h.b16 %v4511
        %v4906 = vunpack.c.l.b16 %v4512
        %v4907 = vunpack.c.h.b16 %v4512
        %v4908 = vunpack.c.l.b16 %v4513
        %v4909 = vunpack.c.h.b16 %v4513
        %v4910 = vunpack.c.l.b16 %v4514
        %v4911 = vunpack.c.h.b16 %v4514
        %v4912 = vunpack.c.l.b16 %v4515
        %v4913 = vunpack.c.h.b16 %v4515
        %v4914 = vunpack.c.l.b16 %v4516
        %v4915 = vunpack.c.h.b16 %v4516
        %v4916 = vunpack.c.l.b16 %v4517
        %v4917 = vunpack.c.h.b16 %v4517
        %v4918 = vunpack.c.l.b16 %v4518
        %v4919 = vunpack.c.h.b16 %v4518
        %v4920 = vunpack.c.l.b16 %v4519
        %v4921 = vunpack.c.h.b16 %v4519
        %v4922 = vunpack.c.l.b16 %v4520
        %v4923 = vunpack.c.h.b16 %v4520
        %v4924 = vunpack.c.l.b16 %v4521
        %v4925 = vunpack.c.h.b16 %v4521
        %v4926 = vunpack.c.l.b16 %v4522
        %v4927 = vunpack.c.h.b16 %v4522
        %v4928 = vunpack.c.l.b16 %v4523
        %v4929 = vunpack.c.h.b16 %v4523
        %v4930 = vunpack.c.l.b16 %v4524
        %v4931 = vunpack.c.h.b16 %v4524
        %v4932 = vunpack.c.l.b16 %v4525
        %v4933 = vunpack.c.h.b16 %v4525
        %v4934 = vunpack.c.l.b16 %v4526
        %v4935 = vunpack.c.h.b16 %v4526
        %v4936 = vunpack.c.l.b16 %v4527
        %v4937 = vunpack.c.h.b16 %v4527
        %v4938 = vunpack.c.l.b16 %v4528
        %v4939 = vunpack.c.h.b16 %v4528
        %v4940 = vunpack.c.l.b16 %v4529
        %v4941 = vunpack.c.h.b16 %v4529
        %v4942 = vunpack.c.l.b16 %v4530
        %v4943 = vunpack.c.h.b16 %v4530
        %v4944 = vunpack.c.l.b16 %v4531
        %v4945 = vunpack.c.h.b16 %v4531
        %v4946 = vunpack.c.l.b16 %v4532
        %v4947 = vunpack.c.h.b16 %v4532
        %v4948 = vunpack.c.l.b16 %v4533
        %v4949 = vunpack.c.h.b16 %v4533
        %v4950 = vunpack.c.l.b16 %v4534
        %v4951 = vunpack.c.h.b16 %v4534
        %v4952 = vunpack.c.l.b16 %v4535
        %v4953 = vunpack.c.h.b16 %v4535
        %v4954 = vunpack.c.l.b16 %v4536
        %v4955 = vunpack.c.h.b16 %v4536
        %v4956 = vunpack.c.l.b16 %v4537
        %v4957 = vunpack.c.h.b16 %v4537
        %v4958 = vunpack.c.l.b16 %v4538
        %v4959 = vunpack.c.h.b16 %v4538
        %v4960 = vunpack.c.l.b16 %v4539
        %v4961 = vunpack.c.h.b16 %v4539
        %v4962 = vunpack.c.l.b16 %v4540
        %v4963 = vunpack.c.h.b16 %v4540
        %v4964 = vunpack.c.l.b16 %v4541
        %v4965 = vunpack.c.h.b16 %v4541
        %v4966 = vunpack.c.l.b16 %v4542
        %v4967 = vunpack.c.h.b16 %v4542
        %v4968 = vunpack.c.l.b16 %v4543
        %v4969 = vunpack.c.h.b16 %v4543
        %v4970 = vunpack.c.l.b16 %v4544
        %v4971 = vunpack.c.h.b16 %v4544
        %v4972 = vunpack.c.l.b16 %v4545
        %v4973 = vunpack.c.h.b16 %v4545
        %v4974 = vunpack.c.l.b16 %v4546
        %v4975 = vunpack.c.h.b16 %v4546
        %v4976 = vunpack.c.l.b16 %v4547
        %v4977 = vunpack.c.h.b16 %v4547
        %v4978 = vunpack.c.l.b16 %v4548
        %v4979 = vunpack.c.h.b16 %v4548
        %v4980 = vunpack.c.l.b16 %v4549
        %v4981 = vunpack.c.h.b16 %v4549
        %v4982 = vunpack.c.l.b16 %v4550
        %v4983 = vunpack.c.h.b16 %v4550
        %v4984 = vunpack.c.l.b16 %v4551
        %v4985 = vunpack.c.h.b16 %v4551
        %v4986 = vunpack.c.l.b16 %v4552
        %v4987 = vunpack.c.h.b16 %v4552
        %v4988 = vunpack.c.l.b16 %v4553
        %v4989 = vunpack.c.h.b16 %v4553
        %v4990 = vunpack.c.l.b16 %v4554
        %v4991 = vunpack.c.h.b16 %v4554
        %v4992 = vunpack.c.l.b16 %v4555
        %v4993 = vunpack.c.h.b16 %v4555
        %v4994 = vunpack.c.l.b16 %v4556
        %v4995 = vunpack.c.h.b16 %v4556
        %v4996 = vunpack.c.l.b16 %v4557
        %v4997 = vunpack.c.h.b16 %v4557
        %v4998 = vunpack.c.l.b16 %v4558
        %v4999 = vunpack.c.h.b16 %v4558
        %v5000 = vunpack.c.l.b16 %v4559
        %v5001 = vunpack.c.h.b16 %v4559
        %v5002 = vunpack.c.l.b16 %v4560
        %v5003 = vunpack.c.h.b16 %v4560
        %v5004 = vunpack.c.l.b16 %v4561
        %v5005 = vunpack.c.h.b16 %v4561
        %v5006 = vunpack.c.l.b16 %v4562
        %v5007 = vunpack.c.h.b16 %v4562
        %v5008 = vunpack.c.l.b16 %v4563
        %v5009 = vunpack.c.h.b16 %v4563
        %v5010 = vunpack.c.l.b16 %v4564
        %v5011 = vunpack.c.h.b16 %v4564
        %v5012 = vunpack.c.l.b16 %v4565
        %v5013 = vunpack.c.h.b16 %v4565
        %v5014 = vpack.c.b16 %v4762, %v4758
        %v5015 = vpack.c.b16 %v4763, %v4759
        %v5016 = vpack.c.b16 %v4764, %v4760
        %v5017 = vpack.c.b16 %v4765, %v4761
        %v5018 = vpack.c.b16 %v4770, %v4766
        %v5019 = vpack.c.b16 %v4771, %v4767
        %v5020 = vpack.c.b16 %v4772, %v4768
        %v5021 = vpack.c.b16 %v4773, %v4769
        %v5022 = vpack.c.b16 %v4778, %v4774
        %v5023 = vpack.c.b16 %v4779, %v4775
        %v5024 = vpack.c.b16 %v4780, %v4776
        %v5025 = vpack.c.b16 %v4781, %v4777
        %v5026 = vpack.c.b16 %v4786, %v4782
        %v5027 = vpack.c.b16 %v4787, %v4783
        %v5028 = vpack.c.b16 %v4788, %v4784
        %v5029 = vpack.c.b16 %v4789, %v4785
        %v5030 = vpack.c.b16 %v4794, %v4790
        %v5031 = vpack.c.b16 %v4795, %v4791
        %v5032 = vpack.c.b16 %v4796, %v4792
        %v5033 = vpack.c.b16 %v4797, %v4793
        %v5034 = vpack.c.b16 %v4802, %v4798
        %v5035 = vpack.c.b16 %v4803, %v4799
        %v5036 = vpack.c.b16 %v4804, %v4800
        %v5037 = vpack.c.b16 %v4805, %v4801
        %v5038 = vpack.c.b16 %v4810, %v4806
        %v5039 = vpack.c.b16 %v4811, %v4807
        %v5040 = vpack.c.b16 %v4812, %v4808
        %v5041 = vpack.c.b16 %v4813, %v4809
        %v5042 = vpack.c.b16 %v4818, %v4814
        %v5043 = vpack.c.b16 %v4819, %v4815
        %v5044 = vpack.c.b16 %v4820, %v4816
        %v5045 = vpack.c.b16 %v4821, %v4817
        %v5046 = vpack.c.b16 %v4826, %v4822
        %v5047 = vpack.c.b16 %v4827, %v4823
        %v5048 = vpack.c.b16 %v4828, %v4824
        %v5049 = vpack.c.b16 %v4829, %v4825
        %v5050 = vpack.c.b16 %v4834, %v4830
        %v5051 = vpack.c.b16 %v4835, %v4831
        %v5052 = vpack.c.b16 %v4836, %v4832
        %v5053 = vpack.c.b16 %v4837, %v4833
        %v5054 = vpack.c.b16 %v4842, %v4838
        %v5055 = vpack.c.b16 %v4843, %v4839
        %v5056 = vpack.c.b16 %v4844, %v4840
        %v5057 = vpack.c.b16 %v4845, %v4841
        %v5058 = vpack.c.b16 %v4850, %v4846
        %v5059 = vpack.c.b16 %v4851, %v4847
        %v5060 = vpack.c.b16 %v4852, %v4848
        %v5061 = vpack.c.b16 %v4853, %v4849
        %v5062 = vpack.c.b16 %v4858, %v4854
        %v5063 = vpack.c.b16 %v4859, %v4855
        %v5064 = vpack.c.b16 %v4860, %v4856
        %v5065 = vpack.c.b16 %v4861, %v4857
        %v5066 = vpack.c.b16 %v4866, %v4862
        %v5067 = vpack.c.b16 %v4867, %v4863
        %v5068 = vpack.c.b16 %v4868, %v4864
        %v5069 = vpack.c.b16 %v4869, %v4865
        %v5070 = vpack.c.b16 %v4874, %v4870
        %v5071 = vpack.c.b16 %v4875, %v4871
        %v5072 = vpack.c.b16 %v4876, %v4872
        %v5073 = vpack.c.b16 %v4877, %v4873
        %v5074 = vpack.c.b16 %v4882, %v4878
        %v5075 = vpack.c.b16 %v4883, %v4879
        %v5076 = vpack.c.b16 %v4884, %v4880
        %v5077 = vpack.c.b16 %v4885, %v4881
        %v5078 = vpack.c.b16 %v4890, %v4886
        %v5079 = vpack.c.b16 %v4891, %v4887
        %v5080 = vpack.c.b16 %v4892, %v4888
        %v5081 = vpack.c.b16 %v4893, %v4889
        %v5082 = vpack.c.b16 %v4898, %v4894
        %v5083 = vpack.c.b16 %v4899, %v4895
        %v5084 = vpack.c.b16 %v4900, %v4896
        %v5085 = vpack.c.b16 %v4901, %v4897
        %v5086 = vpack.c.b16 %v4906, %v4902
        %v5087 = vpack.c.b16 %v4907, %v4903
        %v5088 = vpack.c.b16 %v4908, %v4904
        %v5089 = vpack.c.b16 %v4909, %v4905
        %v5090 = vpack.c.b16 %v4914, %v4910
        %v5091 = vpack.c.b16 %v4915, %v4911
        %v5092 = vpack.c.b16 %v4916, %v4912
        %v5093 = vpack.c.b16 %v4917, %v4913
        %v5094 = vpack.c.b16 %v4922, %v4918
        %v5095 = vpack.c.b16 %v4923, %v4919
        %v5096 = vpack.c.b16 %v4924, %v4920
        %v5097 = vpack.c.b16 %v4925, %v4921
        %v5098 = vpack.c.b16 %v4930, %v4926
        %v5099 = vpack.c.b16 %v4931, %v4927
        %v5100 = vpack.c.b16 %v4932, %v4928
        %v5101 = vpack.c.b16 %v4933, %v4929
        %v5102 = vpack.c.b16 %v4938, %v4934
        %v5103 = vpack.c.b16 %v4939, %v4935
        %v5104 = vpack.c.b16 %v4940, %v4936
        %v5105 = vpack.c.b16 %v4941, %v4937
        %v5106 = vpack.c.b16 %v4946, %v4942
        %v5107 = vpack.c.b16 %v4947, %v4943
        %v5108 = vpack.c.b16 %v4948, %v4944
        %v5109 = vpack.c.b16 %v4949, %v4945
        %v5110 = vpack.c.b16 %v4954, %v4950
        %v5111 = vpack.c.b16 %v4955, %v4951
        %v5112 = vpack.c.b16 %v4956, %v4952
        %v5113 = vpack.c.b16 %v4957, %v4953
        %v5114 = vpack.c.b16 %v4962, %v4958
        %v5115 = vpack.c.b16 %v4963, %v4959
        %v5116 = vpack.c.b16 %v4964, %v4960
        %v5117 = vpack.c.b16 %v4965, %v4961
        %v5118 = vpack.c.b16 %v4970, %v4966
        %v5119 = vpack.c.b16 %v4971, %v4967
        %v5120 = vpack.c.b16 %v4972, %v4968
        %v5121 = vpack.c.b16 %v4973, %v4969
        %v5122 = vpack.c.b16 %v4978, %v4974
        %v5123 = vpack.c.b16 %v4979, %v4975
        %v5124 = vpack.c.b16 %v4980, %v4976
        %v5125 = vpack.c.b16 %v4981, %v4977
        %v5126 = vpack.c.b16 %v4986, %v4982
        %v5127 = vpack.c.b16 %v4987, %v4983
        %v5128 = vpack.c.b16 %v4988, %v4984
        %v5129 = vpack.c.b16 %v4989, %v4985
        %v5130 = vpack.c.b16 %v4994, %v4990
        %v5131 = vpack.c.b16 %v4995, %v4991
        %v5132 = vpack.c.b16 %v4996, %v4992
        %v5133 = vpack.c.b16 %v4997, %v4993
        %v5134 = vpack.c.b16 %v5002, %v4998
        %v5135 = vpack.c.b16 %v5003, %v4999
        %v5136 = vpack.c.b16 %v5004, %v5000
        %v5137 = vpack.c.b16 %v5005, %v5001
        %v5138 = vpack.c.b16 %v5010, %v5006
        %v5139 = vpack.c.b16 %v5011, %v5007
        %v5140 = vpack.c.b16 %v5012, %v5008
        %v5141 = vpack.c.b16 %v5013, %v5009
        %5270 = vmatprep.subr.bf16.mxu0 %v5043
        %5271 = vmatpush1.bf16.msra.mxu0 %v5042
        %5272 = vmatprep.subr.bf16.mxu0 %v5039
        %5273 = vmatpush1.bf16.msra.mxu0 %v5038
        %5274 = vmatprep.subr.bf16.mxu0 %v5035
        %5275 = vmatpush1.bf16.msra.mxu0 %v5034
        %5276 = vmatprep.subr.bf16.mxu0 %v5031
        %5277 = vmatpush1.bf16.msra.mxu0 %v5030
        %5278 = vmatprep.subr.bf16.mxu0 %v5027
        %5279 = vmatpush1.bf16.msra.mxu0 %v5026
        %5280 = vmatprep.subr.bf16.mxu0 %v5023
        %5281 = vmatpush1.bf16.msra.mxu0 %v5022
        %5282 = vmatprep.subr.bf16.mxu0 %v5019
        %5283 = vmatpush1.bf16.msra.mxu0 %v5018
        %5284 = vmatprep.subr.bf16.mxu0 %v5015
        %5285 = vmatpush1.bf16.msra.mxu0 %v5014
        %5286 = vmatprep.subr.bf16.mxu0 %v5075
        %5287 = vmatpush2.bf16.msra.mxu0 %v5074
        %5288 = vmatprep.subr.bf16.mxu0 %v5071
        %5289 = vmatpush2.bf16.msra.mxu0 %v5070
        %5290 = vmatprep.subr.bf16.mxu0 %v5067
        %5291 = vmatpush2.bf16.msra.mxu0 %v5066
        %5292 = vmatprep.subr.bf16.mxu0 %v5063
        %5293 = vmatpush2.bf16.msra.mxu0 %v5062
        %5294 = vmatprep.subr.bf16.mxu0 %v5059
        %5295 = vmatpush2.bf16.msra.mxu0 %v5058
        %5296 = vmatprep.subr.bf16.mxu0 %v5055
        %5297 = vmatpush2.bf16.msra.mxu0 %v5054
        %5298 = vmatprep.subr.bf16.mxu0 %v5051
        %5299 = vmatpush2.bf16.msra.mxu0 %v5050
        %5300 = vmatprep.subr.bf16.mxu0 %v5047
        %5301 = vmatpush2.bf16.msra.mxu0 %v5046
        %5302 = vmatprep.mubr.bf16.mxu0 %v4587
        %5303 = vmatmul.mubr.bf16.gmra.mxu0 %v4576
        %v5304 = vpop.f32.mrf.mxu0
        %v5305 = vadd.f32 0.0, %v5304
        %v5306 = vpop.f32.mrf.mxu0
        %v5307 = vadd.f32 0.0, %v5306
        %v5308 = vpop.f32.mrf.mxu0
        %v5309 = vadd.f32 0.0, %v5308
        %v5310 = vpop.f32.mrf.mxu0
        %v5311 = vadd.f32 0.0, %v5310
        %5312 = vmatprep.mubr.bf16.mxu0 %v4615
        %5313 = vmatmul.mubr.bf16.gmra.mxu0 %v4612
        %v5314 = vpop.f32.mrf.mxu0
        %v5315 = vadd.f32 0.0, %v5314
        %v5316 = vpop.f32.mrf.mxu0
        %v5317 = vadd.f32 0.0, %v5316
        %v5318 = vpop.f32.mrf.mxu0
        %v5319 = vpop.f32.mrf.mxu0
        %5320 = vdwg.mxu0
        %5321 = vmatprep.subr.bf16.mxu0 %v5107
        %5322 = vmatpush1.bf16.msra.mxu0 %v5106
        %5323 = vmatprep.subr.bf16.mxu0 %v5103
        %5324 = vmatpush1.bf16.msra.mxu0 %v5102
        %5325 = vmatprep.subr.bf16.mxu0 %v5099
        %5326 = vmatpush1.bf16.msra.mxu0 %v5098
        %5327 = vmatprep.subr.bf16.mxu0 %v5095
        %5328 = vmatpush1.bf16.msra.mxu0 %v5094
        %5329 = vmatprep.subr.bf16.mxu0 %v5091
        %5330 = vmatpush1.bf16.msra.mxu0 %v5090
        %5331 = vmatprep.subr.bf16.mxu0 %v5087
        %5332 = vmatpush1.bf16.msra.mxu0 %v5086
        %5333 = vmatprep.subr.bf16.mxu0 %v5083
        %5334 = vmatpush1.bf16.msra.mxu0 %v5082
        %5335 = vmatprep.subr.bf16.mxu0 %v5079
        %5336 = vmatpush1.bf16.msra.mxu0 %v5078
        %5337 = vmatprep.subr.bf16.mxu0 %v5139
        %5338 = vmatpush2.bf16.msra.mxu0 %v5138
        %5339 = vmatprep.subr.bf16.mxu0 %v5135
        %5340 = vmatpush2.bf16.msra.mxu0 %v5134
        %5341 = vmatprep.subr.bf16.mxu0 %v5131
        %5342 = vmatpush2.bf16.msra.mxu0 %v5130
        %5343 = vmatprep.subr.bf16.mxu0 %v5127
        %5344 = vmatpush2.bf16.msra.mxu0 %v5126
        %5345 = vmatprep.subr.bf16.mxu0 %v5123
        %5346 = vmatpush2.bf16.msra.mxu0 %v5122
        %5347 = vmatprep.subr.bf16.mxu0 %v5119
        %5348 = vmatpush2.bf16.msra.mxu0 %v5118
        %5349 = vmatprep.subr.bf16.mxu0 %v5115
        %5350 = vmatpush2.bf16.msra.mxu0 %v5114
        %5351 = vmatprep.subr.bf16.mxu0 %v5111
        %5352 = vmatpush2.bf16.msra.mxu0 %v5110
        %5353 = vmatprep.mubr.bf16.mxu0 %v4609
        %5354 = vmatmul.mubr.bf16.gmra.mxu0 %v4598
        %v5355 = vpop.f32.mrf.mxu0
        %v5356 = vadd.f32 %v5305, %v5355
        %v5357 = vpop.f32.mrf.mxu0
        %v5358 = vadd.f32 %v5307, %v5357
        %v5359 = vpop.f32.mrf.mxu0
        %v5360 = vadd.f32 %v5309, %v5359
        %v5361 = vpop.f32.mrf.mxu0
        %v5362 = vadd.f32 %v5311, %v5361
        %5363 = vmatprep.mubr.bf16.mxu0 %v4621
        %5364 = vmatmul.mubr.bf16.gmra.mxu0 %v4618
        %v5365 = vpop.f32.mrf.mxu0
        %v5366 = vadd.f32 %v5315, %v5365
        %v5367 = vpop.f32.mrf.mxu0
        %v5368 = vadd.f32 %v5317, %v5367
        %v5369 = vpop.f32.mrf.mxu0
        %v5370 = vpop.f32.mrf.mxu0
        %5371 = vdwg.mxu0
        %5372 = vmatprep.subr.bf16.mxu0 %v5045
        %5373 = vmatpush1.bf16.msra.mxu0 %v5044
        %5374 = vmatprep.subr.bf16.mxu0 %v5041
        %5375 = vmatpush1.bf16.msra.mxu0 %v5040
        %5376 = vmatprep.subr.bf16.mxu0 %v5037
        %5377 = vmatpush1.bf16.msra.mxu0 %v5036
        %5378 = vmatprep.subr.bf16.mxu0 %v5033
        %5379 = vmatpush1.bf16.msra.mxu0 %v5032
        %5380 = vmatprep.subr.bf16.mxu0 %v5029
        %5381 = vmatpush1.bf16.msra.mxu0 %v5028
        %5382 = vmatprep.subr.bf16.mxu0 %v5025
        %5383 = vmatpush1.bf16.msra.mxu0 %v5024
        %5384 = vmatprep.subr.bf16.mxu0 %v5021
        %5385 = vmatpush1.bf16.msra.mxu0 %v5020
        %5386 = vmatprep.subr.bf16.mxu0 %v5017
        %5387 = vmatpush1.bf16.msra.mxu0 %v5016
        %5388 = vmatprep.subr.bf16.mxu0 %v5077
        %5389 = vmatpush2.bf16.msra.mxu0 %v5076
        %5390 = vmatprep.subr.bf16.mxu0 %v5073
        %5391 = vmatpush2.bf16.msra.mxu0 %v5072
        %5392 = vmatprep.subr.bf16.mxu0 %v5069
        %5393 = vmatpush2.bf16.msra.mxu0 %v5068
        %5394 = vmatprep.subr.bf16.mxu0 %v5065
        %5395 = vmatpush2.bf16.msra.mxu0 %v5064
        %5396 = vmatprep.subr.bf16.mxu0 %v5061
        %5397 = vmatpush2.bf16.msra.mxu0 %v5060
        %5398 = vmatprep.subr.bf16.mxu0 %v5057
        %5399 = vmatpush2.bf16.msra.mxu0 %v5056
        %5400 = vmatprep.subr.bf16.mxu0 %v5053
        %5401 = vmatpush2.bf16.msra.mxu0 %v5052
        %5402 = vmatprep.subr.bf16.mxu0 %v5049
        %5403 = vmatpush2.bf16.msra.mxu0 %v5048
        %5404 = vmatprep.mubr.bf16.mxu0 %v4587
        %5405 = vmatmul.mubr.bf16.gmra.mxu0 %v4576
        %v5406 = vpop.f32.mrf.mxu0
        %v5407 = vadd.f32 0.0, %v5406
        %v5408 = vpop.f32.mrf.mxu0
        %v5409 = vadd.f32 0.0, %v5408
        %v5410 = vpop.f32.mrf.mxu0
        %v5411 = vadd.f32 0.0, %v5410
        %v5412 = vpop.f32.mrf.mxu0
        %v5413 = vadd.f32 0.0, %v5412
        %5414 = vmatprep.mubr.bf16.mxu0 %v4615
        %5415 = vmatmul.mubr.bf16.gmra.mxu0 %v4612
        %v5416 = vpop.f32.mrf.mxu0
        %v5417 = vadd.f32 0.0, %v5416
        %v5418 = vpop.f32.mrf.mxu0
        %v5419 = vadd.f32 0.0, %v5418
        %v5420 = vpop.f32.mrf.mxu0
        %v5421 = vpop.f32.mrf.mxu0
        %5422 = vdwg.mxu0
        %5423 = vmatprep.subr.bf16.mxu0 %v5109
        %5424 = vmatpush1.bf16.msra.mxu0 %v5108
        %5425 = vmatprep.subr.bf16.mxu0 %v5105
        %5426 = vmatpush1.bf16.msra.mxu0 %v5104
        %5427 = vmatprep.subr.bf16.mxu0 %v5101
        %5428 = vmatpush1.bf16.msra.mxu0 %v5100
        %5429 = vmatprep.subr.bf16.mxu0 %v5097
        %5430 = vmatpush1.bf16.msra.mxu0 %v5096
        %5431 = vmatprep.subr.bf16.mxu0 %v5093
        %5432 = vmatpush1.bf16.msra.mxu0 %v5092
        %5433 = vmatprep.subr.bf16.mxu0 %v5089
        %5434 = vmatpush1.bf16.msra.mxu0 %v5088
        %5435 = vmatprep.subr.bf16.mxu0 %v5085
        %5436 = vmatpush1.bf16.msra.mxu0 %v5084
        %5437 = vmatprep.subr.bf16.mxu0 %v5081
        %5438 = vmatpush1.bf16.msra.mxu0 %v5080
        %5439 = vmatprep.subr.bf16.mxu0 %v5141
        %5440 = vmatpush2.bf16.msra.mxu0 %v5140
        %5441 = vmatprep.subr.bf16.mxu0 %v5137
        %5442 = vmatpush2.bf16.msra.mxu0 %v5136
        %5443 = vmatprep.subr.bf16.mxu0 %v5133
        %5444 = vmatpush2.bf16.msra.mxu0 %v5132
        %5445 = vmatprep.subr.bf16.mxu0 %v5129
        %5446 = vmatpush2.bf16.msra.mxu0 %v5128
        %5447 = vmatprep.subr.bf16.mxu0 %v5125
        %5448 = vmatpush2.bf16.msra.mxu0 %v5124
        %5449 = vmatprep.subr.bf16.mxu0 %v5121
        %5450 = vmatpush2.bf16.msra.mxu0 %v5120
        %5451 = vmatprep.subr.bf16.mxu0 %v5117
        %5452 = vmatpush2.bf16.msra.mxu0 %v5116
        %5453 = vmatprep.subr.bf16.mxu0 %v5113
        %5454 = vmatpush2.bf16.msra.mxu0 %v5112
        %5455 = vmatprep.mubr.bf16.mxu0 %v4609
        %5456 = vmatmul.mubr.bf16.gmra.mxu0 %v4598
        %v5457 = vpop.f32.mrf.mxu0
        %v5458 = vadd.f32 %v5407, %v5457
        %v5459 = vpop.f32.mrf.mxu0
        %v5460 = vadd.f32 %v5409, %v5459
        %v5461 = vpop.f32.mrf.mxu0
        %v5462 = vadd.f32 %v5411, %v5461
        %v5463 = vpop.f32.mrf.mxu0
        %v5464 = vadd.f32 %v5413, %v5463
        %5465 = vmatprep.mubr.bf16.mxu0 %v4621
        %5466 = vmatmul.mubr.bf16.gmra.mxu0 %v4618
        %v5467 = vpop.f32.mrf.mxu0
        %v5468 = vadd.f32 %v5417, %v5467
        %v5469 = vpop.f32.mrf.mxu0
        %v5470 = vadd.f32 %v5419, %v5469
        %v5471 = vpop.f32.mrf.mxu0
        %v5472 = vpop.f32.mrf.mxu0
        %5473 = vdwg.mxu0
        %v5474 = vadd.f32 %v4425, %v5356
        %v5475 = vadd.f32 %v4426, %v5358
        %v5476 = vadd.f32 %v4427, %v5458
        %v5477 = vadd.f32 %v4428, %v5460
        %v5478 = vadd.f32 %v4429, %v5360
        %v5479 = vadd.f32 %v4430, %v5362
        %v5480 = vadd.f32 %v4431, %v5462
        %v5481 = vadd.f32 %v4432, %v5464
        %v5482 = vadd.f32 %v4433, %v5366
        %v5483 = vadd.f32 %v4434, %v5368
        %v5484 = vadd.f32 %v4435, %v5468
        %v5485 = vadd.f32 %v4436, %v5470
        %s5486 = scalar_lea.vmem [#allocation2], 5120
        %v5487 = vld [vmem:[%s5486] sm:$0xff]
        %v5488 = vld [vmem:[%s5486 + $0x8] sm:$0xff]
        %v5489 = vld [vmem:[%s5486 + $0x10] sm:$0xff]
        %v5490 = vld [vmem:[%s5486 + $0x18] sm:$0xff]
        %v5491 = vld [vmem:[%s5486 + $0x20] sm:$0xff]
        %v5492 = vld [vmem:[%s5486 + $0x28] sm:$0xff]
        %v5493 = vld [vmem:[%s5486 + $0x30] sm:$0xff]
        %v5494 = vld [vmem:[%s5486 + $0x38] sm:$0xff]
        %v5495 = vld [vmem:[%s5486 + $0x40] sm:$0xff]
        %v5496 = vld [vmem:[%s5486 + $0x48] sm:$0xff]
        %v5497 = vld [vmem:[%s5486 + $0x50] sm:$0xff]
        %v5498 = vld [vmem:[%s5486 + $0x58] sm:$0xff]
        %v5499 = vld [vmem:[%s5486 + $0x60] sm:$0xff]
        %v5500 = vld [vmem:[%s5486 + $0x68] sm:$0xff]
        %v5501 = vld [vmem:[%s5486 + $0x70] sm:$0xff]
        %v5502 = vld [vmem:[%s5486 + $0x78] sm:$0xff]
        %v5503 = vld [vmem:[%s5486 + $0x80] sm:$0xff]
        %v5504 = vld [vmem:[%s5486 + $0x88] sm:$0xff]
        %v5505 = vld [vmem:[%s5486 + $0x90] sm:$0xff]
        %v5506 = vld [vmem:[%s5486 + $0x98] sm:$0xff]
        %v5507 = vld [vmem:[%s5486 + $0xa0] sm:$0xff]
        %v5508 = vld [vmem:[%s5486 + $0xa8] sm:$0xff]
        %v5509 = vld [vmem:[%s5486 + $0xb0] sm:$0xff]
        %v5510 = vld [vmem:[%s5486 + $0xb8] sm:$0xff]
        %v5511 = vld [vmem:[%s5486 + $0xc0] sm:$0xff]
        %v5512 = vld [vmem:[%s5486 + $0xc8] sm:$0xff]
        %v5513 = vld [vmem:[%s5486 + $0xd0] sm:$0xff]
        %v5514 = vld [vmem:[%s5486 + $0xd8] sm:$0xff]
        %v5515 = vld [vmem:[%s5486 + $0xe0] sm:$0xff]
        %v5516 = vld [vmem:[%s5486 + $0xe8] sm:$0xff]
        %v5517 = vld [vmem:[%s5486 + $0xf0] sm:$0xff]
        %v5518 = vld [vmem:[%s5486 + $0xf8] sm:$0xff]
        %v5519 = vld [vmem:[%s5486 + $0x100] sm:$0xff]
        %v5520 = vld [vmem:[%s5486 + $0x108] sm:$0xff]
        %v5521 = vld [vmem:[%s5486 + $0x110] sm:$0xff]
        %v5522 = vld [vmem:[%s5486 + $0x118] sm:$0xff]
        %v5523 = vld [vmem:[%s5486 + $0x120] sm:$0xff]
        %v5524 = vld [vmem:[%s5486 + $0x128] sm:$0xff]
        %v5525 = vld [vmem:[%s5486 + $0x130] sm:$0xff]
        %v5526 = vld [vmem:[%s5486 + $0x138] sm:$0xff]
        %v5527 = vld [vmem:[%s5486 + $0x140] sm:$0xff]
        %v5528 = vld [vmem:[%s5486 + $0x148] sm:$0xff]
        %v5529 = vld [vmem:[%s5486 + $0x150] sm:$0xff]
        %v5530 = vld [vmem:[%s5486 + $0x158] sm:$0xff]
        %v5531 = vld [vmem:[%s5486 + $0x160] sm:$0xff]
        %v5532 = vld [vmem:[%s5486 + $0x168] sm:$0xff]
        %v5533 = vld [vmem:[%s5486 + $0x170] sm:$0xff]
        %v5534 = vld [vmem:[%s5486 + $0x178] sm:$0xff]
        %v5535 = vld [vmem:[%s5486 + $0x180] sm:$0xff]
        %v5536 = vld [vmem:[%s5486 + $0x188] sm:$0xff]
        %v5537 = vld [vmem:[%s5486 + $0x190] sm:$0xff]
        %v5538 = vld [vmem:[%s5486 + $0x198] sm:$0xff]
        %v5539 = vld [vmem:[%s5486 + $0x1a0] sm:$0xff]
        %v5540 = vld [vmem:[%s5486 + $0x1a8] sm:$0xff]
        %v5541 = vld [vmem:[%s5486 + $0x1b0] sm:$0xff]
        %v5542 = vld [vmem:[%s5486 + $0x1b8] sm:$0xff]
        %v5543 = vld [vmem:[%s5486 + $0x1c0] sm:$0xff]
        %v5544 = vld [vmem:[%s5486 + $0x1c8] sm:$0xff]
        %v5545 = vld [vmem:[%s5486 + $0x1d0] sm:$0xff]
        %v5546 = vld [vmem:[%s5486 + $0x1d8] sm:$0xff]
        %v5547 = vld [vmem:[%s5486 + $0x1e0] sm:$0xff]
        %v5548 = vld [vmem:[%s5486 + $0x1e8] sm:$0xff]
        %v5549 = vld [vmem:[%s5486 + $0x1f0] sm:$0xff]
        %v5550 = vld [vmem:[%s5486 + $0x1f8] sm:$0xff]
        %v5551 = vld [vmem:[%s5486 + $0x200] sm:$0xff]
        %v5552 = vld [vmem:[%s5486 + $0x208] sm:$0xff]
        %v5553 = vld [vmem:[%s5486 + $0x210] sm:$0xff]
        %v5554 = vld [vmem:[%s5486 + $0x218] sm:$0xff]
        %v5555 = vld [vmem:[%s5486 + $0x220] sm:$0xff]
        %v5556 = vld [vmem:[%s5486 + $0x228] sm:$0xff]
        %v5557 = vld [vmem:[%s5486 + $0x230] sm:$0xff]
        %v5558 = vld [vmem:[%s5486 + $0x238] sm:$0xff]
        %v5559 = vld [vmem:[%s5486 + $0x240] sm:$0xff]
        %v5560 = vld [vmem:[%s5486 + $0x248] sm:$0xff]
        %v5561 = vld [vmem:[%s5486 + $0x250] sm:$0xff]
        %v5562 = vld [vmem:[%s5486 + $0x258] sm:$0xff]
        %v5563 = vld [vmem:[%s5486 + $0x260] sm:$0xff]
        %v5564 = vld [vmem:[%s5486 + $0x268] sm:$0xff]
        %v5565 = vld [vmem:[%s5486 + $0x270] sm:$0xff]
        %v5566 = vld [vmem:[%s5486 + $0x278] sm:$0xff]
        %v5567 = vld [vmem:[%s5486 + $0x280] sm:$0xff]
        %v5568 = vld [vmem:[%s5486 + $0x288] sm:$0xff]
        %v5569 = vld [vmem:[%s5486 + $0x290] sm:$0xff]
        %v5570 = vld [vmem:[%s5486 + $0x298] sm:$0xff]
        %v5571 = vld [vmem:[%s5486 + $0x2a0] sm:$0xff]
        %v5572 = vld [vmem:[%s5486 + $0x2a8] sm:$0xff]
        %v5573 = vld [vmem:[%s5486 + $0x2b0] sm:$0xff]
        %v5574 = vld [vmem:[%s5486 + $0x2b8] sm:$0xff]
        %v5575 = vld [vmem:[%s5486 + $0x2c0] sm:$0xff]
        %v5576 = vld [vmem:[%s5486 + $0x2c8] sm:$0xff]
        %v5577 = vld [vmem:[%s5486 + $0x2d0] sm:$0xff]
        %v5578 = vld [vmem:[%s5486 + $0x2d8] sm:$0xff]
        %v5579 = vld [vmem:[%s5486 + $0x2e0] sm:$0xff]
        %v5580 = vld [vmem:[%s5486 + $0x2e8] sm:$0xff]
        %v5581 = vld [vmem:[%s5486 + $0x2f0] sm:$0xff]
        %v5582 = vld [vmem:[%s5486 + $0x2f8] sm:$0xff]
        %v5583 = vld [vmem:[%s5486 + $0x300] sm:$0xff]
        %v5584 = vld [vmem:[%s5486 + $0x308] sm:$0xff]
        %v5585 = vld [vmem:[%s5486 + $0x310] sm:$0xff]
        %v5586 = vld [vmem:[%s5486 + $0x318] sm:$0xff]
        %v5587 = vld [vmem:[%s5486 + $0x320] sm:$0xff]
        %v5588 = vld [vmem:[%s5486 + $0x328] sm:$0xff]
        %v5589 = vld [vmem:[%s5486 + $0x330] sm:$0xff]
        %v5590 = vld [vmem:[%s5486 + $0x338] sm:$0xff]
        %v5591 = vld [vmem:[%s5486 + $0x340] sm:$0xff]
        %v5592 = vld [vmem:[%s5486 + $0x348] sm:$0xff]
        %v5593 = vld [vmem:[%s5486 + $0x350] sm:$0xff]
        %v5594 = vld [vmem:[%s5486 + $0x358] sm:$0xff]
        %v5595 = vld [vmem:[%s5486 + $0x360] sm:$0xff]
        %v5596 = vld [vmem:[%s5486 + $0x368] sm:$0xff]
        %v5597 = vld [vmem:[%s5486 + $0x370] sm:$0xff]
        %v5598 = vld [vmem:[%s5486 + $0x378] sm:$0xff]
        %v5599 = vld [vmem:[%s5486 + $0x380] sm:$0xff]
        %v5600 = vld [vmem:[%s5486 + $0x388] sm:$0xff]
        %v5601 = vld [vmem:[%s5486 + $0x390] sm:$0xff]
        %v5602 = vld [vmem:[%s5486 + $0x398] sm:$0xff]
        %v5603 = vld [vmem:[%s5486 + $0x3a0] sm:$0xff]
        %v5604 = vld [vmem:[%s5486 + $0x3a8] sm:$0xff]
        %v5605 = vld [vmem:[%s5486 + $0x3b0] sm:$0xff]
        %v5606 = vld [vmem:[%s5486 + $0x3b8] sm:$0xff]
        %v5607 = vld [vmem:[%s5486 + $0x3c0] sm:$0xff]
        %v5608 = vld [vmem:[%s5486 + $0x3c8] sm:$0xff]
        %v5609 = vld [vmem:[%s5486 + $0x3d0] sm:$0xff]
        %v5610 = vld [vmem:[%s5486 + $0x3d8] sm:$0xff]
        %v5611 = vld [vmem:[%s5486 + $0x3e0] sm:$0xff]
        %v5612 = vld [vmem:[%s5486 + $0x3e8] sm:$0xff]
        %v5613 = vld [vmem:[%s5486 + $0x3f0] sm:$0xff]
        %v5614 = vld [vmem:[%s5486 + $0x3f8] sm:$0xff]
        %v5623 = vrot.slane %v3409, 1
        %v5624 = vrot.slane %v3418, 1
        %v5625 = vsel %vm2520, %v5623, %v5624
        %v5626 = vrot.slane %v3410, 1
        %v5627 = vrot.slane %v3421, 1
        %v5628 = vsel %vm2520, %v5626, %v5627
        %v5629 = vrot.slane %v3411, 1
        %v5630 = vrot.slane %v3424, 1
        %v5631 = vsel %vm2520, %v5629, %v5630
        %v5632 = vrot.slane %v3412, 1
        %v5633 = vrot.slane %v3427, 1
        %v5634 = vsel %vm2520, %v5632, %v5633
        %v5771 = vunpack.c.l.b16 %v5487
        %v5772 = vunpack.c.h.b16 %v5487
        %v5773 = vunpack.c.l.b16 %v5488
        %v5774 = vunpack.c.h.b16 %v5488
        %v5775 = vunpack.c.l.b16 %v5489
        %v5776 = vunpack.c.h.b16 %v5489
        %v5777 = vunpack.c.l.b16 %v5490
        %v5778 = vunpack.c.h.b16 %v5490
        %v5779 = vunpack.c.l.b16 %v5491
        %v5780 = vunpack.c.h.b16 %v5491
        %v5781 = vunpack.c.l.b16 %v5492
        %v5782 = vunpack.c.h.b16 %v5492
        %v5783 = vunpack.c.l.b16 %v5493
        %v5784 = vunpack.c.h.b16 %v5493
        %v5785 = vunpack.c.l.b16 %v5494
        %v5786 = vunpack.c.h.b16 %v5494
        %v5787 = vunpack.c.l.b16 %v5495
        %v5788 = vunpack.c.h.b16 %v5495
        %v5789 = vunpack.c.l.b16 %v5496
        %v5790 = vunpack.c.h.b16 %v5496
        %v5791 = vunpack.c.l.b16 %v5497
        %v5792 = vunpack.c.h.b16 %v5497
        %v5793 = vunpack.c.l.b16 %v5498
        %v5794 = vunpack.c.h.b16 %v5498
        %v5795 = vunpack.c.l.b16 %v5499
        %v5796 = vunpack.c.h.b16 %v5499
        %v5797 = vunpack.c.l.b16 %v5500
        %v5798 = vunpack.c.h.b16 %v5500
        %v5799 = vunpack.c.l.b16 %v5501
        %v5800 = vunpack.c.h.b16 %v5501
        %v5801 = vunpack.c.l.b16 %v5502
        %v5802 = vunpack.c.h.b16 %v5502
        %v5803 = vunpack.c.l.b16 %v5503
        %v5804 = vunpack.c.h.b16 %v5503
        %v5805 = vunpack.c.l.b16 %v5504
        %v5806 = vunpack.c.h.b16 %v5504
        %v5807 = vunpack.c.l.b16 %v5505
        %v5808 = vunpack.c.h.b16 %v5505
        %v5809 = vunpack.c.l.b16 %v5506
        %v5810 = vunpack.c.h.b16 %v5506
        %v5811 = vunpack.c.l.b16 %v5507
        %v5812 = vunpack.c.h.b16 %v5507
        %v5813 = vunpack.c.l.b16 %v5508
        %v5814 = vunpack.c.h.b16 %v5508
        %v5815 = vunpack.c.l.b16 %v5509
        %v5816 = vunpack.c.h.b16 %v5509
        %v5817 = vunpack.c.l.b16 %v5510
        %v5818 = vunpack.c.h.b16 %v5510
        %v5819 = vunpack.c.l.b16 %v5511
        %v5820 = vunpack.c.h.b16 %v5511
        %v5821 = vunpack.c.l.b16 %v5512
        %v5822 = vunpack.c.h.b16 %v5512
        %v5823 = vunpack.c.l.b16 %v5513
        %v5824 = vunpack.c.h.b16 %v5513
        %v5825 = vunpack.c.l.b16 %v5514
        %v5826 = vunpack.c.h.b16 %v5514
        %v5827 = vunpack.c.l.b16 %v5515
        %v5828 = vunpack.c.h.b16 %v5515
        %v5829 = vunpack.c.l.b16 %v5516
        %v5830 = vunpack.c.h.b16 %v5516
        %v5831 = vunpack.c.l.b16 %v5517
        %v5832 = vunpack.c.h.b16 %v5517
        %v5833 = vunpack.c.l.b16 %v5518
        %v5834 = vunpack.c.h.b16 %v5518
        %v5835 = vunpack.c.l.b16 %v5519
        %v5836 = vunpack.c.h.b16 %v5519
        %v5837 = vunpack.c.l.b16 %v5520
        %v5838 = vunpack.c.h.b16 %v5520
        %v5839 = vunpack.c.l.b16 %v5521
        %v5840 = vunpack.c.h.b16 %v5521
        %v5841 = vunpack.c.l.b16 %v5522
        %v5842 = vunpack.c.h.b16 %v5522
        %v5843 = vunpack.c.l.b16 %v5523
        %v5844 = vunpack.c.h.b16 %v5523
        %v5845 = vunpack.c.l.b16 %v5524
        %v5846 = vunpack.c.h.b16 %v5524
        %v5847 = vunpack.c.l.b16 %v5525
        %v5848 = vunpack.c.h.b16 %v5525
        %v5849 = vunpack.c.l.b16 %v5526
        %v5850 = vunpack.c.h.b16 %v5526
        %v5851 = vunpack.c.l.b16 %v5527
        %v5852 = vunpack.c.h.b16 %v5527
        %v5853 = vunpack.c.l.b16 %v5528
        %v5854 = vunpack.c.h.b16 %v5528
        %v5855 = vunpack.c.l.b16 %v5529
        %v5856 = vunpack.c.h.b16 %v5529
        %v5857 = vunpack.c.l.b16 %v5530
        %v5858 = vunpack.c.h.b16 %v5530
        %v5859 = vunpack.c.l.b16 %v5531
        %v5860 = vunpack.c.h.b16 %v5531
        %v5861 = vunpack.c.l.b16 %v5532
        %v5862 = vunpack.c.h.b16 %v5532
        %v5863 = vunpack.c.l.b16 %v5533
        %v5864 = vunpack.c.h.b16 %v5533
        %v5865 = vunpack.c.l.b16 %v5534
        %v5866 = vunpack.c.h.b16 %v5534
        %v5867 = vunpack.c.l.b16 %v5535
        %v5868 = vunpack.c.h.b16 %v5535
        %v5869 = vunpack.c.l.b16 %v5536
        %v5870 = vunpack.c.h.b16 %v5536
        %v5871 = vunpack.c.l.b16 %v5537
        %v5872 = vunpack.c.h.b16 %v5537
        %v5873 = vunpack.c.l.b16 %v5538
        %v5874 = vunpack.c.h.b16 %v5538
        %v5875 = vunpack.c.l.b16 %v5539
        %v5876 = vunpack.c.h.b16 %v5539
        %v5877 = vunpack.c.l.b16 %v5540
        %v5878 = vunpack.c.h.b16 %v5540
        %v5879 = vunpack.c.l.b16 %v5541
        %v5880 = vunpack.c.h.b16 %v5541
        %v5881 = vunpack.c.l.b16 %v5542
        %v5882 = vunpack.c.h.b16 %v5542
        %v5883 = vunpack.c.l.b16 %v5543
        %v5884 = vunpack.c.h.b16 %v5543
        %v5885 = vunpack.c.l.b16 %v5544
        %v5886 = vunpack.c.h.b16 %v5544
        %v5887 = vunpack.c.l.b16 %v5545
        %v5888 = vunpack.c.h.b16 %v5545
        %v5889 = vunpack.c.l.b16 %v5546
        %v5890 = vunpack.c.h.b16 %v5546
        %v5891 = vunpack.c.l.b16 %v5547
        %v5892 = vunpack.c.h.b16 %v5547
        %v5893 = vunpack.c.l.b16 %v5548
        %v5894 = vunpack.c.h.b16 %v5548
        %v5895 = vunpack.c.l.b16 %v5549
        %v5896 = vunpack.c.h.b16 %v5549
        %v5897 = vunpack.c.l.b16 %v5550
        %v5898 = vunpack.c.h.b16 %v5550
        %v5899 = vunpack.c.l.b16 %v5551
        %v5900 = vunpack.c.h.b16 %v5551
        %v5901 = vunpack.c.l.b16 %v5552
        %v5902 = vunpack.c.h.b16 %v5552
        %v5903 = vunpack.c.l.b16 %v5553
        %v5904 = vunpack.c.h.b16 %v5553
        %v5905 = vunpack.c.l.b16 %v5554
        %v5906 = vunpack.c.h.b16 %v5554
        %v5907 = vunpack.c.l.b16 %v5555
        %v5908 = vunpack.c.h.b16 %v5555
        %v5909 = vunpack.c.l.b16 %v5556
        %v5910 = vunpack.c.h.b16 %v5556
        %v5911 = vunpack.c.l.b16 %v5557
        %v5912 = vunpack.c.h.b16 %v5557
        %v5913 = vunpack.c.l.b16 %v5558
        %v5914 = vunpack.c.h.b16 %v5558
        %v5915 = vunpack.c.l.b16 %v5559
        %v5916 = vunpack.c.h.b16 %v5559
        %v5917 = vunpack.c.l.b16 %v5560
        %v5918 = vunpack.c.h.b16 %v5560
        %v5919 = vunpack.c.l.b16 %v5561
        %v5920 = vunpack.c.h.b16 %v5561
        %v5921 = vunpack.c.l.b16 %v5562
        %v5922 = vunpack.c.h.b16 %v5562
        %v5923 = vunpack.c.l.b16 %v5563
        %v5924 = vunpack.c.h.b16 %v5563
        %v5925 = vunpack.c.l.b16 %v5564
        %v5926 = vunpack.c.h.b16 %v5564
        %v5927 = vunpack.c.l.b16 %v5565
        %v5928 = vunpack.c.h.b16 %v5565
        %v5929 = vunpack.c.l.b16 %v5566
        %v5930 = vunpack.c.h.b16 %v5566
        %v5931 = vunpack.c.l.b16 %v5567
        %v5932 = vunpack.c.h.b16 %v5567
        %v5933 = vunpack.c.l.b16 %v5568
        %v5934 = vunpack.c.h.b16 %v5568
        %v5935 = vunpack.c.l.b16 %v5569
        %v5936 = vunpack.c.h.b16 %v5569
        %v5937 = vunpack.c.l.b16 %v5570
        %v5938 = vunpack.c.h.b16 %v5570
        %v5939 = vunpack.c.l.b16 %v5571
        %v5940 = vunpack.c.h.b16 %v5571
        %v5941 = vunpack.c.l.b16 %v5572
        %v5942 = vunpack.c.h.b16 %v5572
        %v5943 = vunpack.c.l.b16 %v5573
        %v5944 = vunpack.c.h.b16 %v5573
        %v5945 = vunpack.c.l.b16 %v5574
        %v5946 = vunpack.c.h.b16 %v5574
        %v5947 = vunpack.c.l.b16 %v5575
        %v5948 = vunpack.c.h.b16 %v5575
        %v5949 = vunpack.c.l.b16 %v5576
        %v5950 = vunpack.c.h.b16 %v5576
        %v5951 = vunpack.c.l.b16 %v5577
        %v5952 = vunpack.c.h.b16 %v5577
        %v5953 = vunpack.c.l.b16 %v5578
        %v5954 = vunpack.c.h.b16 %v5578
        %v5955 = vunpack.c.l.b16 %v5579
        %v5956 = vunpack.c.h.b16 %v5579
        %v5957 = vunpack.c.l.b16 %v5580
        %v5958 = vunpack.c.h.b16 %v5580
        %v5959 = vunpack.c.l.b16 %v5581
        %v5960 = vunpack.c.h.b16 %v5581
        %v5961 = vunpack.c.l.b16 %v5582
        %v5962 = vunpack.c.h.b16 %v5582
        %v5963 = vunpack.c.l.b16 %v5583
        %v5964 = vunpack.c.h.b16 %v5583
        %v5965 = vunpack.c.l.b16 %v5584
        %v5966 = vunpack.c.h.b16 %v5584
        %v5967 = vunpack.c.l.b16 %v5585
        %v5968 = vunpack.c.h.b16 %v5585
        %v5969 = vunpack.c.l.b16 %v5586
        %v5970 = vunpack.c.h.b16 %v5586
        %v5971 = vunpack.c.l.b16 %v5587
        %v5972 = vunpack.c.h.b16 %v5587
        %v5973 = vunpack.c.l.b16 %v5588
        %v5974 = vunpack.c.h.b16 %v5588
        %v5975 = vunpack.c.l.b16 %v5589
        %v5976 = vunpack.c.h.b16 %v5589
        %v5977 = vunpack.c.l.b16 %v5590
        %v5978 = vunpack.c.h.b16 %v5590
        %v5979 = vunpack.c.l.b16 %v5591
        %v5980 = vunpack.c.h.b16 %v5591
        %v5981 = vunpack.c.l.b16 %v5592
        %v5982 = vunpack.c.h.b16 %v5592
        %v5983 = vunpack.c.l.b16 %v5593
        %v5984 = vunpack.c.h.b16 %v5593
        %v5985 = vunpack.c.l.b16 %v5594
        %v5986 = vunpack.c.h.b16 %v5594
        %v5987 = vunpack.c.l.b16 %v5595
        %v5988 = vunpack.c.h.b16 %v5595
        %v5989 = vunpack.c.l.b16 %v5596
        %v5990 = vunpack.c.h.b16 %v5596
        %v5991 = vunpack.c.l.b16 %v5597
        %v5992 = vunpack.c.h.b16 %v5597
        %v5993 = vunpack.c.l.b16 %v5598
        %v5994 = vunpack.c.h.b16 %v5598
        %v5995 = vunpack.c.l.b16 %v5599
        %v5996 = vunpack.c.h.b16 %v5599
        %v5997 = vunpack.c.l.b16 %v5600
        %v5998 = vunpack.c.h.b16 %v5600
        %v5999 = vunpack.c.l.b16 %v5601
        %v6000 = vunpack.c.h.b16 %v5601
        %v6001 = vunpack.c.l.b16 %v5602
        %v6002 = vunpack.c.h.b16 %v5602
        %v6003 = vunpack.c.l.b16 %v5603
        %v6004 = vunpack.c.h.b16 %v5603
        %v6005 = vunpack.c.l.b16 %v5604
        %v6006 = vunpack.c.h.b16 %v5604
        %v6007 = vunpack.c.l.b16 %v5605
        %v6008 = vunpack.c.h.b16 %v5605
        %v6009 = vunpack.c.l.b16 %v5606
        %v6010 = vunpack.c.h.b16 %v5606
        %v6011 = vunpack.c.l.b16 %v5607
        %v6012 = vunpack.c.h.b16 %v5607
        %v6013 = vunpack.c.l.b16 %v5608
        %v6014 = vunpack.c.h.b16 %v5608
        %v6015 = vunpack.c.l.b16 %v5609
        %v6016 = vunpack.c.h.b16 %v5609
        %v6017 = vunpack.c.l.b16 %v5610
        %v6018 = vunpack.c.h.b16 %v5610
        %v6019 = vunpack.c.l.b16 %v5611
        %v6020 = vunpack.c.h.b16 %v5611
        %v6021 = vunpack.c.l.b16 %v5612
        %v6022 = vunpack.c.h.b16 %v5612
        %v6023 = vunpack.c.l.b16 %v5613
        %v6024 = vunpack.c.h.b16 %v5613
        %v6025 = vunpack.c.l.b16 %v5614
        %v6026 = vunpack.c.h.b16 %v5614
        %v6027 = vpack.c.b16 %v5775, %v5771
        %v6028 = vpack.c.b16 %v5776, %v5772
        %v6029 = vpack.c.b16 %v5777, %v5773
        %v6030 = vpack.c.b16 %v5778, %v5774
        %v6031 = vpack.c.b16 %v5783, %v5779
        %v6032 = vpack.c.b16 %v5784, %v5780
        %v6033 = vpack.c.b16 %v5785, %v5781
        %v6034 = vpack.c.b16 %v5786, %v5782
        %v6035 = vpack.c.b16 %v5791, %v5787
        %v6036 = vpack.c.b16 %v5792, %v5788
        %v6037 = vpack.c.b16 %v5793, %v5789
        %v6038 = vpack.c.b16 %v5794, %v5790
        %v6039 = vpack.c.b16 %v5799, %v5795
        %v6040 = vpack.c.b16 %v5800, %v5796
        %v6041 = vpack.c.b16 %v5801, %v5797
        %v6042 = vpack.c.b16 %v5802, %v5798
        %v6043 = vpack.c.b16 %v5807, %v5803
        %v6044 = vpack.c.b16 %v5808, %v5804
        %v6045 = vpack.c.b16 %v5809, %v5805
        %v6046 = vpack.c.b16 %v5810, %v5806
        %v6047 = vpack.c.b16 %v5815, %v5811
        %v6048 = vpack.c.b16 %v5816, %v5812
        %v6049 = vpack.c.b16 %v5817, %v5813
        %v6050 = vpack.c.b16 %v5818, %v5814
        %v6051 = vpack.c.b16 %v5823, %v5819
        %v6052 = vpack.c.b16 %v5824, %v5820
        %v6053 = vpack.c.b16 %v5825, %v5821
        %v6054 = vpack.c.b16 %v5826, %v5822
        %v6055 = vpack.c.b16 %v5831, %v5827
        %v6056 = vpack.c.b16 %v5832, %v5828
        %v6057 = vpack.c.b16 %v5833, %v5829
        %v6058 = vpack.c.b16 %v5834, %v5830
        %v6059 = vpack.c.b16 %v5839, %v5835
        %v6060 = vpack.c.b16 %v5840, %v5836
        %v6061 = vpack.c.b16 %v5841, %v5837
        %v6062 = vpack.c.b16 %v5842, %v5838
        %v6063 = vpack.c.b16 %v5847, %v5843
        %v6064 = vpack.c.b16 %v5848, %v5844
        %v6065 = vpack.c.b16 %v5849, %v5845
        %v6066 = vpack.c.b16 %v5850, %v5846
        %v6067 = vpack.c.b16 %v5855, %v5851
        %v6068 = vpack.c.b16 %v5856, %v5852
        %v6069 = vpack.c.b16 %v5857, %v5853
        %v6070 = vpack.c.b16 %v5858, %v5854
        %v6071 = vpack.c.b16 %v5863, %v5859
        %v6072 = vpack.c.b16 %v5864, %v5860
        %v6073 = vpack.c.b16 %v5865, %v5861
        %v6074 = vpack.c.b16 %v5866, %v5862
        %v6075 = vpack.c.b16 %v5871, %v5867
        %v6076 = vpack.c.b16 %v5872, %v5868
        %v6077 = vpack.c.b16 %v5873, %v5869
        %v6078 = vpack.c.b16 %v5874, %v5870
        %v6079 = vpack.c.b16 %v5879, %v5875
        %v6080 = vpack.c.b16 %v5880, %v5876
        %v6081 = vpack.c.b16 %v5881, %v5877
        %v6082 = vpack.c.b16 %v5882, %v5878
        %v6083 = vpack.c.b16 %v5887, %v5883
        %v6084 = vpack.c.b16 %v5888, %v5884
        %v6085 = vpack.c.b16 %v5889, %v5885
        %v6086 = vpack.c.b16 %v5890, %v5886
        %v6087 = vpack.c.b16 %v5895, %v5891
        %v6088 = vpack.c.b16 %v5896, %v5892
        %v6089 = vpack.c.b16 %v5897, %v5893
        %v6090 = vpack.c.b16 %v5898, %v5894
        %v6091 = vpack.c.b16 %v5903, %v5899
        %v6092 = vpack.c.b16 %v5904, %v5900
        %v6093 = vpack.c.b16 %v5905, %v5901
        %v6094 = vpack.c.b16 %v5906, %v5902
        %v6095 = vpack.c.b16 %v5911, %v5907
        %v6096 = vpack.c.b16 %v5912, %v5908
        %v6097 = vpack.c.b16 %v5913, %v5909
        %v6098 = vpack.c.b16 %v5914, %v5910
        %v6099 = vpack.c.b16 %v5919, %v5915
        %v6100 = vpack.c.b16 %v5920, %v5916
        %v6101 = vpack.c.b16 %v5921, %v5917
        %v6102 = vpack.c.b16 %v5922, %v5918
        %v6103 = vpack.c.b16 %v5927, %v5923
        %v6104 = vpack.c.b16 %v5928, %v5924
        %v6105 = vpack.c.b16 %v5929, %v5925
        %v6106 = vpack.c.b16 %v5930, %v5926
        %v6107 = vpack.c.b16 %v5935, %v5931
        %v6108 = vpack.c.b16 %v5936, %v5932
        %v6109 = vpack.c.b16 %v5937, %v5933
        %v6110 = vpack.c.b16 %v5938, %v5934
        %v6111 = vpack.c.b16 %v5943, %v5939
        %v6112 = vpack.c.b16 %v5944, %v5940
        %v6113 = vpack.c.b16 %v5945, %v5941
        %v6114 = vpack.c.b16 %v5946, %v5942
        %v6115 = vpack.c.b16 %v5951, %v5947
        %v6116 = vpack.c.b16 %v5952, %v5948
        %v6117 = vpack.c.b16 %v5953, %v5949
        %v6118 = vpack.c.b16 %v5954, %v5950
        %v6119 = vpack.c.b16 %v5959, %v5955
        %v6120 = vpack.c.b16 %v5960, %v5956
        %v6121 = vpack.c.b16 %v5961, %v5957
        %v6122 = vpack.c.b16 %v5962, %v5958
        %v6123 = vpack.c.b16 %v5967, %v5963
        %v6124 = vpack.c.b16 %v5968, %v5964
        %v6125 = vpack.c.b16 %v5969, %v5965
        %v6126 = vpack.c.b16 %v5970, %v5966
        %v6127 = vpack.c.b16 %v5975, %v5971
        %v6128 = vpack.c.b16 %v5976, %v5972
        %v6129 = vpack.c.b16 %v5977, %v5973
        %v6130 = vpack.c.b16 %v5978, %v5974
        %v6131 = vpack.c.b16 %v5983, %v5979
        %v6132 = vpack.c.b16 %v5984, %v5980
        %v6133 = vpack.c.b16 %v5985, %v5981
        %v6134 = vpack.c.b16 %v5986, %v5982
        %v6135 = vpack.c.b16 %v5991, %v5987
        %v6136 = vpack.c.b16 %v5992, %v5988
        %v6137 = vpack.c.b16 %v5993, %v5989
        %v6138 = vpack.c.b16 %v5994, %v5990
        %v6139 = vpack.c.b16 %v5999, %v5995
        %v6140 = vpack.c.b16 %v6000, %v5996
        %v6141 = vpack.c.b16 %v6001, %v5997
        %v6142 = vpack.c.b16 %v6002, %v5998
        %v6143 = vpack.c.b16 %v6007, %v6003
        %v6144 = vpack.c.b16 %v6008, %v6004
        %v6145 = vpack.c.b16 %v6009, %v6005
        %v6146 = vpack.c.b16 %v6010, %v6006
        %v6147 = vpack.c.b16 %v6015, %v6011
        %v6148 = vpack.c.b16 %v6016, %v6012
        %v6149 = vpack.c.b16 %v6017, %v6013
        %v6150 = vpack.c.b16 %v6018, %v6014
        %v6151 = vpack.c.b16 %v6023, %v6019
        %v6152 = vpack.c.b16 %v6024, %v6020
        %v6153 = vpack.c.b16 %v6025, %v6021
        %v6154 = vpack.c.b16 %v6026, %v6022
        %6283 = vmatprep.subr.bf16.mxu0 %v6056
        %6284 = vmatpush1.bf16.msra.mxu0 %v6055
        %6285 = vmatprep.subr.bf16.mxu0 %v6052
        %6286 = vmatpush1.bf16.msra.mxu0 %v6051
        %6287 = vmatprep.subr.bf16.mxu0 %v6048
        %6288 = vmatpush1.bf16.msra.mxu0 %v6047
        %6289 = vmatprep.subr.bf16.mxu0 %v6044
        %6290 = vmatpush1.bf16.msra.mxu0 %v6043
        %6291 = vmatprep.subr.bf16.mxu0 %v6040
        %6292 = vmatpush1.bf16.msra.mxu0 %v6039
        %6293 = vmatprep.subr.bf16.mxu0 %v6036
        %6294 = vmatpush1.bf16.msra.mxu0 %v6035
        %6295 = vmatprep.subr.bf16.mxu0 %v6032
        %6296 = vmatpush1.bf16.msra.mxu0 %v6031
        %6297 = vmatprep.subr.bf16.mxu0 %v6028
        %6298 = vmatpush1.bf16.msra.mxu0 %v6027
        %6299 = vmatprep.subr.bf16.mxu0 %v6088
        %6300 = vmatpush2.bf16.msra.mxu0 %v6087
        %6301 = vmatprep.subr.bf16.mxu0 %v6084
        %6302 = vmatpush2.bf16.msra.mxu0 %v6083
        %6303 = vmatprep.subr.bf16.mxu0 %v6080
        %6304 = vmatpush2.bf16.msra.mxu0 %v6079
        %6305 = vmatprep.subr.bf16.mxu0 %v6076
        %6306 = vmatpush2.bf16.msra.mxu0 %v6075
        %6307 = vmatprep.subr.bf16.mxu0 %v6072
        %6308 = vmatpush2.bf16.msra.mxu0 %v6071
        %6309 = vmatprep.subr.bf16.mxu0 %v6068
        %6310 = vmatpush2.bf16.msra.mxu0 %v6067
        %6311 = vmatprep.subr.bf16.mxu0 %v6064
        %6312 = vmatpush2.bf16.msra.mxu0 %v6063
        %6313 = vmatprep.subr.bf16.mxu0 %v6060
        %6314 = vmatpush2.bf16.msra.mxu0 %v6059
        %6315 = vmatprep.mubr.bf16.mxu0 %v5628
        %6316 = vmatmul.mubr.bf16.gmra.mxu0 %v5625
        %v6317 = vpop.f32.mrf.mxu0
        %v6318 = vadd.f32 0.0, %v6317
        %v6319 = vpop.f32.mrf.mxu0
        %v6320 = vadd.f32 0.0, %v6319
        %v6321 = vpop.f32.mrf.mxu0
        %v6322 = vadd.f32 0.0, %v6321
        %v6323 = vpop.f32.mrf.mxu0
        %v6324 = vadd.f32 0.0, %v6323
        %6325 = vmatprep.mubr.bf16.mxu0 %v5627
        %6326 = vmatmul.mubr.bf16.gmra.mxu0 %v5624
        %v6327 = vpop.f32.mrf.mxu0
        %v6328 = vadd.f32 0.0, %v6327
        %v6329 = vpop.f32.mrf.mxu0
        %v6330 = vadd.f32 0.0, %v6329
        %v6331 = vpop.f32.mrf.mxu0
        %v6332 = vpop.f32.mrf.mxu0
        %6333 = vdwg.mxu0
        %6334 = vmatprep.subr.bf16.mxu0 %v6120
        %6335 = vmatpush1.bf16.msra.mxu0 %v6119
        %6336 = vmatprep.subr.bf16.mxu0 %v6116
        %6337 = vmatpush1.bf16.msra.mxu0 %v6115
        %6338 = vmatprep.subr.bf16.mxu0 %v6112
        %6339 = vmatpush1.bf16.msra.mxu0 %v6111
        %6340 = vmatprep.subr.bf16.mxu0 %v6108
        %6341 = vmatpush1.bf16.msra.mxu0 %v6107
        %6342 = vmatprep.subr.bf16.mxu0 %v6104
        %6343 = vmatpush1.bf16.msra.mxu0 %v6103
        %6344 = vmatprep.subr.bf16.mxu0 %v6100
        %6345 = vmatpush1.bf16.msra.mxu0 %v6099
        %6346 = vmatprep.subr.bf16.mxu0 %v6096
        %6347 = vmatpush1.bf16.msra.mxu0 %v6095
        %6348 = vmatprep.subr.bf16.mxu0 %v6092
        %6349 = vmatpush1.bf16.msra.mxu0 %v6091
        %6350 = vmatprep.subr.bf16.mxu0 %v6152
        %6351 = vmatpush2.bf16.msra.mxu0 %v6151
        %6352 = vmatprep.subr.bf16.mxu0 %v6148
        %6353 = vmatpush2.bf16.msra.mxu0 %v6147
        %6354 = vmatprep.subr.bf16.mxu0 %v6144
        %6355 = vmatpush2.bf16.msra.mxu0 %v6143
        %6356 = vmatprep.subr.bf16.mxu0 %v6140
        %6357 = vmatpush2.bf16.msra.mxu0 %v6139
        %6358 = vmatprep.subr.bf16.mxu0 %v6136
        %6359 = vmatpush2.bf16.msra.mxu0 %v6135
        %6360 = vmatprep.subr.bf16.mxu0 %v6132
        %6361 = vmatpush2.bf16.msra.mxu0 %v6131
        %6362 = vmatprep.subr.bf16.mxu0 %v6128
        %6363 = vmatpush2.bf16.msra.mxu0 %v6127
        %6364 = vmatprep.subr.bf16.mxu0 %v6124
        %6365 = vmatpush2.bf16.msra.mxu0 %v6123
        %6366 = vmatprep.mubr.bf16.mxu0 %v5634
        %6367 = vmatmul.mubr.bf16.gmra.mxu0 %v5631
        %v6368 = vpop.f32.mrf.mxu0
        %v6369 = vadd.f32 %v6318, %v6368
        %v6370 = vpop.f32.mrf.mxu0
        %v6371 = vadd.f32 %v6320, %v6370
        %v6372 = vpop.f32.mrf.mxu0
        %v6373 = vadd.f32 %v6322, %v6372
        %v6374 = vpop.f32.mrf.mxu0
        %v6375 = vadd.f32 %v6324, %v6374
        %6376 = vmatprep.mubr.bf16.mxu0 %v5633
        %6377 = vmatmul.mubr.bf16.gmra.mxu0 %v5630
        %v6378 = vpop.f32.mrf.mxu0
        %v6379 = vadd.f32 %v6328, %v6378
        %v6380 = vpop.f32.mrf.mxu0
        %v6381 = vadd.f32 %v6330, %v6380
        %v6382 = vpop.f32.mrf.mxu0
        %v6383 = vpop.f32.mrf.mxu0
        %6384 = vdwg.mxu0
        %6385 = vmatprep.subr.bf16.mxu0 %v6058
        %6386 = vmatpush1.bf16.msra.mxu0 %v6057
        %6387 = vmatprep.subr.bf16.mxu0 %v6054
        %6388 = vmatpush1.bf16.msra.mxu0 %v6053
        %6389 = vmatprep.subr.bf16.mxu0 %v6050
        %6390 = vmatpush1.bf16.msra.mxu0 %v6049
        %6391 = vmatprep.subr.bf16.mxu0 %v6046
        %6392 = vmatpush1.bf16.msra.mxu0 %v6045
        %6393 = vmatprep.subr.bf16.mxu0 %v6042
        %6394 = vmatpush1.bf16.msra.mxu0 %v6041
        %6395 = vmatprep.subr.bf16.mxu0 %v6038
        %6396 = vmatpush1.bf16.msra.mxu0 %v6037
        %6397 = vmatprep.subr.bf16.mxu0 %v6034
        %6398 = vmatpush1.bf16.msra.mxu0 %v6033
        %6399 = vmatprep.subr.bf16.mxu0 %v6030
        %6400 = vmatpush1.bf16.msra.mxu0 %v6029
        %6401 = vmatprep.subr.bf16.mxu0 %v6090
        %6402 = vmatpush2.bf16.msra.mxu0 %v6089
        %6403 = vmatprep.subr.bf16.mxu0 %v6086
        %6404 = vmatpush2.bf16.msra.mxu0 %v6085
        %6405 = vmatprep.subr.bf16.mxu0 %v6082
        %6406 = vmatpush2.bf16.msra.mxu0 %v6081
        %6407 = vmatprep.subr.bf16.mxu0 %v6078
        %6408 = vmatpush2.bf16.msra.mxu0 %v6077
        %6409 = vmatprep.subr.bf16.mxu0 %v6074
        %6410 = vmatpush2.bf16.msra.mxu0 %v6073
        %6411 = vmatprep.subr.bf16.mxu0 %v6070
        %6412 = vmatpush2.bf16.msra.mxu0 %v6069
        %6413 = vmatprep.subr.bf16.mxu0 %v6066
        %6414 = vmatpush2.bf16.msra.mxu0 %v6065
        %6415 = vmatprep.subr.bf16.mxu0 %v6062
        %6416 = vmatpush2.bf16.msra.mxu0 %v6061
        %6417 = vmatprep.mubr.bf16.mxu0 %v5628
        %6418 = vmatmul.mubr.bf16.gmra.mxu0 %v5625
        %v6419 = vpop.f32.mrf.mxu0
        %v6420 = vadd.f32 0.0, %v6419
        %v6421 = vpop.f32.mrf.mxu0
        %v6422 = vadd.f32 0.0, %v6421
        %v6423 = vpop.f32.mrf.mxu0
        %v6424 = vadd.f32 0.0, %v6423
        %v6425 = vpop.f32.mrf.mxu0
        %v6426 = vadd.f32 0.0, %v6425
        %6427 = vmatprep.mubr.bf16.mxu0 %v5627
        %6428 = vmatmul.mubr.bf16.gmra.mxu0 %v5624
        %v6429 = vpop.f32.mrf.mxu0
        %v6430 = vadd.f32 0.0, %v6429
        %v6431 = vpop.f32.mrf.mxu0
        %v6432 = vadd.f32 0.0, %v6431
        %v6433 = vpop.f32.mrf.mxu0
        %v6434 = vpop.f32.mrf.mxu0
        %6435 = vdwg.mxu0
        %6436 = vmatprep.subr.bf16.mxu0 %v6122
        %6437 = vmatpush1.bf16.msra.mxu0 %v6121
        %6438 = vmatprep.subr.bf16.mxu0 %v6118
        %6439 = vmatpush1.bf16.msra.mxu0 %v6117
        %6440 = vmatprep.subr.bf16.mxu0 %v6114
        %6441 = vmatpush1.bf16.msra.mxu0 %v6113
        %6442 = vmatprep.subr.bf16.mxu0 %v6110
        %6443 = vmatpush1.bf16.msra.mxu0 %v6109
        %6444 = vmatprep.subr.bf16.mxu0 %v6106
        %6445 = vmatpush1.bf16.msra.mxu0 %v6105
        %6446 = vmatprep.subr.bf16.mxu0 %v6102
        %6447 = vmatpush1.bf16.msra.mxu0 %v6101
        %6448 = vmatprep.subr.bf16.mxu0 %v6098
        %6449 = vmatpush1.bf16.msra.mxu0 %v6097
        %6450 = vmatprep.subr.bf16.mxu0 %v6094
        %6451 = vmatpush1.bf16.msra.mxu0 %v6093
        %6452 = vmatprep.subr.bf16.mxu0 %v6154
        %6453 = vmatpush2.bf16.msra.mxu0 %v6153
        %6454 = vmatprep.subr.bf16.mxu0 %v6150
        %6455 = vmatpush2.bf16.msra.mxu0 %v6149
        %6456 = vmatprep.subr.bf16.mxu0 %v6146
        %6457 = vmatpush2.bf16.msra.mxu0 %v6145
        %6458 = vmatprep.subr.bf16.mxu0 %v6142
        %6459 = vmatpush2.bf16.msra.mxu0 %v6141
        %6460 = vmatprep.subr.bf16.mxu0 %v6138
        %6461 = vmatpush2.bf16.msra.mxu0 %v6137
        %6462 = vmatprep.subr.bf16.mxu0 %v6134
        %6463 = vmatpush2.bf16.msra.mxu0 %v6133
        %6464 = vmatprep.subr.bf16.mxu0 %v6130
        %6465 = vmatpush2.bf16.msra.mxu0 %v6129
        %6466 = vmatprep.subr.bf16.mxu0 %v6126
        %6467 = vmatpush2.bf16.msra.mxu0 %v6125
        %6468 = vmatprep.mubr.bf16.mxu0 %v5634
        %6469 = vmatmul.mubr.bf16.gmra.mxu0 %v5631
        %v6470 = vpop.f32.mrf.mxu0
        %v6471 = vadd.f32 %v6420, %v6470
        %v6472 = vpop.f32.mrf.mxu0
        %v6473 = vadd.f32 %v6422, %v6472
        %v6474 = vpop.f32.mrf.mxu0
        %v6475 = vadd.f32 %v6424, %v6474
        %v6476 = vpop.f32.mrf.mxu0
        %v6477 = vadd.f32 %v6426, %v6476
        %6478 = vmatprep.mubr.bf16.mxu0 %v5633
        %6479 = vmatmul.mubr.bf16.gmra.mxu0 %v5630
        %v6480 = vpop.f32.mrf.mxu0
        %v6481 = vadd.f32 %v6430, %v6480
        %v6482 = vpop.f32.mrf.mxu0
        %v6483 = vadd.f32 %v6432, %v6482
        %v6484 = vpop.f32.mrf.mxu0
        %v6485 = vpop.f32.mrf.mxu0
        %6486 = vdwg.mxu0
        %v6487 = vadd.f32 %v5474, %v6369
        %v6488 = vadd.f32 %v5475, %v6371
        %v6489 = vadd.f32 %v5476, %v6471
        %v6490 = vadd.f32 %v5477, %v6473
        %v6491 = vadd.f32 %v5478, %v6373
        %v6492 = vadd.f32 %v5479, %v6375
        %v6493 = vadd.f32 %v5480, %v6475
        %v6494 = vadd.f32 %v5481, %v6477
        %v6495 = vadd.f32 %v5482, %v6379
        %v6496 = vadd.f32 %v5483, %v6381
        %v6497 = vadd.f32 %v5484, %v6481
        %v6498 = vadd.f32 %v5485, %v6483
        %v6499 = vmax.f32 %v6487, 0.0
        %v6500 = vmax.f32 %v6488, 0.0
        %v6501 = vmax.f32 %v6489, 0.0
        %v6502 = vmax.f32 %v6490, 0.0
        %v6503 = vmax.f32 %v6491, 0.0
        %v6504 = vmax.f32 %v6492, 0.0
        %v6505 = vmax.f32 %v6493, 0.0
        %v6506 = vmax.f32 %v6494, 0.0
        %v6507 = vmax.f32 %v6495, 0.0
        %v6508 = vmax.f32 %v6496, 0.0
        %v6509 = vmax.f32 %v6497, 0.0
        %v6510 = vmax.f32 %v6498, 0.0
        %v6511 = vpack.c.bf16 %v6503, %v6499
        %v6512 = vpack.c.bf16 %v6504, %v6500
        %v6513 = vpack.c.bf16 %v6505, %v6501
        %v6514 = vpack.c.bf16 %v6506, %v6502
        %v6515 = vpack.c.bf16 %v6507, %v6507
        %v6516 = vpack.c.bf16 %v6508, %v6508
        %v6517 = vpack.c.bf16 %v6509, %v6509
        %v6518 = vpack.c.bf16 %v6510, %v6510
        %v6520 = vsel %vm317, %v6515, 0
        %v6523 = vsel %vm317, %v6516, 0
        %v6526 = vsel %vm317, %v6517, 0
        %v6529 = vsel %vm317, %v6518, 0
        %s6531 = scalar_lea.vmem [#allocation4], 8
        %v6532 = vld [vmem:[%s6531] sm:$0xf]
        %v6534 = vlaneseq
        %v6535 = vshrl.u32 %v6534, 7
        %v6536 = vsub.s32 0, %v6535
        %v6537 = vrot.slane %v6532, %v6536
        %v6538 = vlaneseq
        %v6539 = vshrl.u32 %v6538, 7
        %v6540 = vsub.s32 1, %v6539
        %v6541 = vrot.slane %v6532, %v6540
        %v6542 = vlaneseq
        %v6543 = vshrl.u32 %v6542, 7
        %v6544 = vsub.s32 2, %v6543
        %v6545 = vrot.slane %v6532, %v6544
        %v6546 = vlaneseq
        %v6547 = vshrl.u32 %v6546, 7
        %v6548 = vsub.s32 3, %v6547
        %v6549 = vrot.slane %v6532, %v6548
        %s6554 = scalar_lea.vmem [#allocation2], 6144
        %v6555 = vld [vmem:[%s6554] sm:$0xff]
        %v6556 = vld [vmem:[%s6554 + $0x8] sm:$0xff]
        %v6557 = vld [vmem:[%s6554 + $0x10] sm:$0xff]
        %v6558 = vld [vmem:[%s6554 + $0x18] sm:$0xff]
        %v6559 = vld [vmem:[%s6554 + $0x20] sm:$0xff]
        %v6560 = vld [vmem:[%s6554 + $0x28] sm:$0xff]
        %v6561 = vld [vmem:[%s6554 + $0x30] sm:$0xff]
        %v6562 = vld [vmem:[%s6554 + $0x38] sm:$0xff]
        %v6563 = vld [vmem:[%s6554 + $0x40] sm:$0xff]
        %v6564 = vld [vmem:[%s6554 + $0x48] sm:$0xff]
        %v6565 = vld [vmem:[%s6554 + $0x50] sm:$0xff]
        %v6566 = vld [vmem:[%s6554 + $0x58] sm:$0xff]
        %v6567 = vld [vmem:[%s6554 + $0x60] sm:$0xff]
        %v6568 = vld [vmem:[%s6554 + $0x68] sm:$0xff]
        %v6569 = vld [vmem:[%s6554 + $0x70] sm:$0xff]
        %v6570 = vld [vmem:[%s6554 + $0x78] sm:$0xff]
        %v6571 = vld [vmem:[%s6554 + $0x80] sm:$0xff]
        %v6572 = vld [vmem:[%s6554 + $0x88] sm:$0xff]
        %v6573 = vld [vmem:[%s6554 + $0x90] sm:$0xff]
        %v6574 = vld [vmem:[%s6554 + $0x98] sm:$0xff]
        %v6575 = vld [vmem:[%s6554 + $0xa0] sm:$0xff]
        %v6576 = vld [vmem:[%s6554 + $0xa8] sm:$0xff]
        %v6577 = vld [vmem:[%s6554 + $0xb0] sm:$0xff]
        %v6578 = vld [vmem:[%s6554 + $0xb8] sm:$0xff]
        %v6579 = vld [vmem:[%s6554 + $0xc0] sm:$0xff]
        %v6580 = vld [vmem:[%s6554 + $0xc8] sm:$0xff]
        %v6581 = vld [vmem:[%s6554 + $0xd0] sm:$0xff]
        %v6582 = vld [vmem:[%s6554 + $0xd8] sm:$0xff]
        %v6583 = vld [vmem:[%s6554 + $0xe0] sm:$0xff]
        %v6584 = vld [vmem:[%s6554 + $0xe8] sm:$0xff]
        %v6585 = vld [vmem:[%s6554 + $0xf0] sm:$0xff]
        %v6586 = vld [vmem:[%s6554 + $0xf8] sm:$0xff]
        %v6587 = vld [vmem:[%s6554 + $0x100] sm:$0xff]
        %v6588 = vld [vmem:[%s6554 + $0x108] sm:$0xff]
        %v6589 = vld [vmem:[%s6554 + $0x110] sm:$0xff]
        %v6590 = vld [vmem:[%s6554 + $0x118] sm:$0xff]
        %v6591 = vld [vmem:[%s6554 + $0x120] sm:$0xff]
        %v6592 = vld [vmem:[%s6554 + $0x128] sm:$0xff]
        %v6593 = vld [vmem:[%s6554 + $0x130] sm:$0xff]
        %v6594 = vld [vmem:[%s6554 + $0x138] sm:$0xff]
        %v6595 = vld [vmem:[%s6554 + $0x140] sm:$0xff]
        %v6596 = vld [vmem:[%s6554 + $0x148] sm:$0xff]
        %v6597 = vld [vmem:[%s6554 + $0x150] sm:$0xff]
        %v6598 = vld [vmem:[%s6554 + $0x158] sm:$0xff]
        %v6599 = vld [vmem:[%s6554 + $0x160] sm:$0xff]
        %v6600 = vld [vmem:[%s6554 + $0x168] sm:$0xff]
        %v6601 = vld [vmem:[%s6554 + $0x170] sm:$0xff]
        %v6602 = vld [vmem:[%s6554 + $0x178] sm:$0xff]
        %v6603 = vld [vmem:[%s6554 + $0x180] sm:$0xff]
        %v6604 = vld [vmem:[%s6554 + $0x188] sm:$0xff]
        %v6605 = vld [vmem:[%s6554 + $0x190] sm:$0xff]
        %v6606 = vld [vmem:[%s6554 + $0x198] sm:$0xff]
        %v6607 = vld [vmem:[%s6554 + $0x1a0] sm:$0xff]
        %v6608 = vld [vmem:[%s6554 + $0x1a8] sm:$0xff]
        %v6609 = vld [vmem:[%s6554 + $0x1b0] sm:$0xff]
        %v6610 = vld [vmem:[%s6554 + $0x1b8] sm:$0xff]
        %v6611 = vld [vmem:[%s6554 + $0x1c0] sm:$0xff]
        %v6612 = vld [vmem:[%s6554 + $0x1c8] sm:$0xff]
        %v6613 = vld [vmem:[%s6554 + $0x1d0] sm:$0xff]
        %v6614 = vld [vmem:[%s6554 + $0x1d8] sm:$0xff]
        %v6615 = vld [vmem:[%s6554 + $0x1e0] sm:$0xff]
        %v6616 = vld [vmem:[%s6554 + $0x1e8] sm:$0xff]
        %v6617 = vld [vmem:[%s6554 + $0x1f0] sm:$0xff]
        %v6618 = vld [vmem:[%s6554 + $0x1f8] sm:$0xff]
        %v6619 = vld [vmem:[%s6554 + $0x200] sm:$0xff]
        %v6620 = vld [vmem:[%s6554 + $0x208] sm:$0xff]
        %v6621 = vld [vmem:[%s6554 + $0x210] sm:$0xff]
        %v6622 = vld [vmem:[%s6554 + $0x218] sm:$0xff]
        %v6623 = vld [vmem:[%s6554 + $0x220] sm:$0xff]
        %v6624 = vld [vmem:[%s6554 + $0x228] sm:$0xff]
        %v6625 = vld [vmem:[%s6554 + $0x230] sm:$0xff]
        %v6626 = vld [vmem:[%s6554 + $0x238] sm:$0xff]
        %v6627 = vld [vmem:[%s6554 + $0x240] sm:$0xff]
        %v6628 = vld [vmem:[%s6554 + $0x248] sm:$0xff]
        %v6629 = vld [vmem:[%s6554 + $0x250] sm:$0xff]
        %v6630 = vld [vmem:[%s6554 + $0x258] sm:$0xff]
        %v6631 = vld [vmem:[%s6554 + $0x260] sm:$0xff]
        %v6632 = vld [vmem:[%s6554 + $0x268] sm:$0xff]
        %v6633 = vld [vmem:[%s6554 + $0x270] sm:$0xff]
        %v6634 = vld [vmem:[%s6554 + $0x278] sm:$0xff]
        %v6635 = vld [vmem:[%s6554 + $0x280] sm:$0xff]
        %v6636 = vld [vmem:[%s6554 + $0x288] sm:$0xff]
        %v6637 = vld [vmem:[%s6554 + $0x290] sm:$0xff]
        %v6638 = vld [vmem:[%s6554 + $0x298] sm:$0xff]
        %v6639 = vld [vmem:[%s6554 + $0x2a0] sm:$0xff]
        %v6640 = vld [vmem:[%s6554 + $0x2a8] sm:$0xff]
        %v6641 = vld [vmem:[%s6554 + $0x2b0] sm:$0xff]
        %v6642 = vld [vmem:[%s6554 + $0x2b8] sm:$0xff]
        %v6643 = vld [vmem:[%s6554 + $0x2c0] sm:$0xff]
        %v6644 = vld [vmem:[%s6554 + $0x2c8] sm:$0xff]
        %v6645 = vld [vmem:[%s6554 + $0x2d0] sm:$0xff]
        %v6646 = vld [vmem:[%s6554 + $0x2d8] sm:$0xff]
        %v6647 = vld [vmem:[%s6554 + $0x2e0] sm:$0xff]
        %v6648 = vld [vmem:[%s6554 + $0x2e8] sm:$0xff]
        %v6649 = vld [vmem:[%s6554 + $0x2f0] sm:$0xff]
        %v6650 = vld [vmem:[%s6554 + $0x2f8] sm:$0xff]
        %v6651 = vld [vmem:[%s6554 + $0x300] sm:$0xff]
        %v6652 = vld [vmem:[%s6554 + $0x308] sm:$0xff]
        %v6653 = vld [vmem:[%s6554 + $0x310] sm:$0xff]
        %v6654 = vld [vmem:[%s6554 + $0x318] sm:$0xff]
        %v6655 = vld [vmem:[%s6554 + $0x320] sm:$0xff]
        %v6656 = vld [vmem:[%s6554 + $0x328] sm:$0xff]
        %v6657 = vld [vmem:[%s6554 + $0x330] sm:$0xff]
        %v6658 = vld [vmem:[%s6554 + $0x338] sm:$0xff]
        %v6659 = vld [vmem:[%s6554 + $0x340] sm:$0xff]
        %v6660 = vld [vmem:[%s6554 + $0x348] sm:$0xff]
        %v6661 = vld [vmem:[%s6554 + $0x350] sm:$0xff]
        %v6662 = vld [vmem:[%s6554 + $0x358] sm:$0xff]
        %v6663 = vld [vmem:[%s6554 + $0x360] sm:$0xff]
        %v6664 = vld [vmem:[%s6554 + $0x368] sm:$0xff]
        %v6665 = vld [vmem:[%s6554 + $0x370] sm:$0xff]
        %v6666 = vld [vmem:[%s6554 + $0x378] sm:$0xff]
        %v6667 = vld [vmem:[%s6554 + $0x380] sm:$0xff]
        %v6668 = vld [vmem:[%s6554 + $0x388] sm:$0xff]
        %v6669 = vld [vmem:[%s6554 + $0x390] sm:$0xff]
        %v6670 = vld [vmem:[%s6554 + $0x398] sm:$0xff]
        %v6671 = vld [vmem:[%s6554 + $0x3a0] sm:$0xff]
        %v6672 = vld [vmem:[%s6554 + $0x3a8] sm:$0xff]
        %v6673 = vld [vmem:[%s6554 + $0x3b0] sm:$0xff]
        %v6674 = vld [vmem:[%s6554 + $0x3b8] sm:$0xff]
        %v6675 = vld [vmem:[%s6554 + $0x3c0] sm:$0xff]
        %v6676 = vld [vmem:[%s6554 + $0x3c8] sm:$0xff]
        %v6677 = vld [vmem:[%s6554 + $0x3d0] sm:$0xff]
        %v6678 = vld [vmem:[%s6554 + $0x3d8] sm:$0xff]
        %v6679 = vld [vmem:[%s6554 + $0x3e0] sm:$0xff]
        %v6680 = vld [vmem:[%s6554 + $0x3e8] sm:$0xff]
        %v6681 = vld [vmem:[%s6554 + $0x3f0] sm:$0xff]
        %v6682 = vld [vmem:[%s6554 + $0x3f8] sm:$0xff]
        %v6811 = vunpack.c.l.b16 %v6555
        %v6812 = vunpack.c.h.b16 %v6555
        %v6813 = vunpack.c.l.b16 %v6556
        %v6814 = vunpack.c.h.b16 %v6556
        %v6815 = vunpack.c.l.b16 %v6557
        %v6816 = vunpack.c.h.b16 %v6557
        %v6817 = vunpack.c.l.b16 %v6558
        %v6818 = vunpack.c.h.b16 %v6558
        %v6819 = vunpack.c.l.b16 %v6559
        %v6820 = vunpack.c.h.b16 %v6559
        %v6821 = vunpack.c.l.b16 %v6560
        %v6822 = vunpack.c.h.b16 %v6560
        %v6823 = vunpack.c.l.b16 %v6561
        %v6824 = vunpack.c.h.b16 %v6561
        %v6825 = vunpack.c.l.b16 %v6562
        %v6826 = vunpack.c.h.b16 %v6562
        %v6827 = vunpack.c.l.b16 %v6563
        %v6828 = vunpack.c.h.b16 %v6563
        %v6829 = vunpack.c.l.b16 %v6564
        %v6830 = vunpack.c.h.b16 %v6564
        %v6831 = vunpack.c.l.b16 %v6565
        %v6832 = vunpack.c.h.b16 %v6565
        %v6833 = vunpack.c.l.b16 %v6566
        %v6834 = vunpack.c.h.b16 %v6566
        %v6835 = vunpack.c.l.b16 %v6567
        %v6836 = vunpack.c.h.b16 %v6567
        %v6837 = vunpack.c.l.b16 %v6568
        %v6838 = vunpack.c.h.b16 %v6568
        %v6839 = vunpack.c.l.b16 %v6569
        %v6840 = vunpack.c.h.b16 %v6569
        %v6841 = vunpack.c.l.b16 %v6570
        %v6842 = vunpack.c.h.b16 %v6570
        %v6843 = vunpack.c.l.b16 %v6571
        %v6844 = vunpack.c.h.b16 %v6571
        %v6845 = vunpack.c.l.b16 %v6572
        %v6846 = vunpack.c.h.b16 %v6572
        %v6847 = vunpack.c.l.b16 %v6573
        %v6848 = vunpack.c.h.b16 %v6573
        %v6849 = vunpack.c.l.b16 %v6574
        %v6850 = vunpack.c.h.b16 %v6574
        %v6851 = vunpack.c.l.b16 %v6575
        %v6852 = vunpack.c.h.b16 %v6575
        %v6853 = vunpack.c.l.b16 %v6576
        %v6854 = vunpack.c.h.b16 %v6576
        %v6855 = vunpack.c.l.b16 %v6577
        %v6856 = vunpack.c.h.b16 %v6577
        %v6857 = vunpack.c.l.b16 %v6578
        %v6858 = vunpack.c.h.b16 %v6578
        %v6859 = vunpack.c.l.b16 %v6579
        %v6860 = vunpack.c.h.b16 %v6579
        %v6861 = vunpack.c.l.b16 %v6580
        %v6862 = vunpack.c.h.b16 %v6580
        %v6863 = vunpack.c.l.b16 %v6581
        %v6864 = vunpack.c.h.b16 %v6581
        %v6865 = vunpack.c.l.b16 %v6582
        %v6866 = vunpack.c.h.b16 %v6582
        %v6867 = vunpack.c.l.b16 %v6583
        %v6868 = vunpack.c.h.b16 %v6583
        %v6869 = vunpack.c.l.b16 %v6584
        %v6870 = vunpack.c.h.b16 %v6584
        %v6871 = vunpack.c.l.b16 %v6585
        %v6872 = vunpack.c.h.b16 %v6585
        %v6873 = vunpack.c.l.b16 %v6586
        %v6874 = vunpack.c.h.b16 %v6586
        %v6875 = vunpack.c.l.b16 %v6587
        %v6876 = vunpack.c.h.b16 %v6587
        %v6877 = vunpack.c.l.b16 %v6588
        %v6878 = vunpack.c.h.b16 %v6588
        %v6879 = vunpack.c.l.b16 %v6589
        %v6880 = vunpack.c.h.b16 %v6589
        %v6881 = vunpack.c.l.b16 %v6590
        %v6882 = vunpack.c.h.b16 %v6590
        %v6883 = vunpack.c.l.b16 %v6591
        %v6884 = vunpack.c.h.b16 %v6591
        %v6885 = vunpack.c.l.b16 %v6592
        %v6886 = vunpack.c.h.b16 %v6592
        %v6887 = vunpack.c.l.b16 %v6593
        %v6888 = vunpack.c.h.b16 %v6593
        %v6889 = vunpack.c.l.b16 %v6594
        %v6890 = vunpack.c.h.b16 %v6594
        %v6891 = vunpack.c.l.b16 %v6595
        %v6892 = vunpack.c.h.b16 %v6595
        %v6893 = vunpack.c.l.b16 %v6596
        %v6894 = vunpack.c.h.b16 %v6596
        %v6895 = vunpack.c.l.b16 %v6597
        %v6896 = vunpack.c.h.b16 %v6597
        %v6897 = vunpack.c.l.b16 %v6598
        %v6898 = vunpack.c.h.b16 %v6598
        %v6899 = vunpack.c.l.b16 %v6599
        %v6900 = vunpack.c.h.b16 %v6599
        %v6901 = vunpack.c.l.b16 %v6600
        %v6902 = vunpack.c.h.b16 %v6600
        %v6903 = vunpack.c.l.b16 %v6601
        %v6904 = vunpack.c.h.b16 %v6601
        %v6905 = vunpack.c.l.b16 %v6602
        %v6906 = vunpack.c.h.b16 %v6602
        %v6907 = vunpack.c.l.b16 %v6603
        %v6908 = vunpack.c.h.b16 %v6603
        %v6909 = vunpack.c.l.b16 %v6604
        %v6910 = vunpack.c.h.b16 %v6604
        %v6911 = vunpack.c.l.b16 %v6605
        %v6912 = vunpack.c.h.b16 %v6605
        %v6913 = vunpack.c.l.b16 %v6606
        %v6914 = vunpack.c.h.b16 %v6606
        %v6915 = vunpack.c.l.b16 %v6607
        %v6916 = vunpack.c.h.b16 %v6607
        %v6917 = vunpack.c.l.b16 %v6608
        %v6918 = vunpack.c.h.b16 %v6608
        %v6919 = vunpack.c.l.b16 %v6609
        %v6920 = vunpack.c.h.b16 %v6609
        %v6921 = vunpack.c.l.b16 %v6610
        %v6922 = vunpack.c.h.b16 %v6610
        %v6923 = vunpack.c.l.b16 %v6611
        %v6924 = vunpack.c.h.b16 %v6611
        %v6925 = vunpack.c.l.b16 %v6612
        %v6926 = vunpack.c.h.b16 %v6612
        %v6927 = vunpack.c.l.b16 %v6613
        %v6928 = vunpack.c.h.b16 %v6613
        %v6929 = vunpack.c.l.b16 %v6614
        %v6930 = vunpack.c.h.b16 %v6614
        %v6931 = vunpack.c.l.b16 %v6615
        %v6932 = vunpack.c.h.b16 %v6615
        %v6933 = vunpack.c.l.b16 %v6616
        %v6934 = vunpack.c.h.b16 %v6616
        %v6935 = vunpack.c.l.b16 %v6617
        %v6936 = vunpack.c.h.b16 %v6617
        %v6937 = vunpack.c.l.b16 %v6618
        %v6938 = vunpack.c.h.b16 %v6618
        %v6939 = vunpack.c.l.b16 %v6619
        %v6940 = vunpack.c.h.b16 %v6619
        %v6941 = vunpack.c.l.b16 %v6620
        %v6942 = vunpack.c.h.b16 %v6620
        %v6943 = vunpack.c.l.b16 %v6621
        %v6944 = vunpack.c.h.b16 %v6621
        %v6945 = vunpack.c.l.b16 %v6622
        %v6946 = vunpack.c.h.b16 %v6622
        %v6947 = vunpack.c.l.b16 %v6623
        %v6948 = vunpack.c.h.b16 %v6623
        %v6949 = vunpack.c.l.b16 %v6624
        %v6950 = vunpack.c.h.b16 %v6624
        %v6951 = vunpack.c.l.b16 %v6625
        %v6952 = vunpack.c.h.b16 %v6625
        %v6953 = vunpack.c.l.b16 %v6626
        %v6954 = vunpack.c.h.b16 %v6626
        %v6955 = vunpack.c.l.b16 %v6627
        %v6956 = vunpack.c.h.b16 %v6627
        %v6957 = vunpack.c.l.b16 %v6628
        %v6958 = vunpack.c.h.b16 %v6628
        %v6959 = vunpack.c.l.b16 %v6629
        %v6960 = vunpack.c.h.b16 %v6629
        %v6961 = vunpack.c.l.b16 %v6630
        %v6962 = vunpack.c.h.b16 %v6630
        %v6963 = vunpack.c.l.b16 %v6631
        %v6964 = vunpack.c.h.b16 %v6631
        %v6965 = vunpack.c.l.b16 %v6632
        %v6966 = vunpack.c.h.b16 %v6632
        %v6967 = vunpack.c.l.b16 %v6633
        %v6968 = vunpack.c.h.b16 %v6633
        %v6969 = vunpack.c.l.b16 %v6634
        %v6970 = vunpack.c.h.b16 %v6634
        %v6971 = vunpack.c.l.b16 %v6635
        %v6972 = vunpack.c.h.b16 %v6635
        %v6973 = vunpack.c.l.b16 %v6636
        %v6974 = vunpack.c.h.b16 %v6636
        %v6975 = vunpack.c.l.b16 %v6637
        %v6976 = vunpack.c.h.b16 %v6637
        %v6977 = vunpack.c.l.b16 %v6638
        %v6978 = vunpack.c.h.b16 %v6638
        %v6979 = vunpack.c.l.b16 %v6639
        %v6980 = vunpack.c.h.b16 %v6639
        %v6981 = vunpack.c.l.b16 %v6640
        %v6982 = vunpack.c.h.b16 %v6640
        %v6983 = vunpack.c.l.b16 %v6641
        %v6984 = vunpack.c.h.b16 %v6641
        %v6985 = vunpack.c.l.b16 %v6642
        %v6986 = vunpack.c.h.b16 %v6642
        %v6987 = vunpack.c.l.b16 %v6643
        %v6988 = vunpack.c.h.b16 %v6643
        %v6989 = vunpack.c.l.b16 %v6644
        %v6990 = vunpack.c.h.b16 %v6644
        %v6991 = vunpack.c.l.b16 %v6645
        %v6992 = vunpack.c.h.b16 %v6645
        %v6993 = vunpack.c.l.b16 %v6646
        %v6994 = vunpack.c.h.b16 %v6646
        %v6995 = vunpack.c.l.b16 %v6647
        %v6996 = vunpack.c.h.b16 %v6647
        %v6997 = vunpack.c.l.b16 %v6648
        %v6998 = vunpack.c.h.b16 %v6648
        %v6999 = vunpack.c.l.b16 %v6649
        %v7000 = vunpack.c.h.b16 %v6649
        %v7001 = vunpack.c.l.b16 %v6650
        %v7002 = vunpack.c.h.b16 %v6650
        %v7003 = vunpack.c.l.b16 %v6651
        %v7004 = vunpack.c.h.b16 %v6651
        %v7005 = vunpack.c.l.b16 %v6652
        %v7006 = vunpack.c.h.b16 %v6652
        %v7007 = vunpack.c.l.b16 %v6653
        %v7008 = vunpack.c.h.b16 %v6653
        %v7009 = vunpack.c.l.b16 %v6654
        %v7010 = vunpack.c.h.b16 %v6654
        %v7011 = vunpack.c.l.b16 %v6655
        %v7012 = vunpack.c.h.b16 %v6655
        %v7013 = vunpack.c.l.b16 %v6656
        %v7014 = vunpack.c.h.b16 %v6656
        %v7015 = vunpack.c.l.b16 %v6657
        %v7016 = vunpack.c.h.b16 %v6657
        %v7017 = vunpack.c.l.b16 %v6658
        %v7018 = vunpack.c.h.b16 %v6658
        %v7019 = vunpack.c.l.b16 %v6659
        %v7020 = vunpack.c.h.b16 %v6659
        %v7021 = vunpack.c.l.b16 %v6660
        %v7022 = vunpack.c.h.b16 %v6660
        %v7023 = vunpack.c.l.b16 %v6661
        %v7024 = vunpack.c.h.b16 %v6661
        %v7025 = vunpack.c.l.b16 %v6662
        %v7026 = vunpack.c.h.b16 %v6662
        %v7027 = vunpack.c.l.b16 %v6663
        %v7028 = vunpack.c.h.b16 %v6663
        %v7029 = vunpack.c.l.b16 %v6664
        %v7030 = vunpack.c.h.b16 %v6664
        %v7031 = vunpack.c.l.b16 %v6665
        %v7032 = vunpack.c.h.b16 %v6665
        %v7033 = vunpack.c.l.b16 %v6666
        %v7034 = vunpack.c.h.b16 %v6666
        %v7035 = vunpack.c.l.b16 %v6667
        %v7036 = vunpack.c.h.b16 %v6667
        %v7037 = vunpack.c.l.b16 %v6668
        %v7038 = vunpack.c.h.b16 %v6668
        %v7039 = vunpack.c.l.b16 %v6669
        %v7040 = vunpack.c.h.b16 %v6669
        %v7041 = vunpack.c.l.b16 %v6670
        %v7042 = vunpack.c.h.b16 %v6670
        %v7043 = vunpack.c.l.b16 %v6671
        %v7044 = vunpack.c.h.b16 %v6671
        %v7045 = vunpack.c.l.b16 %v6672
        %v7046 = vunpack.c.h.b16 %v6672
        %v7047 = vunpack.c.l.b16 %v6673
        %v7048 = vunpack.c.h.b16 %v6673
        %v7049 = vunpack.c.l.b16 %v6674
        %v7050 = vunpack.c.h.b16 %v6674
        %v7051 = vunpack.c.l.b16 %v6675
        %v7052 = vunpack.c.h.b16 %v6675
        %v7053 = vunpack.c.l.b16 %v6676
        %v7054 = vunpack.c.h.b16 %v6676
        %v7055 = vunpack.c.l.b16 %v6677
        %v7056 = vunpack.c.h.b16 %v6677
        %v7057 = vunpack.c.l.b16 %v6678
        %v7058 = vunpack.c.h.b16 %v6678
        %v7059 = vunpack.c.l.b16 %v6679
        %v7060 = vunpack.c.h.b16 %v6679
        %v7061 = vunpack.c.l.b16 %v6680
        %v7062 = vunpack.c.h.b16 %v6680
        %v7063 = vunpack.c.l.b16 %v6681
        %v7064 = vunpack.c.h.b16 %v6681
        %v7065 = vunpack.c.l.b16 %v6682
        %v7066 = vunpack.c.h.b16 %v6682
        %v7067 = vpack.c.b16 %v6815, %v6811
        %v7068 = vpack.c.b16 %v6816, %v6812
        %v7069 = vpack.c.b16 %v6817, %v6813
        %v7070 = vpack.c.b16 %v6818, %v6814
        %v7071 = vpack.c.b16 %v6823, %v6819
        %v7072 = vpack.c.b16 %v6824, %v6820
        %v7073 = vpack.c.b16 %v6825, %v6821
        %v7074 = vpack.c.b16 %v6826, %v6822
        %v7075 = vpack.c.b16 %v6831, %v6827
        %v7076 = vpack.c.b16 %v6832, %v6828
        %v7077 = vpack.c.b16 %v6833, %v6829
        %v7078 = vpack.c.b16 %v6834, %v6830
        %v7079 = vpack.c.b16 %v6839, %v6835
        %v7080 = vpack.c.b16 %v6840, %v6836
        %v7081 = vpack.c.b16 %v6841, %v6837
        %v7082 = vpack.c.b16 %v6842, %v6838
        %v7083 = vpack.c.b16 %v6847, %v6843
        %v7084 = vpack.c.b16 %v6848, %v6844
        %v7085 = vpack.c.b16 %v6849, %v6845
        %v7086 = vpack.c.b16 %v6850, %v6846
        %v7087 = vpack.c.b16 %v6855, %v6851
        %v7088 = vpack.c.b16 %v6856, %v6852
        %v7089 = vpack.c.b16 %v6857, %v6853
        %v7090 = vpack.c.b16 %v6858, %v6854
        %v7091 = vpack.c.b16 %v6863, %v6859
        %v7092 = vpack.c.b16 %v6864, %v6860
        %v7093 = vpack.c.b16 %v6865, %v6861
        %v7094 = vpack.c.b16 %v6866, %v6862
        %v7095 = vpack.c.b16 %v6871, %v6867
        %v7096 = vpack.c.b16 %v6872, %v6868
        %v7097 = vpack.c.b16 %v6873, %v6869
        %v7098 = vpack.c.b16 %v6874, %v6870
        %v7099 = vpack.c.b16 %v6879, %v6875
        %v7100 = vpack.c.b16 %v6880, %v6876
        %v7101 = vpack.c.b16 %v6881, %v6877
        %v7102 = vpack.c.b16 %v6882, %v6878
        %v7103 = vpack.c.b16 %v6887, %v6883
        %v7104 = vpack.c.b16 %v6888, %v6884
        %v7105 = vpack.c.b16 %v6889, %v6885
        %v7106 = vpack.c.b16 %v6890, %v6886
        %v7107 = vpack.c.b16 %v6895, %v6891
        %v7108 = vpack.c.b16 %v6896, %v6892
        %v7109 = vpack.c.b16 %v6897, %v6893
        %v7110 = vpack.c.b16 %v6898, %v6894
        %v7111 = vpack.c.b16 %v6903, %v6899
        %v7112 = vpack.c.b16 %v6904, %v6900
        %v7113 = vpack.c.b16 %v6905, %v6901
        %v7114 = vpack.c.b16 %v6906, %v6902
        %v7115 = vpack.c.b16 %v6911, %v6907
        %v7116 = vpack.c.b16 %v6912, %v6908
        %v7117 = vpack.c.b16 %v6913, %v6909
        %v7118 = vpack.c.b16 %v6914, %v6910
        %v7119 = vpack.c.b16 %v6919, %v6915
        %v7120 = vpack.c.b16 %v6920, %v6916
        %v7121 = vpack.c.b16 %v6921, %v6917
        %v7122 = vpack.c.b16 %v6922, %v6918
        %v7123 = vpack.c.b16 %v6927, %v6923
        %v7124 = vpack.c.b16 %v6928, %v6924
        %v7125 = vpack.c.b16 %v6929, %v6925
        %v7126 = vpack.c.b16 %v6930, %v6926
        %v7127 = vpack.c.b16 %v6935, %v6931
        %v7128 = vpack.c.b16 %v6936, %v6932
        %v7129 = vpack.c.b16 %v6937, %v6933
        %v7130 = vpack.c.b16 %v6938, %v6934
        %v7131 = vpack.c.b16 %v6943, %v6939
        %v7132 = vpack.c.b16 %v6944, %v6940
        %v7133 = vpack.c.b16 %v6945, %v6941
        %v7134 = vpack.c.b16 %v6946, %v6942
        %v7135 = vpack.c.b16 %v6951, %v6947
        %v7136 = vpack.c.b16 %v6952, %v6948
        %v7137 = vpack.c.b16 %v6953, %v6949
        %v7138 = vpack.c.b16 %v6954, %v6950
        %v7139 = vpack.c.b16 %v6959, %v6955
        %v7140 = vpack.c.b16 %v6960, %v6956
        %v7141 = vpack.c.b16 %v6961, %v6957
        %v7142 = vpack.c.b16 %v6962, %v6958
        %v7143 = vpack.c.b16 %v6967, %v6963
        %v7144 = vpack.c.b16 %v6968, %v6964
        %v7145 = vpack.c.b16 %v6969, %v6965
        %v7146 = vpack.c.b16 %v6970, %v6966
        %v7147 = vpack.c.b16 %v6975, %v6971
        %v7148 = vpack.c.b16 %v6976, %v6972
        %v7149 = vpack.c.b16 %v6977, %v6973
        %v7150 = vpack.c.b16 %v6978, %v6974
        %v7151 = vpack.c.b16 %v6983, %v6979
        %v7152 = vpack.c.b16 %v6984, %v6980
        %v7153 = vpack.c.b16 %v6985, %v6981
        %v7154 = vpack.c.b16 %v6986, %v6982
        %v7155 = vpack.c.b16 %v6991, %v6987
        %v7156 = vpack.c.b16 %v6992, %v6988
        %v7157 = vpack.c.b16 %v6993, %v6989
        %v7158 = vpack.c.b16 %v6994, %v6990
        %v7159 = vpack.c.b16 %v6999, %v6995
        %v7160 = vpack.c.b16 %v7000, %v6996
        %v7161 = vpack.c.b16 %v7001, %v6997
        %v7162 = vpack.c.b16 %v7002, %v6998
        %v7163 = vpack.c.b16 %v7007, %v7003
        %v7164 = vpack.c.b16 %v7008, %v7004
        %v7165 = vpack.c.b16 %v7009, %v7005
        %v7166 = vpack.c.b16 %v7010, %v7006
        %v7167 = vpack.c.b16 %v7015, %v7011
        %v7168 = vpack.c.b16 %v7016, %v7012
        %v7169 = vpack.c.b16 %v7017, %v7013
        %v7170 = vpack.c.b16 %v7018, %v7014
        %v7171 = vpack.c.b16 %v7023, %v7019
        %v7172 = vpack.c.b16 %v7024, %v7020
        %v7173 = vpack.c.b16 %v7025, %v7021
        %v7174 = vpack.c.b16 %v7026, %v7022
        %v7175 = vpack.c.b16 %v7031, %v7027
        %v7176 = vpack.c.b16 %v7032, %v7028
        %v7177 = vpack.c.b16 %v7033, %v7029
        %v7178 = vpack.c.b16 %v7034, %v7030
        %v7179 = vpack.c.b16 %v7039, %v7035
        %v7180 = vpack.c.b16 %v7040, %v7036
        %v7181 = vpack.c.b16 %v7041, %v7037
        %v7182 = vpack.c.b16 %v7042, %v7038
        %v7183 = vpack.c.b16 %v7047, %v7043
        %v7184 = vpack.c.b16 %v7048, %v7044
        %v7185 = vpack.c.b16 %v7049, %v7045
        %v7186 = vpack.c.b16 %v7050, %v7046
        %v7187 = vpack.c.b16 %v7055, %v7051
        %v7188 = vpack.c.b16 %v7056, %v7052
        %v7189 = vpack.c.b16 %v7057, %v7053
        %v7190 = vpack.c.b16 %v7058, %v7054
        %v7191 = vpack.c.b16 %v7063, %v7059
        %v7192 = vpack.c.b16 %v7064, %v7060
        %v7193 = vpack.c.b16 %v7065, %v7061
        %v7194 = vpack.c.b16 %v7066, %v7062
        %7323 = vmatprep.subr.bf16.mxu0 %v7096
        %7324 = vmatpush1.bf16.msra.mxu0 %v7095
        %7325 = vmatprep.subr.bf16.mxu0 %v7092
        %7326 = vmatpush1.bf16.msra.mxu0 %v7091
        %7327 = vmatprep.subr.bf16.mxu0 %v7088
        %7328 = vmatpush1.bf16.msra.mxu0 %v7087
        %7329 = vmatprep.subr.bf16.mxu0 %v7084
        %7330 = vmatpush1.bf16.msra.mxu0 %v7083
        %7331 = vmatprep.subr.bf16.mxu0 %v7080
        %7332 = vmatpush1.bf16.msra.mxu0 %v7079
        %7333 = vmatprep.subr.bf16.mxu0 %v7076
        %7334 = vmatpush1.bf16.msra.mxu0 %v7075
        %7335 = vmatprep.subr.bf16.mxu0 %v7072
        %7336 = vmatpush1.bf16.msra.mxu0 %v7071
        %7337 = vmatprep.subr.bf16.mxu0 %v7068
        %7338 = vmatpush1.bf16.msra.mxu0 %v7067
        %7339 = vmatprep.subr.bf16.mxu0 %v7128
        %7340 = vmatpush2.bf16.msra.mxu0 %v7127
        %7341 = vmatprep.subr.bf16.mxu0 %v7124
        %7342 = vmatpush2.bf16.msra.mxu0 %v7123
        %7343 = vmatprep.subr.bf16.mxu0 %v7120
        %7344 = vmatpush2.bf16.msra.mxu0 %v7119
        %7345 = vmatprep.subr.bf16.mxu0 %v7116
        %7346 = vmatpush2.bf16.msra.mxu0 %v7115
        %7347 = vmatprep.subr.bf16.mxu0 %v7112
        %7348 = vmatpush2.bf16.msra.mxu0 %v7111
        %7349 = vmatprep.subr.bf16.mxu0 %v7108
        %7350 = vmatpush2.bf16.msra.mxu0 %v7107
        %7351 = vmatprep.subr.bf16.mxu0 %v7104
        %7352 = vmatpush2.bf16.msra.mxu0 %v7103
        %7353 = vmatprep.subr.bf16.mxu0 %v7100
        %7354 = vmatpush2.bf16.msra.mxu0 %v7099
        %7355 = vmatprep.mubr.bf16.mxu0 %v6512
        %7356 = vmatmul.mubr.bf16.gmra.mxu0 %v6511
        %v7357 = vpop.f32.mrf.mxu0
        %v7358 = vadd.f32 0.0, %v7357
        %v7359 = vpop.f32.mrf.mxu0
        %v7360 = vadd.f32 0.0, %v7359
        %v7361 = vpop.f32.mrf.mxu0
        %v7362 = vadd.f32 0.0, %v7361
        %v7363 = vpop.f32.mrf.mxu0
        %v7364 = vadd.f32 0.0, %v7363
        %7365 = vmatprep.mubr.bf16.mxu0 %v6523
        %7366 = vmatmul.mubr.bf16.gmra.mxu0 %v6520
        %v7367 = vpop.f32.mrf.mxu0
        %v7368 = vadd.f32 0.0, %v7367
        %v7369 = vpop.f32.mrf.mxu0
        %v7370 = vadd.f32 0.0, %v7369
        %v7371 = vpop.f32.mrf.mxu0
        %v7372 = vpop.f32.mrf.mxu0
        %7373 = vdwg.mxu0
        %7374 = vmatprep.subr.bf16.mxu0 %v7160
        %7375 = vmatpush1.bf16.msra.mxu0 %v7159
        %7376 = vmatprep.subr.bf16.mxu0 %v7156
        %7377 = vmatpush1.bf16.msra.mxu0 %v7155
        %7378 = vmatprep.subr.bf16.mxu0 %v7152
        %7379 = vmatpush1.bf16.msra.mxu0 %v7151
        %7380 = vmatprep.subr.bf16.mxu0 %v7148
        %7381 = vmatpush1.bf16.msra.mxu0 %v7147
        %7382 = vmatprep.subr.bf16.mxu0 %v7144
        %7383 = vmatpush1.bf16.msra.mxu0 %v7143
        %7384 = vmatprep.subr.bf16.mxu0 %v7140
        %7385 = vmatpush1.bf16.msra.mxu0 %v7139
        %7386 = vmatprep.subr.bf16.mxu0 %v7136
        %7387 = vmatpush1.bf16.msra.mxu0 %v7135
        %7388 = vmatprep.subr.bf16.mxu0 %v7132
        %7389 = vmatpush1.bf16.msra.mxu0 %v7131
        %7390 = vmatprep.subr.bf16.mxu0 %v7192
        %7391 = vmatpush2.bf16.msra.mxu0 %v7191
        %7392 = vmatprep.subr.bf16.mxu0 %v7188
        %7393 = vmatpush2.bf16.msra.mxu0 %v7187
        %7394 = vmatprep.subr.bf16.mxu0 %v7184
        %7395 = vmatpush2.bf16.msra.mxu0 %v7183
        %7396 = vmatprep.subr.bf16.mxu0 %v7180
        %7397 = vmatpush2.bf16.msra.mxu0 %v7179
        %7398 = vmatprep.subr.bf16.mxu0 %v7176
        %7399 = vmatpush2.bf16.msra.mxu0 %v7175
        %7400 = vmatprep.subr.bf16.mxu0 %v7172
        %7401 = vmatpush2.bf16.msra.mxu0 %v7171
        %7402 = vmatprep.subr.bf16.mxu0 %v7168
        %7403 = vmatpush2.bf16.msra.mxu0 %v7167
        %7404 = vmatprep.subr.bf16.mxu0 %v7164
        %7405 = vmatpush2.bf16.msra.mxu0 %v7163
        %7406 = vmatprep.mubr.bf16.mxu0 %v6514
        %7407 = vmatmul.mubr.bf16.gmra.mxu0 %v6513
        %v7408 = vpop.f32.mrf.mxu0
        %v7409 = vadd.f32 %v7358, %v7408
        %v7410 = vpop.f32.mrf.mxu0
        %v7411 = vadd.f32 %v7360, %v7410
        %v7412 = vpop.f32.mrf.mxu0
        %v7413 = vadd.f32 %v7362, %v7412
        %v7414 = vpop.f32.mrf.mxu0
        %v7415 = vadd.f32 %v7364, %v7414
        %7416 = vmatprep.mubr.bf16.mxu0 %v6529
        %7417 = vmatmul.mubr.bf16.gmra.mxu0 %v6526
        %v7418 = vpop.f32.mrf.mxu0
        %v7419 = vadd.f32 %v7368, %v7418
        %v7420 = vpop.f32.mrf.mxu0
        %v7421 = vadd.f32 %v7370, %v7420
        %v7422 = vpop.f32.mrf.mxu0
        %v7423 = vpop.f32.mrf.mxu0
        %7424 = vdwg.mxu0
        %7425 = vmatprep.subr.bf16.mxu0 %v7098
        %7426 = vmatpush1.bf16.msra.mxu0 %v7097
        %7427 = vmatprep.subr.bf16.mxu0 %v7094
        %7428 = vmatpush1.bf16.msra.mxu0 %v7093
        %7429 = vmatprep.subr.bf16.mxu0 %v7090
        %7430 = vmatpush1.bf16.msra.mxu0 %v7089
        %7431 = vmatprep.subr.bf16.mxu0 %v7086
        %7432 = vmatpush1.bf16.msra.mxu0 %v7085
        %7433 = vmatprep.subr.bf16.mxu0 %v7082
        %7434 = vmatpush1.bf16.msra.mxu0 %v7081
        %7435 = vmatprep.subr.bf16.mxu0 %v7078
        %7436 = vmatpush1.bf16.msra.mxu0 %v7077
        %7437 = vmatprep.subr.bf16.mxu0 %v7074
        %7438 = vmatpush1.bf16.msra.mxu0 %v7073
        %7439 = vmatprep.subr.bf16.mxu0 %v7070
        %7440 = vmatpush1.bf16.msra.mxu0 %v7069
        %7441 = vmatprep.subr.bf16.mxu0 %v7130
        %7442 = vmatpush2.bf16.msra.mxu0 %v7129
        %7443 = vmatprep.subr.bf16.mxu0 %v7126
        %7444 = vmatpush2.bf16.msra.mxu0 %v7125
        %7445 = vmatprep.subr.bf16.mxu0 %v7122
        %7446 = vmatpush2.bf16.msra.mxu0 %v7121
        %7447 = vmatprep.subr.bf16.mxu0 %v7118
        %7448 = vmatpush2.bf16.msra.mxu0 %v7117
        %7449 = vmatprep.subr.bf16.mxu0 %v7114
        %7450 = vmatpush2.bf16.msra.mxu0 %v7113
        %7451 = vmatprep.subr.bf16.mxu0 %v7110
        %7452 = vmatpush2.bf16.msra.mxu0 %v7109
        %7453 = vmatprep.subr.bf16.mxu0 %v7106
        %7454 = vmatpush2.bf16.msra.mxu0 %v7105
        %7455 = vmatprep.subr.bf16.mxu0 %v7102
        %7456 = vmatpush2.bf16.msra.mxu0 %v7101
        %7457 = vmatprep.mubr.bf16.mxu0 %v6512
        %7458 = vmatmul.mubr.bf16.gmra.mxu0 %v6511
        %v7459 = vpop.f32.mrf.mxu0
        %v7460 = vadd.f32 0.0, %v7459
        %v7461 = vpop.f32.mrf.mxu0
        %v7462 = vadd.f32 0.0, %v7461
        %v7463 = vpop.f32.mrf.mxu0
        %v7464 = vadd.f32 0.0, %v7463
        %v7465 = vpop.f32.mrf.mxu0
        %v7466 = vadd.f32 0.0, %v7465
        %7467 = vmatprep.mubr.bf16.mxu0 %v6523
        %7468 = vmatmul.mubr.bf16.gmra.mxu0 %v6520
        %v7469 = vpop.f32.mrf.mxu0
        %v7470 = vadd.f32 0.0, %v7469
        %v7471 = vpop.f32.mrf.mxu0
        %v7472 = vadd.f32 0.0, %v7471
        %v7473 = vpop.f32.mrf.mxu0
        %v7474 = vpop.f32.mrf.mxu0
        %7475 = vdwg.mxu0
        %7476 = vmatprep.subr.bf16.mxu0 %v7162
        %7477 = vmatpush1.bf16.msra.mxu0 %v7161
        %7478 = vmatprep.subr.bf16.mxu0 %v7158
        %7479 = vmatpush1.bf16.msra.mxu0 %v7157
        %7480 = vmatprep.subr.bf16.mxu0 %v7154
        %7481 = vmatpush1.bf16.msra.mxu0 %v7153
        %7482 = vmatprep.subr.bf16.mxu0 %v7150
        %7483 = vmatpush1.bf16.msra.mxu0 %v7149
        %7484 = vmatprep.subr.bf16.mxu0 %v7146
        %7485 = vmatpush1.bf16.msra.mxu0 %v7145
        %7486 = vmatprep.subr.bf16.mxu0 %v7142
        %7487 = vmatpush1.bf16.msra.mxu0 %v7141
        %7488 = vmatprep.subr.bf16.mxu0 %v7138
        %7489 = vmatpush1.bf16.msra.mxu0 %v7137
        %7490 = vmatprep.subr.bf16.mxu0 %v7134
        %7491 = vmatpush1.bf16.msra.mxu0 %v7133
        %7492 = vmatprep.subr.bf16.mxu0 %v7194
        %7493 = vmatpush2.bf16.msra.mxu0 %v7193
        %7494 = vmatprep.subr.bf16.mxu0 %v7190
        %7495 = vmatpush2.bf16.msra.mxu0 %v7189
        %7496 = vmatprep.subr.bf16.mxu0 %v7186
        %7497 = vmatpush2.bf16.msra.mxu0 %v7185
        %7498 = vmatprep.subr.bf16.mxu0 %v7182
        %7499 = vmatpush2.bf16.msra.mxu0 %v7181
        %7500 = vmatprep.subr.bf16.mxu0 %v7178
        %7501 = vmatpush2.bf16.msra.mxu0 %v7177
        %7502 = vmatprep.subr.bf16.mxu0 %v7174
        %7503 = vmatpush2.bf16.msra.mxu0 %v7173
        %7504 = vmatprep.subr.bf16.mxu0 %v7170
        %7505 = vmatpush2.bf16.msra.mxu0 %v7169
        %7506 = vmatprep.subr.bf16.mxu0 %v7166
        %7507 = vmatpush2.bf16.msra.mxu0 %v7165
        %7508 = vmatprep.mubr.bf16.mxu0 %v6514
        %7509 = vmatmul.mubr.bf16.gmra.mxu0 %v6513
        %v7510 = vpop.f32.mrf.mxu0
        %v7511 = vadd.f32 %v7460, %v7510
        %v7512 = vpop.f32.mrf.mxu0
        %v7513 = vadd.f32 %v7462, %v7512
        %v7514 = vpop.f32.mrf.mxu0
        %v7515 = vadd.f32 %v7464, %v7514
        %v7516 = vpop.f32.mrf.mxu0
        %v7517 = vadd.f32 %v7466, %v7516
        %7518 = vmatprep.mubr.bf16.mxu0 %v6529
        %7519 = vmatmul.mubr.bf16.gmra.mxu0 %v6526
        %v7520 = vpop.f32.mrf.mxu0
        %v7521 = vadd.f32 %v7470, %v7520
        %v7522 = vpop.f32.mrf.mxu0
        %v7523 = vadd.f32 %v7472, %v7522
        %v7524 = vpop.f32.mrf.mxu0
        %v7525 = vpop.f32.mrf.mxu0
        %7526 = vdwg.mxu0
        %v7527 = vadd.f32 %v6537, %v7409
        %v7528 = vadd.f32 %v6541, %v7411
        %v7529 = vadd.f32 %v6545, %v7511
        %v7530 = vadd.f32 %v6549, %v7513
        %v7531 = vadd.f32 %v6537, %v7413
        %v7532 = vadd.f32 %v6541, %v7415
        %v7533 = vadd.f32 %v6545, %v7515
        %v7534 = vadd.f32 %v6549, %v7517
        %v7535 = vadd.f32 %v6537, %v7419
        %v7536 = vadd.f32 %v6541, %v7421
        %v7537 = vadd.f32 %v6545, %v7521
        %v7538 = vadd.f32 %v6549, %v7523
        %s7539 = scalar_lea.vmem [#allocation2], 7168
        %v7540 = vld [vmem:[%s7539] sm:$0xff]
        %v7541 = vld [vmem:[%s7539 + $0x8] sm:$0xff]
        %v7542 = vld [vmem:[%s7539 + $0x10] sm:$0xff]
        %v7543 = vld [vmem:[%s7539 + $0x18] sm:$0xff]
        %v7544 = vld [vmem:[%s7539 + $0x20] sm:$0xff]
        %v7545 = vld [vmem:[%s7539 + $0x28] sm:$0xff]
        %v7546 = vld [vmem:[%s7539 + $0x30] sm:$0xff]
        %v7547 = vld [vmem:[%s7539 + $0x38] sm:$0xff]
        %v7548 = vld [vmem:[%s7539 + $0x40] sm:$0xff]
        %v7549 = vld [vmem:[%s7539 + $0x48] sm:$0xff]
        %v7550 = vld [vmem:[%s7539 + $0x50] sm:$0xff]
        %v7551 = vld [vmem:[%s7539 + $0x58] sm:$0xff]
        %v7552 = vld [vmem:[%s7539 + $0x60] sm:$0xff]
        %v7553 = vld [vmem:[%s7539 + $0x68] sm:$0xff]
        %v7554 = vld [vmem:[%s7539 + $0x70] sm:$0xff]
        %v7555 = vld [vmem:[%s7539 + $0x78] sm:$0xff]
        %v7556 = vld [vmem:[%s7539 + $0x80] sm:$0xff]
        %v7557 = vld [vmem:[%s7539 + $0x88] sm:$0xff]
        %v7558 = vld [vmem:[%s7539 + $0x90] sm:$0xff]
        %v7559 = vld [vmem:[%s7539 + $0x98] sm:$0xff]
        %v7560 = vld [vmem:[%s7539 + $0xa0] sm:$0xff]
        %v7561 = vld [vmem:[%s7539 + $0xa8] sm:$0xff]
        %v7562 = vld [vmem:[%s7539 + $0xb0] sm:$0xff]
        %v7563 = vld [vmem:[%s7539 + $0xb8] sm:$0xff]
        %v7564 = vld [vmem:[%s7539 + $0xc0] sm:$0xff]
        %v7565 = vld [vmem:[%s7539 + $0xc8] sm:$0xff]
        %v7566 = vld [vmem:[%s7539 + $0xd0] sm:$0xff]
        %v7567 = vld [vmem:[%s7539 + $0xd8] sm:$0xff]
        %v7568 = vld [vmem:[%s7539 + $0xe0] sm:$0xff]
        %v7569 = vld [vmem:[%s7539 + $0xe8] sm:$0xff]
        %v7570 = vld [vmem:[%s7539 + $0xf0] sm:$0xff]
        %v7571 = vld [vmem:[%s7539 + $0xf8] sm:$0xff]
        %v7572 = vld [vmem:[%s7539 + $0x100] sm:$0xff]
        %v7573 = vld [vmem:[%s7539 + $0x108] sm:$0xff]
        %v7574 = vld [vmem:[%s7539 + $0x110] sm:$0xff]
        %v7575 = vld [vmem:[%s7539 + $0x118] sm:$0xff]
        %v7576 = vld [vmem:[%s7539 + $0x120] sm:$0xff]
        %v7577 = vld [vmem:[%s7539 + $0x128] sm:$0xff]
        %v7578 = vld [vmem:[%s7539 + $0x130] sm:$0xff]
        %v7579 = vld [vmem:[%s7539 + $0x138] sm:$0xff]
        %v7580 = vld [vmem:[%s7539 + $0x140] sm:$0xff]
        %v7581 = vld [vmem:[%s7539 + $0x148] sm:$0xff]
        %v7582 = vld [vmem:[%s7539 + $0x150] sm:$0xff]
        %v7583 = vld [vmem:[%s7539 + $0x158] sm:$0xff]
        %v7584 = vld [vmem:[%s7539 + $0x160] sm:$0xff]
        %v7585 = vld [vmem:[%s7539 + $0x168] sm:$0xff]
        %v7586 = vld [vmem:[%s7539 + $0x170] sm:$0xff]
        %v7587 = vld [vmem:[%s7539 + $0x178] sm:$0xff]
        %v7588 = vld [vmem:[%s7539 + $0x180] sm:$0xff]
        %v7589 = vld [vmem:[%s7539 + $0x188] sm:$0xff]
        %v7590 = vld [vmem:[%s7539 + $0x190] sm:$0xff]
        %v7591 = vld [vmem:[%s7539 + $0x198] sm:$0xff]
        %v7592 = vld [vmem:[%s7539 + $0x1a0] sm:$0xff]
        %v7593 = vld [vmem:[%s7539 + $0x1a8] sm:$0xff]
        %v7594 = vld [vmem:[%s7539 + $0x1b0] sm:$0xff]
        %v7595 = vld [vmem:[%s7539 + $0x1b8] sm:$0xff]
        %v7596 = vld [vmem:[%s7539 + $0x1c0] sm:$0xff]
        %v7597 = vld [vmem:[%s7539 + $0x1c8] sm:$0xff]
        %v7598 = vld [vmem:[%s7539 + $0x1d0] sm:$0xff]
        %v7599 = vld [vmem:[%s7539 + $0x1d8] sm:$0xff]
        %v7600 = vld [vmem:[%s7539 + $0x1e0] sm:$0xff]
        %v7601 = vld [vmem:[%s7539 + $0x1e8] sm:$0xff]
        %v7602 = vld [vmem:[%s7539 + $0x1f0] sm:$0xff]
        %v7603 = vld [vmem:[%s7539 + $0x1f8] sm:$0xff]
        %v7604 = vld [vmem:[%s7539 + $0x200] sm:$0xff]
        %v7605 = vld [vmem:[%s7539 + $0x208] sm:$0xff]
        %v7606 = vld [vmem:[%s7539 + $0x210] sm:$0xff]
        %v7607 = vld [vmem:[%s7539 + $0x218] sm:$0xff]
        %v7608 = vld [vmem:[%s7539 + $0x220] sm:$0xff]
        %v7609 = vld [vmem:[%s7539 + $0x228] sm:$0xff]
        %v7610 = vld [vmem:[%s7539 + $0x230] sm:$0xff]
        %v7611 = vld [vmem:[%s7539 + $0x238] sm:$0xff]
        %v7612 = vld [vmem:[%s7539 + $0x240] sm:$0xff]
        %v7613 = vld [vmem:[%s7539 + $0x248] sm:$0xff]
        %v7614 = vld [vmem:[%s7539 + $0x250] sm:$0xff]
        %v7615 = vld [vmem:[%s7539 + $0x258] sm:$0xff]
        %v7616 = vld [vmem:[%s7539 + $0x260] sm:$0xff]
        %v7617 = vld [vmem:[%s7539 + $0x268] sm:$0xff]
        %v7618 = vld [vmem:[%s7539 + $0x270] sm:$0xff]
        %v7619 = vld [vmem:[%s7539 + $0x278] sm:$0xff]
        %v7620 = vld [vmem:[%s7539 + $0x280] sm:$0xff]
        %v7621 = vld [vmem:[%s7539 + $0x288] sm:$0xff]
        %v7622 = vld [vmem:[%s7539 + $0x290] sm:$0xff]
        %v7623 = vld [vmem:[%s7539 + $0x298] sm:$0xff]
        %v7624 = vld [vmem:[%s7539 + $0x2a0] sm:$0xff]
        %v7625 = vld [vmem:[%s7539 + $0x2a8] sm:$0xff]
        %v7626 = vld [vmem:[%s7539 + $0x2b0] sm:$0xff]
        %v7627 = vld [vmem:[%s7539 + $0x2b8] sm:$0xff]
        %v7628 = vld [vmem:[%s7539 + $0x2c0] sm:$0xff]
        %v7629 = vld [vmem:[%s7539 + $0x2c8] sm:$0xff]
        %v7630 = vld [vmem:[%s7539 + $0x2d0] sm:$0xff]
        %v7631 = vld [vmem:[%s7539 + $0x2d8] sm:$0xff]
        %v7632 = vld [vmem:[%s7539 + $0x2e0] sm:$0xff]
        %v7633 = vld [vmem:[%s7539 + $0x2e8] sm:$0xff]
        %v7634 = vld [vmem:[%s7539 + $0x2f0] sm:$0xff]
        %v7635 = vld [vmem:[%s7539 + $0x2f8] sm:$0xff]
        %v7636 = vld [vmem:[%s7539 + $0x300] sm:$0xff]
        %v7637 = vld [vmem:[%s7539 + $0x308] sm:$0xff]
        %v7638 = vld [vmem:[%s7539 + $0x310] sm:$0xff]
        %v7639 = vld [vmem:[%s7539 + $0x318] sm:$0xff]
        %v7640 = vld [vmem:[%s7539 + $0x320] sm:$0xff]
        %v7641 = vld [vmem:[%s7539 + $0x328] sm:$0xff]
        %v7642 = vld [vmem:[%s7539 + $0x330] sm:$0xff]
        %v7643 = vld [vmem:[%s7539 + $0x338] sm:$0xff]
        %v7644 = vld [vmem:[%s7539 + $0x340] sm:$0xff]
        %v7645 = vld [vmem:[%s7539 + $0x348] sm:$0xff]
        %v7646 = vld [vmem:[%s7539 + $0x350] sm:$0xff]
        %v7647 = vld [vmem:[%s7539 + $0x358] sm:$0xff]
        %v7648 = vld [vmem:[%s7539 + $0x360] sm:$0xff]
        %v7649 = vld [vmem:[%s7539 + $0x368] sm:$0xff]
        %v7650 = vld [vmem:[%s7539 + $0x370] sm:$0xff]
        %v7651 = vld [vmem:[%s7539 + $0x378] sm:$0xff]
        %v7652 = vld [vmem:[%s7539 + $0x380] sm:$0xff]
        %v7653 = vld [vmem:[%s7539 + $0x388] sm:$0xff]
        %v7654 = vld [vmem:[%s7539 + $0x390] sm:$0xff]
        %v7655 = vld [vmem:[%s7539 + $0x398] sm:$0xff]
        %v7656 = vld [vmem:[%s7539 + $0x3a0] sm:$0xff]
        %v7657 = vld [vmem:[%s7539 + $0x3a8] sm:$0xff]
        %v7658 = vld [vmem:[%s7539 + $0x3b0] sm:$0xff]
        %v7659 = vld [vmem:[%s7539 + $0x3b8] sm:$0xff]
        %v7660 = vld [vmem:[%s7539 + $0x3c0] sm:$0xff]
        %v7661 = vld [vmem:[%s7539 + $0x3c8] sm:$0xff]
        %v7662 = vld [vmem:[%s7539 + $0x3d0] sm:$0xff]
        %v7663 = vld [vmem:[%s7539 + $0x3d8] sm:$0xff]
        %v7664 = vld [vmem:[%s7539 + $0x3e0] sm:$0xff]
        %v7665 = vld [vmem:[%s7539 + $0x3e8] sm:$0xff]
        %v7666 = vld [vmem:[%s7539 + $0x3f0] sm:$0xff]
        %v7667 = vld [vmem:[%s7539 + $0x3f8] sm:$0xff]
        %v7669 = vshrl.u32 %v6511, 16
        %v7671 = vshll.u32 %v6511, 16
        %v7673 = vrot.slane %v7671, 1
        %v7674 = vor.u32 %v7669, %v7673
        %v7675 = vshll.u32 %v6520, 16
        %v7677 = vrot.slane %v7675, 1
        %v7678 = vsel %vm1466, %v7674, %v7677
        %v7680 = vshrl.u32 %v6512, 16
        %v7682 = vshll.u32 %v6512, 16
        %v7684 = vrot.slane %v7682, 1
        %v7685 = vor.u32 %v7680, %v7684
        %v7686 = vshll.u32 %v6523, 16
        %v7688 = vrot.slane %v7686, 1
        %v7689 = vsel %vm1466, %v7685, %v7688
        %v7691 = vshrl.u32 %v6513, 16
        %v7693 = vshll.u32 %v6513, 16
        %v7695 = vrot.slane %v7693, 1
        %v7696 = vor.u32 %v7691, %v7695
        %v7697 = vshll.u32 %v6526, 16
        %v7699 = vrot.slane %v7697, 1
        %v7700 = vsel %vm1466, %v7696, %v7699
        %v7702 = vshrl.u32 %v6514, 16
        %v7704 = vshll.u32 %v6514, 16
        %v7706 = vrot.slane %v7704, 1
        %v7707 = vor.u32 %v7702, %v7706
        %v7708 = vshll.u32 %v6529, 16
        %v7710 = vrot.slane %v7708, 1
        %v7711 = vsel %vm1466, %v7707, %v7710
        %v7712 = vshrl.u32 %v6520, 16
        %v7714 = vor.u32 %v7712, %v7677
        %v7715 = vshrl.u32 %v6523, 16
        %v7717 = vor.u32 %v7715, %v7688
        %v7718 = vshrl.u32 %v6526, 16
        %v7720 = vor.u32 %v7718, %v7699
        %v7721 = vshrl.u32 %v6529, 16
        %v7723 = vor.u32 %v7721, %v7710
        %v7860 = vunpack.c.l.b16 %v7540
        %v7861 = vunpack.c.h.b16 %v7540
        %v7862 = vunpack.c.l.b16 %v7541
        %v7863 = vunpack.c.h.b16 %v7541
        %v7864 = vunpack.c.l.b16 %v7542
        %v7865 = vunpack.c.h.b16 %v7542
        %v7866 = vunpack.c.l.b16 %v7543
        %v7867 = vunpack.c.h.b16 %v7543
        %v7868 = vunpack.c.l.b16 %v7544
        %v7869 = vunpack.c.h.b16 %v7544
        %v7870 = vunpack.c.l.b16 %v7545
        %v7871 = vunpack.c.h.b16 %v7545
        %v7872 = vunpack.c.l.b16 %v7546
        %v7873 = vunpack.c.h.b16 %v7546
        %v7874 = vunpack.c.l.b16 %v7547
        %v7875 = vunpack.c.h.b16 %v7547
        %v7876 = vunpack.c.l.b16 %v7548
        %v7877 = vunpack.c.h.b16 %v7548
        %v7878 = vunpack.c.l.b16 %v7549
        %v7879 = vunpack.c.h.b16 %v7549
        %v7880 = vunpack.c.l.b16 %v7550
        %v7881 = vunpack.c.h.b16 %v7550
        %v7882 = vunpack.c.l.b16 %v7551
        %v7883 = vunpack.c.h.b16 %v7551
        %v7884 = vunpack.c.l.b16 %v7552
        %v7885 = vunpack.c.h.b16 %v7552
        %v7886 = vunpack.c.l.b16 %v7553
        %v7887 = vunpack.c.h.b16 %v7553
        %v7888 = vunpack.c.l.b16 %v7554
        %v7889 = vunpack.c.h.b16 %v7554
        %v7890 = vunpack.c.l.b16 %v7555
        %v7891 = vunpack.c.h.b16 %v7555
        %v7892 = vunpack.c.l.b16 %v7556
        %v7893 = vunpack.c.h.b16 %v7556
        %v7894 = vunpack.c.l.b16 %v7557
        %v7895 = vunpack.c.h.b16 %v7557
        %v7896 = vunpack.c.l.b16 %v7558
        %v7897 = vunpack.c.h.b16 %v7558
        %v7898 = vunpack.c.l.b16 %v7559
        %v7899 = vunpack.c.h.b16 %v7559
        %v7900 = vunpack.c.l.b16 %v7560
        %v7901 = vunpack.c.h.b16 %v7560
        %v7902 = vunpack.c.l.b16 %v7561
        %v7903 = vunpack.c.h.b16 %v7561
        %v7904 = vunpack.c.l.b16 %v7562
        %v7905 = vunpack.c.h.b16 %v7562
        %v7906 = vunpack.c.l.b16 %v7563
        %v7907 = vunpack.c.h.b16 %v7563
        %v7908 = vunpack.c.l.b16 %v7564
        %v7909 = vunpack.c.h.b16 %v7564
        %v7910 = vunpack.c.l.b16 %v7565
        %v7911 = vunpack.c.h.b16 %v7565
        %v7912 = vunpack.c.l.b16 %v7566
        %v7913 = vunpack.c.h.b16 %v7566
        %v7914 = vunpack.c.l.b16 %v7567
        %v7915 = vunpack.c.h.b16 %v7567
        %v7916 = vunpack.c.l.b16 %v7568
        %v7917 = vunpack.c.h.b16 %v7568
        %v7918 = vunpack.c.l.b16 %v7569
        %v7919 = vunpack.c.h.b16 %v7569
        %v7920 = vunpack.c.l.b16 %v7570
        %v7921 = vunpack.c.h.b16 %v7570
        %v7922 = vunpack.c.l.b16 %v7571
        %v7923 = vunpack.c.h.b16 %v7571
        %v7924 = vunpack.c.l.b16 %v7572
        %v7925 = vunpack.c.h.b16 %v7572
        %v7926 = vunpack.c.l.b16 %v7573
        %v7927 = vunpack.c.h.b16 %v7573
        %v7928 = vunpack.c.l.b16 %v7574
        %v7929 = vunpack.c.h.b16 %v7574
        %v7930 = vunpack.c.l.b16 %v7575
        %v7931 = vunpack.c.h.b16 %v7575
        %v7932 = vunpack.c.l.b16 %v7576
        %v7933 = vunpack.c.h.b16 %v7576
        %v7934 = vunpack.c.l.b16 %v7577
        %v7935 = vunpack.c.h.b16 %v7577
        %v7936 = vunpack.c.l.b16 %v7578
        %v7937 = vunpack.c.h.b16 %v7578
        %v7938 = vunpack.c.l.b16 %v7579
        %v7939 = vunpack.c.h.b16 %v7579
        %v7940 = vunpack.c.l.b16 %v7580
        %v7941 = vunpack.c.h.b16 %v7580
        %v7942 = vunpack.c.l.b16 %v7581
        %v7943 = vunpack.c.h.b16 %v7581
        %v7944 = vunpack.c.l.b16 %v7582
        %v7945 = vunpack.c.h.b16 %v7582
        %v7946 = vunpack.c.l.b16 %v7583
        %v7947 = vunpack.c.h.b16 %v7583
        %v7948 = vunpack.c.l.b16 %v7584
        %v7949 = vunpack.c.h.b16 %v7584
        %v7950 = vunpack.c.l.b16 %v7585
        %v7951 = vunpack.c.h.b16 %v7585
        %v7952 = vunpack.c.l.b16 %v7586
        %v7953 = vunpack.c.h.b16 %v7586
        %v7954 = vunpack.c.l.b16 %v7587
        %v7955 = vunpack.c.h.b16 %v7587
        %v7956 = vunpack.c.l.b16 %v7588
        %v7957 = vunpack.c.h.b16 %v7588
        %v7958 = vunpack.c.l.b16 %v7589
        %v7959 = vunpack.c.h.b16 %v7589
        %v7960 = vunpack.c.l.b16 %v7590
        %v7961 = vunpack.c.h.b16 %v7590
        %v7962 = vunpack.c.l.b16 %v7591
        %v7963 = vunpack.c.h.b16 %v7591
        %v7964 = vunpack.c.l.b16 %v7592
        %v7965 = vunpack.c.h.b16 %v7592
        %v7966 = vunpack.c.l.b16 %v7593
        %v7967 = vunpack.c.h.b16 %v7593
        %v7968 = vunpack.c.l.b16 %v7594
        %v7969 = vunpack.c.h.b16 %v7594
        %v7970 = vunpack.c.l.b16 %v7595
        %v7971 = vunpack.c.h.b16 %v7595
        %v7972 = vunpack.c.l.b16 %v7596
        %v7973 = vunpack.c.h.b16 %v7596
        %v7974 = vunpack.c.l.b16 %v7597
        %v7975 = vunpack.c.h.b16 %v7597
        %v7976 = vunpack.c.l.b16 %v7598
        %v7977 = vunpack.c.h.b16 %v7598
        %v7978 = vunpack.c.l.b16 %v7599
        %v7979 = vunpack.c.h.b16 %v7599
        %v7980 = vunpack.c.l.b16 %v7600
        %v7981 = vunpack.c.h.b16 %v7600
        %v7982 = vunpack.c.l.b16 %v7601
        %v7983 = vunpack.c.h.b16 %v7601
        %v7984 = vunpack.c.l.b16 %v7602
        %v7985 = vunpack.c.h.b16 %v7602
        %v7986 = vunpack.c.l.b16 %v7603
        %v7987 = vunpack.c.h.b16 %v7603
        %v7988 = vunpack.c.l.b16 %v7604
        %v7989 = vunpack.c.h.b16 %v7604
        %v7990 = vunpack.c.l.b16 %v7605
        %v7991 = vunpack.c.h.b16 %v7605
        %v7992 = vunpack.c.l.b16 %v7606
        %v7993 = vunpack.c.h.b16 %v7606
        %v7994 = vunpack.c.l.b16 %v7607
        %v7995 = vunpack.c.h.b16 %v7607
        %v7996 = vunpack.c.l.b16 %v7608
        %v7997 = vunpack.c.h.b16 %v7608
        %v7998 = vunpack.c.l.b16 %v7609
        %v7999 = vunpack.c.h.b16 %v7609
        %v8000 = vunpack.c.l.b16 %v7610
        %v8001 = vunpack.c.h.b16 %v7610
        %v8002 = vunpack.c.l.b16 %v7611
        %v8003 = vunpack.c.h.b16 %v7611
        %v8004 = vunpack.c.l.b16 %v7612
        %v8005 = vunpack.c.h.b16 %v7612
        %v8006 = vunpack.c.l.b16 %v7613
        %v8007 = vunpack.c.h.b16 %v7613
        %v8008 = vunpack.c.l.b16 %v7614
        %v8009 = vunpack.c.h.b16 %v7614
        %v8010 = vunpack.c.l.b16 %v7615
        %v8011 = vunpack.c.h.b16 %v7615
        %v8012 = vunpack.c.l.b16 %v7616
        %v8013 = vunpack.c.h.b16 %v7616
        %v8014 = vunpack.c.l.b16 %v7617
        %v8015 = vunpack.c.h.b16 %v7617
        %v8016 = vunpack.c.l.b16 %v7618
        %v8017 = vunpack.c.h.b16 %v7618
        %v8018 = vunpack.c.l.b16 %v7619
        %v8019 = vunpack.c.h.b16 %v7619
        %v8020 = vunpack.c.l.b16 %v7620
        %v8021 = vunpack.c.h.b16 %v7620
        %v8022 = vunpack.c.l.b16 %v7621
        %v8023 = vunpack.c.h.b16 %v7621
        %v8024 = vunpack.c.l.b16 %v7622
        %v8025 = vunpack.c.h.b16 %v7622
        %v8026 = vunpack.c.l.b16 %v7623
        %v8027 = vunpack.c.h.b16 %v7623
        %v8028 = vunpack.c.l.b16 %v7624
        %v8029 = vunpack.c.h.b16 %v7624
        %v8030 = vunpack.c.l.b16 %v7625
        %v8031 = vunpack.c.h.b16 %v7625
        %v8032 = vunpack.c.l.b16 %v7626
        %v8033 = vunpack.c.h.b16 %v7626
        %v8034 = vunpack.c.l.b16 %v7627
        %v8035 = vunpack.c.h.b16 %v7627
        %v8036 = vunpack.c.l.b16 %v7628
        %v8037 = vunpack.c.h.b16 %v7628
        %v8038 = vunpack.c.l.b16 %v7629
        %v8039 = vunpack.c.h.b16 %v7629
        %v8040 = vunpack.c.l.b16 %v7630
        %v8041 = vunpack.c.h.b16 %v7630
        %v8042 = vunpack.c.l.b16 %v7631
        %v8043 = vunpack.c.h.b16 %v7631
        %v8044 = vunpack.c.l.b16 %v7632
        %v8045 = vunpack.c.h.b16 %v7632
        %v8046 = vunpack.c.l.b16 %v7633
        %v8047 = vunpack.c.h.b16 %v7633
        %v8048 = vunpack.c.l.b16 %v7634
        %v8049 = vunpack.c.h.b16 %v7634
        %v8050 = vunpack.c.l.b16 %v7635
        %v8051 = vunpack.c.h.b16 %v7635
        %v8052 = vunpack.c.l.b16 %v7636
        %v8053 = vunpack.c.h.b16 %v7636
        %v8054 = vunpack.c.l.b16 %v7637
        %v8055 = vunpack.c.h.b16 %v7637
        %v8056 = vunpack.c.l.b16 %v7638
        %v8057 = vunpack.c.h.b16 %v7638
        %v8058 = vunpack.c.l.b16 %v7639
        %v8059 = vunpack.c.h.b16 %v7639
        %v8060 = vunpack.c.l.b16 %v7640
        %v8061 = vunpack.c.h.b16 %v7640
        %v8062 = vunpack.c.l.b16 %v7641
        %v8063 = vunpack.c.h.b16 %v7641
        %v8064 = vunpack.c.l.b16 %v7642
        %v8065 = vunpack.c.h.b16 %v7642
        %v8066 = vunpack.c.l.b16 %v7643
        %v8067 = vunpack.c.h.b16 %v7643
        %v8068 = vunpack.c.l.b16 %v7644
        %v8069 = vunpack.c.h.b16 %v7644
        %v8070 = vunpack.c.l.b16 %v7645
        %v8071 = vunpack.c.h.b16 %v7645
        %v8072 = vunpack.c.l.b16 %v7646
        %v8073 = vunpack.c.h.b16 %v7646
        %v8074 = vunpack.c.l.b16 %v7647
        %v8075 = vunpack.c.h.b16 %v7647
        %v8076 = vunpack.c.l.b16 %v7648
        %v8077 = vunpack.c.h.b16 %v7648
        %v8078 = vunpack.c.l.b16 %v7649
        %v8079 = vunpack.c.h.b16 %v7649
        %v8080 = vunpack.c.l.b16 %v7650
        %v8081 = vunpack.c.h.b16 %v7650
        %v8082 = vunpack.c.l.b16 %v7651
        %v8083 = vunpack.c.h.b16 %v7651
        %v8084 = vunpack.c.l.b16 %v7652
        %v8085 = vunpack.c.h.b16 %v7652
        %v8086 = vunpack.c.l.b16 %v7653
        %v8087 = vunpack.c.h.b16 %v7653
        %v8088 = vunpack.c.l.b16 %v7654
        %v8089 = vunpack.c.h.b16 %v7654
        %v8090 = vunpack.c.l.b16 %v7655
        %v8091 = vunpack.c.h.b16 %v7655
        %v8092 = vunpack.c.l.b16 %v7656
        %v8093 = vunpack.c.h.b16 %v7656
        %v8094 = vunpack.c.l.b16 %v7657
        %v8095 = vunpack.c.h.b16 %v7657
        %v8096 = vunpack.c.l.b16 %v7658
        %v8097 = vunpack.c.h.b16 %v7658
        %v8098 = vunpack.c.l.b16 %v7659
        %v8099 = vunpack.c.h.b16 %v7659
        %v8100 = vunpack.c.l.b16 %v7660
        %v8101 = vunpack.c.h.b16 %v7660
        %v8102 = vunpack.c.l.b16 %v7661
        %v8103 = vunpack.c.h.b16 %v7661
        %v8104 = vunpack.c.l.b16 %v7662
        %v8105 = vunpack.c.h.b16 %v7662
        %v8106 = vunpack.c.l.b16 %v7663
        %v8107 = vunpack.c.h.b16 %v7663
        %v8108 = vunpack.c.l.b16 %v7664
        %v8109 = vunpack.c.h.b16 %v7664
        %v8110 = vunpack.c.l.b16 %v7665
        %v8111 = vunpack.c.h.b16 %v7665
        %v8112 = vunpack.c.l.b16 %v7666
        %v8113 = vunpack.c.h.b16 %v7666
        %v8114 = vunpack.c.l.b16 %v7667
        %v8115 = vunpack.c.h.b16 %v7667
        %v8116 = vpack.c.b16 %v7864, %v7860
        %v8117 = vpack.c.b16 %v7865, %v7861
        %v8118 = vpack.c.b16 %v7866, %v7862
        %v8119 = vpack.c.b16 %v7867, %v7863
        %v8120 = vpack.c.b16 %v7872, %v7868
        %v8121 = vpack.c.b16 %v7873, %v7869
        %v8122 = vpack.c.b16 %v7874, %v7870
        %v8123 = vpack.c.b16 %v7875, %v7871
        %v8124 = vpack.c.b16 %v7880, %v7876
        %v8125 = vpack.c.b16 %v7881, %v7877
        %v8126 = vpack.c.b16 %v7882, %v7878
        %v8127 = vpack.c.b16 %v7883, %v7879
        %v8128 = vpack.c.b16 %v7888, %v7884
        %v8129 = vpack.c.b16 %v7889, %v7885
        %v8130 = vpack.c.b16 %v7890, %v7886
        %v8131 = vpack.c.b16 %v7891, %v7887
        %v8132 = vpack.c.b16 %v7896, %v7892
        %v8133 = vpack.c.b16 %v7897, %v7893
        %v8134 = vpack.c.b16 %v7898, %v7894
        %v8135 = vpack.c.b16 %v7899, %v7895
        %v8136 = vpack.c.b16 %v7904, %v7900
        %v8137 = vpack.c.b16 %v7905, %v7901
        %v8138 = vpack.c.b16 %v7906, %v7902
        %v8139 = vpack.c.b16 %v7907, %v7903
        %v8140 = vpack.c.b16 %v7912, %v7908
        %v8141 = vpack.c.b16 %v7913, %v7909
        %v8142 = vpack.c.b16 %v7914, %v7910
        %v8143 = vpack.c.b16 %v7915, %v7911
        %v8144 = vpack.c.b16 %v7920, %v7916
        %v8145 = vpack.c.b16 %v7921, %v7917
        %v8146 = vpack.c.b16 %v7922, %v7918
        %v8147 = vpack.c.b16 %v7923, %v7919
        %v8148 = vpack.c.b16 %v7928, %v7924
        %v8149 = vpack.c.b16 %v7929, %v7925
        %v8150 = vpack.c.b16 %v7930, %v7926
        %v8151 = vpack.c.b16 %v7931, %v7927
        %v8152 = vpack.c.b16 %v7936, %v7932
        %v8153 = vpack.c.b16 %v7937, %v7933
        %v8154 = vpack.c.b16 %v7938, %v7934
        %v8155 = vpack.c.b16 %v7939, %v7935
        %v8156 = vpack.c.b16 %v7944, %v7940
        %v8157 = vpack.c.b16 %v7945, %v7941
        %v8158 = vpack.c.b16 %v7946, %v7942
        %v8159 = vpack.c.b16 %v7947, %v7943
        %v8160 = vpack.c.b16 %v7952, %v7948
        %v8161 = vpack.c.b16 %v7953, %v7949
        %v8162 = vpack.c.b16 %v7954, %v7950
        %v8163 = vpack.c.b16 %v7955, %v7951
        %v8164 = vpack.c.b16 %v7960, %v7956
        %v8165 = vpack.c.b16 %v7961, %v7957
        %v8166 = vpack.c.b16 %v7962, %v7958
        %v8167 = vpack.c.b16 %v7963, %v7959
        %v8168 = vpack.c.b16 %v7968, %v7964
        %v8169 = vpack.c.b16 %v7969, %v7965
        %v8170 = vpack.c.b16 %v7970, %v7966
        %v8171 = vpack.c.b16 %v7971, %v7967
        %v8172 = vpack.c.b16 %v7976, %v7972
        %v8173 = vpack.c.b16 %v7977, %v7973
        %v8174 = vpack.c.b16 %v7978, %v7974
        %v8175 = vpack.c.b16 %v7979, %v7975
        %v8176 = vpack.c.b16 %v7984, %v7980
        %v8177 = vpack.c.b16 %v7985, %v7981
        %v8178 = vpack.c.b16 %v7986, %v7982
        %v8179 = vpack.c.b16 %v7987, %v7983
        %v8180 = vpack.c.b16 %v7992, %v7988
        %v8181 = vpack.c.b16 %v7993, %v7989
        %v8182 = vpack.c.b16 %v7994, %v7990
        %v8183 = vpack.c.b16 %v7995, %v7991
        %v8184 = vpack.c.b16 %v8000, %v7996
        %v8185 = vpack.c.b16 %v8001, %v7997
        %v8186 = vpack.c.b16 %v8002, %v7998
        %v8187 = vpack.c.b16 %v8003, %v7999
        %v8188 = vpack.c.b16 %v8008, %v8004
        %v8189 = vpack.c.b16 %v8009, %v8005
        %v8190 = vpack.c.b16 %v8010, %v8006
        %v8191 = vpack.c.b16 %v8011, %v8007
        %v8192 = vpack.c.b16 %v8016, %v8012
        %v8193 = vpack.c.b16 %v8017, %v8013
        %v8194 = vpack.c.b16 %v8018, %v8014
        %v8195 = vpack.c.b16 %v8019, %v8015
        %v8196 = vpack.c.b16 %v8024, %v8020
        %v8197 = vpack.c.b16 %v8025, %v8021
        %v8198 = vpack.c.b16 %v8026, %v8022
        %v8199 = vpack.c.b16 %v8027, %v8023
        %v8200 = vpack.c.b16 %v8032, %v8028
        %v8201 = vpack.c.b16 %v8033, %v8029
        %v8202 = vpack.c.b16 %v8034, %v8030
        %v8203 = vpack.c.b16 %v8035, %v8031
        %v8204 = vpack.c.b16 %v8040, %v8036
        %v8205 = vpack.c.b16 %v8041, %v8037
        %v8206 = vpack.c.b16 %v8042, %v8038
        %v8207 = vpack.c.b16 %v8043, %v8039
        %v8208 = vpack.c.b16 %v8048, %v8044
        %v8209 = vpack.c.b16 %v8049, %v8045
        %v8210 = vpack.c.b16 %v8050, %v8046
        %v8211 = vpack.c.b16 %v8051, %v8047
        %v8212 = vpack.c.b16 %v8056, %v8052
        %v8213 = vpack.c.b16 %v8057, %v8053
        %v8214 = vpack.c.b16 %v8058, %v8054
        %v8215 = vpack.c.b16 %v8059, %v8055
        %v8216 = vpack.c.b16 %v8064, %v8060
        %v8217 = vpack.c.b16 %v8065, %v8061
        %v8218 = vpack.c.b16 %v8066, %v8062
        %v8219 = vpack.c.b16 %v8067, %v8063
        %v8220 = vpack.c.b16 %v8072, %v8068
        %v8221 = vpack.c.b16 %v8073, %v8069
        %v8222 = vpack.c.b16 %v8074, %v8070
        %v8223 = vpack.c.b16 %v8075, %v8071
        %v8224 = vpack.c.b16 %v8080, %v8076
        %v8225 = vpack.c.b16 %v8081, %v8077
        %v8226 = vpack.c.b16 %v8082, %v8078
        %v8227 = vpack.c.b16 %v8083, %v8079
        %v8228 = vpack.c.b16 %v8088, %v8084
        %v8229 = vpack.c.b16 %v8089, %v8085
        %v8230 = vpack.c.b16 %v8090, %v8086
        %v8231 = vpack.c.b16 %v8091, %v8087
        %v8232 = vpack.c.b16 %v8096, %v8092
        %v8233 = vpack.c.b16 %v8097, %v8093
        %v8234 = vpack.c.b16 %v8098, %v8094
        %v8235 = vpack.c.b16 %v8099, %v8095
        %v8236 = vpack.c.b16 %v8104, %v8100
        %v8237 = vpack.c.b16 %v8105, %v8101
        %v8238 = vpack.c.b16 %v8106, %v8102
        %v8239 = vpack.c.b16 %v8107, %v8103
        %v8240 = vpack.c.b16 %v8112, %v8108
        %v8241 = vpack.c.b16 %v8113, %v8109
        %v8242 = vpack.c.b16 %v8114, %v8110
        %v8243 = vpack.c.b16 %v8115, %v8111
        %8372 = vmatprep.subr.bf16.mxu0 %v8145
        %8373 = vmatpush1.bf16.msra.mxu0 %v8144
        %8374 = vmatprep.subr.bf16.mxu0 %v8141
        %8375 = vmatpush1.bf16.msra.mxu0 %v8140
        %8376 = vmatprep.subr.bf16.mxu0 %v8137
        %8377 = vmatpush1.bf16.msra.mxu0 %v8136
        %8378 = vmatprep.subr.bf16.mxu0 %v8133
        %8379 = vmatpush1.bf16.msra.mxu0 %v8132
        %8380 = vmatprep.subr.bf16.mxu0 %v8129
        %8381 = vmatpush1.bf16.msra.mxu0 %v8128
        %8382 = vmatprep.subr.bf16.mxu0 %v8125
        %8383 = vmatpush1.bf16.msra.mxu0 %v8124
        %8384 = vmatprep.subr.bf16.mxu0 %v8121
        %8385 = vmatpush1.bf16.msra.mxu0 %v8120
        %8386 = vmatprep.subr.bf16.mxu0 %v8117
        %8387 = vmatpush1.bf16.msra.mxu0 %v8116
        %8388 = vmatprep.subr.bf16.mxu0 %v8177
        %8389 = vmatpush2.bf16.msra.mxu0 %v8176
        %8390 = vmatprep.subr.bf16.mxu0 %v8173
        %8391 = vmatpush2.bf16.msra.mxu0 %v8172
        %8392 = vmatprep.subr.bf16.mxu0 %v8169
        %8393 = vmatpush2.bf16.msra.mxu0 %v8168
        %8394 = vmatprep.subr.bf16.mxu0 %v8165
        %8395 = vmatpush2.bf16.msra.mxu0 %v8164
        %8396 = vmatprep.subr.bf16.mxu0 %v8161
        %8397 = vmatpush2.bf16.msra.mxu0 %v8160
        %8398 = vmatprep.subr.bf16.mxu0 %v8157
        %8399 = vmatpush2.bf16.msra.mxu0 %v8156
        %8400 = vmatprep.subr.bf16.mxu0 %v8153
        %8401 = vmatpush2.bf16.msra.mxu0 %v8152
        %8402 = vmatprep.subr.bf16.mxu0 %v8149
        %8403 = vmatpush2.bf16.msra.mxu0 %v8148
        %8404 = vmatprep.mubr.bf16.mxu0 %v7689
        %8405 = vmatmul.mubr.bf16.gmra.mxu0 %v7678
        %v8406 = vpop.f32.mrf.mxu0
        %v8407 = vadd.f32 0.0, %v8406
        %v8408 = vpop.f32.mrf.mxu0
        %v8409 = vadd.f32 0.0, %v8408
        %v8410 = vpop.f32.mrf.mxu0
        %v8411 = vadd.f32 0.0, %v8410
        %v8412 = vpop.f32.mrf.mxu0
        %v8413 = vadd.f32 0.0, %v8412
        %8414 = vmatprep.mubr.bf16.mxu0 %v7717
        %8415 = vmatmul.mubr.bf16.gmra.mxu0 %v7714
        %v8416 = vpop.f32.mrf.mxu0
        %v8417 = vadd.f32 0.0, %v8416
        %v8418 = vpop.f32.mrf.mxu0
        %v8419 = vadd.f32 0.0, %v8418
        %v8420 = vpop.f32.mrf.mxu0
        %v8421 = vpop.f32.mrf.mxu0
        %8422 = vdwg.mxu0
        %8423 = vmatprep.subr.bf16.mxu0 %v8209
        %8424 = vmatpush1.bf16.msra.mxu0 %v8208
        %8425 = vmatprep.subr.bf16.mxu0 %v8205
        %8426 = vmatpush1.bf16.msra.mxu0 %v8204
        %8427 = vmatprep.subr.bf16.mxu0 %v8201
        %8428 = vmatpush1.bf16.msra.mxu0 %v8200
        %8429 = vmatprep.subr.bf16.mxu0 %v8197
        %8430 = vmatpush1.bf16.msra.mxu0 %v8196
        %8431 = vmatprep.subr.bf16.mxu0 %v8193
        %8432 = vmatpush1.bf16.msra.mxu0 %v8192
        %8433 = vmatprep.subr.bf16.mxu0 %v8189
        %8434 = vmatpush1.bf16.msra.mxu0 %v8188
        %8435 = vmatprep.subr.bf16.mxu0 %v8185
        %8436 = vmatpush1.bf16.msra.mxu0 %v8184
        %8437 = vmatprep.subr.bf16.mxu0 %v8181
        %8438 = vmatpush1.bf16.msra.mxu0 %v8180
        %8439 = vmatprep.subr.bf16.mxu0 %v8241
        %8440 = vmatpush2.bf16.msra.mxu0 %v8240
        %8441 = vmatprep.subr.bf16.mxu0 %v8237
        %8442 = vmatpush2.bf16.msra.mxu0 %v8236
        %8443 = vmatprep.subr.bf16.mxu0 %v8233
        %8444 = vmatpush2.bf16.msra.mxu0 %v8232
        %8445 = vmatprep.subr.bf16.mxu0 %v8229
        %8446 = vmatpush2.bf16.msra.mxu0 %v8228
        %8447 = vmatprep.subr.bf16.mxu0 %v8225
        %8448 = vmatpush2.bf16.msra.mxu0 %v8224
        %8449 = vmatprep.subr.bf16.mxu0 %v8221
        %8450 = vmatpush2.bf16.msra.mxu0 %v8220
        %8451 = vmatprep.subr.bf16.mxu0 %v8217
        %8452 = vmatpush2.bf16.msra.mxu0 %v8216
        %8453 = vmatprep.subr.bf16.mxu0 %v8213
        %8454 = vmatpush2.bf16.msra.mxu0 %v8212
        %8455 = vmatprep.mubr.bf16.mxu0 %v7711
        %8456 = vmatmul.mubr.bf16.gmra.mxu0 %v7700
        %v8457 = vpop.f32.mrf.mxu0
        %v8458 = vadd.f32 %v8407, %v8457
        %v8459 = vpop.f32.mrf.mxu0
        %v8460 = vadd.f32 %v8409, %v8459
        %v8461 = vpop.f32.mrf.mxu0
        %v8462 = vadd.f32 %v8411, %v8461
        %v8463 = vpop.f32.mrf.mxu0
        %v8464 = vadd.f32 %v8413, %v8463
        %8465 = vmatprep.mubr.bf16.mxu0 %v7723
        %8466 = vmatmul.mubr.bf16.gmra.mxu0 %v7720
        %v8467 = vpop.f32.mrf.mxu0
        %v8468 = vadd.f32 %v8417, %v8467
        %v8469 = vpop.f32.mrf.mxu0
        %v8470 = vadd.f32 %v8419, %v8469
        %v8471 = vpop.f32.mrf.mxu0
        %v8472 = vpop.f32.mrf.mxu0
        %8473 = vdwg.mxu0
        %8474 = vmatprep.subr.bf16.mxu0 %v8147
        %8475 = vmatpush1.bf16.msra.mxu0 %v8146
        %8476 = vmatprep.subr.bf16.mxu0 %v8143
        %8477 = vmatpush1.bf16.msra.mxu0 %v8142
        %8478 = vmatprep.subr.bf16.mxu0 %v8139
        %8479 = vmatpush1.bf16.msra.mxu0 %v8138
        %8480 = vmatprep.subr.bf16.mxu0 %v8135
        %8481 = vmatpush1.bf16.msra.mxu0 %v8134
        %8482 = vmatprep.subr.bf16.mxu0 %v8131
        %8483 = vmatpush1.bf16.msra.mxu0 %v8130
        %8484 = vmatprep.subr.bf16.mxu0 %v8127
        %8485 = vmatpush1.bf16.msra.mxu0 %v8126
        %8486 = vmatprep.subr.bf16.mxu0 %v8123
        %8487 = vmatpush1.bf16.msra.mxu0 %v8122
        %8488 = vmatprep.subr.bf16.mxu0 %v8119
        %8489 = vmatpush1.bf16.msra.mxu0 %v8118
        %8490 = vmatprep.subr.bf16.mxu0 %v8179
        %8491 = vmatpush2.bf16.msra.mxu0 %v8178
        %8492 = vmatprep.subr.bf16.mxu0 %v8175
        %8493 = vmatpush2.bf16.msra.mxu0 %v8174
        %8494 = vmatprep.subr.bf16.mxu0 %v8171
        %8495 = vmatpush2.bf16.msra.mxu0 %v8170
        %8496 = vmatprep.subr.bf16.mxu0 %v8167
        %8497 = vmatpush2.bf16.msra.mxu0 %v8166
        %8498 = vmatprep.subr.bf16.mxu0 %v8163
        %8499 = vmatpush2.bf16.msra.mxu0 %v8162
        %8500 = vmatprep.subr.bf16.mxu0 %v8159
        %8501 = vmatpush2.bf16.msra.mxu0 %v8158
        %8502 = vmatprep.subr.bf16.mxu0 %v8155
        %8503 = vmatpush2.bf16.msra.mxu0 %v8154
        %8504 = vmatprep.subr.bf16.mxu0 %v8151
        %8505 = vmatpush2.bf16.msra.mxu0 %v8150
        %8506 = vmatprep.mubr.bf16.mxu0 %v7689
        %8507 = vmatmul.mubr.bf16.gmra.mxu0 %v7678
        %v8508 = vpop.f32.mrf.mxu0
        %v8509 = vadd.f32 0.0, %v8508
        %v8510 = vpop.f32.mrf.mxu0
        %v8511 = vadd.f32 0.0, %v8510
        %v8512 = vpop.f32.mrf.mxu0
        %v8513 = vadd.f32 0.0, %v8512
        %v8514 = vpop.f32.mrf.mxu0
        %v8515 = vadd.f32 0.0, %v8514
        %8516 = vmatprep.mubr.bf16.mxu0 %v7717
        %8517 = vmatmul.mubr.bf16.gmra.mxu0 %v7714
        %v8518 = vpop.f32.mrf.mxu0
        %v8519 = vadd.f32 0.0, %v8518
        %v8520 = vpop.f32.mrf.mxu0
        %v8521 = vadd.f32 0.0, %v8520
        %v8522 = vpop.f32.mrf.mxu0
        %v8523 = vpop.f32.mrf.mxu0
        %8524 = vdwg.mxu0
        %8525 = vmatprep.subr.bf16.mxu0 %v8211
        %8526 = vmatpush1.bf16.msra.mxu0 %v8210
        %8527 = vmatprep.subr.bf16.mxu0 %v8207
        %8528 = vmatpush1.bf16.msra.mxu0 %v8206
        %8529 = vmatprep.subr.bf16.mxu0 %v8203
        %8530 = vmatpush1.bf16.msra.mxu0 %v8202
        %8531 = vmatprep.subr.bf16.mxu0 %v8199
        %8532 = vmatpush1.bf16.msra.mxu0 %v8198
        %8533 = vmatprep.subr.bf16.mxu0 %v8195
        %8534 = vmatpush1.bf16.msra.mxu0 %v8194
        %8535 = vmatprep.subr.bf16.mxu0 %v8191
        %8536 = vmatpush1.bf16.msra.mxu0 %v8190
        %8537 = vmatprep.subr.bf16.mxu0 %v8187
        %8538 = vmatpush1.bf16.msra.mxu0 %v8186
        %8539 = vmatprep.subr.bf16.mxu0 %v8183
        %8540 = vmatpush1.bf16.msra.mxu0 %v8182
        %8541 = vmatprep.subr.bf16.mxu0 %v8243
        %8542 = vmatpush2.bf16.msra.mxu0 %v8242
        %8543 = vmatprep.subr.bf16.mxu0 %v8239
        %8544 = vmatpush2.bf16.msra.mxu0 %v8238
        %8545 = vmatprep.subr.bf16.mxu0 %v8235
        %8546 = vmatpush2.bf16.msra.mxu0 %v8234
        %8547 = vmatprep.subr.bf16.mxu0 %v8231
        %8548 = vmatpush2.bf16.msra.mxu0 %v8230
        %8549 = vmatprep.subr.bf16.mxu0 %v8227
        %8550 = vmatpush2.bf16.msra.mxu0 %v8226
        %8551 = vmatprep.subr.bf16.mxu0 %v8223
        %8552 = vmatpush2.bf16.msra.mxu0 %v8222
        %8553 = vmatprep.subr.bf16.mxu0 %v8219
        %8554 = vmatpush2.bf16.msra.mxu0 %v8218
        %8555 = vmatprep.subr.bf16.mxu0 %v8215
        %8556 = vmatpush2.bf16.msra.mxu0 %v8214
        %8557 = vmatprep.mubr.bf16.mxu0 %v7711
        %8558 = vmatmul.mubr.bf16.gmra.mxu0 %v7700
        %v8559 = vpop.f32.mrf.mxu0
        %v8560 = vadd.f32 %v8509, %v8559
        %v8561 = vpop.f32.mrf.mxu0
        %v8562 = vadd.f32 %v8511, %v8561
        %v8563 = vpop.f32.mrf.mxu0
        %v8564 = vadd.f32 %v8513, %v8563
        %v8565 = vpop.f32.mrf.mxu0
        %v8566 = vadd.f32 %v8515, %v8565
        %8567 = vmatprep.mubr.bf16.mxu0 %v7723
        %8568 = vmatmul.mubr.bf16.gmra.mxu0 %v7720
        %v8569 = vpop.f32.mrf.mxu0
        %v8570 = vadd.f32 %v8519, %v8569
        %v8571 = vpop.f32.mrf.mxu0
        %v8572 = vadd.f32 %v8521, %v8571
        %v8573 = vpop.f32.mrf.mxu0
        %v8574 = vpop.f32.mrf.mxu0
        %8575 = vdwg.mxu0
        %v8576 = vadd.f32 %v7527, %v8458
        %v8577 = vadd.f32 %v7528, %v8460
        %v8578 = vadd.f32 %v7529, %v8560
        %v8579 = vadd.f32 %v7530, %v8562
        %v8580 = vadd.f32 %v7531, %v8462
        %v8581 = vadd.f32 %v7532, %v8464
        %v8582 = vadd.f32 %v7533, %v8564
        %v8583 = vadd.f32 %v7534, %v8566
        %v8584 = vadd.f32 %v7535, %v8468
        %v8585 = vadd.f32 %v7536, %v8470
        %v8586 = vadd.f32 %v7537, %v8570
        %v8587 = vadd.f32 %v7538, %v8572
        %s8588 = scalar_lea.vmem [#allocation2], 8192
        %v8589 = vld [vmem:[%s8588] sm:$0xff]
        %v8590 = vld [vmem:[%s8588 + $0x8] sm:$0xff]
        %v8591 = vld [vmem:[%s8588 + $0x10] sm:$0xff]
        %v8592 = vld [vmem:[%s8588 + $0x18] sm:$0xff]
        %v8593 = vld [vmem:[%s8588 + $0x20] sm:$0xff]
        %v8594 = vld [vmem:[%s8588 + $0x28] sm:$0xff]
        %v8595 = vld [vmem:[%s8588 + $0x30] sm:$0xff]
        %v8596 = vld [vmem:[%s8588 + $0x38] sm:$0xff]
        %v8597 = vld [vmem:[%s8588 + $0x40] sm:$0xff]
        %v8598 = vld [vmem:[%s8588 + $0x48] sm:$0xff]
        %v8599 = vld [vmem:[%s8588 + $0x50] sm:$0xff]
        %v8600 = vld [vmem:[%s8588 + $0x58] sm:$0xff]
        %v8601 = vld [vmem:[%s8588 + $0x60] sm:$0xff]
        %v8602 = vld [vmem:[%s8588 + $0x68] sm:$0xff]
        %v8603 = vld [vmem:[%s8588 + $0x70] sm:$0xff]
        %v8604 = vld [vmem:[%s8588 + $0x78] sm:$0xff]
        %v8605 = vld [vmem:[%s8588 + $0x80] sm:$0xff]
        %v8606 = vld [vmem:[%s8588 + $0x88] sm:$0xff]
        %v8607 = vld [vmem:[%s8588 + $0x90] sm:$0xff]
        %v8608 = vld [vmem:[%s8588 + $0x98] sm:$0xff]
        %v8609 = vld [vmem:[%s8588 + $0xa0] sm:$0xff]
        %v8610 = vld [vmem:[%s8588 + $0xa8] sm:$0xff]
        %v8611 = vld [vmem:[%s8588 + $0xb0] sm:$0xff]
        %v8612 = vld [vmem:[%s8588 + $0xb8] sm:$0xff]
        %v8613 = vld [vmem:[%s8588 + $0xc0] sm:$0xff]
        %v8614 = vld [vmem:[%s8588 + $0xc8] sm:$0xff]
        %v8615 = vld [vmem:[%s8588 + $0xd0] sm:$0xff]
        %v8616 = vld [vmem:[%s8588 + $0xd8] sm:$0xff]
        %v8617 = vld [vmem:[%s8588 + $0xe0] sm:$0xff]
        %v8618 = vld [vmem:[%s8588 + $0xe8] sm:$0xff]
        %v8619 = vld [vmem:[%s8588 + $0xf0] sm:$0xff]
        %v8620 = vld [vmem:[%s8588 + $0xf8] sm:$0xff]
        %v8621 = vld [vmem:[%s8588 + $0x100] sm:$0xff]
        %v8622 = vld [vmem:[%s8588 + $0x108] sm:$0xff]
        %v8623 = vld [vmem:[%s8588 + $0x110] sm:$0xff]
        %v8624 = vld [vmem:[%s8588 + $0x118] sm:$0xff]
        %v8625 = vld [vmem:[%s8588 + $0x120] sm:$0xff]
        %v8626 = vld [vmem:[%s8588 + $0x128] sm:$0xff]
        %v8627 = vld [vmem:[%s8588 + $0x130] sm:$0xff]
        %v8628 = vld [vmem:[%s8588 + $0x138] sm:$0xff]
        %v8629 = vld [vmem:[%s8588 + $0x140] sm:$0xff]
        %v8630 = vld [vmem:[%s8588 + $0x148] sm:$0xff]
        %v8631 = vld [vmem:[%s8588 + $0x150] sm:$0xff]
        %v8632 = vld [vmem:[%s8588 + $0x158] sm:$0xff]
        %v8633 = vld [vmem:[%s8588 + $0x160] sm:$0xff]
        %v8634 = vld [vmem:[%s8588 + $0x168] sm:$0xff]
        %v8635 = vld [vmem:[%s8588 + $0x170] sm:$0xff]
        %v8636 = vld [vmem:[%s8588 + $0x178] sm:$0xff]
        %v8637 = vld [vmem:[%s8588 + $0x180] sm:$0xff]
        %v8638 = vld [vmem:[%s8588 + $0x188] sm:$0xff]
        %v8639 = vld [vmem:[%s8588 + $0x190] sm:$0xff]
        %v8640 = vld [vmem:[%s8588 + $0x198] sm:$0xff]
        %v8641 = vld [vmem:[%s8588 + $0x1a0] sm:$0xff]
        %v8642 = vld [vmem:[%s8588 + $0x1a8] sm:$0xff]
        %v8643 = vld [vmem:[%s8588 + $0x1b0] sm:$0xff]
        %v8644 = vld [vmem:[%s8588 + $0x1b8] sm:$0xff]
        %v8645 = vld [vmem:[%s8588 + $0x1c0] sm:$0xff]
        %v8646 = vld [vmem:[%s8588 + $0x1c8] sm:$0xff]
        %v8647 = vld [vmem:[%s8588 + $0x1d0] sm:$0xff]
        %v8648 = vld [vmem:[%s8588 + $0x1d8] sm:$0xff]
        %v8649 = vld [vmem:[%s8588 + $0x1e0] sm:$0xff]
        %v8650 = vld [vmem:[%s8588 + $0x1e8] sm:$0xff]
        %v8651 = vld [vmem:[%s8588 + $0x1f0] sm:$0xff]
        %v8652 = vld [vmem:[%s8588 + $0x1f8] sm:$0xff]
        %v8653 = vld [vmem:[%s8588 + $0x200] sm:$0xff]
        %v8654 = vld [vmem:[%s8588 + $0x208] sm:$0xff]
        %v8655 = vld [vmem:[%s8588 + $0x210] sm:$0xff]
        %v8656 = vld [vmem:[%s8588 + $0x218] sm:$0xff]
        %v8657 = vld [vmem:[%s8588 + $0x220] sm:$0xff]
        %v8658 = vld [vmem:[%s8588 + $0x228] sm:$0xff]
        %v8659 = vld [vmem:[%s8588 + $0x230] sm:$0xff]
        %v8660 = vld [vmem:[%s8588 + $0x238] sm:$0xff]
        %v8661 = vld [vmem:[%s8588 + $0x240] sm:$0xff]
        %v8662 = vld [vmem:[%s8588 + $0x248] sm:$0xff]
        %v8663 = vld [vmem:[%s8588 + $0x250] sm:$0xff]
        %v8664 = vld [vmem:[%s8588 + $0x258] sm:$0xff]
        %v8665 = vld [vmem:[%s8588 + $0x260] sm:$0xff]
        %v8666 = vld [vmem:[%s8588 + $0x268] sm:$0xff]
        %v8667 = vld [vmem:[%s8588 + $0x270] sm:$0xff]
        %v8668 = vld [vmem:[%s8588 + $0x278] sm:$0xff]
        %v8669 = vld [vmem:[%s8588 + $0x280] sm:$0xff]
        %v8670 = vld [vmem:[%s8588 + $0x288] sm:$0xff]
        %v8671 = vld [vmem:[%s8588 + $0x290] sm:$0xff]
        %v8672 = vld [vmem:[%s8588 + $0x298] sm:$0xff]
        %v8673 = vld [vmem:[%s8588 + $0x2a0] sm:$0xff]
        %v8674 = vld [vmem:[%s8588 + $0x2a8] sm:$0xff]
        %v8675 = vld [vmem:[%s8588 + $0x2b0] sm:$0xff]
        %v8676 = vld [vmem:[%s8588 + $0x2b8] sm:$0xff]
        %v8677 = vld [vmem:[%s8588 + $0x2c0] sm:$0xff]
        %v8678 = vld [vmem:[%s8588 + $0x2c8] sm:$0xff]
        %v8679 = vld [vmem:[%s8588 + $0x2d0] sm:$0xff]
        %v8680 = vld [vmem:[%s8588 + $0x2d8] sm:$0xff]
        %v8681 = vld [vmem:[%s8588 + $0x2e0] sm:$0xff]
        %v8682 = vld [vmem:[%s8588 + $0x2e8] sm:$0xff]
        %v8683 = vld [vmem:[%s8588 + $0x2f0] sm:$0xff]
        %v8684 = vld [vmem:[%s8588 + $0x2f8] sm:$0xff]
        %v8685 = vld [vmem:[%s8588 + $0x300] sm:$0xff]
        %v8686 = vld [vmem:[%s8588 + $0x308] sm:$0xff]
        %v8687 = vld [vmem:[%s8588 + $0x310] sm:$0xff]
        %v8688 = vld [vmem:[%s8588 + $0x318] sm:$0xff]
        %v8689 = vld [vmem:[%s8588 + $0x320] sm:$0xff]
        %v8690 = vld [vmem:[%s8588 + $0x328] sm:$0xff]
        %v8691 = vld [vmem:[%s8588 + $0x330] sm:$0xff]
        %v8692 = vld [vmem:[%s8588 + $0x338] sm:$0xff]
        %v8693 = vld [vmem:[%s8588 + $0x340] sm:$0xff]
        %v8694 = vld [vmem:[%s8588 + $0x348] sm:$0xff]
        %v8695 = vld [vmem:[%s8588 + $0x350] sm:$0xff]
        %v8696 = vld [vmem:[%s8588 + $0x358] sm:$0xff]
        %v8697 = vld [vmem:[%s8588 + $0x360] sm:$0xff]
        %v8698 = vld [vmem:[%s8588 + $0x368] sm:$0xff]
        %v8699 = vld [vmem:[%s8588 + $0x370] sm:$0xff]
        %v8700 = vld [vmem:[%s8588 + $0x378] sm:$0xff]
        %v8701 = vld [vmem:[%s8588 + $0x380] sm:$0xff]
        %v8702 = vld [vmem:[%s8588 + $0x388] sm:$0xff]
        %v8703 = vld [vmem:[%s8588 + $0x390] sm:$0xff]
        %v8704 = vld [vmem:[%s8588 + $0x398] sm:$0xff]
        %v8705 = vld [vmem:[%s8588 + $0x3a0] sm:$0xff]
        %v8706 = vld [vmem:[%s8588 + $0x3a8] sm:$0xff]
        %v8707 = vld [vmem:[%s8588 + $0x3b0] sm:$0xff]
        %v8708 = vld [vmem:[%s8588 + $0x3b8] sm:$0xff]
        %v8709 = vld [vmem:[%s8588 + $0x3c0] sm:$0xff]
        %v8710 = vld [vmem:[%s8588 + $0x3c8] sm:$0xff]
        %v8711 = vld [vmem:[%s8588 + $0x3d0] sm:$0xff]
        %v8712 = vld [vmem:[%s8588 + $0x3d8] sm:$0xff]
        %v8713 = vld [vmem:[%s8588 + $0x3e0] sm:$0xff]
        %v8714 = vld [vmem:[%s8588 + $0x3e8] sm:$0xff]
        %v8715 = vld [vmem:[%s8588 + $0x3f0] sm:$0xff]
        %v8716 = vld [vmem:[%s8588 + $0x3f8] sm:$0xff]
        %v8725 = vrot.slane %v6511, 1
        %v8726 = vrot.slane %v6520, 1
        %v8727 = vsel %vm2520, %v8725, %v8726
        %v8728 = vrot.slane %v6512, 1
        %v8729 = vrot.slane %v6523, 1
        %v8730 = vsel %vm2520, %v8728, %v8729
        %v8731 = vrot.slane %v6513, 1
        %v8732 = vrot.slane %v6526, 1
        %v8733 = vsel %vm2520, %v8731, %v8732
        %v8734 = vrot.slane %v6514, 1
        %v8735 = vrot.slane %v6529, 1
        %v8736 = vsel %vm2520, %v8734, %v8735
        %v8873 = vunpack.c.l.b16 %v8589
        %v8874 = vunpack.c.h.b16 %v8589
        %v8875 = vunpack.c.l.b16 %v8590
        %v8876 = vunpack.c.h.b16 %v8590
        %v8877 = vunpack.c.l.b16 %v8591
        %v8878 = vunpack.c.h.b16 %v8591
        %v8879 = vunpack.c.l.b16 %v8592
        %v8880 = vunpack.c.h.b16 %v8592
        %v8881 = vunpack.c.l.b16 %v8593
        %v8882 = vunpack.c.h.b16 %v8593
        %v8883 = vunpack.c.l.b16 %v8594
        %v8884 = vunpack.c.h.b16 %v8594
        %v8885 = vunpack.c.l.b16 %v8595
        %v8886 = vunpack.c.h.b16 %v8595
        %v8887 = vunpack.c.l.b16 %v8596
        %v8888 = vunpack.c.h.b16 %v8596
        %v8889 = vunpack.c.l.b16 %v8597
        %v8890 = vunpack.c.h.b16 %v8597
        %v8891 = vunpack.c.l.b16 %v8598
        %v8892 = vunpack.c.h.b16 %v8598
        %v8893 = vunpack.c.l.b16 %v8599
        %v8894 = vunpack.c.h.b16 %v8599
        %v8895 = vunpack.c.l.b16 %v8600
        %v8896 = vunpack.c.h.b16 %v8600
        %v8897 = vunpack.c.l.b16 %v8601
        %v8898 = vunpack.c.h.b16 %v8601
        %v8899 = vunpack.c.l.b16 %v8602
        %v8900 = vunpack.c.h.b16 %v8602
        %v8901 = vunpack.c.l.b16 %v8603
        %v8902 = vunpack.c.h.b16 %v8603
        %v8903 = vunpack.c.l.b16 %v8604
        %v8904 = vunpack.c.h.b16 %v8604
        %v8905 = vunpack.c.l.b16 %v8605
        %v8906 = vunpack.c.h.b16 %v8605
        %v8907 = vunpack.c.l.b16 %v8606
        %v8908 = vunpack.c.h.b16 %v8606
        %v8909 = vunpack.c.l.b16 %v8607
        %v8910 = vunpack.c.h.b16 %v8607
        %v8911 = vunpack.c.l.b16 %v8608
        %v8912 = vunpack.c.h.b16 %v8608
        %v8913 = vunpack.c.l.b16 %v8609
        %v8914 = vunpack.c.h.b16 %v8609
        %v8915 = vunpack.c.l.b16 %v8610
        %v8916 = vunpack.c.h.b16 %v8610
        %v8917 = vunpack.c.l.b16 %v8611
        %v8918 = vunpack.c.h.b16 %v8611
        %v8919 = vunpack.c.l.b16 %v8612
        %v8920 = vunpack.c.h.b16 %v8612
        %v8921 = vunpack.c.l.b16 %v8613
        %v8922 = vunpack.c.h.b16 %v8613
        %v8923 = vunpack.c.l.b16 %v8614
        %v8924 = vunpack.c.h.b16 %v8614
        %v8925 = vunpack.c.l.b16 %v8615
        %v8926 = vunpack.c.h.b16 %v8615
        %v8927 = vunpack.c.l.b16 %v8616
        %v8928 = vunpack.c.h.b16 %v8616
        %v8929 = vunpack.c.l.b16 %v8617
        %v8930 = vunpack.c.h.b16 %v8617
        %v8931 = vunpack.c.l.b16 %v8618
        %v8932 = vunpack.c.h.b16 %v8618
        %v8933 = vunpack.c.l.b16 %v8619
        %v8934 = vunpack.c.h.b16 %v8619
        %v8935 = vunpack.c.l.b16 %v8620
        %v8936 = vunpack.c.h.b16 %v8620
        %v8937 = vunpack.c.l.b16 %v8621
        %v8938 = vunpack.c.h.b16 %v8621
        %v8939 = vunpack.c.l.b16 %v8622
        %v8940 = vunpack.c.h.b16 %v8622
        %v8941 = vunpack.c.l.b16 %v8623
        %v8942 = vunpack.c.h.b16 %v8623
        %v8943 = vunpack.c.l.b16 %v8624
        %v8944 = vunpack.c.h.b16 %v8624
        %v8945 = vunpack.c.l.b16 %v8625
        %v8946 = vunpack.c.h.b16 %v8625
        %v8947 = vunpack.c.l.b16 %v8626
        %v8948 = vunpack.c.h.b16 %v8626
        %v8949 = vunpack.c.l.b16 %v8627
        %v8950 = vunpack.c.h.b16 %v8627
        %v8951 = vunpack.c.l.b16 %v8628
        %v8952 = vunpack.c.h.b16 %v8628
        %v8953 = vunpack.c.l.b16 %v8629
        %v8954 = vunpack.c.h.b16 %v8629
        %v8955 = vunpack.c.l.b16 %v8630
        %v8956 = vunpack.c.h.b16 %v8630
        %v8957 = vunpack.c.l.b16 %v8631
        %v8958 = vunpack.c.h.b16 %v8631
        %v8959 = vunpack.c.l.b16 %v8632
        %v8960 = vunpack.c.h.b16 %v8632
        %v8961 = vunpack.c.l.b16 %v8633
        %v8962 = vunpack.c.h.b16 %v8633
        %v8963 = vunpack.c.l.b16 %v8634
        %v8964 = vunpack.c.h.b16 %v8634
        %v8965 = vunpack.c.l.b16 %v8635
        %v8966 = vunpack.c.h.b16 %v8635
        %v8967 = vunpack.c.l.b16 %v8636
        %v8968 = vunpack.c.h.b16 %v8636
        %v8969 = vunpack.c.l.b16 %v8637
        %v8970 = vunpack.c.h.b16 %v8637
        %v8971 = vunpack.c.l.b16 %v8638
        %v8972 = vunpack.c.h.b16 %v8638
        %v8973 = vunpack.c.l.b16 %v8639
        %v8974 = vunpack.c.h.b16 %v8639
        %v8975 = vunpack.c.l.b16 %v8640
        %v8976 = vunpack.c.h.b16 %v8640
        %v8977 = vunpack.c.l.b16 %v8641
        %v8978 = vunpack.c.h.b16 %v8641
        %v8979 = vunpack.c.l.b16 %v8642
        %v8980 = vunpack.c.h.b16 %v8642
        %v8981 = vunpack.c.l.b16 %v8643
        %v8982 = vunpack.c.h.b16 %v8643
        %v8983 = vunpack.c.l.b16 %v8644
        %v8984 = vunpack.c.h.b16 %v8644
        %v8985 = vunpack.c.l.b16 %v8645
        %v8986 = vunpack.c.h.b16 %v8645
        %v8987 = vunpack.c.l.b16 %v8646
        %v8988 = vunpack.c.h.b16 %v8646
        %v8989 = vunpack.c.l.b16 %v8647
        %v8990 = vunpack.c.h.b16 %v8647
        %v8991 = vunpack.c.l.b16 %v8648
        %v8992 = vunpack.c.h.b16 %v8648
        %v8993 = vunpack.c.l.b16 %v8649
        %v8994 = vunpack.c.h.b16 %v8649
        %v8995 = vunpack.c.l.b16 %v8650
        %v8996 = vunpack.c.h.b16 %v8650
        %v8997 = vunpack.c.l.b16 %v8651
        %v8998 = vunpack.c.h.b16 %v8651
        %v8999 = vunpack.c.l.b16 %v8652
        %v9000 = vunpack.c.h.b16 %v8652
        %v9001 = vunpack.c.l.b16 %v8653
        %v9002 = vunpack.c.h.b16 %v8653
        %v9003 = vunpack.c.l.b16 %v8654
        %v9004 = vunpack.c.h.b16 %v8654
        %v9005 = vunpack.c.l.b16 %v8655
        %v9006 = vunpack.c.h.b16 %v8655
        %v9007 = vunpack.c.l.b16 %v8656
        %v9008 = vunpack.c.h.b16 %v8656
        %v9009 = vunpack.c.l.b16 %v8657
        %v9010 = vunpack.c.h.b16 %v8657
        %v9011 = vunpack.c.l.b16 %v8658
        %v9012 = vunpack.c.h.b16 %v8658
        %v9013 = vunpack.c.l.b16 %v8659
        %v9014 = vunpack.c.h.b16 %v8659
        %v9015 = vunpack.c.l.b16 %v8660
        %v9016 = vunpack.c.h.b16 %v8660
        %v9017 = vunpack.c.l.b16 %v8661
        %v9018 = vunpack.c.h.b16 %v8661
        %v9019 = vunpack.c.l.b16 %v8662
        %v9020 = vunpack.c.h.b16 %v8662
        %v9021 = vunpack.c.l.b16 %v8663
        %v9022 = vunpack.c.h.b16 %v8663
        %v9023 = vunpack.c.l.b16 %v8664
        %v9024 = vunpack.c.h.b16 %v8664
        %v9025 = vunpack.c.l.b16 %v8665
        %v9026 = vunpack.c.h.b16 %v8665
        %v9027 = vunpack.c.l.b16 %v8666
        %v9028 = vunpack.c.h.b16 %v8666
        %v9029 = vunpack.c.l.b16 %v8667
        %v9030 = vunpack.c.h.b16 %v8667
        %v9031 = vunpack.c.l.b16 %v8668
        %v9032 = vunpack.c.h.b16 %v8668
        %v9033 = vunpack.c.l.b16 %v8669
        %v9034 = vunpack.c.h.b16 %v8669
        %v9035 = vunpack.c.l.b16 %v8670
        %v9036 = vunpack.c.h.b16 %v8670
        %v9037 = vunpack.c.l.b16 %v8671
        %v9038 = vunpack.c.h.b16 %v8671
        %v9039 = vunpack.c.l.b16 %v8672
        %v9040 = vunpack.c.h.b16 %v8672
        %v9041 = vunpack.c.l.b16 %v8673
        %v9042 = vunpack.c.h.b16 %v8673
        %v9043 = vunpack.c.l.b16 %v8674
        %v9044 = vunpack.c.h.b16 %v8674
        %v9045 = vunpack.c.l.b16 %v8675
        %v9046 = vunpack.c.h.b16 %v8675
        %v9047 = vunpack.c.l.b16 %v8676
        %v9048 = vunpack.c.h.b16 %v8676
        %v9049 = vunpack.c.l.b16 %v8677
        %v9050 = vunpack.c.h.b16 %v8677
        %v9051 = vunpack.c.l.b16 %v8678
        %v9052 = vunpack.c.h.b16 %v8678
        %v9053 = vunpack.c.l.b16 %v8679
        %v9054 = vunpack.c.h.b16 %v8679
        %v9055 = vunpack.c.l.b16 %v8680
        %v9056 = vunpack.c.h.b16 %v8680
        %v9057 = vunpack.c.l.b16 %v8681
        %v9058 = vunpack.c.h.b16 %v8681
        %v9059 = vunpack.c.l.b16 %v8682
        %v9060 = vunpack.c.h.b16 %v8682
        %v9061 = vunpack.c.l.b16 %v8683
        %v9062 = vunpack.c.h.b16 %v8683
        %v9063 = vunpack.c.l.b16 %v8684
        %v9064 = vunpack.c.h.b16 %v8684
        %v9065 = vunpack.c.l.b16 %v8685
        %v9066 = vunpack.c.h.b16 %v8685
        %v9067 = vunpack.c.l.b16 %v8686
        %v9068 = vunpack.c.h.b16 %v8686
        %v9069 = vunpack.c.l.b16 %v8687
        %v9070 = vunpack.c.h.b16 %v8687
        %v9071 = vunpack.c.l.b16 %v8688
        %v9072 = vunpack.c.h.b16 %v8688
        %v9073 = vunpack.c.l.b16 %v8689
        %v9074 = vunpack.c.h.b16 %v8689
        %v9075 = vunpack.c.l.b16 %v8690
        %v9076 = vunpack.c.h.b16 %v8690
        %v9077 = vunpack.c.l.b16 %v8691
        %v9078 = vunpack.c.h.b16 %v8691
        %v9079 = vunpack.c.l.b16 %v8692
        %v9080 = vunpack.c.h.b16 %v8692
        %v9081 = vunpack.c.l.b16 %v8693
        %v9082 = vunpack.c.h.b16 %v8693
        %v9083 = vunpack.c.l.b16 %v8694
        %v9084 = vunpack.c.h.b16 %v8694
        %v9085 = vunpack.c.l.b16 %v8695
        %v9086 = vunpack.c.h.b16 %v8695
        %v9087 = vunpack.c.l.b16 %v8696
        %v9088 = vunpack.c.h.b16 %v8696
        %v9089 = vunpack.c.l.b16 %v8697
        %v9090 = vunpack.c.h.b16 %v8697
        %v9091 = vunpack.c.l.b16 %v8698
        %v9092 = vunpack.c.h.b16 %v8698
        %v9093 = vunpack.c.l.b16 %v8699
        %v9094 = vunpack.c.h.b16 %v8699
        %v9095 = vunpack.c.l.b16 %v8700
        %v9096 = vunpack.c.h.b16 %v8700
        %v9097 = vunpack.c.l.b16 %v8701
        %v9098 = vunpack.c.h.b16 %v8701
        %v9099 = vunpack.c.l.b16 %v8702
        %v9100 = vunpack.c.h.b16 %v8702
        %v9101 = vunpack.c.l.b16 %v8703
        %v9102 = vunpack.c.h.b16 %v8703
        %v9103 = vunpack.c.l.b16 %v8704
        %v9104 = vunpack.c.h.b16 %v8704
        %v9105 = vunpack.c.l.b16 %v8705
        %v9106 = vunpack.c.h.b16 %v8705
        %v9107 = vunpack.c.l.b16 %v8706
        %v9108 = vunpack.c.h.b16 %v8706
        %v9109 = vunpack.c.l.b16 %v8707
        %v9110 = vunpack.c.h.b16 %v8707
        %v9111 = vunpack.c.l.b16 %v8708
        %v9112 = vunpack.c.h.b16 %v8708
        %v9113 = vunpack.c.l.b16 %v8709
        %v9114 = vunpack.c.h.b16 %v8709
        %v9115 = vunpack.c.l.b16 %v8710
        %v9116 = vunpack.c.h.b16 %v8710
        %v9117 = vunpack.c.l.b16 %v8711
        %v9118 = vunpack.c.h.b16 %v8711
        %v9119 = vunpack.c.l.b16 %v8712
        %v9120 = vunpack.c.h.b16 %v8712
        %v9121 = vunpack.c.l.b16 %v8713
        %v9122 = vunpack.c.h.b16 %v8713
        %v9123 = vunpack.c.l.b16 %v8714
        %v9124 = vunpack.c.h.b16 %v8714
        %v9125 = vunpack.c.l.b16 %v8715
        %v9126 = vunpack.c.h.b16 %v8715
        %v9127 = vunpack.c.l.b16 %v8716
        %v9128 = vunpack.c.h.b16 %v8716
        %v9129 = vpack.c.b16 %v8877, %v8873
        %v9130 = vpack.c.b16 %v8878, %v8874
        %v9131 = vpack.c.b16 %v8879, %v8875
        %v9132 = vpack.c.b16 %v8880, %v8876
        %v9133 = vpack.c.b16 %v8885, %v8881
        %v9134 = vpack.c.b16 %v8886, %v8882
        %v9135 = vpack.c.b16 %v8887, %v8883
        %v9136 = vpack.c.b16 %v8888, %v8884
        %v9137 = vpack.c.b16 %v8893, %v8889
        %v9138 = vpack.c.b16 %v8894, %v8890
        %v9139 = vpack.c.b16 %v8895, %v8891
        %v9140 = vpack.c.b16 %v8896, %v8892
        %v9141 = vpack.c.b16 %v8901, %v8897
        %v9142 = vpack.c.b16 %v8902, %v8898
        %v9143 = vpack.c.b16 %v8903, %v8899
        %v9144 = vpack.c.b16 %v8904, %v8900
        %v9145 = vpack.c.b16 %v8909, %v8905
        %v9146 = vpack.c.b16 %v8910, %v8906
        %v9147 = vpack.c.b16 %v8911, %v8907
        %v9148 = vpack.c.b16 %v8912, %v8908
        %v9149 = vpack.c.b16 %v8917, %v8913
        %v9150 = vpack.c.b16 %v8918, %v8914
        %v9151 = vpack.c.b16 %v8919, %v8915
        %v9152 = vpack.c.b16 %v8920, %v8916
        %v9153 = vpack.c.b16 %v8925, %v8921
        %v9154 = vpack.c.b16 %v8926, %v8922
        %v9155 = vpack.c.b16 %v8927, %v8923
        %v9156 = vpack.c.b16 %v8928, %v8924
        %v9157 = vpack.c.b16 %v8933, %v8929
        %v9158 = vpack.c.b16 %v8934, %v8930
        %v9159 = vpack.c.b16 %v8935, %v8931
        %v9160 = vpack.c.b16 %v8936, %v8932
        %v9161 = vpack.c.b16 %v8941, %v8937
        %v9162 = vpack.c.b16 %v8942, %v8938
        %v9163 = vpack.c.b16 %v8943, %v8939
        %v9164 = vpack.c.b16 %v8944, %v8940
        %v9165 = vpack.c.b16 %v8949, %v8945
        %v9166 = vpack.c.b16 %v8950, %v8946
        %v9167 = vpack.c.b16 %v8951, %v8947
        %v9168 = vpack.c.b16 %v8952, %v8948
        %v9169 = vpack.c.b16 %v8957, %v8953
        %v9170 = vpack.c.b16 %v8958, %v8954
        %v9171 = vpack.c.b16 %v8959, %v8955
        %v9172 = vpack.c.b16 %v8960, %v8956
        %v9173 = vpack.c.b16 %v8965, %v8961
        %v9174 = vpack.c.b16 %v8966, %v8962
        %v9175 = vpack.c.b16 %v8967, %v8963
        %v9176 = vpack.c.b16 %v8968, %v8964
        %v9177 = vpack.c.b16 %v8973, %v8969
        %v9178 = vpack.c.b16 %v8974, %v8970
        %v9179 = vpack.c.b16 %v8975, %v8971
        %v9180 = vpack.c.b16 %v8976, %v8972
        %v9181 = vpack.c.b16 %v8981, %v8977
        %v9182 = vpack.c.b16 %v8982, %v8978
        %v9183 = vpack.c.b16 %v8983, %v8979
        %v9184 = vpack.c.b16 %v8984, %v8980
        %v9185 = vpack.c.b16 %v8989, %v8985
        %v9186 = vpack.c.b16 %v8990, %v8986
        %v9187 = vpack.c.b16 %v8991, %v8987
        %v9188 = vpack.c.b16 %v8992, %v8988
        %v9189 = vpack.c.b16 %v8997, %v8993
        %v9190 = vpack.c.b16 %v8998, %v8994
        %v9191 = vpack.c.b16 %v8999, %v8995
        %v9192 = vpack.c.b16 %v9000, %v8996
        %v9193 = vpack.c.b16 %v9005, %v9001
        %v9194 = vpack.c.b16 %v9006, %v9002
        %v9195 = vpack.c.b16 %v9007, %v9003
        %v9196 = vpack.c.b16 %v9008, %v9004
        %v9197 = vpack.c.b16 %v9013, %v9009
        %v9198 = vpack.c.b16 %v9014, %v9010
        %v9199 = vpack.c.b16 %v9015, %v9011
        %v9200 = vpack.c.b16 %v9016, %v9012
        %v9201 = vpack.c.b16 %v9021, %v9017
        %v9202 = vpack.c.b16 %v9022, %v9018
        %v9203 = vpack.c.b16 %v9023, %v9019
        %v9204 = vpack.c.b16 %v9024, %v9020
        %v9205 = vpack.c.b16 %v9029, %v9025
        %v9206 = vpack.c.b16 %v9030, %v9026
        %v9207 = vpack.c.b16 %v9031, %v9027
        %v9208 = vpack.c.b16 %v9032, %v9028
        %v9209 = vpack.c.b16 %v9037, %v9033
        %v9210 = vpack.c.b16 %v9038, %v9034
        %v9211 = vpack.c.b16 %v9039, %v9035
        %v9212 = vpack.c.b16 %v9040, %v9036
        %v9213 = vpack.c.b16 %v9045, %v9041
        %v9214 = vpack.c.b16 %v9046, %v9042
        %v9215 = vpack.c.b16 %v9047, %v9043
        %v9216 = vpack.c.b16 %v9048, %v9044
        %v9217 = vpack.c.b16 %v9053, %v9049
        %v9218 = vpack.c.b16 %v9054, %v9050
        %v9219 = vpack.c.b16 %v9055, %v9051
        %v9220 = vpack.c.b16 %v9056, %v9052
        %v9221 = vpack.c.b16 %v9061, %v9057
        %v9222 = vpack.c.b16 %v9062, %v9058
        %v9223 = vpack.c.b16 %v9063, %v9059
        %v9224 = vpack.c.b16 %v9064, %v9060
        %v9225 = vpack.c.b16 %v9069, %v9065
        %v9226 = vpack.c.b16 %v9070, %v9066
        %v9227 = vpack.c.b16 %v9071, %v9067
        %v9228 = vpack.c.b16 %v9072, %v9068
        %v9229 = vpack.c.b16 %v9077, %v9073
        %v9230 = vpack.c.b16 %v9078, %v9074
        %v9231 = vpack.c.b16 %v9079, %v9075
        %v9232 = vpack.c.b16 %v9080, %v9076
        %v9233 = vpack.c.b16 %v9085, %v9081
        %v9234 = vpack.c.b16 %v9086, %v9082
        %v9235 = vpack.c.b16 %v9087, %v9083
        %v9236 = vpack.c.b16 %v9088, %v9084
        %v9237 = vpack.c.b16 %v9093, %v9089
        %v9238 = vpack.c.b16 %v9094, %v9090
        %v9239 = vpack.c.b16 %v9095, %v9091
        %v9240 = vpack.c.b16 %v9096, %v9092
        %v9241 = vpack.c.b16 %v9101, %v9097
        %v9242 = vpack.c.b16 %v9102, %v9098
        %v9243 = vpack.c.b16 %v9103, %v9099
        %v9244 = vpack.c.b16 %v9104, %v9100
        %v9245 = vpack.c.b16 %v9109, %v9105
        %v9246 = vpack.c.b16 %v9110, %v9106
        %v9247 = vpack.c.b16 %v9111, %v9107
        %v9248 = vpack.c.b16 %v9112, %v9108
        %v9249 = vpack.c.b16 %v9117, %v9113
        %v9250 = vpack.c.b16 %v9118, %v9114
        %v9251 = vpack.c.b16 %v9119, %v9115
        %v9252 = vpack.c.b16 %v9120, %v9116
        %v9253 = vpack.c.b16 %v9125, %v9121
        %v9254 = vpack.c.b16 %v9126, %v9122
        %v9255 = vpack.c.b16 %v9127, %v9123
        %v9256 = vpack.c.b16 %v9128, %v9124
        %9385 = vmatprep.subr.bf16.mxu0 %v9158
        %9386 = vmatpush1.bf16.msra.mxu0 %v9157
        %9387 = vmatprep.subr.bf16.mxu0 %v9154
        %9388 = vmatpush1.bf16.msra.mxu0 %v9153
        %9389 = vmatprep.subr.bf16.mxu0 %v9150
        %9390 = vmatpush1.bf16.msra.mxu0 %v9149
        %9391 = vmatprep.subr.bf16.mxu0 %v9146
        %9392 = vmatpush1.bf16.msra.mxu0 %v9145
        %9393 = vmatprep.subr.bf16.mxu0 %v9142
        %9394 = vmatpush1.bf16.msra.mxu0 %v9141
        %9395 = vmatprep.subr.bf16.mxu0 %v9138
        %9396 = vmatpush1.bf16.msra.mxu0 %v9137
        %9397 = vmatprep.subr.bf16.mxu0 %v9134
        %9398 = vmatpush1.bf16.msra.mxu0 %v9133
        %9399 = vmatprep.subr.bf16.mxu0 %v9130
        %9400 = vmatpush1.bf16.msra.mxu0 %v9129
        %9401 = vmatprep.subr.bf16.mxu0 %v9190
        %9402 = vmatpush2.bf16.msra.mxu0 %v9189
        %9403 = vmatprep.subr.bf16.mxu0 %v9186
        %9404 = vmatpush2.bf16.msra.mxu0 %v9185
        %9405 = vmatprep.subr.bf16.mxu0 %v9182
        %9406 = vmatpush2.bf16.msra.mxu0 %v9181
        %9407 = vmatprep.subr.bf16.mxu0 %v9178
        %9408 = vmatpush2.bf16.msra.mxu0 %v9177
        %9409 = vmatprep.subr.bf16.mxu0 %v9174
        %9410 = vmatpush2.bf16.msra.mxu0 %v9173
        %9411 = vmatprep.subr.bf16.mxu0 %v9170
        %9412 = vmatpush2.bf16.msra.mxu0 %v9169
        %9413 = vmatprep.subr.bf16.mxu0 %v9166
        %9414 = vmatpush2.bf16.msra.mxu0 %v9165
        %9415 = vmatprep.subr.bf16.mxu0 %v9162
        %9416 = vmatpush2.bf16.msra.mxu0 %v9161
        %9417 = vmatprep.mubr.bf16.mxu0 %v8730
        %9418 = vmatmul.mubr.bf16.gmra.mxu0 %v8727
        %v9419 = vpop.f32.mrf.mxu0
        %v9420 = vadd.f32 0.0, %v9419
        %v9421 = vpop.f32.mrf.mxu0
        %v9422 = vadd.f32 0.0, %v9421
        %v9423 = vpop.f32.mrf.mxu0
        %v9424 = vadd.f32 0.0, %v9423
        %v9425 = vpop.f32.mrf.mxu0
        %v9426 = vadd.f32 0.0, %v9425
        %9427 = vmatprep.mubr.bf16.mxu0 %v8729
        %9428 = vmatmul.mubr.bf16.gmra.mxu0 %v8726
        %v9429 = vpop.f32.mrf.mxu0
        %v9430 = vadd.f32 0.0, %v9429
        %v9431 = vpop.f32.mrf.mxu0
        %v9432 = vadd.f32 0.0, %v9431
        %v9433 = vpop.f32.mrf.mxu0
        %v9434 = vpop.f32.mrf.mxu0
        %9435 = vdwg.mxu0
        %9436 = vmatprep.subr.bf16.mxu0 %v9222
        %9437 = vmatpush1.bf16.msra.mxu0 %v9221
        %9438 = vmatprep.subr.bf16.mxu0 %v9218
        %9439 = vmatpush1.bf16.msra.mxu0 %v9217
        %9440 = vmatprep.subr.bf16.mxu0 %v9214
        %9441 = vmatpush1.bf16.msra.mxu0 %v9213
        %9442 = vmatprep.subr.bf16.mxu0 %v9210
        %9443 = vmatpush1.bf16.msra.mxu0 %v9209
        %9444 = vmatprep.subr.bf16.mxu0 %v9206
        %9445 = vmatpush1.bf16.msra.mxu0 %v9205
        %9446 = vmatprep.subr.bf16.mxu0 %v9202
        %9447 = vmatpush1.bf16.msra.mxu0 %v9201
        %9448 = vmatprep.subr.bf16.mxu0 %v9198
        %9449 = vmatpush1.bf16.msra.mxu0 %v9197
        %9450 = vmatprep.subr.bf16.mxu0 %v9194
        %9451 = vmatpush1.bf16.msra.mxu0 %v9193
        %9452 = vmatprep.subr.bf16.mxu0 %v9254
        %9453 = vmatpush2.bf16.msra.mxu0 %v9253
        %9454 = vmatprep.subr.bf16.mxu0 %v9250
        %9455 = vmatpush2.bf16.msra.mxu0 %v9249
        %9456 = vmatprep.subr.bf16.mxu0 %v9246
        %9457 = vmatpush2.bf16.msra.mxu0 %v9245
        %9458 = vmatprep.subr.bf16.mxu0 %v9242
        %9459 = vmatpush2.bf16.msra.mxu0 %v9241
        %9460 = vmatprep.subr.bf16.mxu0 %v9238
        %9461 = vmatpush2.bf16.msra.mxu0 %v9237
        %9462 = vmatprep.subr.bf16.mxu0 %v9234
        %9463 = vmatpush2.bf16.msra.mxu0 %v9233
        %9464 = vmatprep.subr.bf16.mxu0 %v9230
        %9465 = vmatpush2.bf16.msra.mxu0 %v9229
        %9466 = vmatprep.subr.bf16.mxu0 %v9226
        %9467 = vmatpush2.bf16.msra.mxu0 %v9225
        %9468 = vmatprep.mubr.bf16.mxu0 %v8736
        %9469 = vmatmul.mubr.bf16.gmra.mxu0 %v8733
        %v9470 = vpop.f32.mrf.mxu0
        %v9471 = vadd.f32 %v9420, %v9470
        %v9472 = vpop.f32.mrf.mxu0
        %v9473 = vadd.f32 %v9422, %v9472
        %v9474 = vpop.f32.mrf.mxu0
        %v9475 = vadd.f32 %v9424, %v9474
        %v9476 = vpop.f32.mrf.mxu0
        %v9477 = vadd.f32 %v9426, %v9476
        %9478 = vmatprep.mubr.bf16.mxu0 %v8735
        %9479 = vmatmul.mubr.bf16.gmra.mxu0 %v8732
        %v9480 = vpop.f32.mrf.mxu0
        %v9481 = vadd.f32 %v9430, %v9480
        %v9482 = vpop.f32.mrf.mxu0
        %v9483 = vadd.f32 %v9432, %v9482
        %v9484 = vpop.f32.mrf.mxu0
        %v9485 = vpop.f32.mrf.mxu0
        %9486 = vdwg.mxu0
        %9487 = vmatprep.subr.bf16.mxu0 %v9160
        %9488 = vmatpush1.bf16.msra.mxu0 %v9159
        %9489 = vmatprep.subr.bf16.mxu0 %v9156
        %9490 = vmatpush1.bf16.msra.mxu0 %v9155
        %9491 = vmatprep.subr.bf16.mxu0 %v9152
        %9492 = vmatpush1.bf16.msra.mxu0 %v9151
        %9493 = vmatprep.subr.bf16.mxu0 %v9148
        %9494 = vmatpush1.bf16.msra.mxu0 %v9147
        %9495 = vmatprep.subr.bf16.mxu0 %v9144
        %9496 = vmatpush1.bf16.msra.mxu0 %v9143
        %9497 = vmatprep.subr.bf16.mxu0 %v9140
        %9498 = vmatpush1.bf16.msra.mxu0 %v9139
        %9499 = vmatprep.subr.bf16.mxu0 %v9136
        %9500 = vmatpush1.bf16.msra.mxu0 %v9135
        %9501 = vmatprep.subr.bf16.mxu0 %v9132
        %9502 = vmatpush1.bf16.msra.mxu0 %v9131
        %9503 = vmatprep.subr.bf16.mxu0 %v9192
        %9504 = vmatpush2.bf16.msra.mxu0 %v9191
        %9505 = vmatprep.subr.bf16.mxu0 %v9188
        %9506 = vmatpush2.bf16.msra.mxu0 %v9187
        %9507 = vmatprep.subr.bf16.mxu0 %v9184
        %9508 = vmatpush2.bf16.msra.mxu0 %v9183
        %9509 = vmatprep.subr.bf16.mxu0 %v9180
        %9510 = vmatpush2.bf16.msra.mxu0 %v9179
        %9511 = vmatprep.subr.bf16.mxu0 %v9176
        %9512 = vmatpush2.bf16.msra.mxu0 %v9175
        %9513 = vmatprep.subr.bf16.mxu0 %v9172
        %9514 = vmatpush2.bf16.msra.mxu0 %v9171
        %9515 = vmatprep.subr.bf16.mxu0 %v9168
        %9516 = vmatpush2.bf16.msra.mxu0 %v9167
        %9517 = vmatprep.subr.bf16.mxu0 %v9164
        %9518 = vmatpush2.bf16.msra.mxu0 %v9163
        %9519 = vmatprep.mubr.bf16.mxu0 %v8730
        %9520 = vmatmul.mubr.bf16.gmra.mxu0 %v8727
        %v9521 = vpop.f32.mrf.mxu0
        %v9522 = vadd.f32 0.0, %v9521
        %v9523 = vpop.f32.mrf.mxu0
        %v9524 = vadd.f32 0.0, %v9523
        %v9525 = vpop.f32.mrf.mxu0
        %v9526 = vadd.f32 0.0, %v9525
        %v9527 = vpop.f32.mrf.mxu0
        %v9528 = vadd.f32 0.0, %v9527
        %9529 = vmatprep.mubr.bf16.mxu0 %v8729
        %9530 = vmatmul.mubr.bf16.gmra.mxu0 %v8726
        %v9531 = vpop.f32.mrf.mxu0
        %v9532 = vadd.f32 0.0, %v9531
        %v9533 = vpop.f32.mrf.mxu0
        %v9534 = vadd.f32 0.0, %v9533
        %v9535 = vpop.f32.mrf.mxu0
        %v9536 = vpop.f32.mrf.mxu0
        %9537 = vdwg.mxu0
        %9538 = vmatprep.subr.bf16.mxu0 %v9224
        %9539 = vmatpush1.bf16.msra.mxu0 %v9223
        %9540 = vmatprep.subr.bf16.mxu0 %v9220
        %9541 = vmatpush1.bf16.msra.mxu0 %v9219
        %9542 = vmatprep.subr.bf16.mxu0 %v9216
        %9543 = vmatpush1.bf16.msra.mxu0 %v9215
        %9544 = vmatprep.subr.bf16.mxu0 %v9212
        %9545 = vmatpush1.bf16.msra.mxu0 %v9211
        %9546 = vmatprep.subr.bf16.mxu0 %v9208
        %9547 = vmatpush1.bf16.msra.mxu0 %v9207
        %9548 = vmatprep.subr.bf16.mxu0 %v9204
        %9549 = vmatpush1.bf16.msra.mxu0 %v9203
        %9550 = vmatprep.subr.bf16.mxu0 %v9200
        %9551 = vmatpush1.bf16.msra.mxu0 %v9199
        %9552 = vmatprep.subr.bf16.mxu0 %v9196
        %9553 = vmatpush1.bf16.msra.mxu0 %v9195
        %9554 = vmatprep.subr.bf16.mxu0 %v9256
        %9555 = vmatpush2.bf16.msra.mxu0 %v9255
        %9556 = vmatprep.subr.bf16.mxu0 %v9252
        %9557 = vmatpush2.bf16.msra.mxu0 %v9251
        %9558 = vmatprep.subr.bf16.mxu0 %v9248
        %9559 = vmatpush2.bf16.msra.mxu0 %v9247
        %9560 = vmatprep.subr.bf16.mxu0 %v9244
        %9561 = vmatpush2.bf16.msra.mxu0 %v9243
        %9562 = vmatprep.subr.bf16.mxu0 %v9240
        %9563 = vmatpush2.bf16.msra.mxu0 %v9239
        %9564 = vmatprep.subr.bf16.mxu0 %v9236
        %9565 = vmatpush2.bf16.msra.mxu0 %v9235
        %9566 = vmatprep.subr.bf16.mxu0 %v9232
        %9567 = vmatpush2.bf16.msra.mxu0 %v9231
        %9568 = vmatprep.subr.bf16.mxu0 %v9228
        %9569 = vmatpush2.bf16.msra.mxu0 %v9227
        %9570 = vmatprep.mubr.bf16.mxu0 %v8736
        %9571 = vmatmul.mubr.bf16.gmra.mxu0 %v8733
        %v9572 = vpop.f32.mrf.mxu0
        %v9573 = vadd.f32 %v9522, %v9572
        %v9574 = vpop.f32.mrf.mxu0
        %v9575 = vadd.f32 %v9524, %v9574
        %v9576 = vpop.f32.mrf.mxu0
        %v9577 = vadd.f32 %v9526, %v9576
        %v9578 = vpop.f32.mrf.mxu0
        %v9579 = vadd.f32 %v9528, %v9578
        %9580 = vmatprep.mubr.bf16.mxu0 %v8735
        %9581 = vmatmul.mubr.bf16.gmra.mxu0 %v8732
        %v9582 = vpop.f32.mrf.mxu0
        %v9583 = vadd.f32 %v9532, %v9582
        %v9584 = vpop.f32.mrf.mxu0
        %v9585 = vadd.f32 %v9534, %v9584
        %v9586 = vpop.f32.mrf.mxu0
        %v9587 = vpop.f32.mrf.mxu0
        %9588 = vdwg.mxu0
        %v9589 = vadd.f32 %v8576, %v9471
        %v9590 = vadd.f32 %v8577, %v9473
        %v9591 = vadd.f32 %v8578, %v9573
        %v9592 = vadd.f32 %v8579, %v9575
        %v9593 = vadd.f32 %v8580, %v9475
        %v9594 = vadd.f32 %v8581, %v9477
        %v9595 = vadd.f32 %v8582, %v9577
        %v9596 = vadd.f32 %v8583, %v9579
        %v9597 = vadd.f32 %v8584, %v9481
        %v9598 = vadd.f32 %v8585, %v9483
        %v9599 = vadd.f32 %v8586, %v9583
        %v9600 = vadd.f32 %v8587, %v9585
        %v9601 = vpack.c.bf16 %v9593, %v9589
        %v9602 = vpack.c.bf16 %v9594, %v9590
        %v9603 = vpack.c.bf16 %v9595, %v9591
        %v9604 = vpack.c.bf16 %v9596, %v9592
        %v9605 = vpack.c.bf16 %v9597, %v9597
        %v9606 = vpack.c.bf16 %v9598, %v9598
        %v9607 = vpack.c.bf16 %v9599, %v9599
        %v9608 = vpack.c.bf16 %v9600, %v9600
        %v9610 = vsel %vm317, %v9605, 0
        %v9613 = vsel %vm317, %v9606, 0
        %v9616 = vsel %vm317, %v9607, 0
        %v9619 = vsel %vm317, %v9608, 0
        %s9621 = scalar_lea.vmem [#allocation4], 12
        %v9622 = vld [vmem:[%s9621] sm:$0xf]
        %v9624 = vlaneseq
        %v9625 = vshrl.u32 %v9624, 7
        %v9626 = vsub.s32 0, %v9625
        %v9627 = vrot.slane %v9622, %v9626
        %v9628 = vlaneseq
        %v9629 = vshrl.u32 %v9628, 7
        %v9630 = vsub.s32 1, %v9629
        %v9631 = vrot.slane %v9622, %v9630
        %v9632 = vlaneseq
        %v9633 = vshrl.u32 %v9632, 7
        %v9634 = vsub.s32 2, %v9633
        %v9635 = vrot.slane %v9622, %v9634
        %v9636 = vlaneseq
        %v9637 = vshrl.u32 %v9636, 7
        %v9638 = vsub.s32 3, %v9637
        %v9639 = vrot.slane %v9622, %v9638
        %s9644 = scalar_lea.vmem [#allocation2], 9216
        %v9645 = vld [vmem:[%s9644] sm:$0xff]
        %v9646 = vld [vmem:[%s9644 + $0x8] sm:$0xff]
        %v9647 = vld [vmem:[%s9644 + $0x10] sm:$0xff]
        %v9648 = vld [vmem:[%s9644 + $0x18] sm:$0xff]
        %v9649 = vld [vmem:[%s9644 + $0x20] sm:$0xff]
        %v9650 = vld [vmem:[%s9644 + $0x28] sm:$0xff]
        %v9651 = vld [vmem:[%s9644 + $0x30] sm:$0xff]
        %v9652 = vld [vmem:[%s9644 + $0x38] sm:$0xff]
        %v9653 = vld [vmem:[%s9644 + $0x40] sm:$0xff]
        %v9654 = vld [vmem:[%s9644 + $0x48] sm:$0xff]
        %v9655 = vld [vmem:[%s9644 + $0x50] sm:$0xff]
        %v9656 = vld [vmem:[%s9644 + $0x58] sm:$0xff]
        %v9657 = vld [vmem:[%s9644 + $0x60] sm:$0xff]
        %v9658 = vld [vmem:[%s9644 + $0x68] sm:$0xff]
        %v9659 = vld [vmem:[%s9644 + $0x70] sm:$0xff]
        %v9660 = vld [vmem:[%s9644 + $0x78] sm:$0xff]
        %v9661 = vld [vmem:[%s9644 + $0x80] sm:$0xff]
        %v9662 = vld [vmem:[%s9644 + $0x88] sm:$0xff]
        %v9663 = vld [vmem:[%s9644 + $0x90] sm:$0xff]
        %v9664 = vld [vmem:[%s9644 + $0x98] sm:$0xff]
        %v9665 = vld [vmem:[%s9644 + $0xa0] sm:$0xff]
        %v9666 = vld [vmem:[%s9644 + $0xa8] sm:$0xff]
        %v9667 = vld [vmem:[%s9644 + $0xb0] sm:$0xff]
        %v9668 = vld [vmem:[%s9644 + $0xb8] sm:$0xff]
        %v9669 = vld [vmem:[%s9644 + $0xc0] sm:$0xff]
        %v9670 = vld [vmem:[%s9644 + $0xc8] sm:$0xff]
        %v9671 = vld [vmem:[%s9644 + $0xd0] sm:$0xff]
        %v9672 = vld [vmem:[%s9644 + $0xd8] sm:$0xff]
        %v9673 = vld [vmem:[%s9644 + $0xe0] sm:$0xff]
        %v9674 = vld [vmem:[%s9644 + $0xe8] sm:$0xff]
        %v9675 = vld [vmem:[%s9644 + $0xf0] sm:$0xff]
        %v9676 = vld [vmem:[%s9644 + $0xf8] sm:$0xff]
        %v9677 = vld [vmem:[%s9644 + $0x100] sm:$0xff]
        %v9678 = vld [vmem:[%s9644 + $0x108] sm:$0xff]
        %v9679 = vld [vmem:[%s9644 + $0x110] sm:$0xff]
        %v9680 = vld [vmem:[%s9644 + $0x118] sm:$0xff]
        %v9681 = vld [vmem:[%s9644 + $0x120] sm:$0xff]
        %v9682 = vld [vmem:[%s9644 + $0x128] sm:$0xff]
        %v9683 = vld [vmem:[%s9644 + $0x130] sm:$0xff]
        %v9684 = vld [vmem:[%s9644 + $0x138] sm:$0xff]
        %v9685 = vld [vmem:[%s9644 + $0x140] sm:$0xff]
        %v9686 = vld [vmem:[%s9644 + $0x148] sm:$0xff]
        %v9687 = vld [vmem:[%s9644 + $0x150] sm:$0xff]
        %v9688 = vld [vmem:[%s9644 + $0x158] sm:$0xff]
        %v9689 = vld [vmem:[%s9644 + $0x160] sm:$0xff]
        %v9690 = vld [vmem:[%s9644 + $0x168] sm:$0xff]
        %v9691 = vld [vmem:[%s9644 + $0x170] sm:$0xff]
        %v9692 = vld [vmem:[%s9644 + $0x178] sm:$0xff]
        %v9693 = vld [vmem:[%s9644 + $0x180] sm:$0xff]
        %v9694 = vld [vmem:[%s9644 + $0x188] sm:$0xff]
        %v9695 = vld [vmem:[%s9644 + $0x190] sm:$0xff]
        %v9696 = vld [vmem:[%s9644 + $0x198] sm:$0xff]
        %v9697 = vld [vmem:[%s9644 + $0x1a0] sm:$0xff]
        %v9698 = vld [vmem:[%s9644 + $0x1a8] sm:$0xff]
        %v9699 = vld [vmem:[%s9644 + $0x1b0] sm:$0xff]
        %v9700 = vld [vmem:[%s9644 + $0x1b8] sm:$0xff]
        %v9701 = vld [vmem:[%s9644 + $0x1c0] sm:$0xff]
        %v9702 = vld [vmem:[%s9644 + $0x1c8] sm:$0xff]
        %v9703 = vld [vmem:[%s9644 + $0x1d0] sm:$0xff]
        %v9704 = vld [vmem:[%s9644 + $0x1d8] sm:$0xff]
        %v9705 = vld [vmem:[%s9644 + $0x1e0] sm:$0xff]
        %v9706 = vld [vmem:[%s9644 + $0x1e8] sm:$0xff]
        %v9707 = vld [vmem:[%s9644 + $0x1f0] sm:$0xff]
        %v9708 = vld [vmem:[%s9644 + $0x1f8] sm:$0xff]
        %v9709 = vld [vmem:[%s9644 + $0x200] sm:$0xff]
        %v9710 = vld [vmem:[%s9644 + $0x208] sm:$0xff]
        %v9711 = vld [vmem:[%s9644 + $0x210] sm:$0xff]
        %v9712 = vld [vmem:[%s9644 + $0x218] sm:$0xff]
        %v9713 = vld [vmem:[%s9644 + $0x220] sm:$0xff]
        %v9714 = vld [vmem:[%s9644 + $0x228] sm:$0xff]
        %v9715 = vld [vmem:[%s9644 + $0x230] sm:$0xff]
        %v9716 = vld [vmem:[%s9644 + $0x238] sm:$0xff]
        %v9717 = vld [vmem:[%s9644 + $0x240] sm:$0xff]
        %v9718 = vld [vmem:[%s9644 + $0x248] sm:$0xff]
        %v9719 = vld [vmem:[%s9644 + $0x250] sm:$0xff]
        %v9720 = vld [vmem:[%s9644 + $0x258] sm:$0xff]
        %v9721 = vld [vmem:[%s9644 + $0x260] sm:$0xff]
        %v9722 = vld [vmem:[%s9644 + $0x268] sm:$0xff]
        %v9723 = vld [vmem:[%s9644 + $0x270] sm:$0xff]
        %v9724 = vld [vmem:[%s9644 + $0x278] sm:$0xff]
        %v9725 = vld [vmem:[%s9644 + $0x280] sm:$0xff]
        %v9726 = vld [vmem:[%s9644 + $0x288] sm:$0xff]
        %v9727 = vld [vmem:[%s9644 + $0x290] sm:$0xff]
        %v9728 = vld [vmem:[%s9644 + $0x298] sm:$0xff]
        %v9729 = vld [vmem:[%s9644 + $0x2a0] sm:$0xff]
        %v9730 = vld [vmem:[%s9644 + $0x2a8] sm:$0xff]
        %v9731 = vld [vmem:[%s9644 + $0x2b0] sm:$0xff]
        %v9732 = vld [vmem:[%s9644 + $0x2b8] sm:$0xff]
        %v9733 = vld [vmem:[%s9644 + $0x2c0] sm:$0xff]
        %v9734 = vld [vmem:[%s9644 + $0x2c8] sm:$0xff]
        %v9735 = vld [vmem:[%s9644 + $0x2d0] sm:$0xff]
        %v9736 = vld [vmem:[%s9644 + $0x2d8] sm:$0xff]
        %v9737 = vld [vmem:[%s9644 + $0x2e0] sm:$0xff]
        %v9738 = vld [vmem:[%s9644 + $0x2e8] sm:$0xff]
        %v9739 = vld [vmem:[%s9644 + $0x2f0] sm:$0xff]
        %v9740 = vld [vmem:[%s9644 + $0x2f8] sm:$0xff]
        %v9741 = vld [vmem:[%s9644 + $0x300] sm:$0xff]
        %v9742 = vld [vmem:[%s9644 + $0x308] sm:$0xff]
        %v9743 = vld [vmem:[%s9644 + $0x310] sm:$0xff]
        %v9744 = vld [vmem:[%s9644 + $0x318] sm:$0xff]
        %v9745 = vld [vmem:[%s9644 + $0x320] sm:$0xff]
        %v9746 = vld [vmem:[%s9644 + $0x328] sm:$0xff]
        %v9747 = vld [vmem:[%s9644 + $0x330] sm:$0xff]
        %v9748 = vld [vmem:[%s9644 + $0x338] sm:$0xff]
        %v9749 = vld [vmem:[%s9644 + $0x340] sm:$0xff]
        %v9750 = vld [vmem:[%s9644 + $0x348] sm:$0xff]
        %v9751 = vld [vmem:[%s9644 + $0x350] sm:$0xff]
        %v9752 = vld [vmem:[%s9644 + $0x358] sm:$0xff]
        %v9753 = vld [vmem:[%s9644 + $0x360] sm:$0xff]
        %v9754 = vld [vmem:[%s9644 + $0x368] sm:$0xff]
        %v9755 = vld [vmem:[%s9644 + $0x370] sm:$0xff]
        %v9756 = vld [vmem:[%s9644 + $0x378] sm:$0xff]
        %v9757 = vld [vmem:[%s9644 + $0x380] sm:$0xff]
        %v9758 = vld [vmem:[%s9644 + $0x388] sm:$0xff]
        %v9759 = vld [vmem:[%s9644 + $0x390] sm:$0xff]
        %v9760 = vld [vmem:[%s9644 + $0x398] sm:$0xff]
        %v9761 = vld [vmem:[%s9644 + $0x3a0] sm:$0xff]
        %v9762 = vld [vmem:[%s9644 + $0x3a8] sm:$0xff]
        %v9763 = vld [vmem:[%s9644 + $0x3b0] sm:$0xff]
        %v9764 = vld [vmem:[%s9644 + $0x3b8] sm:$0xff]
        %v9765 = vld [vmem:[%s9644 + $0x3c0] sm:$0xff]
        %v9766 = vld [vmem:[%s9644 + $0x3c8] sm:$0xff]
        %v9767 = vld [vmem:[%s9644 + $0x3d0] sm:$0xff]
        %v9768 = vld [vmem:[%s9644 + $0x3d8] sm:$0xff]
        %v9769 = vld [vmem:[%s9644 + $0x3e0] sm:$0xff]
        %v9770 = vld [vmem:[%s9644 + $0x3e8] sm:$0xff]
        %v9771 = vld [vmem:[%s9644 + $0x3f0] sm:$0xff]
        %v9772 = vld [vmem:[%s9644 + $0x3f8] sm:$0xff]
        %v9901 = vunpack.c.l.b16 %v9645
        %v9902 = vunpack.c.h.b16 %v9645
        %v9903 = vunpack.c.l.b16 %v9646
        %v9904 = vunpack.c.h.b16 %v9646
        %v9905 = vunpack.c.l.b16 %v9647
        %v9906 = vunpack.c.h.b16 %v9647
        %v9907 = vunpack.c.l.b16 %v9648
        %v9908 = vunpack.c.h.b16 %v9648
        %v9909 = vunpack.c.l.b16 %v9649
        %v9910 = vunpack.c.h.b16 %v9649
        %v9911 = vunpack.c.l.b16 %v9650
        %v9912 = vunpack.c.h.b16 %v9650
        %v9913 = vunpack.c.l.b16 %v9651
        %v9914 = vunpack.c.h.b16 %v9651
        %v9915 = vunpack.c.l.b16 %v9652
        %v9916 = vunpack.c.h.b16 %v9652
        %v9917 = vunpack.c.l.b16 %v9653
        %v9918 = vunpack.c.h.b16 %v9653
        %v9919 = vunpack.c.l.b16 %v9654
        %v9920 = vunpack.c.h.b16 %v9654
        %v9921 = vunpack.c.l.b16 %v9655
        %v9922 = vunpack.c.h.b16 %v9655
        %v9923 = vunpack.c.l.b16 %v9656
        %v9924 = vunpack.c.h.b16 %v9656
        %v9925 = vunpack.c.l.b16 %v9657
        %v9926 = vunpack.c.h.b16 %v9657
        %v9927 = vunpack.c.l.b16 %v9658
        %v9928 = vunpack.c.h.b16 %v9658
        %v9929 = vunpack.c.l.b16 %v9659
        %v9930 = vunpack.c.h.b16 %v9659
        %v9931 = vunpack.c.l.b16 %v9660
        %v9932 = vunpack.c.h.b16 %v9660
        %v9933 = vunpack.c.l.b16 %v9661
        %v9934 = vunpack.c.h.b16 %v9661
        %v9935 = vunpack.c.l.b16 %v9662
        %v9936 = vunpack.c.h.b16 %v9662
        %v9937 = vunpack.c.l.b16 %v9663
        %v9938 = vunpack.c.h.b16 %v9663
        %v9939 = vunpack.c.l.b16 %v9664
        %v9940 = vunpack.c.h.b16 %v9664
        %v9941 = vunpack.c.l.b16 %v9665
        %v9942 = vunpack.c.h.b16 %v9665
        %v9943 = vunpack.c.l.b16 %v9666
        %v9944 = vunpack.c.h.b16 %v9666
        %v9945 = vunpack.c.l.b16 %v9667
        %v9946 = vunpack.c.h.b16 %v9667
        %v9947 = vunpack.c.l.b16 %v9668
        %v9948 = vunpack.c.h.b16 %v9668
        %v9949 = vunpack.c.l.b16 %v9669
        %v9950 = vunpack.c.h.b16 %v9669
        %v9951 = vunpack.c.l.b16 %v9670
        %v9952 = vunpack.c.h.b16 %v9670
        %v9953 = vunpack.c.l.b16 %v9671
        %v9954 = vunpack.c.h.b16 %v9671
        %v9955 = vunpack.c.l.b16 %v9672
        %v9956 = vunpack.c.h.b16 %v9672
        %v9957 = vunpack.c.l.b16 %v9673
        %v9958 = vunpack.c.h.b16 %v9673
        %v9959 = vunpack.c.l.b16 %v9674
        %v9960 = vunpack.c.h.b16 %v9674
        %v9961 = vunpack.c.l.b16 %v9675
        %v9962 = vunpack.c.h.b16 %v9675
        %v9963 = vunpack.c.l.b16 %v9676
        %v9964 = vunpack.c.h.b16 %v9676
        %v9965 = vunpack.c.l.b16 %v9677
        %v9966 = vunpack.c.h.b16 %v9677
        %v9967 = vunpack.c.l.b16 %v9678
        %v9968 = vunpack.c.h.b16 %v9678
        %v9969 = vunpack.c.l.b16 %v9679
        %v9970 = vunpack.c.h.b16 %v9679
        %v9971 = vunpack.c.l.b16 %v9680
        %v9972 = vunpack.c.h.b16 %v9680
        %v9973 = vunpack.c.l.b16 %v9681
        %v9974 = vunpack.c.h.b16 %v9681
        %v9975 = vunpack.c.l.b16 %v9682
        %v9976 = vunpack.c.h.b16 %v9682
        %v9977 = vunpack.c.l.b16 %v9683
        %v9978 = vunpack.c.h.b16 %v9683
        %v9979 = vunpack.c.l.b16 %v9684
        %v9980 = vunpack.c.h.b16 %v9684
        %v9981 = vunpack.c.l.b16 %v9685
        %v9982 = vunpack.c.h.b16 %v9685
        %v9983 = vunpack.c.l.b16 %v9686
        %v9984 = vunpack.c.h.b16 %v9686
        %v9985 = vunpack.c.l.b16 %v9687
        %v9986 = vunpack.c.h.b16 %v9687
        %v9987 = vunpack.c.l.b16 %v9688
        %v9988 = vunpack.c.h.b16 %v9688
        %v9989 = vunpack.c.l.b16 %v9689
        %v9990 = vunpack.c.h.b16 %v9689
        %v9991 = vunpack.c.l.b16 %v9690
        %v9992 = vunpack.c.h.b16 %v9690
        %v9993 = vunpack.c.l.b16 %v9691
        %v9994 = vunpack.c.h.b16 %v9691
        %v9995 = vunpack.c.l.b16 %v9692
        %v9996 = vunpack.c.h.b16 %v9692
        %v9997 = vunpack.c.l.b16 %v9693
        %v9998 = vunpack.c.h.b16 %v9693
        %v9999 = vunpack.c.l.b16 %v9694
        %v10000 = vunpack.c.h.b16 %v9694
        %v10001 = vunpack.c.l.b16 %v9695
        %v10002 = vunpack.c.h.b16 %v9695
        %v10003 = vunpack.c.l.b16 %v9696
        %v10004 = vunpack.c.h.b16 %v9696
        %v10005 = vunpack.c.l.b16 %v9697
        %v10006 = vunpack.c.h.b16 %v9697
        %v10007 = vunpack.c.l.b16 %v9698
        %v10008 = vunpack.c.h.b16 %v9698
        %v10009 = vunpack.c.l.b16 %v9699
        %v10010 = vunpack.c.h.b16 %v9699
        %v10011 = vunpack.c.l.b16 %v9700
        %v10012 = vunpack.c.h.b16 %v9700
        %v10013 = vunpack.c.l.b16 %v9701
        %v10014 = vunpack.c.h.b16 %v9701
        %v10015 = vunpack.c.l.b16 %v9702
        %v10016 = vunpack.c.h.b16 %v9702
        %v10017 = vunpack.c.l.b16 %v9703
        %v10018 = vunpack.c.h.b16 %v9703
        %v10019 = vunpack.c.l.b16 %v9704
        %v10020 = vunpack.c.h.b16 %v9704
        %v10021 = vunpack.c.l.b16 %v9705
        %v10022 = vunpack.c.h.b16 %v9705
        %v10023 = vunpack.c.l.b16 %v9706
        %v10024 = vunpack.c.h.b16 %v9706
        %v10025 = vunpack.c.l.b16 %v9707
        %v10026 = vunpack.c.h.b16 %v9707
        %v10027 = vunpack.c.l.b16 %v9708
        %v10028 = vunpack.c.h.b16 %v9708
        %v10029 = vunpack.c.l.b16 %v9709
        %v10030 = vunpack.c.h.b16 %v9709
        %v10031 = vunpack.c.l.b16 %v9710
        %v10032 = vunpack.c.h.b16 %v9710
        %v10033 = vunpack.c.l.b16 %v9711
        %v10034 = vunpack.c.h.b16 %v9711
        %v10035 = vunpack.c.l.b16 %v9712
        %v10036 = vunpack.c.h.b16 %v9712
        %v10037 = vunpack.c.l.b16 %v9713
        %v10038 = vunpack.c.h.b16 %v9713
        %v10039 = vunpack.c.l.b16 %v9714
        %v10040 = vunpack.c.h.b16 %v9714
        %v10041 = vunpack.c.l.b16 %v9715
        %v10042 = vunpack.c.h.b16 %v9715
        %v10043 = vunpack.c.l.b16 %v9716
        %v10044 = vunpack.c.h.b16 %v9716
        %v10045 = vunpack.c.l.b16 %v9717
        %v10046 = vunpack.c.h.b16 %v9717
        %v10047 = vunpack.c.l.b16 %v9718
        %v10048 = vunpack.c.h.b16 %v9718
        %v10049 = vunpack.c.l.b16 %v9719
        %v10050 = vunpack.c.h.b16 %v9719
        %v10051 = vunpack.c.l.b16 %v9720
        %v10052 = vunpack.c.h.b16 %v9720
        %v10053 = vunpack.c.l.b16 %v9721
        %v10054 = vunpack.c.h.b16 %v9721
        %v10055 = vunpack.c.l.b16 %v9722
        %v10056 = vunpack.c.h.b16 %v9722
        %v10057 = vunpack.c.l.b16 %v9723
        %v10058 = vunpack.c.h.b16 %v9723
        %v10059 = vunpack.c.l.b16 %v9724
        %v10060 = vunpack.c.h.b16 %v9724
        %v10061 = vunpack.c.l.b16 %v9725
        %v10062 = vunpack.c.h.b16 %v9725
        %v10063 = vunpack.c.l.b16 %v9726
        %v10064 = vunpack.c.h.b16 %v9726
        %v10065 = vunpack.c.l.b16 %v9727
        %v10066 = vunpack.c.h.b16 %v9727
        %v10067 = vunpack.c.l.b16 %v9728
        %v10068 = vunpack.c.h.b16 %v9728
        %v10069 = vunpack.c.l.b16 %v9729
        %v10070 = vunpack.c.h.b16 %v9729
        %v10071 = vunpack.c.l.b16 %v9730
        %v10072 = vunpack.c.h.b16 %v9730
        %v10073 = vunpack.c.l.b16 %v9731
        %v10074 = vunpack.c.h.b16 %v9731
        %v10075 = vunpack.c.l.b16 %v9732
        %v10076 = vunpack.c.h.b16 %v9732
        %v10077 = vunpack.c.l.b16 %v9733
        %v10078 = vunpack.c.h.b16 %v9733
        %v10079 = vunpack.c.l.b16 %v9734
        %v10080 = vunpack.c.h.b16 %v9734
        %v10081 = vunpack.c.l.b16 %v9735
        %v10082 = vunpack.c.h.b16 %v9735
        %v10083 = vunpack.c.l.b16 %v9736
        %v10084 = vunpack.c.h.b16 %v9736
        %v10085 = vunpack.c.l.b16 %v9737
        %v10086 = vunpack.c.h.b16 %v9737
        %v10087 = vunpack.c.l.b16 %v9738
        %v10088 = vunpack.c.h.b16 %v9738
        %v10089 = vunpack.c.l.b16 %v9739
        %v10090 = vunpack.c.h.b16 %v9739
        %v10091 = vunpack.c.l.b16 %v9740
        %v10092 = vunpack.c.h.b16 %v9740
        %v10093 = vunpack.c.l.b16 %v9741
        %v10094 = vunpack.c.h.b16 %v9741
        %v10095 = vunpack.c.l.b16 %v9742
        %v10096 = vunpack.c.h.b16 %v9742
        %v10097 = vunpack.c.l.b16 %v9743
        %v10098 = vunpack.c.h.b16 %v9743
        %v10099 = vunpack.c.l.b16 %v9744
        %v10100 = vunpack.c.h.b16 %v9744
        %v10101 = vunpack.c.l.b16 %v9745
        %v10102 = vunpack.c.h.b16 %v9745
        %v10103 = vunpack.c.l.b16 %v9746
        %v10104 = vunpack.c.h.b16 %v9746
        %v10105 = vunpack.c.l.b16 %v9747
        %v10106 = vunpack.c.h.b16 %v9747
        %v10107 = vunpack.c.l.b16 %v9748
        %v10108 = vunpack.c.h.b16 %v9748
        %v10109 = vunpack.c.l.b16 %v9749
        %v10110 = vunpack.c.h.b16 %v9749
        %v10111 = vunpack.c.l.b16 %v9750
        %v10112 = vunpack.c.h.b16 %v9750
        %v10113 = vunpack.c.l.b16 %v9751
        %v10114 = vunpack.c.h.b16 %v9751
        %v10115 = vunpack.c.l.b16 %v9752
        %v10116 = vunpack.c.h.b16 %v9752
        %v10117 = vunpack.c.l.b16 %v9753
        %v10118 = vunpack.c.h.b16 %v9753
        %v10119 = vunpack.c.l.b16 %v9754
        %v10120 = vunpack.c.h.b16 %v9754
        %v10121 = vunpack.c.l.b16 %v9755
        %v10122 = vunpack.c.h.b16 %v9755
        %v10123 = vunpack.c.l.b16 %v9756
        %v10124 = vunpack.c.h.b16 %v9756
        %v10125 = vunpack.c.l.b16 %v9757
        %v10126 = vunpack.c.h.b16 %v9757
        %v10127 = vunpack.c.l.b16 %v9758
        %v10128 = vunpack.c.h.b16 %v9758
        %v10129 = vunpack.c.l.b16 %v9759
        %v10130 = vunpack.c.h.b16 %v9759
        %v10131 = vunpack.c.l.b16 %v9760
        %v10132 = vunpack.c.h.b16 %v9760
        %v10133 = vunpack.c.l.b16 %v9761
        %v10134 = vunpack.c.h.b16 %v9761
        %v10135 = vunpack.c.l.b16 %v9762
        %v10136 = vunpack.c.h.b16 %v9762
        %v10137 = vunpack.c.l.b16 %v9763
        %v10138 = vunpack.c.h.b16 %v9763
        %v10139 = vunpack.c.l.b16 %v9764
        %v10140 = vunpack.c.h.b16 %v9764
        %v10141 = vunpack.c.l.b16 %v9765
        %v10142 = vunpack.c.h.b16 %v9765
        %v10143 = vunpack.c.l.b16 %v9766
        %v10144 = vunpack.c.h.b16 %v9766
        %v10145 = vunpack.c.l.b16 %v9767
        %v10146 = vunpack.c.h.b16 %v9767
        %v10147 = vunpack.c.l.b16 %v9768
        %v10148 = vunpack.c.h.b16 %v9768
        %v10149 = vunpack.c.l.b16 %v9769
        %v10150 = vunpack.c.h.b16 %v9769
        %v10151 = vunpack.c.l.b16 %v9770
        %v10152 = vunpack.c.h.b16 %v9770
        %v10153 = vunpack.c.l.b16 %v9771
        %v10154 = vunpack.c.h.b16 %v9771
        %v10155 = vunpack.c.l.b16 %v9772
        %v10156 = vunpack.c.h.b16 %v9772
        %v10157 = vpack.c.b16 %v9905, %v9901
        %v10158 = vpack.c.b16 %v9906, %v9902
        %v10159 = vpack.c.b16 %v9907, %v9903
        %v10160 = vpack.c.b16 %v9908, %v9904
        %v10161 = vpack.c.b16 %v9913, %v9909
        %v10162 = vpack.c.b16 %v9914, %v9910
        %v10163 = vpack.c.b16 %v9915, %v9911
        %v10164 = vpack.c.b16 %v9916, %v9912
        %v10165 = vpack.c.b16 %v9921, %v9917
        %v10166 = vpack.c.b16 %v9922, %v9918
        %v10167 = vpack.c.b16 %v9923, %v9919
        %v10168 = vpack.c.b16 %v9924, %v9920
        %v10169 = vpack.c.b16 %v9929, %v9925
        %v10170 = vpack.c.b16 %v9930, %v9926
        %v10171 = vpack.c.b16 %v9931, %v9927
        %v10172 = vpack.c.b16 %v9932, %v9928
        %v10173 = vpack.c.b16 %v9937, %v9933
        %v10174 = vpack.c.b16 %v9938, %v9934
        %v10175 = vpack.c.b16 %v9939, %v9935
        %v10176 = vpack.c.b16 %v9940, %v9936
        %v10177 = vpack.c.b16 %v9945, %v9941
        %v10178 = vpack.c.b16 %v9946, %v9942
        %v10179 = vpack.c.b16 %v9947, %v9943
        %v10180 = vpack.c.b16 %v9948, %v9944
        %v10181 = vpack.c.b16 %v9953, %v9949
        %v10182 = vpack.c.b16 %v9954, %v9950
        %v10183 = vpack.c.b16 %v9955, %v9951
        %v10184 = vpack.c.b16 %v9956, %v9952
        %v10185 = vpack.c.b16 %v9961, %v9957
        %v10186 = vpack.c.b16 %v9962, %v9958
        %v10187 = vpack.c.b16 %v9963, %v9959
        %v10188 = vpack.c.b16 %v9964, %v9960
        %v10189 = vpack.c.b16 %v9969, %v9965
        %v10190 = vpack.c.b16 %v9970, %v9966
        %v10191 = vpack.c.b16 %v9971, %v9967
        %v10192 = vpack.c.b16 %v9972, %v9968
        %v10193 = vpack.c.b16 %v9977, %v9973
        %v10194 = vpack.c.b16 %v9978, %v9974
        %v10195 = vpack.c.b16 %v9979, %v9975
        %v10196 = vpack.c.b16 %v9980, %v9976
        %v10197 = vpack.c.b16 %v9985, %v9981
        %v10198 = vpack.c.b16 %v9986, %v9982
        %v10199 = vpack.c.b16 %v9987, %v9983
        %v10200 = vpack.c.b16 %v9988, %v9984
        %v10201 = vpack.c.b16 %v9993, %v9989
        %v10202 = vpack.c.b16 %v9994, %v9990
        %v10203 = vpack.c.b16 %v9995, %v9991
        %v10204 = vpack.c.b16 %v9996, %v9992
        %v10205 = vpack.c.b16 %v10001, %v9997
        %v10206 = vpack.c.b16 %v10002, %v9998
        %v10207 = vpack.c.b16 %v10003, %v9999
        %v10208 = vpack.c.b16 %v10004, %v10000
        %v10209 = vpack.c.b16 %v10009, %v10005
        %v10210 = vpack.c.b16 %v10010, %v10006
        %v10211 = vpack.c.b16 %v10011, %v10007
        %v10212 = vpack.c.b16 %v10012, %v10008
        %v10213 = vpack.c.b16 %v10017, %v10013
        %v10214 = vpack.c.b16 %v10018, %v10014
        %v10215 = vpack.c.b16 %v10019, %v10015
        %v10216 = vpack.c.b16 %v10020, %v10016
        %v10217 = vpack.c.b16 %v10025, %v10021
        %v10218 = vpack.c.b16 %v10026, %v10022
        %v10219 = vpack.c.b16 %v10027, %v10023
        %v10220 = vpack.c.b16 %v10028, %v10024
        %v10221 = vpack.c.b16 %v10033, %v10029
        %v10222 = vpack.c.b16 %v10034, %v10030
        %v10223 = vpack.c.b16 %v10035, %v10031
        %v10224 = vpack.c.b16 %v10036, %v10032
        %v10225 = vpack.c.b16 %v10041, %v10037
        %v10226 = vpack.c.b16 %v10042, %v10038
        %v10227 = vpack.c.b16 %v10043, %v10039
        %v10228 = vpack.c.b16 %v10044, %v10040
        %v10229 = vpack.c.b16 %v10049, %v10045
        %v10230 = vpack.c.b16 %v10050, %v10046
        %v10231 = vpack.c.b16 %v10051, %v10047
        %v10232 = vpack.c.b16 %v10052, %v10048
        %v10233 = vpack.c.b16 %v10057, %v10053
        %v10234 = vpack.c.b16 %v10058, %v10054
        %v10235 = vpack.c.b16 %v10059, %v10055
        %v10236 = vpack.c.b16 %v10060, %v10056
        %v10237 = vpack.c.b16 %v10065, %v10061
        %v10238 = vpack.c.b16 %v10066, %v10062
        %v10239 = vpack.c.b16 %v10067, %v10063
        %v10240 = vpack.c.b16 %v10068, %v10064
        %v10241 = vpack.c.b16 %v10073, %v10069
        %v10242 = vpack.c.b16 %v10074, %v10070
        %v10243 = vpack.c.b16 %v10075, %v10071
        %v10244 = vpack.c.b16 %v10076, %v10072
        %v10245 = vpack.c.b16 %v10081, %v10077
        %v10246 = vpack.c.b16 %v10082, %v10078
        %v10247 = vpack.c.b16 %v10083, %v10079
        %v10248 = vpack.c.b16 %v10084, %v10080
        %v10249 = vpack.c.b16 %v10089, %v10085
        %v10250 = vpack.c.b16 %v10090, %v10086
        %v10251 = vpack.c.b16 %v10091, %v10087
        %v10252 = vpack.c.b16 %v10092, %v10088
        %v10253 = vpack.c.b16 %v10097, %v10093
        %v10254 = vpack.c.b16 %v10098, %v10094
        %v10255 = vpack.c.b16 %v10099, %v10095
        %v10256 = vpack.c.b16 %v10100, %v10096
        %v10257 = vpack.c.b16 %v10105, %v10101
        %v10258 = vpack.c.b16 %v10106, %v10102
        %v10259 = vpack.c.b16 %v10107, %v10103
        %v10260 = vpack.c.b16 %v10108, %v10104
        %v10261 = vpack.c.b16 %v10113, %v10109
        %v10262 = vpack.c.b16 %v10114, %v10110
        %v10263 = vpack.c.b16 %v10115, %v10111
        %v10264 = vpack.c.b16 %v10116, %v10112
        %v10265 = vpack.c.b16 %v10121, %v10117
        %v10266 = vpack.c.b16 %v10122, %v10118
        %v10267 = vpack.c.b16 %v10123, %v10119
        %v10268 = vpack.c.b16 %v10124, %v10120
        %v10269 = vpack.c.b16 %v10129, %v10125
        %v10270 = vpack.c.b16 %v10130, %v10126
        %v10271 = vpack.c.b16 %v10131, %v10127
        %v10272 = vpack.c.b16 %v10132, %v10128
        %v10273 = vpack.c.b16 %v10137, %v10133
        %v10274 = vpack.c.b16 %v10138, %v10134
        %v10275 = vpack.c.b16 %v10139, %v10135
        %v10276 = vpack.c.b16 %v10140, %v10136
        %v10277 = vpack.c.b16 %v10145, %v10141
        %v10278 = vpack.c.b16 %v10146, %v10142
        %v10279 = vpack.c.b16 %v10147, %v10143
        %v10280 = vpack.c.b16 %v10148, %v10144
        %v10281 = vpack.c.b16 %v10153, %v10149
        %v10282 = vpack.c.b16 %v10154, %v10150
        %v10283 = vpack.c.b16 %v10155, %v10151
        %v10284 = vpack.c.b16 %v10156, %v10152
        %10413 = vmatprep.subr.bf16.mxu0 %v10186
        %10414 = vmatpush1.bf16.msra.mxu0 %v10185
        %10415 = vmatprep.subr.bf16.mxu0 %v10182
        %10416 = vmatpush1.bf16.msra.mxu0 %v10181
        %10417 = vmatprep.subr.bf16.mxu0 %v10178
        %10418 = vmatpush1.bf16.msra.mxu0 %v10177
        %10419 = vmatprep.subr.bf16.mxu0 %v10174
        %10420 = vmatpush1.bf16.msra.mxu0 %v10173
        %10421 = vmatprep.subr.bf16.mxu0 %v10170
        %10422 = vmatpush1.bf16.msra.mxu0 %v10169
        %10423 = vmatprep.subr.bf16.mxu0 %v10166
        %10424 = vmatpush1.bf16.msra.mxu0 %v10165
        %10425 = vmatprep.subr.bf16.mxu0 %v10162
        %10426 = vmatpush1.bf16.msra.mxu0 %v10161
        %10427 = vmatprep.subr.bf16.mxu0 %v10158
        %10428 = vmatpush1.bf16.msra.mxu0 %v10157
        %10429 = vmatprep.subr.bf16.mxu0 %v10218
        %10430 = vmatpush2.bf16.msra.mxu0 %v10217
        %10431 = vmatprep.subr.bf16.mxu0 %v10214
        %10432 = vmatpush2.bf16.msra.mxu0 %v10213
        %10433 = vmatprep.subr.bf16.mxu0 %v10210
        %10434 = vmatpush2.bf16.msra.mxu0 %v10209
        %10435 = vmatprep.subr.bf16.mxu0 %v10206
        %10436 = vmatpush2.bf16.msra.mxu0 %v10205
        %10437 = vmatprep.subr.bf16.mxu0 %v10202
        %10438 = vmatpush2.bf16.msra.mxu0 %v10201
        %10439 = vmatprep.subr.bf16.mxu0 %v10198
        %10440 = vmatpush2.bf16.msra.mxu0 %v10197
        %10441 = vmatprep.subr.bf16.mxu0 %v10194
        %10442 = vmatpush2.bf16.msra.mxu0 %v10193
        %10443 = vmatprep.subr.bf16.mxu0 %v10190
        %10444 = vmatpush2.bf16.msra.mxu0 %v10189
        %10445 = vmatprep.mubr.bf16.mxu0 %v9602
        %10446 = vmatmul.mubr.bf16.gmra.mxu0 %v9601
        %v10447 = vpop.f32.mrf.mxu0
        %v10448 = vadd.f32 0.0, %v10447
        %v10449 = vpop.f32.mrf.mxu0
        %v10450 = vadd.f32 0.0, %v10449
        %v10451 = vpop.f32.mrf.mxu0
        %v10452 = vadd.f32 0.0, %v10451
        %v10453 = vpop.f32.mrf.mxu0
        %v10454 = vadd.f32 0.0, %v10453
        %10455 = vmatprep.mubr.bf16.mxu0 %v9613
        %10456 = vmatmul.mubr.bf16.gmra.mxu0 %v9610
        %v10457 = vpop.f32.mrf.mxu0
        %v10458 = vadd.f32 0.0, %v10457
        %v10459 = vpop.f32.mrf.mxu0
        %v10460 = vadd.f32 0.0, %v10459
        %v10461 = vpop.f32.mrf.mxu0
        %v10462 = vpop.f32.mrf.mxu0
        %10463 = vdwg.mxu0
        %10464 = vmatprep.subr.bf16.mxu0 %v10250
        %10465 = vmatpush1.bf16.msra.mxu0 %v10249
        %10466 = vmatprep.subr.bf16.mxu0 %v10246
        %10467 = vmatpush1.bf16.msra.mxu0 %v10245
        %10468 = vmatprep.subr.bf16.mxu0 %v10242
        %10469 = vmatpush1.bf16.msra.mxu0 %v10241
        %10470 = vmatprep.subr.bf16.mxu0 %v10238
        %10471 = vmatpush1.bf16.msra.mxu0 %v10237
        %10472 = vmatprep.subr.bf16.mxu0 %v10234
        %10473 = vmatpush1.bf16.msra.mxu0 %v10233
        %10474 = vmatprep.subr.bf16.mxu0 %v10230
        %10475 = vmatpush1.bf16.msra.mxu0 %v10229
        %10476 = vmatprep.subr.bf16.mxu0 %v10226
        %10477 = vmatpush1.bf16.msra.mxu0 %v10225
        %10478 = vmatprep.subr.bf16.mxu0 %v10222
        %10479 = vmatpush1.bf16.msra.mxu0 %v10221
        %10480 = vmatprep.subr.bf16.mxu0 %v10282
        %10481 = vmatpush2.bf16.msra.mxu0 %v10281
        %10482 = vmatprep.subr.bf16.mxu0 %v10278
        %10483 = vmatpush2.bf16.msra.mxu0 %v10277
        %10484 = vmatprep.subr.bf16.mxu0 %v10274
        %10485 = vmatpush2.bf16.msra.mxu0 %v10273
        %10486 = vmatprep.subr.bf16.mxu0 %v10270
        %10487 = vmatpush2.bf16.msra.mxu0 %v10269
        %10488 = vmatprep.subr.bf16.mxu0 %v10266
        %10489 = vmatpush2.bf16.msra.mxu0 %v10265
        %10490 = vmatprep.subr.bf16.mxu0 %v10262
        %10491 = vmatpush2.bf16.msra.mxu0 %v10261
        %10492 = vmatprep.subr.bf16.mxu0 %v10258
        %10493 = vmatpush2.bf16.msra.mxu0 %v10257
        %10494 = vmatprep.subr.bf16.mxu0 %v10254
        %10495 = vmatpush2.bf16.msra.mxu0 %v10253
        %10496 = vmatprep.mubr.bf16.mxu0 %v9604
        %10497 = vmatmul.mubr.bf16.gmra.mxu0 %v9603
        %v10498 = vpop.f32.mrf.mxu0
        %v10499 = vadd.f32 %v10448, %v10498
        %v10500 = vpop.f32.mrf.mxu0
        %v10501 = vadd.f32 %v10450, %v10500
        %v10502 = vpop.f32.mrf.mxu0
        %v10503 = vadd.f32 %v10452, %v10502
        %v10504 = vpop.f32.mrf.mxu0
        %v10505 = vadd.f32 %v10454, %v10504
        %10506 = vmatprep.mubr.bf16.mxu0 %v9619
        %10507 = vmatmul.mubr.bf16.gmra.mxu0 %v9616
        %v10508 = vpop.f32.mrf.mxu0
        %v10509 = vadd.f32 %v10458, %v10508
        %v10510 = vpop.f32.mrf.mxu0
        %v10511 = vadd.f32 %v10460, %v10510
        %v10512 = vpop.f32.mrf.mxu0
        %v10513 = vpop.f32.mrf.mxu0
        %10514 = vdwg.mxu0
        %10515 = vmatprep.subr.bf16.mxu0 %v10188
        %10516 = vmatpush1.bf16.msra.mxu0 %v10187
        %10517 = vmatprep.subr.bf16.mxu0 %v10184
        %10518 = vmatpush1.bf16.msra.mxu0 %v10183
        %10519 = vmatprep.subr.bf16.mxu0 %v10180
        %10520 = vmatpush1.bf16.msra.mxu0 %v10179
        %10521 = vmatprep.subr.bf16.mxu0 %v10176
        %10522 = vmatpush1.bf16.msra.mxu0 %v10175
        %10523 = vmatprep.subr.bf16.mxu0 %v10172
        %10524 = vmatpush1.bf16.msra.mxu0 %v10171
        %10525 = vmatprep.subr.bf16.mxu0 %v10168
        %10526 = vmatpush1.bf16.msra.mxu0 %v10167
        %10527 = vmatprep.subr.bf16.mxu0 %v10164
        %10528 = vmatpush1.bf16.msra.mxu0 %v10163
        %10529 = vmatprep.subr.bf16.mxu0 %v10160
        %10530 = vmatpush1.bf16.msra.mxu0 %v10159
        %10531 = vmatprep.subr.bf16.mxu0 %v10220
        %10532 = vmatpush2.bf16.msra.mxu0 %v10219
        %10533 = vmatprep.subr.bf16.mxu0 %v10216
        %10534 = vmatpush2.bf16.msra.mxu0 %v10215
        %10535 = vmatprep.subr.bf16.mxu0 %v10212
        %10536 = vmatpush2.bf16.msra.mxu0 %v10211
        %10537 = vmatprep.subr.bf16.mxu0 %v10208
        %10538 = vmatpush2.bf16.msra.mxu0 %v10207
        %10539 = vmatprep.subr.bf16.mxu0 %v10204
        %10540 = vmatpush2.bf16.msra.mxu0 %v10203
        %10541 = vmatprep.subr.bf16.mxu0 %v10200
        %10542 = vmatpush2.bf16.msra.mxu0 %v10199
        %10543 = vmatprep.subr.bf16.mxu0 %v10196
        %10544 = vmatpush2.bf16.msra.mxu0 %v10195
        %10545 = vmatprep.subr.bf16.mxu0 %v10192
        %10546 = vmatpush2.bf16.msra.mxu0 %v10191
        %10547 = vmatprep.mubr.bf16.mxu0 %v9602
        %10548 = vmatmul.mubr.bf16.gmra.mxu0 %v9601
        %v10549 = vpop.f32.mrf.mxu0
        %v10550 = vadd.f32 0.0, %v10549
        %v10551 = vpop.f32.mrf.mxu0
        %v10552 = vadd.f32 0.0, %v10551
        %v10553 = vpop.f32.mrf.mxu0
        %v10554 = vadd.f32 0.0, %v10553
        %v10555 = vpop.f32.mrf.mxu0
        %v10556 = vadd.f32 0.0, %v10555
        %10557 = vmatprep.mubr.bf16.mxu0 %v9613
        %10558 = vmatmul.mubr.bf16.gmra.mxu0 %v9610
        %v10559 = vpop.f32.mrf.mxu0
        %v10560 = vadd.f32 0.0, %v10559
        %v10561 = vpop.f32.mrf.mxu0
        %v10562 = vadd.f32 0.0, %v10561
        %v10563 = vpop.f32.mrf.mxu0
        %v10564 = vpop.f32.mrf.mxu0
        %10565 = vdwg.mxu0
        %10566 = vmatprep.subr.bf16.mxu0 %v10252
        %10567 = vmatpush1.bf16.msra.mxu0 %v10251
        %10568 = vmatprep.subr.bf16.mxu0 %v10248
        %10569 = vmatpush1.bf16.msra.mxu0 %v10247
        %10570 = vmatprep.subr.bf16.mxu0 %v10244
        %10571 = vmatpush1.bf16.msra.mxu0 %v10243
        %10572 = vmatprep.subr.bf16.mxu0 %v10240
        %10573 = vmatpush1.bf16.msra.mxu0 %v10239
        %10574 = vmatprep.subr.bf16.mxu0 %v10236
        %10575 = vmatpush1.bf16.msra.mxu0 %v10235
        %10576 = vmatprep.subr.bf16.mxu0 %v10232
        %10577 = vmatpush1.bf16.msra.mxu0 %v10231
        %10578 = vmatprep.subr.bf16.mxu0 %v10228
        %10579 = vmatpush1.bf16.msra.mxu0 %v10227
        %10580 = vmatprep.subr.bf16.mxu0 %v10224
        %10581 = vmatpush1.bf16.msra.mxu0 %v10223
        %10582 = vmatprep.subr.bf16.mxu0 %v10284
        %10583 = vmatpush2.bf16.msra.mxu0 %v10283
        %10584 = vmatprep.subr.bf16.mxu0 %v10280
        %10585 = vmatpush2.bf16.msra.mxu0 %v10279
        %10586 = vmatprep.subr.bf16.mxu0 %v10276
        %10587 = vmatpush2.bf16.msra.mxu0 %v10275
        %10588 = vmatprep.subr.bf16.mxu0 %v10272
        %10589 = vmatpush2.bf16.msra.mxu0 %v10271
        %10590 = vmatprep.subr.bf16.mxu0 %v10268
        %10591 = vmatpush2.bf16.msra.mxu0 %v10267
        %10592 = vmatprep.subr.bf16.mxu0 %v10264
        %10593 = vmatpush2.bf16.msra.mxu0 %v10263
        %10594 = vmatprep.subr.bf16.mxu0 %v10260
        %10595 = vmatpush2.bf16.msra.mxu0 %v10259
        %10596 = vmatprep.subr.bf16.mxu0 %v10256
        %10597 = vmatpush2.bf16.msra.mxu0 %v10255
        %10598 = vmatprep.mubr.bf16.mxu0 %v9604
        %10599 = vmatmul.mubr.bf16.gmra.mxu0 %v9603
        %v10600 = vpop.f32.mrf.mxu0
        %v10601 = vadd.f32 %v10550, %v10600
        %v10602 = vpop.f32.mrf.mxu0
        %v10603 = vadd.f32 %v10552, %v10602
        %v10604 = vpop.f32.mrf.mxu0
        %v10605 = vadd.f32 %v10554, %v10604
        %v10606 = vpop.f32.mrf.mxu0
        %v10607 = vadd.f32 %v10556, %v10606
        %10608 = vmatprep.mubr.bf16.mxu0 %v9619
        %10609 = vmatmul.mubr.bf16.gmra.mxu0 %v9616
        %v10610 = vpop.f32.mrf.mxu0
        %v10611 = vadd.f32 %v10560, %v10610
        %v10612 = vpop.f32.mrf.mxu0
        %v10613 = vadd.f32 %v10562, %v10612
        %v10614 = vpop.f32.mrf.mxu0
        %v10615 = vpop.f32.mrf.mxu0
        %10616 = vdwg.mxu0
        %v10617 = vadd.f32 %v9627, %v10499
        %v10618 = vadd.f32 %v9631, %v10501
        %v10619 = vadd.f32 %v9635, %v10601
        %v10620 = vadd.f32 %v9639, %v10603
        %v10621 = vadd.f32 %v9627, %v10503
        %v10622 = vadd.f32 %v9631, %v10505
        %v10623 = vadd.f32 %v9635, %v10605
        %v10624 = vadd.f32 %v9639, %v10607
        %v10625 = vadd.f32 %v9627, %v10509
        %v10626 = vadd.f32 %v9631, %v10511
        %v10627 = vadd.f32 %v9635, %v10611
        %v10628 = vadd.f32 %v9639, %v10613
        %s10629 = scalar_lea.vmem [#allocation2], 10240
        %v10630 = vld [vmem:[%s10629] sm:$0xff]
        %v10631 = vld [vmem:[%s10629 + $0x8] sm:$0xff]
        %v10632 = vld [vmem:[%s10629 + $0x10] sm:$0xff]
        %v10633 = vld [vmem:[%s10629 + $0x18] sm:$0xff]
        %v10634 = vld [vmem:[%s10629 + $0x20] sm:$0xff]
        %v10635 = vld [vmem:[%s10629 + $0x28] sm:$0xff]
        %v10636 = vld [vmem:[%s10629 + $0x30] sm:$0xff]
        %v10637 = vld [vmem:[%s10629 + $0x38] sm:$0xff]
        %v10638 = vld [vmem:[%s10629 + $0x40] sm:$0xff]
        %v10639 = vld [vmem:[%s10629 + $0x48] sm:$0xff]
        %v10640 = vld [vmem:[%s10629 + $0x50] sm:$0xff]
        %v10641 = vld [vmem:[%s10629 + $0x58] sm:$0xff]
        %v10642 = vld [vmem:[%s10629 + $0x60] sm:$0xff]
        %v10643 = vld [vmem:[%s10629 + $0x68] sm:$0xff]
        %v10644 = vld [vmem:[%s10629 + $0x70] sm:$0xff]
        %v10645 = vld [vmem:[%s10629 + $0x78] sm:$0xff]
        %v10646 = vld [vmem:[%s10629 + $0x80] sm:$0xff]
        %v10647 = vld [vmem:[%s10629 + $0x88] sm:$0xff]
        %v10648 = vld [vmem:[%s10629 + $0x90] sm:$0xff]
        %v10649 = vld [vmem:[%s10629 + $0x98] sm:$0xff]
        %v10650 = vld [vmem:[%s10629 + $0xa0] sm:$0xff]
        %v10651 = vld [vmem:[%s10629 + $0xa8] sm:$0xff]
        %v10652 = vld [vmem:[%s10629 + $0xb0] sm:$0xff]
        %v10653 = vld [vmem:[%s10629 + $0xb8] sm:$0xff]
        %v10654 = vld [vmem:[%s10629 + $0xc0] sm:$0xff]
        %v10655 = vld [vmem:[%s10629 + $0xc8] sm:$0xff]
        %v10656 = vld [vmem:[%s10629 + $0xd0] sm:$0xff]
        %v10657 = vld [vmem:[%s10629 + $0xd8] sm:$0xff]
        %v10658 = vld [vmem:[%s10629 + $0xe0] sm:$0xff]
        %v10659 = vld [vmem:[%s10629 + $0xe8] sm:$0xff]
        %v10660 = vld [vmem:[%s10629 + $0xf0] sm:$0xff]
        %v10661 = vld [vmem:[%s10629 + $0xf8] sm:$0xff]
        %v10662 = vld [vmem:[%s10629 + $0x100] sm:$0xff]
        %v10663 = vld [vmem:[%s10629 + $0x108] sm:$0xff]
        %v10664 = vld [vmem:[%s10629 + $0x110] sm:$0xff]
        %v10665 = vld [vmem:[%s10629 + $0x118] sm:$0xff]
        %v10666 = vld [vmem:[%s10629 + $0x120] sm:$0xff]
        %v10667 = vld [vmem:[%s10629 + $0x128] sm:$0xff]
        %v10668 = vld [vmem:[%s10629 + $0x130] sm:$0xff]
        %v10669 = vld [vmem:[%s10629 + $0x138] sm:$0xff]
        %v10670 = vld [vmem:[%s10629 + $0x140] sm:$0xff]
        %v10671 = vld [vmem:[%s10629 + $0x148] sm:$0xff]
        %v10672 = vld [vmem:[%s10629 + $0x150] sm:$0xff]
        %v10673 = vld [vmem:[%s10629 + $0x158] sm:$0xff]
        %v10674 = vld [vmem:[%s10629 + $0x160] sm:$0xff]
        %v10675 = vld [vmem:[%s10629 + $0x168] sm:$0xff]
        %v10676 = vld [vmem:[%s10629 + $0x170] sm:$0xff]
        %v10677 = vld [vmem:[%s10629 + $0x178] sm:$0xff]
        %v10678 = vld [vmem:[%s10629 + $0x180] sm:$0xff]
        %v10679 = vld [vmem:[%s10629 + $0x188] sm:$0xff]
        %v10680 = vld [vmem:[%s10629 + $0x190] sm:$0xff]
        %v10681 = vld [vmem:[%s10629 + $0x198] sm:$0xff]
        %v10682 = vld [vmem:[%s10629 + $0x1a0] sm:$0xff]
        %v10683 = vld [vmem:[%s10629 + $0x1a8] sm:$0xff]
        %v10684 = vld [vmem:[%s10629 + $0x1b0] sm:$0xff]
        %v10685 = vld [vmem:[%s10629 + $0x1b8] sm:$0xff]
        %v10686 = vld [vmem:[%s10629 + $0x1c0] sm:$0xff]
        %v10687 = vld [vmem:[%s10629 + $0x1c8] sm:$0xff]
        %v10688 = vld [vmem:[%s10629 + $0x1d0] sm:$0xff]
        %v10689 = vld [vmem:[%s10629 + $0x1d8] sm:$0xff]
        %v10690 = vld [vmem:[%s10629 + $0x1e0] sm:$0xff]
        %v10691 = vld [vmem:[%s10629 + $0x1e8] sm:$0xff]
        %v10692 = vld [vmem:[%s10629 + $0x1f0] sm:$0xff]
        %v10693 = vld [vmem:[%s10629 + $0x1f8] sm:$0xff]
        %v10694 = vld [vmem:[%s10629 + $0x200] sm:$0xff]
        %v10695 = vld [vmem:[%s10629 + $0x208] sm:$0xff]
        %v10696 = vld [vmem:[%s10629 + $0x210] sm:$0xff]
        %v10697 = vld [vmem:[%s10629 + $0x218] sm:$0xff]
        %v10698 = vld [vmem:[%s10629 + $0x220] sm:$0xff]
        %v10699 = vld [vmem:[%s10629 + $0x228] sm:$0xff]
        %v10700 = vld [vmem:[%s10629 + $0x230] sm:$0xff]
        %v10701 = vld [vmem:[%s10629 + $0x238] sm:$0xff]
        %v10702 = vld [vmem:[%s10629 + $0x240] sm:$0xff]
        %v10703 = vld [vmem:[%s10629 + $0x248] sm:$0xff]
        %v10704 = vld [vmem:[%s10629 + $0x250] sm:$0xff]
        %v10705 = vld [vmem:[%s10629 + $0x258] sm:$0xff]
        %v10706 = vld [vmem:[%s10629 + $0x260] sm:$0xff]
        %v10707 = vld [vmem:[%s10629 + $0x268] sm:$0xff]
        %v10708 = vld [vmem:[%s10629 + $0x270] sm:$0xff]
        %v10709 = vld [vmem:[%s10629 + $0x278] sm:$0xff]
        %v10710 = vld [vmem:[%s10629 + $0x280] sm:$0xff]
        %v10711 = vld [vmem:[%s10629 + $0x288] sm:$0xff]
        %v10712 = vld [vmem:[%s10629 + $0x290] sm:$0xff]
        %v10713 = vld [vmem:[%s10629 + $0x298] sm:$0xff]
        %v10714 = vld [vmem:[%s10629 + $0x2a0] sm:$0xff]
        %v10715 = vld [vmem:[%s10629 + $0x2a8] sm:$0xff]
        %v10716 = vld [vmem:[%s10629 + $0x2b0] sm:$0xff]
        %v10717 = vld [vmem:[%s10629 + $0x2b8] sm:$0xff]
        %v10718 = vld [vmem:[%s10629 + $0x2c0] sm:$0xff]
        %v10719 = vld [vmem:[%s10629 + $0x2c8] sm:$0xff]
        %v10720 = vld [vmem:[%s10629 + $0x2d0] sm:$0xff]
        %v10721 = vld [vmem:[%s10629 + $0x2d8] sm:$0xff]
        %v10722 = vld [vmem:[%s10629 + $0x2e0] sm:$0xff]
        %v10723 = vld [vmem:[%s10629 + $0x2e8] sm:$0xff]
        %v10724 = vld [vmem:[%s10629 + $0x2f0] sm:$0xff]
        %v10725 = vld [vmem:[%s10629 + $0x2f8] sm:$0xff]
        %v10726 = vld [vmem:[%s10629 + $0x300] sm:$0xff]
        %v10727 = vld [vmem:[%s10629 + $0x308] sm:$0xff]
        %v10728 = vld [vmem:[%s10629 + $0x310] sm:$0xff]
        %v10729 = vld [vmem:[%s10629 + $0x318] sm:$0xff]
        %v10730 = vld [vmem:[%s10629 + $0x320] sm:$0xff]
        %v10731 = vld [vmem:[%s10629 + $0x328] sm:$0xff]
        %v10732 = vld [vmem:[%s10629 + $0x330] sm:$0xff]
        %v10733 = vld [vmem:[%s10629 + $0x338] sm:$0xff]
        %v10734 = vld [vmem:[%s10629 + $0x340] sm:$0xff]
        %v10735 = vld [vmem:[%s10629 + $0x348] sm:$0xff]
        %v10736 = vld [vmem:[%s10629 + $0x350] sm:$0xff]
        %v10737 = vld [vmem:[%s10629 + $0x358] sm:$0xff]
        %v10738 = vld [vmem:[%s10629 + $0x360] sm:$0xff]
        %v10739 = vld [vmem:[%s10629 + $0x368] sm:$0xff]
        %v10740 = vld [vmem:[%s10629 + $0x370] sm:$0xff]
        %v10741 = vld [vmem:[%s10629 + $0x378] sm:$0xff]
        %v10742 = vld [vmem:[%s10629 + $0x380] sm:$0xff]
        %v10743 = vld [vmem:[%s10629 + $0x388] sm:$0xff]
        %v10744 = vld [vmem:[%s10629 + $0x390] sm:$0xff]
        %v10745 = vld [vmem:[%s10629 + $0x398] sm:$0xff]
        %v10746 = vld [vmem:[%s10629 + $0x3a0] sm:$0xff]
        %v10747 = vld [vmem:[%s10629 + $0x3a8] sm:$0xff]
        %v10748 = vld [vmem:[%s10629 + $0x3b0] sm:$0xff]
        %v10749 = vld [vmem:[%s10629 + $0x3b8] sm:$0xff]
        %v10750 = vld [vmem:[%s10629 + $0x3c0] sm:$0xff]
        %v10751 = vld [vmem:[%s10629 + $0x3c8] sm:$0xff]
        %v10752 = vld [vmem:[%s10629 + $0x3d0] sm:$0xff]
        %v10753 = vld [vmem:[%s10629 + $0x3d8] sm:$0xff]
        %v10754 = vld [vmem:[%s10629 + $0x3e0] sm:$0xff]
        %v10755 = vld [vmem:[%s10629 + $0x3e8] sm:$0xff]
        %v10756 = vld [vmem:[%s10629 + $0x3f0] sm:$0xff]
        %v10757 = vld [vmem:[%s10629 + $0x3f8] sm:$0xff]
        %v10759 = vshrl.u32 %v9601, 16
        %v10761 = vshll.u32 %v9601, 16
        %v10763 = vrot.slane %v10761, 1
        %v10764 = vor.u32 %v10759, %v10763
        %v10765 = vshll.u32 %v9610, 16
        %v10767 = vrot.slane %v10765, 1
        %v10768 = vsel %vm1466, %v10764, %v10767
        %v10770 = vshrl.u32 %v9602, 16
        %v10772 = vshll.u32 %v9602, 16
        %v10774 = vrot.slane %v10772, 1
        %v10775 = vor.u32 %v10770, %v10774
        %v10776 = vshll.u32 %v9613, 16
        %v10778 = vrot.slane %v10776, 1
        %v10779 = vsel %vm1466, %v10775, %v10778
        %v10781 = vshrl.u32 %v9603, 16
        %v10783 = vshll.u32 %v9603, 16
        %v10785 = vrot.slane %v10783, 1
        %v10786 = vor.u32 %v10781, %v10785
        %v10787 = vshll.u32 %v9616, 16
        %v10789 = vrot.slane %v10787, 1
        %v10790 = vsel %vm1466, %v10786, %v10789
        %v10792 = vshrl.u32 %v9604, 16
        %v10794 = vshll.u32 %v9604, 16
        %v10796 = vrot.slane %v10794, 1
        %v10797 = vor.u32 %v10792, %v10796
        %v10798 = vshll.u32 %v9619, 16
        %v10800 = vrot.slane %v10798, 1
        %v10801 = vsel %vm1466, %v10797, %v10800
        %v10802 = vshrl.u32 %v9610, 16
        %v10804 = vor.u32 %v10802, %v10767
        %v10805 = vshrl.u32 %v9613, 16
        %v10807 = vor.u32 %v10805, %v10778
        %v10808 = vshrl.u32 %v9616, 16
        %v10810 = vor.u32 %v10808, %v10789
        %v10811 = vshrl.u32 %v9619, 16
        %v10813 = vor.u32 %v10811, %v10800
        %v10950 = vunpack.c.l.b16 %v10630
        %v10951 = vunpack.c.h.b16 %v10630
        %v10952 = vunpack.c.l.b16 %v10631
        %v10953 = vunpack.c.h.b16 %v10631
        %v10954 = vunpack.c.l.b16 %v10632
        %v10955 = vunpack.c.h.b16 %v10632
        %v10956 = vunpack.c.l.b16 %v10633
        %v10957 = vunpack.c.h.b16 %v10633
        %v10958 = vunpack.c.l.b16 %v10634
        %v10959 = vunpack.c.h.b16 %v10634
        %v10960 = vunpack.c.l.b16 %v10635
        %v10961 = vunpack.c.h.b16 %v10635
        %v10962 = vunpack.c.l.b16 %v10636
        %v10963 = vunpack.c.h.b16 %v10636
        %v10964 = vunpack.c.l.b16 %v10637
        %v10965 = vunpack.c.h.b16 %v10637
        %v10966 = vunpack.c.l.b16 %v10638
        %v10967 = vunpack.c.h.b16 %v10638
        %v10968 = vunpack.c.l.b16 %v10639
        %v10969 = vunpack.c.h.b16 %v10639
        %v10970 = vunpack.c.l.b16 %v10640
        %v10971 = vunpack.c.h.b16 %v10640
        %v10972 = vunpack.c.l.b16 %v10641
        %v10973 = vunpack.c.h.b16 %v10641
        %v10974 = vunpack.c.l.b16 %v10642
        %v10975 = vunpack.c.h.b16 %v10642
        %v10976 = vunpack.c.l.b16 %v10643
        %v10977 = vunpack.c.h.b16 %v10643
        %v10978 = vunpack.c.l.b16 %v10644
        %v10979 = vunpack.c.h.b16 %v10644
        %v10980 = vunpack.c.l.b16 %v10645
        %v10981 = vunpack.c.h.b16 %v10645
        %v10982 = vunpack.c.l.b16 %v10646
        %v10983 = vunpack.c.h.b16 %v10646
        %v10984 = vunpack.c.l.b16 %v10647
        %v10985 = vunpack.c.h.b16 %v10647
        %v10986 = vunpack.c.l.b16 %v10648
        %v10987 = vunpack.c.h.b16 %v10648
        %v10988 = vunpack.c.l.b16 %v10649
        %v10989 = vunpack.c.h.b16 %v10649
        %v10990 = vunpack.c.l.b16 %v10650
        %v10991 = vunpack.c.h.b16 %v10650
        %v10992 = vunpack.c.l.b16 %v10651
        %v10993 = vunpack.c.h.b16 %v10651
        %v10994 = vunpack.c.l.b16 %v10652
        %v10995 = vunpack.c.h.b16 %v10652
        %v10996 = vunpack.c.l.b16 %v10653
        %v10997 = vunpack.c.h.b16 %v10653
        %v10998 = vunpack.c.l.b16 %v10654
        %v10999 = vunpack.c.h.b16 %v10654
        %v11000 = vunpack.c.l.b16 %v10655
        %v11001 = vunpack.c.h.b16 %v10655
        %v11002 = vunpack.c.l.b16 %v10656
        %v11003 = vunpack.c.h.b16 %v10656
        %v11004 = vunpack.c.l.b16 %v10657
        %v11005 = vunpack.c.h.b16 %v10657
        %v11006 = vunpack.c.l.b16 %v10658
        %v11007 = vunpack.c.h.b16 %v10658
        %v11008 = vunpack.c.l.b16 %v10659
        %v11009 = vunpack.c.h.b16 %v10659
        %v11010 = vunpack.c.l.b16 %v10660
        %v11011 = vunpack.c.h.b16 %v10660
        %v11012 = vunpack.c.l.b16 %v10661
        %v11013 = vunpack.c.h.b16 %v10661
        %v11014 = vunpack.c.l.b16 %v10662
        %v11015 = vunpack.c.h.b16 %v10662
        %v11016 = vunpack.c.l.b16 %v10663
        %v11017 = vunpack.c.h.b16 %v10663
        %v11018 = vunpack.c.l.b16 %v10664
        %v11019 = vunpack.c.h.b16 %v10664
        %v11020 = vunpack.c.l.b16 %v10665
        %v11021 = vunpack.c.h.b16 %v10665
        %v11022 = vunpack.c.l.b16 %v10666
        %v11023 = vunpack.c.h.b16 %v10666
        %v11024 = vunpack.c.l.b16 %v10667
        %v11025 = vunpack.c.h.b16 %v10667
        %v11026 = vunpack.c.l.b16 %v10668
        %v11027 = vunpack.c.h.b16 %v10668
        %v11028 = vunpack.c.l.b16 %v10669
        %v11029 = vunpack.c.h.b16 %v10669
        %v11030 = vunpack.c.l.b16 %v10670
        %v11031 = vunpack.c.h.b16 %v10670
        %v11032 = vunpack.c.l.b16 %v10671
        %v11033 = vunpack.c.h.b16 %v10671
        %v11034 = vunpack.c.l.b16 %v10672
        %v11035 = vunpack.c.h.b16 %v10672
        %v11036 = vunpack.c.l.b16 %v10673
        %v11037 = vunpack.c.h.b16 %v10673
        %v11038 = vunpack.c.l.b16 %v10674
        %v11039 = vunpack.c.h.b16 %v10674
        %v11040 = vunpack.c.l.b16 %v10675
        %v11041 = vunpack.c.h.b16 %v10675
        %v11042 = vunpack.c.l.b16 %v10676
        %v11043 = vunpack.c.h.b16 %v10676
        %v11044 = vunpack.c.l.b16 %v10677
        %v11045 = vunpack.c.h.b16 %v10677
        %v11046 = vunpack.c.l.b16 %v10678
        %v11047 = vunpack.c.h.b16 %v10678
        %v11048 = vunpack.c.l.b16 %v10679
        %v11049 = vunpack.c.h.b16 %v10679
        %v11050 = vunpack.c.l.b16 %v10680
        %v11051 = vunpack.c.h.b16 %v10680
        %v11052 = vunpack.c.l.b16 %v10681
        %v11053 = vunpack.c.h.b16 %v10681
        %v11054 = vunpack.c.l.b16 %v10682
        %v11055 = vunpack.c.h.b16 %v10682
        %v11056 = vunpack.c.l.b16 %v10683
        %v11057 = vunpack.c.h.b16 %v10683
        %v11058 = vunpack.c.l.b16 %v10684
        %v11059 = vunpack.c.h.b16 %v10684
        %v11060 = vunpack.c.l.b16 %v10685
        %v11061 = vunpack.c.h.b16 %v10685
        %v11062 = vunpack.c.l.b16 %v10686
        %v11063 = vunpack.c.h.b16 %v10686
        %v11064 = vunpack.c.l.b16 %v10687
        %v11065 = vunpack.c.h.b16 %v10687
        %v11066 = vunpack.c.l.b16 %v10688
        %v11067 = vunpack.c.h.b16 %v10688
        %v11068 = vunpack.c.l.b16 %v10689
        %v11069 = vunpack.c.h.b16 %v10689
        %v11070 = vunpack.c.l.b16 %v10690
        %v11071 = vunpack.c.h.b16 %v10690
        %v11072 = vunpack.c.l.b16 %v10691
        %v11073 = vunpack.c.h.b16 %v10691
        %v11074 = vunpack.c.l.b16 %v10692
        %v11075 = vunpack.c.h.b16 %v10692
        %v11076 = vunpack.c.l.b16 %v10693
        %v11077 = vunpack.c.h.b16 %v10693
        %v11078 = vunpack.c.l.b16 %v10694
        %v11079 = vunpack.c.h.b16 %v10694
        %v11080 = vunpack.c.l.b16 %v10695
        %v11081 = vunpack.c.h.b16 %v10695
        %v11082 = vunpack.c.l.b16 %v10696
        %v11083 = vunpack.c.h.b16 %v10696
        %v11084 = vunpack.c.l.b16 %v10697
        %v11085 = vunpack.c.h.b16 %v10697
        %v11086 = vunpack.c.l.b16 %v10698
        %v11087 = vunpack.c.h.b16 %v10698
        %v11088 = vunpack.c.l.b16 %v10699
        %v11089 = vunpack.c.h.b16 %v10699
        %v11090 = vunpack.c.l.b16 %v10700
        %v11091 = vunpack.c.h.b16 %v10700
        %v11092 = vunpack.c.l.b16 %v10701
        %v11093 = vunpack.c.h.b16 %v10701
        %v11094 = vunpack.c.l.b16 %v10702
        %v11095 = vunpack.c.h.b16 %v10702
        %v11096 = vunpack.c.l.b16 %v10703
        %v11097 = vunpack.c.h.b16 %v10703
        %v11098 = vunpack.c.l.b16 %v10704
        %v11099 = vunpack.c.h.b16 %v10704
        %v11100 = vunpack.c.l.b16 %v10705
        %v11101 = vunpack.c.h.b16 %v10705
        %v11102 = vunpack.c.l.b16 %v10706
        %v11103 = vunpack.c.h.b16 %v10706
        %v11104 = vunpack.c.l.b16 %v10707
        %v11105 = vunpack.c.h.b16 %v10707
        %v11106 = vunpack.c.l.b16 %v10708
        %v11107 = vunpack.c.h.b16 %v10708
        %v11108 = vunpack.c.l.b16 %v10709
        %v11109 = vunpack.c.h.b16 %v10709
        %v11110 = vunpack.c.l.b16 %v10710
        %v11111 = vunpack.c.h.b16 %v10710
        %v11112 = vunpack.c.l.b16 %v10711
        %v11113 = vunpack.c.h.b16 %v10711
        %v11114 = vunpack.c.l.b16 %v10712
        %v11115 = vunpack.c.h.b16 %v10712
        %v11116 = vunpack.c.l.b16 %v10713
        %v11117 = vunpack.c.h.b16 %v10713
        %v11118 = vunpack.c.l.b16 %v10714
        %v11119 = vunpack.c.h.b16 %v10714
        %v11120 = vunpack.c.l.b16 %v10715
        %v11121 = vunpack.c.h.b16 %v10715
        %v11122 = vunpack.c.l.b16 %v10716
        %v11123 = vunpack.c.h.b16 %v10716
        %v11124 = vunpack.c.l.b16 %v10717
        %v11125 = vunpack.c.h.b16 %v10717
        %v11126 = vunpack.c.l.b16 %v10718
        %v11127 = vunpack.c.h.b16 %v10718
        %v11128 = vunpack.c.l.b16 %v10719
        %v11129 = vunpack.c.h.b16 %v10719
        %v11130 = vunpack.c.l.b16 %v10720
        %v11131 = vunpack.c.h.b16 %v10720
        %v11132 = vunpack.c.l.b16 %v10721
        %v11133 = vunpack.c.h.b16 %v10721
        %v11134 = vunpack.c.l.b16 %v10722
        %v11135 = vunpack.c.h.b16 %v10722
        %v11136 = vunpack.c.l.b16 %v10723
        %v11137 = vunpack.c.h.b16 %v10723
        %v11138 = vunpack.c.l.b16 %v10724
        %v11139 = vunpack.c.h.b16 %v10724
        %v11140 = vunpack.c.l.b16 %v10725
        %v11141 = vunpack.c.h.b16 %v10725
        %v11142 = vunpack.c.l.b16 %v10726
        %v11143 = vunpack.c.h.b16 %v10726
        %v11144 = vunpack.c.l.b16 %v10727
        %v11145 = vunpack.c.h.b16 %v10727
        %v11146 = vunpack.c.l.b16 %v10728
        %v11147 = vunpack.c.h.b16 %v10728
        %v11148 = vunpack.c.l.b16 %v10729
        %v11149 = vunpack.c.h.b16 %v10729
        %v11150 = vunpack.c.l.b16 %v10730
        %v11151 = vunpack.c.h.b16 %v10730
        %v11152 = vunpack.c.l.b16 %v10731
        %v11153 = vunpack.c.h.b16 %v10731
        %v11154 = vunpack.c.l.b16 %v10732
        %v11155 = vunpack.c.h.b16 %v10732
        %v11156 = vunpack.c.l.b16 %v10733
        %v11157 = vunpack.c.h.b16 %v10733
        %v11158 = vunpack.c.l.b16 %v10734
        %v11159 = vunpack.c.h.b16 %v10734
        %v11160 = vunpack.c.l.b16 %v10735
        %v11161 = vunpack.c.h.b16 %v10735
        %v11162 = vunpack.c.l.b16 %v10736
        %v11163 = vunpack.c.h.b16 %v10736
        %v11164 = vunpack.c.l.b16 %v10737
        %v11165 = vunpack.c.h.b16 %v10737
        %v11166 = vunpack.c.l.b16 %v10738
        %v11167 = vunpack.c.h.b16 %v10738
        %v11168 = vunpack.c.l.b16 %v10739
        %v11169 = vunpack.c.h.b16 %v10739
        %v11170 = vunpack.c.l.b16 %v10740
        %v11171 = vunpack.c.h.b16 %v10740
        %v11172 = vunpack.c.l.b16 %v10741
        %v11173 = vunpack.c.h.b16 %v10741
        %v11174 = vunpack.c.l.b16 %v10742
        %v11175 = vunpack.c.h.b16 %v10742
        %v11176 = vunpack.c.l.b16 %v10743
        %v11177 = vunpack.c.h.b16 %v10743
        %v11178 = vunpack.c.l.b16 %v10744
        %v11179 = vunpack.c.h.b16 %v10744
        %v11180 = vunpack.c.l.b16 %v10745
        %v11181 = vunpack.c.h.b16 %v10745
        %v11182 = vunpack.c.l.b16 %v10746
        %v11183 = vunpack.c.h.b16 %v10746
        %v11184 = vunpack.c.l.b16 %v10747
        %v11185 = vunpack.c.h.b16 %v10747
        %v11186 = vunpack.c.l.b16 %v10748
        %v11187 = vunpack.c.h.b16 %v10748
        %v11188 = vunpack.c.l.b16 %v10749
        %v11189 = vunpack.c.h.b16 %v10749
        %v11190 = vunpack.c.l.b16 %v10750
        %v11191 = vunpack.c.h.b16 %v10750
        %v11192 = vunpack.c.l.b16 %v10751
        %v11193 = vunpack.c.h.b16 %v10751
        %v11194 = vunpack.c.l.b16 %v10752
        %v11195 = vunpack.c.h.b16 %v10752
        %v11196 = vunpack.c.l.b16 %v10753
        %v11197 = vunpack.c.h.b16 %v10753
        %v11198 = vunpack.c.l.b16 %v10754
        %v11199 = vunpack.c.h.b16 %v10754
        %v11200 = vunpack.c.l.b16 %v10755
        %v11201 = vunpack.c.h.b16 %v10755
        %v11202 = vunpack.c.l.b16 %v10756
        %v11203 = vunpack.c.h.b16 %v10756
        %v11204 = vunpack.c.l.b16 %v10757
        %v11205 = vunpack.c.h.b16 %v10757
        %v11206 = vpack.c.b16 %v10954, %v10950
        %v11207 = vpack.c.b16 %v10955, %v10951
        %v11208 = vpack.c.b16 %v10956, %v10952
        %v11209 = vpack.c.b16 %v10957, %v10953
        %v11210 = vpack.c.b16 %v10962, %v10958
        %v11211 = vpack.c.b16 %v10963, %v10959
        %v11212 = vpack.c.b16 %v10964, %v10960
        %v11213 = vpack.c.b16 %v10965, %v10961
        %v11214 = vpack.c.b16 %v10970, %v10966
        %v11215 = vpack.c.b16 %v10971, %v10967
        %v11216 = vpack.c.b16 %v10972, %v10968
        %v11217 = vpack.c.b16 %v10973, %v10969
        %v11218 = vpack.c.b16 %v10978, %v10974
        %v11219 = vpack.c.b16 %v10979, %v10975
        %v11220 = vpack.c.b16 %v10980, %v10976
        %v11221 = vpack.c.b16 %v10981, %v10977
        %v11222 = vpack.c.b16 %v10986, %v10982
        %v11223 = vpack.c.b16 %v10987, %v10983
        %v11224 = vpack.c.b16 %v10988, %v10984
        %v11225 = vpack.c.b16 %v10989, %v10985
        %v11226 = vpack.c.b16 %v10994, %v10990
        %v11227 = vpack.c.b16 %v10995, %v10991
        %v11228 = vpack.c.b16 %v10996, %v10992
        %v11229 = vpack.c.b16 %v10997, %v10993
        %v11230 = vpack.c.b16 %v11002, %v10998
        %v11231 = vpack.c.b16 %v11003, %v10999
        %v11232 = vpack.c.b16 %v11004, %v11000
        %v11233 = vpack.c.b16 %v11005, %v11001
        %v11234 = vpack.c.b16 %v11010, %v11006
        %v11235 = vpack.c.b16 %v11011, %v11007
        %v11236 = vpack.c.b16 %v11012, %v11008
        %v11237 = vpack.c.b16 %v11013, %v11009
        %v11238 = vpack.c.b16 %v11018, %v11014
        %v11239 = vpack.c.b16 %v11019, %v11015
        %v11240 = vpack.c.b16 %v11020, %v11016
        %v11241 = vpack.c.b16 %v11021, %v11017
        %v11242 = vpack.c.b16 %v11026, %v11022
        %v11243 = vpack.c.b16 %v11027, %v11023
        %v11244 = vpack.c.b16 %v11028, %v11024
        %v11245 = vpack.c.b16 %v11029, %v11025
        %v11246 = vpack.c.b16 %v11034, %v11030
        %v11247 = vpack.c.b16 %v11035, %v11031
        %v11248 = vpack.c.b16 %v11036, %v11032
        %v11249 = vpack.c.b16 %v11037, %v11033
        %v11250 = vpack.c.b16 %v11042, %v11038
        %v11251 = vpack.c.b16 %v11043, %v11039
        %v11252 = vpack.c.b16 %v11044, %v11040
        %v11253 = vpack.c.b16 %v11045, %v11041
        %v11254 = vpack.c.b16 %v11050, %v11046
        %v11255 = vpack.c.b16 %v11051, %v11047
        %v11256 = vpack.c.b16 %v11052, %v11048
        %v11257 = vpack.c.b16 %v11053, %v11049
        %v11258 = vpack.c.b16 %v11058, %v11054
        %v11259 = vpack.c.b16 %v11059, %v11055
        %v11260 = vpack.c.b16 %v11060, %v11056
        %v11261 = vpack.c.b16 %v11061, %v11057
        %v11262 = vpack.c.b16 %v11066, %v11062
        %v11263 = vpack.c.b16 %v11067, %v11063
        %v11264 = vpack.c.b16 %v11068, %v11064
        %v11265 = vpack.c.b16 %v11069, %v11065
        %v11266 = vpack.c.b16 %v11074, %v11070
        %v11267 = vpack.c.b16 %v11075, %v11071
        %v11268 = vpack.c.b16 %v11076, %v11072
        %v11269 = vpack.c.b16 %v11077, %v11073
        %v11270 = vpack.c.b16 %v11082, %v11078
        %v11271 = vpack.c.b16 %v11083, %v11079
        %v11272 = vpack.c.b16 %v11084, %v11080
        %v11273 = vpack.c.b16 %v11085, %v11081
        %v11274 = vpack.c.b16 %v11090, %v11086
        %v11275 = vpack.c.b16 %v11091, %v11087
        %v11276 = vpack.c.b16 %v11092, %v11088
        %v11277 = vpack.c.b16 %v11093, %v11089
        %v11278 = vpack.c.b16 %v11098, %v11094
        %v11279 = vpack.c.b16 %v11099, %v11095
        %v11280 = vpack.c.b16 %v11100, %v11096
        %v11281 = vpack.c.b16 %v11101, %v11097
        %v11282 = vpack.c.b16 %v11106, %v11102
        %v11283 = vpack.c.b16 %v11107, %v11103
        %v11284 = vpack.c.b16 %v11108, %v11104
        %v11285 = vpack.c.b16 %v11109, %v11105
        %v11286 = vpack.c.b16 %v11114, %v11110
        %v11287 = vpack.c.b16 %v11115, %v11111
        %v11288 = vpack.c.b16 %v11116, %v11112
        %v11289 = vpack.c.b16 %v11117, %v11113
        %v11290 = vpack.c.b16 %v11122, %v11118
        %v11291 = vpack.c.b16 %v11123, %v11119
        %v11292 = vpack.c.b16 %v11124, %v11120
        %v11293 = vpack.c.b16 %v11125, %v11121
        %v11294 = vpack.c.b16 %v11130, %v11126
        %v11295 = vpack.c.b16 %v11131, %v11127
        %v11296 = vpack.c.b16 %v11132, %v11128
        %v11297 = vpack.c.b16 %v11133, %v11129
        %v11298 = vpack.c.b16 %v11138, %v11134
        %v11299 = vpack.c.b16 %v11139, %v11135
        %v11300 = vpack.c.b16 %v11140, %v11136
        %v11301 = vpack.c.b16 %v11141, %v11137
        %v11302 = vpack.c.b16 %v11146, %v11142
        %v11303 = vpack.c.b16 %v11147, %v11143
        %v11304 = vpack.c.b16 %v11148, %v11144
        %v11305 = vpack.c.b16 %v11149, %v11145
        %v11306 = vpack.c.b16 %v11154, %v11150
        %v11307 = vpack.c.b16 %v11155, %v11151
        %v11308 = vpack.c.b16 %v11156, %v11152
        %v11309 = vpack.c.b16 %v11157, %v11153
        %v11310 = vpack.c.b16 %v11162, %v11158
        %v11311 = vpack.c.b16 %v11163, %v11159
        %v11312 = vpack.c.b16 %v11164, %v11160
        %v11313 = vpack.c.b16 %v11165, %v11161
        %v11314 = vpack.c.b16 %v11170, %v11166
        %v11315 = vpack.c.b16 %v11171, %v11167
        %v11316 = vpack.c.b16 %v11172, %v11168
        %v11317 = vpack.c.b16 %v11173, %v11169
        %v11318 = vpack.c.b16 %v11178, %v11174
        %v11319 = vpack.c.b16 %v11179, %v11175
        %v11320 = vpack.c.b16 %v11180, %v11176
        %v11321 = vpack.c.b16 %v11181, %v11177
        %v11322 = vpack.c.b16 %v11186, %v11182
        %v11323 = vpack.c.b16 %v11187, %v11183
        %v11324 = vpack.c.b16 %v11188, %v11184
        %v11325 = vpack.c.b16 %v11189, %v11185
        %v11326 = vpack.c.b16 %v11194, %v11190
        %v11327 = vpack.c.b16 %v11195, %v11191
        %v11328 = vpack.c.b16 %v11196, %v11192
        %v11329 = vpack.c.b16 %v11197, %v11193
        %v11330 = vpack.c.b16 %v11202, %v11198
        %v11331 = vpack.c.b16 %v11203, %v11199
        %v11332 = vpack.c.b16 %v11204, %v11200
        %v11333 = vpack.c.b16 %v11205, %v11201
        %11462 = vmatprep.subr.bf16.mxu0 %v11235
        %11463 = vmatpush1.bf16.msra.mxu0 %v11234
        %11464 = vmatprep.subr.bf16.mxu0 %v11231
        %11465 = vmatpush1.bf16.msra.mxu0 %v11230
        %11466 = vmatprep.subr.bf16.mxu0 %v11227
        %11467 = vmatpush1.bf16.msra.mxu0 %v11226
        %11468 = vmatprep.subr.bf16.mxu0 %v11223
        %11469 = vmatpush1.bf16.msra.mxu0 %v11222
        %11470 = vmatprep.subr.bf16.mxu0 %v11219
        %11471 = vmatpush1.bf16.msra.mxu0 %v11218
        %11472 = vmatprep.subr.bf16.mxu0 %v11215
        %11473 = vmatpush1.bf16.msra.mxu0 %v11214
        %11474 = vmatprep.subr.bf16.mxu0 %v11211
        %11475 = vmatpush1.bf16.msra.mxu0 %v11210
        %11476 = vmatprep.subr.bf16.mxu0 %v11207
        %11477 = vmatpush1.bf16.msra.mxu0 %v11206
        %11478 = vmatprep.subr.bf16.mxu0 %v11267
        %11479 = vmatpush2.bf16.msra.mxu0 %v11266
        %11480 = vmatprep.subr.bf16.mxu0 %v11263
        %11481 = vmatpush2.bf16.msra.mxu0 %v11262
        %11482 = vmatprep.subr.bf16.mxu0 %v11259
        %11483 = vmatpush2.bf16.msra.mxu0 %v11258
        %11484 = vmatprep.subr.bf16.mxu0 %v11255
        %11485 = vmatpush2.bf16.msra.mxu0 %v11254
        %11486 = vmatprep.subr.bf16.mxu0 %v11251
        %11487 = vmatpush2.bf16.msra.mxu0 %v11250
        %11488 = vmatprep.subr.bf16.mxu0 %v11247
        %11489 = vmatpush2.bf16.msra.mxu0 %v11246
        %11490 = vmatprep.subr.bf16.mxu0 %v11243
        %11491 = vmatpush2.bf16.msra.mxu0 %v11242
        %11492 = vmatprep.subr.bf16.mxu0 %v11239
        %11493 = vmatpush2.bf16.msra.mxu0 %v11238
        %11494 = vmatprep.mubr.bf16.mxu0 %v10779
        %11495 = vmatmul.mubr.bf16.gmra.mxu0 %v10768
        %v11496 = vpop.f32.mrf.mxu0
        %v11497 = vadd.f32 0.0, %v11496
        %v11498 = vpop.f32.mrf.mxu0
        %v11499 = vadd.f32 0.0, %v11498
        %v11500 = vpop.f32.mrf.mxu0
        %v11501 = vadd.f32 0.0, %v11500
        %v11502 = vpop.f32.mrf.mxu0
        %v11503 = vadd.f32 0.0, %v11502
        %11504 = vmatprep.mubr.bf16.mxu0 %v10807
        %11505 = vmatmul.mubr.bf16.gmra.mxu0 %v10804
        %v11506 = vpop.f32.mrf.mxu0
        %v11507 = vadd.f32 0.0, %v11506
        %v11508 = vpop.f32.mrf.mxu0
        %v11509 = vadd.f32 0.0, %v11508
        %v11510 = vpop.f32.mrf.mxu0
        %v11511 = vpop.f32.mrf.mxu0
        %11512 = vdwg.mxu0
        %11513 = vmatprep.subr.bf16.mxu0 %v11299
        %11514 = vmatpush1.bf16.msra.mxu0 %v11298
        %11515 = vmatprep.subr.bf16.mxu0 %v11295
        %11516 = vmatpush1.bf16.msra.mxu0 %v11294
        %11517 = vmatprep.subr.bf16.mxu0 %v11291
        %11518 = vmatpush1.bf16.msra.mxu0 %v11290
        %11519 = vmatprep.subr.bf16.mxu0 %v11287
        %11520 = vmatpush1.bf16.msra.mxu0 %v11286
        %11521 = vmatprep.subr.bf16.mxu0 %v11283
        %11522 = vmatpush1.bf16.msra.mxu0 %v11282
        %11523 = vmatprep.subr.bf16.mxu0 %v11279
        %11524 = vmatpush1.bf16.msra.mxu0 %v11278
        %11525 = vmatprep.subr.bf16.mxu0 %v11275
        %11526 = vmatpush1.bf16.msra.mxu0 %v11274
        %11527 = vmatprep.subr.bf16.mxu0 %v11271
        %11528 = vmatpush1.bf16.msra.mxu0 %v11270
        %11529 = vmatprep.subr.bf16.mxu0 %v11331
        %11530 = vmatpush2.bf16.msra.mxu0 %v11330
        %11531 = vmatprep.subr.bf16.mxu0 %v11327
        %11532 = vmatpush2.bf16.msra.mxu0 %v11326
        %11533 = vmatprep.subr.bf16.mxu0 %v11323
        %11534 = vmatpush2.bf16.msra.mxu0 %v11322
        %11535 = vmatprep.subr.bf16.mxu0 %v11319
        %11536 = vmatpush2.bf16.msra.mxu0 %v11318
        %11537 = vmatprep.subr.bf16.mxu0 %v11315
        %11538 = vmatpush2.bf16.msra.mxu0 %v11314
        %11539 = vmatprep.subr.bf16.mxu0 %v11311
        %11540 = vmatpush2.bf16.msra.mxu0 %v11310
        %11541 = vmatprep.subr.bf16.mxu0 %v11307
        %11542 = vmatpush2.bf16.msra.mxu0 %v11306
        %11543 = vmatprep.subr.bf16.mxu0 %v11303
        %11544 = vmatpush2.bf16.msra.mxu0 %v11302
        %11545 = vmatprep.mubr.bf16.mxu0 %v10801
        %11546 = vmatmul.mubr.bf16.gmra.mxu0 %v10790
        %v11547 = vpop.f32.mrf.mxu0
        %v11548 = vadd.f32 %v11497, %v11547
        %v11549 = vpop.f32.mrf.mxu0
        %v11550 = vadd.f32 %v11499, %v11549
        %v11551 = vpop.f32.mrf.mxu0
        %v11552 = vadd.f32 %v11501, %v11551
        %v11553 = vpop.f32.mrf.mxu0
        %v11554 = vadd.f32 %v11503, %v11553
        %11555 = vmatprep.mubr.bf16.mxu0 %v10813
        %11556 = vmatmul.mubr.bf16.gmra.mxu0 %v10810
        %v11557 = vpop.f32.mrf.mxu0
        %v11558 = vadd.f32 %v11507, %v11557
        %v11559 = vpop.f32.mrf.mxu0
        %v11560 = vadd.f32 %v11509, %v11559
        %v11561 = vpop.f32.mrf.mxu0
        %v11562 = vpop.f32.mrf.mxu0
        %11563 = vdwg.mxu0
        %11564 = vmatprep.subr.bf16.mxu0 %v11237
        %11565 = vmatpush1.bf16.msra.mxu0 %v11236
        %11566 = vmatprep.subr.bf16.mxu0 %v11233
        %11567 = vmatpush1.bf16.msra.mxu0 %v11232
        %11568 = vmatprep.subr.bf16.mxu0 %v11229
        %11569 = vmatpush1.bf16.msra.mxu0 %v11228
        %11570 = vmatprep.subr.bf16.mxu0 %v11225
        %11571 = vmatpush1.bf16.msra.mxu0 %v11224
        %11572 = vmatprep.subr.bf16.mxu0 %v11221
        %11573 = vmatpush1.bf16.msra.mxu0 %v11220
        %11574 = vmatprep.subr.bf16.mxu0 %v11217
        %11575 = vmatpush1.bf16.msra.mxu0 %v11216
        %11576 = vmatprep.subr.bf16.mxu0 %v11213
        %11577 = vmatpush1.bf16.msra.mxu0 %v11212
        %11578 = vmatprep.subr.bf16.mxu0 %v11209
        %11579 = vmatpush1.bf16.msra.mxu0 %v11208
        %11580 = vmatprep.subr.bf16.mxu0 %v11269
        %11581 = vmatpush2.bf16.msra.mxu0 %v11268
        %11582 = vmatprep.subr.bf16.mxu0 %v11265
        %11583 = vmatpush2.bf16.msra.mxu0 %v11264
        %11584 = vmatprep.subr.bf16.mxu0 %v11261
        %11585 = vmatpush2.bf16.msra.mxu0 %v11260
        %11586 = vmatprep.subr.bf16.mxu0 %v11257
        %11587 = vmatpush2.bf16.msra.mxu0 %v11256
        %11588 = vmatprep.subr.bf16.mxu0 %v11253
        %11589 = vmatpush2.bf16.msra.mxu0 %v11252
        %11590 = vmatprep.subr.bf16.mxu0 %v11249
        %11591 = vmatpush2.bf16.msra.mxu0 %v11248
        %11592 = vmatprep.subr.bf16.mxu0 %v11245
        %11593 = vmatpush2.bf16.msra.mxu0 %v11244
        %11594 = vmatprep.subr.bf16.mxu0 %v11241
        %11595 = vmatpush2.bf16.msra.mxu0 %v11240
        %11596 = vmatprep.mubr.bf16.mxu0 %v10779
        %11597 = vmatmul.mubr.bf16.gmra.mxu0 %v10768
        %v11598 = vpop.f32.mrf.mxu0
        %v11599 = vadd.f32 0.0, %v11598
        %v11600 = vpop.f32.mrf.mxu0
        %v11601 = vadd.f32 0.0, %v11600
        %v11602 = vpop.f32.mrf.mxu0
        %v11603 = vadd.f32 0.0, %v11602
        %v11604 = vpop.f32.mrf.mxu0
        %v11605 = vadd.f32 0.0, %v11604
        %11606 = vmatprep.mubr.bf16.mxu0 %v10807
        %11607 = vmatmul.mubr.bf16.gmra.mxu0 %v10804
        %v11608 = vpop.f32.mrf.mxu0
        %v11609 = vadd.f32 0.0, %v11608
        %v11610 = vpop.f32.mrf.mxu0
        %v11611 = vadd.f32 0.0, %v11610
        %v11612 = vpop.f32.mrf.mxu0
        %v11613 = vpop.f32.mrf.mxu0
        %11614 = vdwg.mxu0
        %11615 = vmatprep.subr.bf16.mxu0 %v11301
        %11616 = vmatpush1.bf16.msra.mxu0 %v11300
        %11617 = vmatprep.subr.bf16.mxu0 %v11297
        %11618 = vmatpush1.bf16.msra.mxu0 %v11296
        %11619 = vmatprep.subr.bf16.mxu0 %v11293
        %11620 = vmatpush1.bf16.msra.mxu0 %v11292
        %11621 = vmatprep.subr.bf16.mxu0 %v11289
        %11622 = vmatpush1.bf16.msra.mxu0 %v11288
        %11623 = vmatprep.subr.bf16.mxu0 %v11285
        %11624 = vmatpush1.bf16.msra.mxu0 %v11284
        %11625 = vmatprep.subr.bf16.mxu0 %v11281
        %11626 = vmatpush1.bf16.msra.mxu0 %v11280
        %11627 = vmatprep.subr.bf16.mxu0 %v11277
        %11628 = vmatpush1.bf16.msra.mxu0 %v11276
        %11629 = vmatprep.subr.bf16.mxu0 %v11273
        %11630 = vmatpush1.bf16.msra.mxu0 %v11272
        %11631 = vmatprep.subr.bf16.mxu0 %v11333
        %11632 = vmatpush2.bf16.msra.mxu0 %v11332
        %11633 = vmatprep.subr.bf16.mxu0 %v11329
        %11634 = vmatpush2.bf16.msra.mxu0 %v11328
        %11635 = vmatprep.subr.bf16.mxu0 %v11325
        %11636 = vmatpush2.bf16.msra.mxu0 %v11324
        %11637 = vmatprep.subr.bf16.mxu0 %v11321
        %11638 = vmatpush2.bf16.msra.mxu0 %v11320
        %11639 = vmatprep.subr.bf16.mxu0 %v11317
        %11640 = vmatpush2.bf16.msra.mxu0 %v11316
        %11641 = vmatprep.subr.bf16.mxu0 %v11313
        %11642 = vmatpush2.bf16.msra.mxu0 %v11312
        %11643 = vmatprep.subr.bf16.mxu0 %v11309
        %11644 = vmatpush2.bf16.msra.mxu0 %v11308
        %11645 = vmatprep.subr.bf16.mxu0 %v11305
        %11646 = vmatpush2.bf16.msra.mxu0 %v11304
        %11647 = vmatprep.mubr.bf16.mxu0 %v10801
        %11648 = vmatmul.mubr.bf16.gmra.mxu0 %v10790
        %v11649 = vpop.f32.mrf.mxu0
        %v11650 = vadd.f32 %v11599, %v11649
        %v11651 = vpop.f32.mrf.mxu0
        %v11652 = vadd.f32 %v11601, %v11651
        %v11653 = vpop.f32.mrf.mxu0
        %v11654 = vadd.f32 %v11603, %v11653
        %v11655 = vpop.f32.mrf.mxu0
        %v11656 = vadd.f32 %v11605, %v11655
        %11657 = vmatprep.mubr.bf16.mxu0 %v10813
        %11658 = vmatmul.mubr.bf16.gmra.mxu0 %v10810
        %v11659 = vpop.f32.mrf.mxu0
        %v11660 = vadd.f32 %v11609, %v11659
        %v11661 = vpop.f32.mrf.mxu0
        %v11662 = vadd.f32 %v11611, %v11661
        %v11663 = vpop.f32.mrf.mxu0
        %v11664 = vpop.f32.mrf.mxu0
        %11665 = vdwg.mxu0
        %v11666 = vadd.f32 %v10617, %v11548
        %v11667 = vadd.f32 %v10618, %v11550
        %v11668 = vadd.f32 %v10619, %v11650
        %v11669 = vadd.f32 %v10620, %v11652
        %v11670 = vadd.f32 %v10621, %v11552
        %v11671 = vadd.f32 %v10622, %v11554
        %v11672 = vadd.f32 %v10623, %v11654
        %v11673 = vadd.f32 %v10624, %v11656
        %v11674 = vadd.f32 %v10625, %v11558
        %v11675 = vadd.f32 %v10626, %v11560
        %v11676 = vadd.f32 %v10627, %v11660
        %v11677 = vadd.f32 %v10628, %v11662
        %s11678 = scalar_lea.vmem [#allocation2], 11264
        %v11679 = vld [vmem:[%s11678] sm:$0xff]
        %v11680 = vld [vmem:[%s11678 + $0x8] sm:$0xff]
        %v11681 = vld [vmem:[%s11678 + $0x10] sm:$0xff]
        %v11682 = vld [vmem:[%s11678 + $0x18] sm:$0xff]
        %v11683 = vld [vmem:[%s11678 + $0x20] sm:$0xff]
        %v11684 = vld [vmem:[%s11678 + $0x28] sm:$0xff]
        %v11685 = vld [vmem:[%s11678 + $0x30] sm:$0xff]
        %v11686 = vld [vmem:[%s11678 + $0x38] sm:$0xff]
        %v11687 = vld [vmem:[%s11678 + $0x40] sm:$0xff]
        %v11688 = vld [vmem:[%s11678 + $0x48] sm:$0xff]
        %v11689 = vld [vmem:[%s11678 + $0x50] sm:$0xff]
        %v11690 = vld [vmem:[%s11678 + $0x58] sm:$0xff]
        %v11691 = vld [vmem:[%s11678 + $0x60] sm:$0xff]
        %v11692 = vld [vmem:[%s11678 + $0x68] sm:$0xff]
        %v11693 = vld [vmem:[%s11678 + $0x70] sm:$0xff]
        %v11694 = vld [vmem:[%s11678 + $0x78] sm:$0xff]
        %v11695 = vld [vmem:[%s11678 + $0x80] sm:$0xff]
        %v11696 = vld [vmem:[%s11678 + $0x88] sm:$0xff]
        %v11697 = vld [vmem:[%s11678 + $0x90] sm:$0xff]
        %v11698 = vld [vmem:[%s11678 + $0x98] sm:$0xff]
        %v11699 = vld [vmem:[%s11678 + $0xa0] sm:$0xff]
        %v11700 = vld [vmem:[%s11678 + $0xa8] sm:$0xff]
        %v11701 = vld [vmem:[%s11678 + $0xb0] sm:$0xff]
        %v11702 = vld [vmem:[%s11678 + $0xb8] sm:$0xff]
        %v11703 = vld [vmem:[%s11678 + $0xc0] sm:$0xff]
        %v11704 = vld [vmem:[%s11678 + $0xc8] sm:$0xff]
        %v11705 = vld [vmem:[%s11678 + $0xd0] sm:$0xff]
        %v11706 = vld [vmem:[%s11678 + $0xd8] sm:$0xff]
        %v11707 = vld [vmem:[%s11678 + $0xe0] sm:$0xff]
        %v11708 = vld [vmem:[%s11678 + $0xe8] sm:$0xff]
        %v11709 = vld [vmem:[%s11678 + $0xf0] sm:$0xff]
        %v11710 = vld [vmem:[%s11678 + $0xf8] sm:$0xff]
        %v11711 = vld [vmem:[%s11678 + $0x100] sm:$0xff]
        %v11712 = vld [vmem:[%s11678 + $0x108] sm:$0xff]
        %v11713 = vld [vmem:[%s11678 + $0x110] sm:$0xff]
        %v11714 = vld [vmem:[%s11678 + $0x118] sm:$0xff]
        %v11715 = vld [vmem:[%s11678 + $0x120] sm:$0xff]
        %v11716 = vld [vmem:[%s11678 + $0x128] sm:$0xff]
        %v11717 = vld [vmem:[%s11678 + $0x130] sm:$0xff]
        %v11718 = vld [vmem:[%s11678 + $0x138] sm:$0xff]
        %v11719 = vld [vmem:[%s11678 + $0x140] sm:$0xff]
        %v11720 = vld [vmem:[%s11678 + $0x148] sm:$0xff]
        %v11721 = vld [vmem:[%s11678 + $0x150] sm:$0xff]
        %v11722 = vld [vmem:[%s11678 + $0x158] sm:$0xff]
        %v11723 = vld [vmem:[%s11678 + $0x160] sm:$0xff]
        %v11724 = vld [vmem:[%s11678 + $0x168] sm:$0xff]
        %v11725 = vld [vmem:[%s11678 + $0x170] sm:$0xff]
        %v11726 = vld [vmem:[%s11678 + $0x178] sm:$0xff]
        %v11727 = vld [vmem:[%s11678 + $0x180] sm:$0xff]
        %v11728 = vld [vmem:[%s11678 + $0x188] sm:$0xff]
        %v11729 = vld [vmem:[%s11678 + $0x190] sm:$0xff]
        %v11730 = vld [vmem:[%s11678 + $0x198] sm:$0xff]
        %v11731 = vld [vmem:[%s11678 + $0x1a0] sm:$0xff]
        %v11732 = vld [vmem:[%s11678 + $0x1a8] sm:$0xff]
        %v11733 = vld [vmem:[%s11678 + $0x1b0] sm:$0xff]
        %v11734 = vld [vmem:[%s11678 + $0x1b8] sm:$0xff]
        %v11735 = vld [vmem:[%s11678 + $0x1c0] sm:$0xff]
        %v11736 = vld [vmem:[%s11678 + $0x1c8] sm:$0xff]
        %v11737 = vld [vmem:[%s11678 + $0x1d0] sm:$0xff]
        %v11738 = vld [vmem:[%s11678 + $0x1d8] sm:$0xff]
        %v11739 = vld [vmem:[%s11678 + $0x1e0] sm:$0xff]
        %v11740 = vld [vmem:[%s11678 + $0x1e8] sm:$0xff]
        %v11741 = vld [vmem:[%s11678 + $0x1f0] sm:$0xff]
        %v11742 = vld [vmem:[%s11678 + $0x1f8] sm:$0xff]
        %v11743 = vld [vmem:[%s11678 + $0x200] sm:$0xff]
        %v11744 = vld [vmem:[%s11678 + $0x208] sm:$0xff]
        %v11745 = vld [vmem:[%s11678 + $0x210] sm:$0xff]
        %v11746 = vld [vmem:[%s11678 + $0x218] sm:$0xff]
        %v11747 = vld [vmem:[%s11678 + $0x220] sm:$0xff]
        %v11748 = vld [vmem:[%s11678 + $0x228] sm:$0xff]
        %v11749 = vld [vmem:[%s11678 + $0x230] sm:$0xff]
        %v11750 = vld [vmem:[%s11678 + $0x238] sm:$0xff]
        %v11751 = vld [vmem:[%s11678 + $0x240] sm:$0xff]
        %v11752 = vld [vmem:[%s11678 + $0x248] sm:$0xff]
        %v11753 = vld [vmem:[%s11678 + $0x250] sm:$0xff]
        %v11754 = vld [vmem:[%s11678 + $0x258] sm:$0xff]
        %v11755 = vld [vmem:[%s11678 + $0x260] sm:$0xff]
        %v11756 = vld [vmem:[%s11678 + $0x268] sm:$0xff]
        %v11757 = vld [vmem:[%s11678 + $0x270] sm:$0xff]
        %v11758 = vld [vmem:[%s11678 + $0x278] sm:$0xff]
        %v11759 = vld [vmem:[%s11678 + $0x280] sm:$0xff]
        %v11760 = vld [vmem:[%s11678 + $0x288] sm:$0xff]
        %v11761 = vld [vmem:[%s11678 + $0x290] sm:$0xff]
        %v11762 = vld [vmem:[%s11678 + $0x298] sm:$0xff]
        %v11763 = vld [vmem:[%s11678 + $0x2a0] sm:$0xff]
        %v11764 = vld [vmem:[%s11678 + $0x2a8] sm:$0xff]
        %v11765 = vld [vmem:[%s11678 + $0x2b0] sm:$0xff]
        %v11766 = vld [vmem:[%s11678 + $0x2b8] sm:$0xff]
        %v11767 = vld [vmem:[%s11678 + $0x2c0] sm:$0xff]
        %v11768 = vld [vmem:[%s11678 + $0x2c8] sm:$0xff]
        %v11769 = vld [vmem:[%s11678 + $0x2d0] sm:$0xff]
        %v11770 = vld [vmem:[%s11678 + $0x2d8] sm:$0xff]
        %v11771 = vld [vmem:[%s11678 + $0x2e0] sm:$0xff]
        %v11772 = vld [vmem:[%s11678 + $0x2e8] sm:$0xff]
        %v11773 = vld [vmem:[%s11678 + $0x2f0] sm:$0xff]
        %v11774 = vld [vmem:[%s11678 + $0x2f8] sm:$0xff]
        %v11775 = vld [vmem:[%s11678 + $0x300] sm:$0xff]
        %v11776 = vld [vmem:[%s11678 + $0x308] sm:$0xff]
        %v11777 = vld [vmem:[%s11678 + $0x310] sm:$0xff]
        %v11778 = vld [vmem:[%s11678 + $0x318] sm:$0xff]
        %v11779 = vld [vmem:[%s11678 + $0x320] sm:$0xff]
        %v11780 = vld [vmem:[%s11678 + $0x328] sm:$0xff]
        %v11781 = vld [vmem:[%s11678 + $0x330] sm:$0xff]
        %v11782 = vld [vmem:[%s11678 + $0x338] sm:$0xff]
        %v11783 = vld [vmem:[%s11678 + $0x340] sm:$0xff]
        %v11784 = vld [vmem:[%s11678 + $0x348] sm:$0xff]
        %v11785 = vld [vmem:[%s11678 + $0x350] sm:$0xff]
        %v11786 = vld [vmem:[%s11678 + $0x358] sm:$0xff]
        %v11787 = vld [vmem:[%s11678 + $0x360] sm:$0xff]
        %v11788 = vld [vmem:[%s11678 + $0x368] sm:$0xff]
        %v11789 = vld [vmem:[%s11678 + $0x370] sm:$0xff]
        %v11790 = vld [vmem:[%s11678 + $0x378] sm:$0xff]
        %v11791 = vld [vmem:[%s11678 + $0x380] sm:$0xff]
        %v11792 = vld [vmem:[%s11678 + $0x388] sm:$0xff]
        %v11793 = vld [vmem:[%s11678 + $0x390] sm:$0xff]
        %v11794 = vld [vmem:[%s11678 + $0x398] sm:$0xff]
        %v11795 = vld [vmem:[%s11678 + $0x3a0] sm:$0xff]
        %v11796 = vld [vmem:[%s11678 + $0x3a8] sm:$0xff]
        %v11797 = vld [vmem:[%s11678 + $0x3b0] sm:$0xff]
        %v11798 = vld [vmem:[%s11678 + $0x3b8] sm:$0xff]
        %v11799 = vld [vmem:[%s11678 + $0x3c0] sm:$0xff]
        %v11800 = vld [vmem:[%s11678 + $0x3c8] sm:$0xff]
        %v11801 = vld [vmem:[%s11678 + $0x3d0] sm:$0xff]
        %v11802 = vld [vmem:[%s11678 + $0x3d8] sm:$0xff]
        %v11803 = vld [vmem:[%s11678 + $0x3e0] sm:$0xff]
        %v11804 = vld [vmem:[%s11678 + $0x3e8] sm:$0xff]
        %v11805 = vld [vmem:[%s11678 + $0x3f0] sm:$0xff]
        %v11806 = vld [vmem:[%s11678 + $0x3f8] sm:$0xff]
        %v11815 = vrot.slane %v9601, 1
        %v11816 = vrot.slane %v9610, 1
        %v11817 = vsel %vm2520, %v11815, %v11816
        %v11818 = vrot.slane %v9602, 1
        %v11819 = vrot.slane %v9613, 1
        %v11820 = vsel %vm2520, %v11818, %v11819
        %v11821 = vrot.slane %v9603, 1
        %v11822 = vrot.slane %v9616, 1
        %v11823 = vsel %vm2520, %v11821, %v11822
        %v11824 = vrot.slane %v9604, 1
        %v11825 = vrot.slane %v9619, 1
        %v11826 = vsel %vm2520, %v11824, %v11825
        %v11963 = vunpack.c.l.b16 %v11679
        %v11964 = vunpack.c.h.b16 %v11679
        %v11965 = vunpack.c.l.b16 %v11680
        %v11966 = vunpack.c.h.b16 %v11680
        %v11967 = vunpack.c.l.b16 %v11681
        %v11968 = vunpack.c.h.b16 %v11681
        %v11969 = vunpack.c.l.b16 %v11682
        %v11970 = vunpack.c.h.b16 %v11682
        %v11971 = vunpack.c.l.b16 %v11683
        %v11972 = vunpack.c.h.b16 %v11683
        %v11973 = vunpack.c.l.b16 %v11684
        %v11974 = vunpack.c.h.b16 %v11684
        %v11975 = vunpack.c.l.b16 %v11685
        %v11976 = vunpack.c.h.b16 %v11685
        %v11977 = vunpack.c.l.b16 %v11686
        %v11978 = vunpack.c.h.b16 %v11686
        %v11979 = vunpack.c.l.b16 %v11687
        %v11980 = vunpack.c.h.b16 %v11687
        %v11981 = vunpack.c.l.b16 %v11688
        %v11982 = vunpack.c.h.b16 %v11688
        %v11983 = vunpack.c.l.b16 %v11689
        %v11984 = vunpack.c.h.b16 %v11689
        %v11985 = vunpack.c.l.b16 %v11690
        %v11986 = vunpack.c.h.b16 %v11690
        %v11987 = vunpack.c.l.b16 %v11691
        %v11988 = vunpack.c.h.b16 %v11691
        %v11989 = vunpack.c.l.b16 %v11692
        %v11990 = vunpack.c.h.b16 %v11692
        %v11991 = vunpack.c.l.b16 %v11693
        %v11992 = vunpack.c.h.b16 %v11693
        %v11993 = vunpack.c.l.b16 %v11694
        %v11994 = vunpack.c.h.b16 %v11694
        %v11995 = vunpack.c.l.b16 %v11695
        %v11996 = vunpack.c.h.b16 %v11695
        %v11997 = vunpack.c.l.b16 %v11696
        %v11998 = vunpack.c.h.b16 %v11696
        %v11999 = vunpack.c.l.b16 %v11697
        %v12000 = vunpack.c.h.b16 %v11697
        %v12001 = vunpack.c.l.b16 %v11698
        %v12002 = vunpack.c.h.b16 %v11698
        %v12003 = vunpack.c.l.b16 %v11699
        %v12004 = vunpack.c.h.b16 %v11699
        %v12005 = vunpack.c.l.b16 %v11700
        %v12006 = vunpack.c.h.b16 %v11700
        %v12007 = vunpack.c.l.b16 %v11701
        %v12008 = vunpack.c.h.b16 %v11701
        %v12009 = vunpack.c.l.b16 %v11702
        %v12010 = vunpack.c.h.b16 %v11702
        %v12011 = vunpack.c.l.b16 %v11703
        %v12012 = vunpack.c.h.b16 %v11703
        %v12013 = vunpack.c.l.b16 %v11704
        %v12014 = vunpack.c.h.b16 %v11704
        %v12015 = vunpack.c.l.b16 %v11705
        %v12016 = vunpack.c.h.b16 %v11705
        %v12017 = vunpack.c.l.b16 %v11706
        %v12018 = vunpack.c.h.b16 %v11706
        %v12019 = vunpack.c.l.b16 %v11707
        %v12020 = vunpack.c.h.b16 %v11707
        %v12021 = vunpack.c.l.b16 %v11708
        %v12022 = vunpack.c.h.b16 %v11708
        %v12023 = vunpack.c.l.b16 %v11709
        %v12024 = vunpack.c.h.b16 %v11709
        %v12025 = vunpack.c.l.b16 %v11710
        %v12026 = vunpack.c.h.b16 %v11710
        %v12027 = vunpack.c.l.b16 %v11711
        %v12028 = vunpack.c.h.b16 %v11711
        %v12029 = vunpack.c.l.b16 %v11712
        %v12030 = vunpack.c.h.b16 %v11712
        %v12031 = vunpack.c.l.b16 %v11713
        %v12032 = vunpack.c.h.b16 %v11713
        %v12033 = vunpack.c.l.b16 %v11714
        %v12034 = vunpack.c.h.b16 %v11714
        %v12035 = vunpack.c.l.b16 %v11715
        %v12036 = vunpack.c.h.b16 %v11715
        %v12037 = vunpack.c.l.b16 %v11716
        %v12038 = vunpack.c.h.b16 %v11716
        %v12039 = vunpack.c.l.b16 %v11717
        %v12040 = vunpack.c.h.b16 %v11717
        %v12041 = vunpack.c.l.b16 %v11718
        %v12042 = vunpack.c.h.b16 %v11718
        %v12043 = vunpack.c.l.b16 %v11719
        %v12044 = vunpack.c.h.b16 %v11719
        %v12045 = vunpack.c.l.b16 %v11720
        %v12046 = vunpack.c.h.b16 %v11720
        %v12047 = vunpack.c.l.b16 %v11721
        %v12048 = vunpack.c.h.b16 %v11721
        %v12049 = vunpack.c.l.b16 %v11722
        %v12050 = vunpack.c.h.b16 %v11722
        %v12051 = vunpack.c.l.b16 %v11723
        %v12052 = vunpack.c.h.b16 %v11723
        %v12053 = vunpack.c.l.b16 %v11724
        %v12054 = vunpack.c.h.b16 %v11724
        %v12055 = vunpack.c.l.b16 %v11725
        %v12056 = vunpack.c.h.b16 %v11725
        %v12057 = vunpack.c.l.b16 %v11726
        %v12058 = vunpack.c.h.b16 %v11726
        %v12059 = vunpack.c.l.b16 %v11727
        %v12060 = vunpack.c.h.b16 %v11727
        %v12061 = vunpack.c.l.b16 %v11728
        %v12062 = vunpack.c.h.b16 %v11728
        %v12063 = vunpack.c.l.b16 %v11729
        %v12064 = vunpack.c.h.b16 %v11729
        %v12065 = vunpack.c.l.b16 %v11730
        %v12066 = vunpack.c.h.b16 %v11730
        %v12067 = vunpack.c.l.b16 %v11731
        %v12068 = vunpack.c.h.b16 %v11731
        %v12069 = vunpack.c.l.b16 %v11732
        %v12070 = vunpack.c.h.b16 %v11732
        %v12071 = vunpack.c.l.b16 %v11733
        %v12072 = vunpack.c.h.b16 %v11733
        %v12073 = vunpack.c.l.b16 %v11734
        %v12074 = vunpack.c.h.b16 %v11734
        %v12075 = vunpack.c.l.b16 %v11735
        %v12076 = vunpack.c.h.b16 %v11735
        %v12077 = vunpack.c.l.b16 %v11736
        %v12078 = vunpack.c.h.b16 %v11736
        %v12079 = vunpack.c.l.b16 %v11737
        %v12080 = vunpack.c.h.b16 %v11737
        %v12081 = vunpack.c.l.b16 %v11738
        %v12082 = vunpack.c.h.b16 %v11738
        %v12083 = vunpack.c.l.b16 %v11739
        %v12084 = vunpack.c.h.b16 %v11739
        %v12085 = vunpack.c.l.b16 %v11740
        %v12086 = vunpack.c.h.b16 %v11740
        %v12087 = vunpack.c.l.b16 %v11741
        %v12088 = vunpack.c.h.b16 %v11741
        %v12089 = vunpack.c.l.b16 %v11742
        %v12090 = vunpack.c.h.b16 %v11742
        %v12091 = vunpack.c.l.b16 %v11743
        %v12092 = vunpack.c.h.b16 %v11743
        %v12093 = vunpack.c.l.b16 %v11744
        %v12094 = vunpack.c.h.b16 %v11744
        %v12095 = vunpack.c.l.b16 %v11745
        %v12096 = vunpack.c.h.b16 %v11745
        %v12097 = vunpack.c.l.b16 %v11746
        %v12098 = vunpack.c.h.b16 %v11746
        %v12099 = vunpack.c.l.b16 %v11747
        %v12100 = vunpack.c.h.b16 %v11747
        %v12101 = vunpack.c.l.b16 %v11748
        %v12102 = vunpack.c.h.b16 %v11748
        %v12103 = vunpack.c.l.b16 %v11749
        %v12104 = vunpack.c.h.b16 %v11749
        %v12105 = vunpack.c.l.b16 %v11750
        %v12106 = vunpack.c.h.b16 %v11750
        %v12107 = vunpack.c.l.b16 %v11751
        %v12108 = vunpack.c.h.b16 %v11751
        %v12109 = vunpack.c.l.b16 %v11752
        %v12110 = vunpack.c.h.b16 %v11752
        %v12111 = vunpack.c.l.b16 %v11753
        %v12112 = vunpack.c.h.b16 %v11753
        %v12113 = vunpack.c.l.b16 %v11754
        %v12114 = vunpack.c.h.b16 %v11754
        %v12115 = vunpack.c.l.b16 %v11755
        %v12116 = vunpack.c.h.b16 %v11755
        %v12117 = vunpack.c.l.b16 %v11756
        %v12118 = vunpack.c.h.b16 %v11756
        %v12119 = vunpack.c.l.b16 %v11757
        %v12120 = vunpack.c.h.b16 %v11757
        %v12121 = vunpack.c.l.b16 %v11758
        %v12122 = vunpack.c.h.b16 %v11758
        %v12123 = vunpack.c.l.b16 %v11759
        %v12124 = vunpack.c.h.b16 %v11759
        %v12125 = vunpack.c.l.b16 %v11760
        %v12126 = vunpack.c.h.b16 %v11760
        %v12127 = vunpack.c.l.b16 %v11761
        %v12128 = vunpack.c.h.b16 %v11761
        %v12129 = vunpack.c.l.b16 %v11762
        %v12130 = vunpack.c.h.b16 %v11762
        %v12131 = vunpack.c.l.b16 %v11763
        %v12132 = vunpack.c.h.b16 %v11763
        %v12133 = vunpack.c.l.b16 %v11764
        %v12134 = vunpack.c.h.b16 %v11764
        %v12135 = vunpack.c.l.b16 %v11765
        %v12136 = vunpack.c.h.b16 %v11765
        %v12137 = vunpack.c.l.b16 %v11766
        %v12138 = vunpack.c.h.b16 %v11766
        %v12139 = vunpack.c.l.b16 %v11767
        %v12140 = vunpack.c.h.b16 %v11767
        %v12141 = vunpack.c.l.b16 %v11768
        %v12142 = vunpack.c.h.b16 %v11768
        %v12143 = vunpack.c.l.b16 %v11769
        %v12144 = vunpack.c.h.b16 %v11769
        %v12145 = vunpack.c.l.b16 %v11770
        %v12146 = vunpack.c.h.b16 %v11770
        %v12147 = vunpack.c.l.b16 %v11771
        %v12148 = vunpack.c.h.b16 %v11771
        %v12149 = vunpack.c.l.b16 %v11772
        %v12150 = vunpack.c.h.b16 %v11772
        %v12151 = vunpack.c.l.b16 %v11773
        %v12152 = vunpack.c.h.b16 %v11773
        %v12153 = vunpack.c.l.b16 %v11774
        %v12154 = vunpack.c.h.b16 %v11774
        %v12155 = vunpack.c.l.b16 %v11775
        %v12156 = vunpack.c.h.b16 %v11775
        %v12157 = vunpack.c.l.b16 %v11776
        %v12158 = vunpack.c.h.b16 %v11776
        %v12159 = vunpack.c.l.b16 %v11777
        %v12160 = vunpack.c.h.b16 %v11777
        %v12161 = vunpack.c.l.b16 %v11778
        %v12162 = vunpack.c.h.b16 %v11778
        %v12163 = vunpack.c.l.b16 %v11779
        %v12164 = vunpack.c.h.b16 %v11779
        %v12165 = vunpack.c.l.b16 %v11780
        %v12166 = vunpack.c.h.b16 %v11780
        %v12167 = vunpack.c.l.b16 %v11781
        %v12168 = vunpack.c.h.b16 %v11781
        %v12169 = vunpack.c.l.b16 %v11782
        %v12170 = vunpack.c.h.b16 %v11782
        %v12171 = vunpack.c.l.b16 %v11783
        %v12172 = vunpack.c.h.b16 %v11783
        %v12173 = vunpack.c.l.b16 %v11784
        %v12174 = vunpack.c.h.b16 %v11784
        %v12175 = vunpack.c.l.b16 %v11785
        %v12176 = vunpack.c.h.b16 %v11785
        %v12177 = vunpack.c.l.b16 %v11786
        %v12178 = vunpack.c.h.b16 %v11786
        %v12179 = vunpack.c.l.b16 %v11787
        %v12180 = vunpack.c.h.b16 %v11787
        %v12181 = vunpack.c.l.b16 %v11788
        %v12182 = vunpack.c.h.b16 %v11788
        %v12183 = vunpack.c.l.b16 %v11789
        %v12184 = vunpack.c.h.b16 %v11789
        %v12185 = vunpack.c.l.b16 %v11790
        %v12186 = vunpack.c.h.b16 %v11790
        %v12187 = vunpack.c.l.b16 %v11791
        %v12188 = vunpack.c.h.b16 %v11791
        %v12189 = vunpack.c.l.b16 %v11792
        %v12190 = vunpack.c.h.b16 %v11792
        %v12191 = vunpack.c.l.b16 %v11793
        %v12192 = vunpack.c.h.b16 %v11793
        %v12193 = vunpack.c.l.b16 %v11794
        %v12194 = vunpack.c.h.b16 %v11794
        %v12195 = vunpack.c.l.b16 %v11795
        %v12196 = vunpack.c.h.b16 %v11795
        %v12197 = vunpack.c.l.b16 %v11796
        %v12198 = vunpack.c.h.b16 %v11796
        %v12199 = vunpack.c.l.b16 %v11797
        %v12200 = vunpack.c.h.b16 %v11797
        %v12201 = vunpack.c.l.b16 %v11798
        %v12202 = vunpack.c.h.b16 %v11798
        %v12203 = vunpack.c.l.b16 %v11799
        %v12204 = vunpack.c.h.b16 %v11799
        %v12205 = vunpack.c.l.b16 %v11800
        %v12206 = vunpack.c.h.b16 %v11800
        %v12207 = vunpack.c.l.b16 %v11801
        %v12208 = vunpack.c.h.b16 %v11801
        %v12209 = vunpack.c.l.b16 %v11802
        %v12210 = vunpack.c.h.b16 %v11802
        %v12211 = vunpack.c.l.b16 %v11803
        %v12212 = vunpack.c.h.b16 %v11803
        %v12213 = vunpack.c.l.b16 %v11804
        %v12214 = vunpack.c.h.b16 %v11804
        %v12215 = vunpack.c.l.b16 %v11805
        %v12216 = vunpack.c.h.b16 %v11805
        %v12217 = vunpack.c.l.b16 %v11806
        %v12218 = vunpack.c.h.b16 %v11806
        %v12219 = vpack.c.b16 %v11967, %v11963
        %v12220 = vpack.c.b16 %v11968, %v11964
        %v12221 = vpack.c.b16 %v11969, %v11965
        %v12222 = vpack.c.b16 %v11970, %v11966
        %v12223 = vpack.c.b16 %v11975, %v11971
        %v12224 = vpack.c.b16 %v11976, %v11972
        %v12225 = vpack.c.b16 %v11977, %v11973
        %v12226 = vpack.c.b16 %v11978, %v11974
        %v12227 = vpack.c.b16 %v11983, %v11979
        %v12228 = vpack.c.b16 %v11984, %v11980
        %v12229 = vpack.c.b16 %v11985, %v11981
        %v12230 = vpack.c.b16 %v11986, %v11982
        %v12231 = vpack.c.b16 %v11991, %v11987
        %v12232 = vpack.c.b16 %v11992, %v11988
        %v12233 = vpack.c.b16 %v11993, %v11989
        %v12234 = vpack.c.b16 %v11994, %v11990
        %v12235 = vpack.c.b16 %v11999, %v11995
        %v12236 = vpack.c.b16 %v12000, %v11996
        %v12237 = vpack.c.b16 %v12001, %v11997
        %v12238 = vpack.c.b16 %v12002, %v11998
        %v12239 = vpack.c.b16 %v12007, %v12003
        %v12240 = vpack.c.b16 %v12008, %v12004
        %v12241 = vpack.c.b16 %v12009, %v12005
        %v12242 = vpack.c.b16 %v12010, %v12006
        %v12243 = vpack.c.b16 %v12015, %v12011
        %v12244 = vpack.c.b16 %v12016, %v12012
        %v12245 = vpack.c.b16 %v12017, %v12013
        %v12246 = vpack.c.b16 %v12018, %v12014
        %v12247 = vpack.c.b16 %v12023, %v12019
        %v12248 = vpack.c.b16 %v12024, %v12020
        %v12249 = vpack.c.b16 %v12025, %v12021
        %v12250 = vpack.c.b16 %v12026, %v12022
        %v12251 = vpack.c.b16 %v12031, %v12027
        %v12252 = vpack.c.b16 %v12032, %v12028
        %v12253 = vpack.c.b16 %v12033, %v12029
        %v12254 = vpack.c.b16 %v12034, %v12030
        %v12255 = vpack.c.b16 %v12039, %v12035
        %v12256 = vpack.c.b16 %v12040, %v12036
        %v12257 = vpack.c.b16 %v12041, %v12037
        %v12258 = vpack.c.b16 %v12042, %v12038
        %v12259 = vpack.c.b16 %v12047, %v12043
        %v12260 = vpack.c.b16 %v12048, %v12044
        %v12261 = vpack.c.b16 %v12049, %v12045
        %v12262 = vpack.c.b16 %v12050, %v12046
        %v12263 = vpack.c.b16 %v12055, %v12051
        %v12264 = vpack.c.b16 %v12056, %v12052
        %v12265 = vpack.c.b16 %v12057, %v12053
        %v12266 = vpack.c.b16 %v12058, %v12054
        %v12267 = vpack.c.b16 %v12063, %v12059
        %v12268 = vpack.c.b16 %v12064, %v12060
        %v12269 = vpack.c.b16 %v12065, %v12061
        %v12270 = vpack.c.b16 %v12066, %v12062
        %v12271 = vpack.c.b16 %v12071, %v12067
        %v12272 = vpack.c.b16 %v12072, %v12068
        %v12273 = vpack.c.b16 %v12073, %v12069
        %v12274 = vpack.c.b16 %v12074, %v12070
        %v12275 = vpack.c.b16 %v12079, %v12075
        %v12276 = vpack.c.b16 %v12080, %v12076
        %v12277 = vpack.c.b16 %v12081, %v12077
        %v12278 = vpack.c.b16 %v12082, %v12078
        %v12279 = vpack.c.b16 %v12087, %v12083
        %v12280 = vpack.c.b16 %v12088, %v12084
        %v12281 = vpack.c.b16 %v12089, %v12085
        %v12282 = vpack.c.b16 %v12090, %v12086
        %v12283 = vpack.c.b16 %v12095, %v12091
        %v12284 = vpack.c.b16 %v12096, %v12092
        %v12285 = vpack.c.b16 %v12097, %v12093
        %v12286 = vpack.c.b16 %v12098, %v12094
        %v12287 = vpack.c.b16 %v12103, %v12099
        %v12288 = vpack.c.b16 %v12104, %v12100
        %v12289 = vpack.c.b16 %v12105, %v12101
        %v12290 = vpack.c.b16 %v12106, %v12102
        %v12291 = vpack.c.b16 %v12111, %v12107
        %v12292 = vpack.c.b16 %v12112, %v12108
        %v12293 = vpack.c.b16 %v12113, %v12109
        %v12294 = vpack.c.b16 %v12114, %v12110
        %v12295 = vpack.c.b16 %v12119, %v12115
        %v12296 = vpack.c.b16 %v12120, %v12116
        %v12297 = vpack.c.b16 %v12121, %v12117
        %v12298 = vpack.c.b16 %v12122, %v12118
        %v12299 = vpack.c.b16 %v12127, %v12123
        %v12300 = vpack.c.b16 %v12128, %v12124
        %v12301 = vpack.c.b16 %v12129, %v12125
        %v12302 = vpack.c.b16 %v12130, %v12126
        %v12303 = vpack.c.b16 %v12135, %v12131
        %v12304 = vpack.c.b16 %v12136, %v12132
        %v12305 = vpack.c.b16 %v12137, %v12133
        %v12306 = vpack.c.b16 %v12138, %v12134
        %v12307 = vpack.c.b16 %v12143, %v12139
        %v12308 = vpack.c.b16 %v12144, %v12140
        %v12309 = vpack.c.b16 %v12145, %v12141
        %v12310 = vpack.c.b16 %v12146, %v12142
        %v12311 = vpack.c.b16 %v12151, %v12147
        %v12312 = vpack.c.b16 %v12152, %v12148
        %v12313 = vpack.c.b16 %v12153, %v12149
        %v12314 = vpack.c.b16 %v12154, %v12150
        %v12315 = vpack.c.b16 %v12159, %v12155
        %v12316 = vpack.c.b16 %v12160, %v12156
        %v12317 = vpack.c.b16 %v12161, %v12157
        %v12318 = vpack.c.b16 %v12162, %v12158
        %v12319 = vpack.c.b16 %v12167, %v12163
        %v12320 = vpack.c.b16 %v12168, %v12164
        %v12321 = vpack.c.b16 %v12169, %v12165
        %v12322 = vpack.c.b16 %v12170, %v12166
        %v12323 = vpack.c.b16 %v12175, %v12171
        %v12324 = vpack.c.b16 %v12176, %v12172
        %v12325 = vpack.c.b16 %v12177, %v12173
        %v12326 = vpack.c.b16 %v12178, %v12174
        %v12327 = vpack.c.b16 %v12183, %v12179
        %v12328 = vpack.c.b16 %v12184, %v12180
        %v12329 = vpack.c.b16 %v12185, %v12181
        %v12330 = vpack.c.b16 %v12186, %v12182
        %v12331 = vpack.c.b16 %v12191, %v12187
        %v12332 = vpack.c.b16 %v12192, %v12188
        %v12333 = vpack.c.b16 %v12193, %v12189
        %v12334 = vpack.c.b16 %v12194, %v12190
        %v12335 = vpack.c.b16 %v12199, %v12195
        %v12336 = vpack.c.b16 %v12200, %v12196
        %v12337 = vpack.c.b16 %v12201, %v12197
        %v12338 = vpack.c.b16 %v12202, %v12198
        %v12339 = vpack.c.b16 %v12207, %v12203
        %v12340 = vpack.c.b16 %v12208, %v12204
        %v12341 = vpack.c.b16 %v12209, %v12205
        %v12342 = vpack.c.b16 %v12210, %v12206
        %v12343 = vpack.c.b16 %v12215, %v12211
        %v12344 = vpack.c.b16 %v12216, %v12212
        %v12345 = vpack.c.b16 %v12217, %v12213
        %v12346 = vpack.c.b16 %v12218, %v12214
        %12475 = vmatprep.subr.bf16.mxu0 %v12248
        %12476 = vmatpush1.bf16.msra.mxu0 %v12247
        %12477 = vmatprep.subr.bf16.mxu0 %v12244
        %12478 = vmatpush1.bf16.msra.mxu0 %v12243
        %12479 = vmatprep.subr.bf16.mxu0 %v12240
        %12480 = vmatpush1.bf16.msra.mxu0 %v12239
        %12481 = vmatprep.subr.bf16.mxu0 %v12236
        %12482 = vmatpush1.bf16.msra.mxu0 %v12235
        %12483 = vmatprep.subr.bf16.mxu0 %v12232
        %12484 = vmatpush1.bf16.msra.mxu0 %v12231
        %12485 = vmatprep.subr.bf16.mxu0 %v12228
        %12486 = vmatpush1.bf16.msra.mxu0 %v12227
        %12487 = vmatprep.subr.bf16.mxu0 %v12224
        %12488 = vmatpush1.bf16.msra.mxu0 %v12223
        %12489 = vmatprep.subr.bf16.mxu0 %v12220
        %12490 = vmatpush1.bf16.msra.mxu0 %v12219
        %12491 = vmatprep.subr.bf16.mxu0 %v12280
        %12492 = vmatpush2.bf16.msra.mxu0 %v12279
        %12493 = vmatprep.subr.bf16.mxu0 %v12276
        %12494 = vmatpush2.bf16.msra.mxu0 %v12275
        %12495 = vmatprep.subr.bf16.mxu0 %v12272
        %12496 = vmatpush2.bf16.msra.mxu0 %v12271
        %12497 = vmatprep.subr.bf16.mxu0 %v12268
        %12498 = vmatpush2.bf16.msra.mxu0 %v12267
        %12499 = vmatprep.subr.bf16.mxu0 %v12264
        %12500 = vmatpush2.bf16.msra.mxu0 %v12263
        %12501 = vmatprep.subr.bf16.mxu0 %v12260
        %12502 = vmatpush2.bf16.msra.mxu0 %v12259
        %12503 = vmatprep.subr.bf16.mxu0 %v12256
        %12504 = vmatpush2.bf16.msra.mxu0 %v12255
        %12505 = vmatprep.subr.bf16.mxu0 %v12252
        %12506 = vmatpush2.bf16.msra.mxu0 %v12251
        %12507 = vmatprep.mubr.bf16.mxu0 %v11820
        %12508 = vmatmul.mubr.bf16.gmra.mxu0 %v11817
        %v12509 = vpop.f32.mrf.mxu0
        %v12510 = vadd.f32 0.0, %v12509
        %v12511 = vpop.f32.mrf.mxu0
        %v12512 = vadd.f32 0.0, %v12511
        %v12513 = vpop.f32.mrf.mxu0
        %v12514 = vadd.f32 0.0, %v12513
        %v12515 = vpop.f32.mrf.mxu0
        %v12516 = vadd.f32 0.0, %v12515
        %12517 = vmatprep.mubr.bf16.mxu0 %v11819
        %12518 = vmatmul.mubr.bf16.gmra.mxu0 %v11816
        %v12519 = vpop.f32.mrf.mxu0
        %v12520 = vadd.f32 0.0, %v12519
        %v12521 = vpop.f32.mrf.mxu0
        %v12522 = vadd.f32 0.0, %v12521
        %v12523 = vpop.f32.mrf.mxu0
        %v12524 = vpop.f32.mrf.mxu0
        %12525 = vdwg.mxu0
        %12526 = vmatprep.subr.bf16.mxu0 %v12312
        %12527 = vmatpush1.bf16.msra.mxu0 %v12311
        %12528 = vmatprep.subr.bf16.mxu0 %v12308
        %12529 = vmatpush1.bf16.msra.mxu0 %v12307
        %12530 = vmatprep.subr.bf16.mxu0 %v12304
        %12531 = vmatpush1.bf16.msra.mxu0 %v12303
        %12532 = vmatprep.subr.bf16.mxu0 %v12300
        %12533 = vmatpush1.bf16.msra.mxu0 %v12299
        %12534 = vmatprep.subr.bf16.mxu0 %v12296
        %12535 = vmatpush1.bf16.msra.mxu0 %v12295
        %12536 = vmatprep.subr.bf16.mxu0 %v12292
        %12537 = vmatpush1.bf16.msra.mxu0 %v12291
        %12538 = vmatprep.subr.bf16.mxu0 %v12288
        %12539 = vmatpush1.bf16.msra.mxu0 %v12287
        %12540 = vmatprep.subr.bf16.mxu0 %v12284
        %12541 = vmatpush1.bf16.msra.mxu0 %v12283
        %12542 = vmatprep.subr.bf16.mxu0 %v12344
        %12543 = vmatpush2.bf16.msra.mxu0 %v12343
        %12544 = vmatprep.subr.bf16.mxu0 %v12340
        %12545 = vmatpush2.bf16.msra.mxu0 %v12339
        %12546 = vmatprep.subr.bf16.mxu0 %v12336
        %12547 = vmatpush2.bf16.msra.mxu0 %v12335
        %12548 = vmatprep.subr.bf16.mxu0 %v12332
        %12549 = vmatpush2.bf16.msra.mxu0 %v12331
        %12550 = vmatprep.subr.bf16.mxu0 %v12328
        %12551 = vmatpush2.bf16.msra.mxu0 %v12327
        %12552 = vmatprep.subr.bf16.mxu0 %v12324
        %12553 = vmatpush2.bf16.msra.mxu0 %v12323
        %12554 = vmatprep.subr.bf16.mxu0 %v12320
        %12555 = vmatpush2.bf16.msra.mxu0 %v12319
        %12556 = vmatprep.subr.bf16.mxu0 %v12316
        %12557 = vmatpush2.bf16.msra.mxu0 %v12315
        %12558 = vmatprep.mubr.bf16.mxu0 %v11826
        %12559 = vmatmul.mubr.bf16.gmra.mxu0 %v11823
        %v12560 = vpop.f32.mrf.mxu0
        %v12561 = vadd.f32 %v12510, %v12560
        %v12562 = vpop.f32.mrf.mxu0
        %v12563 = vadd.f32 %v12512, %v12562
        %v12564 = vpop.f32.mrf.mxu0
        %v12565 = vadd.f32 %v12514, %v12564
        %v12566 = vpop.f32.mrf.mxu0
        %v12567 = vadd.f32 %v12516, %v12566
        %12568 = vmatprep.mubr.bf16.mxu0 %v11825
        %12569 = vmatmul.mubr.bf16.gmra.mxu0 %v11822
        %v12570 = vpop.f32.mrf.mxu0
        %v12571 = vadd.f32 %v12520, %v12570
        %v12572 = vpop.f32.mrf.mxu0
        %v12573 = vadd.f32 %v12522, %v12572
        %v12574 = vpop.f32.mrf.mxu0
        %v12575 = vpop.f32.mrf.mxu0
        %12576 = vdwg.mxu0
        %12577 = vmatprep.subr.bf16.mxu0 %v12250
        %12578 = vmatpush1.bf16.msra.mxu0 %v12249
        %12579 = vmatprep.subr.bf16.mxu0 %v12246
        %12580 = vmatpush1.bf16.msra.mxu0 %v12245
        %12581 = vmatprep.subr.bf16.mxu0 %v12242
        %12582 = vmatpush1.bf16.msra.mxu0 %v12241
        %12583 = vmatprep.subr.bf16.mxu0 %v12238
        %12584 = vmatpush1.bf16.msra.mxu0 %v12237
        %12585 = vmatprep.subr.bf16.mxu0 %v12234
        %12586 = vmatpush1.bf16.msra.mxu0 %v12233
        %12587 = vmatprep.subr.bf16.mxu0 %v12230
        %12588 = vmatpush1.bf16.msra.mxu0 %v12229
        %12589 = vmatprep.subr.bf16.mxu0 %v12226
        %12590 = vmatpush1.bf16.msra.mxu0 %v12225
        %12591 = vmatprep.subr.bf16.mxu0 %v12222
        %12592 = vmatpush1.bf16.msra.mxu0 %v12221
        %12593 = vmatprep.subr.bf16.mxu0 %v12282
        %12594 = vmatpush2.bf16.msra.mxu0 %v12281
        %12595 = vmatprep.subr.bf16.mxu0 %v12278
        %12596 = vmatpush2.bf16.msra.mxu0 %v12277
        %12597 = vmatprep.subr.bf16.mxu0 %v12274
        %12598 = vmatpush2.bf16.msra.mxu0 %v12273
        %12599 = vmatprep.subr.bf16.mxu0 %v12270
        %12600 = vmatpush2.bf16.msra.mxu0 %v12269
        %12601 = vmatprep.subr.bf16.mxu0 %v12266
        %12602 = vmatpush2.bf16.msra.mxu0 %v12265
        %12603 = vmatprep.subr.bf16.mxu0 %v12262
        %12604 = vmatpush2.bf16.msra.mxu0 %v12261
        %12605 = vmatprep.subr.bf16.mxu0 %v12258
        %12606 = vmatpush2.bf16.msra.mxu0 %v12257
        %12607 = vmatprep.subr.bf16.mxu0 %v12254
        %12608 = vmatpush2.bf16.msra.mxu0 %v12253
        %12609 = vmatprep.mubr.bf16.mxu0 %v11820
        %12610 = vmatmul.mubr.bf16.gmra.mxu0 %v11817
        %v12611 = vpop.f32.mrf.mxu0
        %v12612 = vadd.f32 0.0, %v12611
        %v12613 = vpop.f32.mrf.mxu0
        %v12614 = vadd.f32 0.0, %v12613
        %v12615 = vpop.f32.mrf.mxu0
        %v12616 = vadd.f32 0.0, %v12615
        %v12617 = vpop.f32.mrf.mxu0
        %v12618 = vadd.f32 0.0, %v12617
        %12619 = vmatprep.mubr.bf16.mxu0 %v11819
        %12620 = vmatmul.mubr.bf16.gmra.mxu0 %v11816
        %v12621 = vpop.f32.mrf.mxu0
        %v12622 = vadd.f32 0.0, %v12621
        %v12623 = vpop.f32.mrf.mxu0
        %v12624 = vadd.f32 0.0, %v12623
        %v12625 = vpop.f32.mrf.mxu0
        %v12626 = vpop.f32.mrf.mxu0
        %12627 = vdwg.mxu0
        %12628 = vmatprep.subr.bf16.mxu0 %v12314
        %12629 = vmatpush1.bf16.msra.mxu0 %v12313
        %12630 = vmatprep.subr.bf16.mxu0 %v12310
        %12631 = vmatpush1.bf16.msra.mxu0 %v12309
        %12632 = vmatprep.subr.bf16.mxu0 %v12306
        %12633 = vmatpush1.bf16.msra.mxu0 %v12305
        %12634 = vmatprep.subr.bf16.mxu0 %v12302
        %12635 = vmatpush1.bf16.msra.mxu0 %v12301
        %12636 = vmatprep.subr.bf16.mxu0 %v12298
        %12637 = vmatpush1.bf16.msra.mxu0 %v12297
        %12638 = vmatprep.subr.bf16.mxu0 %v12294
        %12639 = vmatpush1.bf16.msra.mxu0 %v12293
        %12640 = vmatprep.subr.bf16.mxu0 %v12290
        %12641 = vmatpush1.bf16.msra.mxu0 %v12289
        %12642 = vmatprep.subr.bf16.mxu0 %v12286
        %12643 = vmatpush1.bf16.msra.mxu0 %v12285
        %12644 = vmatprep.subr.bf16.mxu0 %v12346
        %12645 = vmatpush2.bf16.msra.mxu0 %v12345
        %12646 = vmatprep.subr.bf16.mxu0 %v12342
        %12647 = vmatpush2.bf16.msra.mxu0 %v12341
        %12648 = vmatprep.subr.bf16.mxu0 %v12338
        %12649 = vmatpush2.bf16.msra.mxu0 %v12337
        %12650 = vmatprep.subr.bf16.mxu0 %v12334
        %12651 = vmatpush2.bf16.msra.mxu0 %v12333
        %12652 = vmatprep.subr.bf16.mxu0 %v12330
        %12653 = vmatpush2.bf16.msra.mxu0 %v12329
        %12654 = vmatprep.subr.bf16.mxu0 %v12326
        %12655 = vmatpush2.bf16.msra.mxu0 %v12325
        %12656 = vmatprep.subr.bf16.mxu0 %v12322
        %12657 = vmatpush2.bf16.msra.mxu0 %v12321
        %12658 = vmatprep.subr.bf16.mxu0 %v12318
        %12659 = vmatpush2.bf16.msra.mxu0 %v12317
        %12660 = vmatprep.mubr.bf16.mxu0 %v11826
        %12661 = vmatmul.mubr.bf16.gmra.mxu0 %v11823
        %v12662 = vpop.f32.mrf.mxu0
        %v12663 = vadd.f32 %v12612, %v12662
        %v12664 = vpop.f32.mrf.mxu0
        %v12665 = vadd.f32 %v12614, %v12664
        %v12666 = vpop.f32.mrf.mxu0
        %v12667 = vadd.f32 %v12616, %v12666
        %v12668 = vpop.f32.mrf.mxu0
        %v12669 = vadd.f32 %v12618, %v12668
        %12670 = vmatprep.mubr.bf16.mxu0 %v11825
        %12671 = vmatmul.mubr.bf16.gmra.mxu0 %v11822
        %v12672 = vpop.f32.mrf.mxu0
        %v12673 = vadd.f32 %v12622, %v12672
        %v12674 = vpop.f32.mrf.mxu0
        %v12675 = vadd.f32 %v12624, %v12674
        %v12676 = vpop.f32.mrf.mxu0
        %v12677 = vpop.f32.mrf.mxu0
        %12678 = vdwg.mxu0
        %v12679 = vadd.f32 %v11666, %v12561
        %v12680 = vadd.f32 %v11667, %v12563
        %v12681 = vadd.f32 %v11668, %v12663
        %v12682 = vadd.f32 %v11669, %v12665
        %v12683 = vadd.f32 %v11670, %v12565
        %v12684 = vadd.f32 %v11671, %v12567
        %v12685 = vadd.f32 %v11672, %v12667
        %v12686 = vadd.f32 %v11673, %v12669
        %v12687 = vadd.f32 %v11674, %v12571
        %v12688 = vadd.f32 %v11675, %v12573
        %v12689 = vadd.f32 %v11676, %v12673
        %v12690 = vadd.f32 %v11677, %v12675
        %v12691 = vlaneseq
        %v12692 = vand.u32 %v12691, 127
        %v12693 = vld [vmem:[#allocation7] sm:$0x1]
        %v12694 = vld [vmem:[#allocation6] sm:$0xff]
        %v12695 = vld [vmem:[#allocation6 + $0x8] sm:$0xff]
        %v12696 = vld [vmem:[#allocation6 + $0x10] sm:$0xff]
        %v12697 = vld [vmem:[#allocation6 + $0x18] sm:$0xff]
        %v12698 = vld [vmem:[#allocation6 + $0x20] sm:$0xff]
        %v12699 = vld [vmem:[#allocation6 + $0x28] sm:$0xff]
        %v12700 = vld [vmem:[#allocation6 + $0x30] sm:$0xff]
        %v12701 = vld [vmem:[#allocation6 + $0x38] sm:$0xff]
        %v12702 = vld [vmem:[#allocation6 + $0x40] sm:$0xff]
        %v12703 = vld [vmem:[#allocation6 + $0x48] sm:$0xff]
        %v12704 = vld [vmem:[#allocation6 + $0x50] sm:$0xff]
        %v12705 = vld [vmem:[#allocation6 + $0x58] sm:$0xff]
        %v12706 = vmul.f32 %v12679, %v12694
        %v12707 = vmul.f32 %v12680, %v12695
        %v12708 = vmul.f32 %v12681, %v12696
        %v12709 = vmul.f32 %v12682, %v12697
        %v12710 = vmul.f32 %v12683, %v12698
        %v12711 = vmul.f32 %v12684, %v12699
        %v12712 = vmul.f32 %v12685, %v12700
        %v12713 = vmul.f32 %v12686, %v12701
        %v12714 = vmul.f32 %v12687, %v12702
        %v12715 = vmul.f32 %v12688, %v12703
        %v12716 = vmul.f32 %v12689, %v12704
        %v12717 = vmul.f32 %v12690, %v12705
        %v12718 = vadd.f32 %v12706, %v12707
        %v12719 = vadd.f32 %v12718, %v12708
        %v12720 = vadd.f32 %v12719, %v12709
        %v12721 = vadd.f32 %v12720, %v12710
        %v12722 = vadd.f32 %v12721, %v12711
        %v12723 = vadd.f32 %v12722, %v12712
        %v12724 = vadd.f32 %v12723, %v12713
        %v12725 = vadd.f32 %v12724, %v12714
        %v12726 = vadd.f32 %v12725, %v12715
        %v12727 = vadd.f32 %v12726, %v12716
        %v12728 = vadd.f32 %v12727, %v12717
        %12729 = vadd.xlane.f32.xlu0 %v12728
        %v12730 = vpop.xlane.xlu0 %12729
        %v12731 = vrot.slane %v12730, 4
        %v12732 = vadd.f32 %v12730, %v12731
        %v12733 = vrot.slane %v12732, 2
        %v12734 = vadd.f32 %v12732, %v12733
        %v12735 = vrot.slane %v12734, 1
        %v12736 = vadd.f32 %v12734, %v12735
        %s12737 = vtos %v12736
        %vm12738 = vcmp.eq.s32.totalorder %v12692, 0
        %v12739 = vstv %s12737
        %v12740 = vsel %vm12738, %v12739, 0.0
        %v12741 = vadd.f32 %v12693, %v12740
        %s12742 = scalar_lea.vmem [#allocation6], 96
        %v12743 = vld [vmem:[%s12742] sm:$0xff]
        %v12744 = vld [vmem:[%s12742 + $0x8] sm:$0xff]
        %v12745 = vld [vmem:[%s12742 + $0x10] sm:$0xff]
        %v12746 = vld [vmem:[%s12742 + $0x18] sm:$0xff]
        %v12747 = vld [vmem:[%s12742 + $0x20] sm:$0xff]
        %v12748 = vld [vmem:[%s12742 + $0x28] sm:$0xff]
        %v12749 = vld [vmem:[%s12742 + $0x30] sm:$0xff]
        %v12750 = vld [vmem:[%s12742 + $0x38] sm:$0xff]
        %v12751 = vld [vmem:[%s12742 + $0x40] sm:$0xff]
        %v12752 = vld [vmem:[%s12742 + $0x48] sm:$0xff]
        %v12753 = vld [vmem:[%s12742 + $0x50] sm:$0xff]
        %v12754 = vld [vmem:[%s12742 + $0x58] sm:$0xff]
        %v12755 = vmul.f32 %v12679, %v12743
        %v12756 = vmul.f32 %v12680, %v12744
        %v12757 = vmul.f32 %v12681, %v12745
        %v12758 = vmul.f32 %v12682, %v12746
        %v12759 = vmul.f32 %v12683, %v12747
        %v12760 = vmul.f32 %v12684, %v12748
        %v12761 = vmul.f32 %v12685, %v12749
        %v12762 = vmul.f32 %v12686, %v12750
        %v12763 = vmul.f32 %v12687, %v12751
        %v12764 = vmul.f32 %v12688, %v12752
        %v12765 = vmul.f32 %v12689, %v12753
        %v12766 = vmul.f32 %v12690, %v12754
        %v12767 = vadd.f32 %v12755, %v12756
        %v12768 = vadd.f32 %v12767, %v12757
        %v12769 = vadd.f32 %v12768, %v12758
        %v12770 = vadd.f32 %v12769, %v12759
        %v12771 = vadd.f32 %v12770, %v12760
        %v12772 = vadd.f32 %v12771, %v12761
        %v12773 = vadd.f32 %v12772, %v12762
        %v12774 = vadd.f32 %v12773, %v12763
        %v12775 = vadd.f32 %v12774, %v12764
        %v12776 = vadd.f32 %v12775, %v12765
        %v12777 = vadd.f32 %v12776, %v12766
        %12778 = vadd.xlane.f32.xlu0 %v12777
        %v12779 = vpop.xlane.xlu0 %12778
        %v12780 = vrot.slane %v12779, 4
        %v12781 = vadd.f32 %v12779, %v12780
        %v12782 = vrot.slane %v12781, 2
        %v12783 = vadd.f32 %v12781, %v12782
        %v12784 = vrot.slane %v12783, 1
        %v12785 = vadd.f32 %v12783, %v12784
        %s12786 = vtos %v12785
        %vm12787 = vcmp.eq.s32.totalorder %v12692, 1
        %v12788 = vstv %s12786
        %v12789 = vsel %vm12787, %v12788, 0.0
        %v12790 = vadd.f32 %v12741, %v12789
        %s12791 = scalar_lea.vmem [#allocation6], 192
        %v12792 = vld [vmem:[%s12791] sm:$0xff]
        %v12793 = vld [vmem:[%s12791 + $0x8] sm:$0xff]
        %v12794 = vld [vmem:[%s12791 + $0x10] sm:$0xff]
        %v12795 = vld [vmem:[%s12791 + $0x18] sm:$0xff]
        %v12796 = vld [vmem:[%s12791 + $0x20] sm:$0xff]
        %v12797 = vld [vmem:[%s12791 + $0x28] sm:$0xff]
        %v12798 = vld [vmem:[%s12791 + $0x30] sm:$0xff]
        %v12799 = vld [vmem:[%s12791 + $0x38] sm:$0xff]
        %v12800 = vld [vmem:[%s12791 + $0x40] sm:$0xff]
        %v12801 = vld [vmem:[%s12791 + $0x48] sm:$0xff]
        %v12802 = vld [vmem:[%s12791 + $0x50] sm:$0xff]
        %v12803 = vld [vmem:[%s12791 + $0x58] sm:$0xff]
        %v12804 = vmul.f32 %v12679, %v12792
        %v12805 = vmul.f32 %v12680, %v12793
        %v12806 = vmul.f32 %v12681, %v12794
        %v12807 = vmul.f32 %v12682, %v12795
        %v12808 = vmul.f32 %v12683, %v12796
        %v12809 = vmul.f32 %v12684, %v12797
        %v12810 = vmul.f32 %v12685, %v12798
        %v12811 = vmul.f32 %v12686, %v12799
        %v12812 = vmul.f32 %v12687, %v12800
        %v12813 = vmul.f32 %v12688, %v12801
        %v12814 = vmul.f32 %v12689, %v12802
        %v12815 = vmul.f32 %v12690, %v12803
        %v12816 = vadd.f32 %v12804, %v12805
        %v12817 = vadd.f32 %v12816, %v12806
        %v12818 = vadd.f32 %v12817, %v12807
        %v12819 = vadd.f32 %v12818, %v12808
        %v12820 = vadd.f32 %v12819, %v12809
        %v12821 = vadd.f32 %v12820, %v12810
        %v12822 = vadd.f32 %v12821, %v12811
        %v12823 = vadd.f32 %v12822, %v12812
        %v12824 = vadd.f32 %v12823, %v12813
        %v12825 = vadd.f32 %v12824, %v12814
        %v12826 = vadd.f32 %v12825, %v12815
        %12827 = vadd.xlane.f32.xlu0 %v12826
        %v12828 = vpop.xlane.xlu0 %12827
        %v12829 = vrot.slane %v12828, 4
        %v12830 = vadd.f32 %v12828, %v12829
        %v12831 = vrot.slane %v12830, 2
        %v12832 = vadd.f32 %v12830, %v12831
        %v12833 = vrot.slane %v12832, 1
        %v12834 = vadd.f32 %v12832, %v12833
        %s12835 = vtos %v12834
        %vm12836 = vcmp.eq.s32.totalorder %v12692, 2
        %v12837 = vstv %s12835
        %v12838 = vsel %vm12836, %v12837, 0.0
        %v12839 = vadd.f32 %v12790, %v12838
        %s12840 = scalar_lea.vmem [#allocation6], 288
        %v12841 = vld [vmem:[%s12840] sm:$0xff]
        %v12842 = vld [vmem:[%s12840 + $0x8] sm:$0xff]
        %v12843 = vld [vmem:[%s12840 + $0x10] sm:$0xff]
        %v12844 = vld [vmem:[%s12840 + $0x18] sm:$0xff]
        %v12845 = vld [vmem:[%s12840 + $0x20] sm:$0xff]
        %v12846 = vld [vmem:[%s12840 + $0x28] sm:$0xff]
        %v12847 = vld [vmem:[%s12840 + $0x30] sm:$0xff]
        %v12848 = vld [vmem:[%s12840 + $0x38] sm:$0xff]
        %v12849 = vld [vmem:[%s12840 + $0x40] sm:$0xff]
        %v12850 = vld [vmem:[%s12840 + $0x48] sm:$0xff]
        %v12851 = vld [vmem:[%s12840 + $0x50] sm:$0xff]
        %v12852 = vld [vmem:[%s12840 + $0x58] sm:$0xff]
        %v12853 = vmul.f32 %v12679, %v12841
        %v12854 = vmul.f32 %v12680, %v12842
        %v12855 = vmul.f32 %v12681, %v12843
        %v12856 = vmul.f32 %v12682, %v12844
        %v12857 = vmul.f32 %v12683, %v12845
        %v12858 = vmul.f32 %v12684, %v12846
        %v12859 = vmul.f32 %v12685, %v12847
        %v12860 = vmul.f32 %v12686, %v12848
        %v12861 = vmul.f32 %v12687, %v12849
        %v12862 = vmul.f32 %v12688, %v12850
        %v12863 = vmul.f32 %v12689, %v12851
        %v12864 = vmul.f32 %v12690, %v12852
        %v12865 = vadd.f32 %v12853, %v12854
        %v12866 = vadd.f32 %v12865, %v12855
        %v12867 = vadd.f32 %v12866, %v12856
        %v12868 = vadd.f32 %v12867, %v12857
        %v12869 = vadd.f32 %v12868, %v12858
        %v12870 = vadd.f32 %v12869, %v12859
        %v12871 = vadd.f32 %v12870, %v12860
        %v12872 = vadd.f32 %v12871, %v12861
        %v12873 = vadd.f32 %v12872, %v12862
        %v12874 = vadd.f32 %v12873, %v12863
        %v12875 = vadd.f32 %v12874, %v12864
        %12876 = vadd.xlane.f32.xlu0 %v12875
        %v12877 = vpop.xlane.xlu0 %12876
        %v12878 = vrot.slane %v12877, 4
        %v12879 = vadd.f32 %v12877, %v12878
        %v12880 = vrot.slane %v12879, 2
        %v12881 = vadd.f32 %v12879, %v12880
        %v12882 = vrot.slane %v12881, 1
        %v12883 = vadd.f32 %v12881, %v12882
        %s12884 = vtos %v12883
        %vm12885 = vcmp.eq.s32.totalorder %v12692, 3
        %v12886 = vstv %s12884
        %v12887 = vsel %vm12885, %v12886, 0.0
        %v12888 = vadd.f32 %v12839, %v12887
        %s12889 = scalar_lea.vmem [#allocation6], 384
        %v12890 = vld [vmem:[%s12889] sm:$0xff]
        %v12891 = vld [vmem:[%s12889 + $0x8] sm:$0xff]
        %v12892 = vld [vmem:[%s12889 + $0x10] sm:$0xff]
        %v12893 = vld [vmem:[%s12889 + $0x18] sm:$0xff]
        %v12894 = vld [vmem:[%s12889 + $0x20] sm:$0xff]
        %v12895 = vld [vmem:[%s12889 + $0x28] sm:$0xff]
        %v12896 = vld [vmem:[%s12889 + $0x30] sm:$0xff]
        %v12897 = vld [vmem:[%s12889 + $0x38] sm:$0xff]
        %v12898 = vld [vmem:[%s12889 + $0x40] sm:$0xff]
        %v12899 = vld [vmem:[%s12889 + $0x48] sm:$0xff]
        %v12900 = vld [vmem:[%s12889 + $0x50] sm:$0xff]
        %v12901 = vld [vmem:[%s12889 + $0x58] sm:$0xff]
        %v12902 = vmul.f32 %v12679, %v12890
        %v12903 = vmul.f32 %v12680, %v12891
        %v12904 = vmul.f32 %v12681, %v12892
        %v12905 = vmul.f32 %v12682, %v12893
        %v12906 = vmul.f32 %v12683, %v12894
        %v12907 = vmul.f32 %v12684, %v12895
        %v12908 = vmul.f32 %v12685, %v12896
        %v12909 = vmul.f32 %v12686, %v12897
        %v12910 = vmul.f32 %v12687, %v12898
        %v12911 = vmul.f32 %v12688, %v12899
        %v12912 = vmul.f32 %v12689, %v12900
        %v12913 = vmul.f32 %v12690, %v12901
        %v12914 = vadd.f32 %v12902, %v12903
        %v12915 = vadd.f32 %v12914, %v12904
        %v12916 = vadd.f32 %v12915, %v12905
        %v12917 = vadd.f32 %v12916, %v12906
        %v12918 = vadd.f32 %v12917, %v12907
        %v12919 = vadd.f32 %v12918, %v12908
        %v12920 = vadd.f32 %v12919, %v12909
        %v12921 = vadd.f32 %v12920, %v12910
        %v12922 = vadd.f32 %v12921, %v12911
        %v12923 = vadd.f32 %v12922, %v12912
        %v12924 = vadd.f32 %v12923, %v12913
        %12925 = vadd.xlane.f32.xlu0 %v12924
        %v12926 = vpop.xlane.xlu0 %12925
        %v12927 = vrot.slane %v12926, 4
        %v12928 = vadd.f32 %v12926, %v12927
        %v12929 = vrot.slane %v12928, 2
        %v12930 = vadd.f32 %v12928, %v12929
        %v12931 = vrot.slane %v12930, 1
        %v12932 = vadd.f32 %v12930, %v12931
        %s12933 = vtos %v12932
        %vm12934 = vcmp.eq.s32.totalorder %v12692, 4
        %v12935 = vstv %s12933
        %v12936 = vsel %vm12934, %v12935, 0.0
        %v12937 = vadd.f32 %v12888, %v12936
        %s12938 = scalar_lea.vmem [#allocation6], 480
        %v12939 = vld [vmem:[%s12938] sm:$0xff]
        %v12940 = vld [vmem:[%s12938 + $0x8] sm:$0xff]
        %v12941 = vld [vmem:[%s12938 + $0x10] sm:$0xff]
        %v12942 = vld [vmem:[%s12938 + $0x18] sm:$0xff]
        %v12943 = vld [vmem:[%s12938 + $0x20] sm:$0xff]
        %v12944 = vld [vmem:[%s12938 + $0x28] sm:$0xff]
        %v12945 = vld [vmem:[%s12938 + $0x30] sm:$0xff]
        %v12946 = vld [vmem:[%s12938 + $0x38] sm:$0xff]
        %v12947 = vld [vmem:[%s12938 + $0x40] sm:$0xff]
        %v12948 = vld [vmem:[%s12938 + $0x48] sm:$0xff]
        %v12949 = vld [vmem:[%s12938 + $0x50] sm:$0xff]
        %v12950 = vld [vmem:[%s12938 + $0x58] sm:$0xff]
        %v12951 = vmul.f32 %v12679, %v12939
        %v12952 = vmul.f32 %v12680, %v12940
        %v12953 = vmul.f32 %v12681, %v12941
        %v12954 = vmul.f32 %v12682, %v12942
        %v12955 = vmul.f32 %v12683, %v12943
        %v12956 = vmul.f32 %v12684, %v12944
        %v12957 = vmul.f32 %v12685, %v12945
        %v12958 = vmul.f32 %v12686, %v12946
        %v12959 = vmul.f32 %v12687, %v12947
        %v12960 = vmul.f32 %v12688, %v12948
        %v12961 = vmul.f32 %v12689, %v12949
        %v12962 = vmul.f32 %v12690, %v12950
        %v12963 = vadd.f32 %v12951, %v12952
        %v12964 = vadd.f32 %v12963, %v12953
        %v12965 = vadd.f32 %v12964, %v12954
        %v12966 = vadd.f32 %v12965, %v12955
        %v12967 = vadd.f32 %v12966, %v12956
        %v12968 = vadd.f32 %v12967, %v12957
        %v12969 = vadd.f32 %v12968, %v12958
        %v12970 = vadd.f32 %v12969, %v12959
        %v12971 = vadd.f32 %v12970, %v12960
        %v12972 = vadd.f32 %v12971, %v12961
        %v12973 = vadd.f32 %v12972, %v12962
        %12974 = vadd.xlane.f32.xlu0 %v12973
        %v12975 = vpop.xlane.xlu0 %12974
        %v12976 = vrot.slane %v12975, 4
        %v12977 = vadd.f32 %v12975, %v12976
        %v12978 = vrot.slane %v12977, 2
        %v12979 = vadd.f32 %v12977, %v12978
        %v12980 = vrot.slane %v12979, 1
        %v12981 = vadd.f32 %v12979, %v12980
        %s12982 = vtos %v12981
        %vm12983 = vcmp.eq.s32.totalorder %v12692, 5
        %v12984 = vstv %s12982
        %v12985 = vsel %vm12983, %v12984, 0.0
        %v12986 = vadd.f32 %v12937, %v12985
        %s12987 = scalar_lea.vmem [#allocation6], 576
        %v12988 = vld [vmem:[%s12987] sm:$0xff]
        %v12989 = vld [vmem:[%s12987 + $0x8] sm:$0xff]
        %v12990 = vld [vmem:[%s12987 + $0x10] sm:$0xff]
        %v12991 = vld [vmem:[%s12987 + $0x18] sm:$0xff]
        %v12992 = vld [vmem:[%s12987 + $0x20] sm:$0xff]
        %v12993 = vld [vmem:[%s12987 + $0x28] sm:$0xff]
        %v12994 = vld [vmem:[%s12987 + $0x30] sm:$0xff]
        %v12995 = vld [vmem:[%s12987 + $0x38] sm:$0xff]
        %v12996 = vld [vmem:[%s12987 + $0x40] sm:$0xff]
        %v12997 = vld [vmem:[%s12987 + $0x48] sm:$0xff]
        %v12998 = vld [vmem:[%s12987 + $0x50] sm:$0xff]
        %v12999 = vld [vmem:[%s12987 + $0x58] sm:$0xff]
        %v13000 = vmul.f32 %v12679, %v12988
        %v13001 = vmul.f32 %v12680, %v12989
        %v13002 = vmul.f32 %v12681, %v12990
        %v13003 = vmul.f32 %v12682, %v12991
        %v13004 = vmul.f32 %v12683, %v12992
        %v13005 = vmul.f32 %v12684, %v12993
        %v13006 = vmul.f32 %v12685, %v12994
        %v13007 = vmul.f32 %v12686, %v12995
        %v13008 = vmul.f32 %v12687, %v12996
        %v13009 = vmul.f32 %v12688, %v12997
        %v13010 = vmul.f32 %v12689, %v12998
        %v13011 = vmul.f32 %v12690, %v12999
        %v13012 = vadd.f32 %v13000, %v13001
        %v13013 = vadd.f32 %v13012, %v13002
        %v13014 = vadd.f32 %v13013, %v13003
        %v13015 = vadd.f32 %v13014, %v13004
        %v13016 = vadd.f32 %v13015, %v13005
        %v13017 = vadd.f32 %v13016, %v13006
        %v13018 = vadd.f32 %v13017, %v13007
        %v13019 = vadd.f32 %v13018, %v13008
        %v13020 = vadd.f32 %v13019, %v13009
        %v13021 = vadd.f32 %v13020, %v13010
        %v13022 = vadd.f32 %v13021, %v13011
        %13023 = vadd.xlane.f32.xlu0 %v13022
        %v13024 = vpop.xlane.xlu0 %13023
        %v13025 = vrot.slane %v13024, 4
        %v13026 = vadd.f32 %v13024, %v13025
        %v13027 = vrot.slane %v13026, 2
        %v13028 = vadd.f32 %v13026, %v13027
        %v13029 = vrot.slane %v13028, 1
        %v13030 = vadd.f32 %v13028, %v13029
        %s13031 = vtos %v13030
        %vm13032 = vcmp.eq.s32.totalorder %v12692, 6
        %v13033 = vstv %s13031
        %v13034 = vsel %vm13032, %v13033, 0.0
        %v13035 = vadd.f32 %v12986, %v13034
        %s13036 = scalar_lea.vmem [#allocation6], 672
        %v13037 = vld [vmem:[%s13036] sm:$0xff]
        %v13038 = vld [vmem:[%s13036 + $0x8] sm:$0xff]
        %v13039 = vld [vmem:[%s13036 + $0x10] sm:$0xff]
        %v13040 = vld [vmem:[%s13036 + $0x18] sm:$0xff]
        %v13041 = vld [vmem:[%s13036 + $0x20] sm:$0xff]
        %v13042 = vld [vmem:[%s13036 + $0x28] sm:$0xff]
        %v13043 = vld [vmem:[%s13036 + $0x30] sm:$0xff]
        %v13044 = vld [vmem:[%s13036 + $0x38] sm:$0xff]
        %v13045 = vld [vmem:[%s13036 + $0x40] sm:$0xff]
        %v13046 = vld [vmem:[%s13036 + $0x48] sm:$0xff]
        %v13047 = vld [vmem:[%s13036 + $0x50] sm:$0xff]
        %v13048 = vld [vmem:[%s13036 + $0x58] sm:$0xff]
        %v13049 = vmul.f32 %v12679, %v13037
        %v13050 = vmul.f32 %v12680, %v13038
        %v13051 = vmul.f32 %v12681, %v13039
        %v13052 = vmul.f32 %v12682, %v13040
        %v13053 = vmul.f32 %v12683, %v13041
        %v13054 = vmul.f32 %v12684, %v13042
        %v13055 = vmul.f32 %v12685, %v13043
        %v13056 = vmul.f32 %v12686, %v13044
        %v13057 = vmul.f32 %v12687, %v13045
        %v13058 = vmul.f32 %v12688, %v13046
        %v13059 = vmul.f32 %v12689, %v13047
        %v13060 = vmul.f32 %v12690, %v13048
        %v13061 = vadd.f32 %v13049, %v13050
        %v13062 = vadd.f32 %v13061, %v13051
        %v13063 = vadd.f32 %v13062, %v13052
        %v13064 = vadd.f32 %v13063, %v13053
        %v13065 = vadd.f32 %v13064, %v13054
        %v13066 = vadd.f32 %v13065, %v13055
        %v13067 = vadd.f32 %v13066, %v13056
        %v13068 = vadd.f32 %v13067, %v13057
        %v13069 = vadd.f32 %v13068, %v13058
        %v13070 = vadd.f32 %v13069, %v13059
        %v13071 = vadd.f32 %v13070, %v13060
        %13072 = vadd.xlane.f32.xlu0 %v13071
        %v13073 = vpop.xlane.xlu0 %13072
        %v13074 = vrot.slane %v13073, 4
        %v13075 = vadd.f32 %v13073, %v13074
        %v13076 = vrot.slane %v13075, 2
        %v13077 = vadd.f32 %v13075, %v13076
        %v13078 = vrot.slane %v13077, 1
        %v13079 = vadd.f32 %v13077, %v13078
        %s13080 = vtos %v13079
        %vm13081 = vcmp.eq.s32.totalorder %v12692, 7
        %v13082 = vstv %s13080
        %v13083 = vsel %vm13081, %v13082, 0.0
        %v13084 = vadd.f32 %v13035, %v13083
        %s13085 = scalar_lea.vmem [#allocation6], 768
        %v13086 = vld [vmem:[%s13085] sm:$0xff]
        %v13087 = vld [vmem:[%s13085 + $0x8] sm:$0xff]
        %v13088 = vld [vmem:[%s13085 + $0x10] sm:$0xff]
        %v13089 = vld [vmem:[%s13085 + $0x18] sm:$0xff]
        %v13090 = vld [vmem:[%s13085 + $0x20] sm:$0xff]
        %v13091 = vld [vmem:[%s13085 + $0x28] sm:$0xff]
        %v13092 = vld [vmem:[%s13085 + $0x30] sm:$0xff]
        %v13093 = vld [vmem:[%s13085 + $0x38] sm:$0xff]
        %v13094 = vld [vmem:[%s13085 + $0x40] sm:$0xff]
        %v13095 = vld [vmem:[%s13085 + $0x48] sm:$0xff]
        %v13096 = vld [vmem:[%s13085 + $0x50] sm:$0xff]
        %v13097 = vld [vmem:[%s13085 + $0x58] sm:$0xff]
        %v13098 = vmul.f32 %v12679, %v13086
        %v13099 = vmul.f32 %v12680, %v13087
        %v13100 = vmul.f32 %v12681, %v13088
        %v13101 = vmul.f32 %v12682, %v13089
        %v13102 = vmul.f32 %v12683, %v13090
        %v13103 = vmul.f32 %v12684, %v13091
        %v13104 = vmul.f32 %v12685, %v13092
        %v13105 = vmul.f32 %v12686, %v13093
        %v13106 = vmul.f32 %v12687, %v13094
        %v13107 = vmul.f32 %v12688, %v13095
        %v13108 = vmul.f32 %v12689, %v13096
        %v13109 = vmul.f32 %v12690, %v13097
        %v13110 = vadd.f32 %v13098, %v13099
        %v13111 = vadd.f32 %v13110, %v13100
        %v13112 = vadd.f32 %v13111, %v13101
        %v13113 = vadd.f32 %v13112, %v13102
        %v13114 = vadd.f32 %v13113, %v13103
        %v13115 = vadd.f32 %v13114, %v13104
        %v13116 = vadd.f32 %v13115, %v13105
        %v13117 = vadd.f32 %v13116, %v13106
        %v13118 = vadd.f32 %v13117, %v13107
        %v13119 = vadd.f32 %v13118, %v13108
        %v13120 = vadd.f32 %v13119, %v13109
        %13121 = vadd.xlane.f32.xlu0 %v13120
        %v13122 = vpop.xlane.xlu0 %13121
        %v13123 = vrot.slane %v13122, 4
        %v13124 = vadd.f32 %v13122, %v13123
        %v13125 = vrot.slane %v13124, 2
        %v13126 = vadd.f32 %v13124, %v13125
        %v13127 = vrot.slane %v13126, 1
        %v13128 = vadd.f32 %v13126, %v13127
        %s13129 = vtos %v13128
        %vm13130 = vcmp.eq.s32.totalorder %v12692, 8
        %v13131 = vstv %s13129
        %v13132 = vsel %vm13130, %v13131, 0.0
        %v13133 = vadd.f32 %v13084, %v13132
        %s13134 = scalar_lea.vmem [#allocation6], 864
        %v13135 = vld [vmem:[%s13134] sm:$0xff]
        %v13136 = vld [vmem:[%s13134 + $0x8] sm:$0xff]
        %v13137 = vld [vmem:[%s13134 + $0x10] sm:$0xff]
        %v13138 = vld [vmem:[%s13134 + $0x18] sm:$0xff]
        %v13139 = vld [vmem:[%s13134 + $0x20] sm:$0xff]
        %v13140 = vld [vmem:[%s13134 + $0x28] sm:$0xff]
        %v13141 = vld [vmem:[%s13134 + $0x30] sm:$0xff]
        %v13142 = vld [vmem:[%s13134 + $0x38] sm:$0xff]
        %v13143 = vld [vmem:[%s13134 + $0x40] sm:$0xff]
        %v13144 = vld [vmem:[%s13134 + $0x48] sm:$0xff]
        %v13145 = vld [vmem:[%s13134 + $0x50] sm:$0xff]
        %v13146 = vld [vmem:[%s13134 + $0x58] sm:$0xff]
        %v13147 = vmul.f32 %v12679, %v13135
        %v13148 = vmul.f32 %v12680, %v13136
        %v13149 = vmul.f32 %v12681, %v13137
        %v13150 = vmul.f32 %v12682, %v13138
        %v13151 = vmul.f32 %v12683, %v13139
        %v13152 = vmul.f32 %v12684, %v13140
        %v13153 = vmul.f32 %v12685, %v13141
        %v13154 = vmul.f32 %v12686, %v13142
        %v13155 = vmul.f32 %v12687, %v13143
        %v13156 = vmul.f32 %v12688, %v13144
        %v13157 = vmul.f32 %v12689, %v13145
        %v13158 = vmul.f32 %v12690, %v13146
        %v13159 = vadd.f32 %v13147, %v13148
        %v13160 = vadd.f32 %v13159, %v13149
        %v13161 = vadd.f32 %v13160, %v13150
        %v13162 = vadd.f32 %v13161, %v13151
        %v13163 = vadd.f32 %v13162, %v13152
        %v13164 = vadd.f32 %v13163, %v13153
        %v13165 = vadd.f32 %v13164, %v13154
        %v13166 = vadd.f32 %v13165, %v13155
        %v13167 = vadd.f32 %v13166, %v13156
        %v13168 = vadd.f32 %v13167, %v13157
        %v13169 = vadd.f32 %v13168, %v13158
        %13170 = vadd.xlane.f32.xlu0 %v13169
        %v13171 = vpop.xlane.xlu0 %13170
        %v13172 = vrot.slane %v13171, 4
        %v13173 = vadd.f32 %v13171, %v13172
        %v13174 = vrot.slane %v13173, 2
        %v13175 = vadd.f32 %v13173, %v13174
        %v13176 = vrot.slane %v13175, 1
        %v13177 = vadd.f32 %v13175, %v13176
        %s13178 = vtos %v13177
        %vm13179 = vcmp.eq.s32.totalorder %v12692, 9
        %v13180 = vstv %s13178
        %v13181 = vsel %vm13179, %v13180, 0.0
        %v13182 = vadd.f32 %v13133, %v13181
        %v13184 = vlaneseq
        %v13185 = vshrl.u32 %v13184, 7
        %v13186 = vsub.s32 0, %v13185
        %v13187 = vrot.slane %v13182, %v13186
        %13189 = vst [vmem:[%s279] sm:$0xff] %v13187
        %p13190 = scmp.lt.s32.totalorder %s19, 1
        %s13191 = scalar_select %p13190, %s19, 1
        %s13192 = smul.addr %s13191, 8
        %s13193 = scalar_lea.vmem %s5, %s13192
        // Predicated region
        $region57: #{my_model_forward.1} parent=39 // pred_check
          %p13194 = pneg %p147
        $region58: #{my_model_forward.1} parent=39 // pred_check_branch
          %13196 = sbr.rel (%p13194) target = $region60
        $region59: #{my_model_forward.1} parent=39 // pred_region
          _
        $region60: #{my_model_forward.1} parent=39 // pred_fallthru
          _
      $region40: #{my_model_forward.1} parent=5 // pred_fallthru
        _
      %p13197 = scmp.le.s32.totalorder 2, %s14
      // Predicated region
      $region61: #{my_model_forward.1} parent=5 // pred_check
        %p13198 = pneg %p13197
      $region62: #{my_model_forward.1} parent=5 // pred_check_branch
        %13200 = sbr.rel (%p13198) target = $region64
      $region63: #{my_model_forward.1} parent=5 // pred_region
        %s13201 = ssub.s32 %s14, 2
        // Predicated region
        $region65: #{my_model_forward.1} parent=63 // pred_check
          %p13202 = pneg %p153
        $region66: #{my_model_forward.1} parent=63 // pred_check_branch
          %13204 = sbr.rel (%p13202) target = $region68
        $region67: #{my_model_forward.1} parent=63 // pred_region
          %p13205 = scmp.lt.s32.totalorder %s20, 1
          %s13206 = scalar_select %p13205, %s20, 1
          %s13207 = smul.addr %s13206, 8
          %s13208 = scalar_lea.vmem %s5, %s13207
        $region68: #{my_model_forward.1} parent=63 // pred_fallthru
          _
      $region64: #{my_model_forward.1} parent=5 // pred_fallthru
        _
    $region6: #{my_model_forward.1} parent=1 // loop_footer
      %s18 = sadd.s32 1, %s14
    $region7: #{my_model_forward.1} parent=1 // loop_footer_branch
      %13 = sbr.rel target = $region3
    $region8: #{my_model_forward.1} parent=1 // loop_exit
      _
    %13209 = vsyncpa [#allocation3], 1
    %s13210 = scalar_lea.sflag [#allocation3], 1
    %13211 = vsyncpa %s13210, 1
    %13212 = vsyncpa [#allocation5], 1
    %13213 = vsyncpa [#allocation8], 1

</llo_original>
